<compile_context>
chip_gen: v7x
topology: tpu7x:2x2x1
jax: 0.10.0
libtpu: 0.0.40
codegen_flags: <defaults>
</compile_context>

<pallas_src>
import functools

import jax
import jax.numpy as jnp
from jax.experimental import pallas as pl
from jax.experimental.pallas import tpu as pltpu


_VMEM_LIMIT = 64 * 1024 * 1024
_SINGLE_BUFFER_WEIGHTS = True   # flipped to False in __main__ if Buffered(1) unsupported


# --------------------------------- helpers ----------------------------------


def _cparams(sem):
    return pltpu.CompilerParams(dimension_semantics=sem,
                                vmem_limit_bytes=_VMEM_LIMIT)


def _round_up(x, m):
    return ((x + m - 1) // m) * m


def _pick_row_tile(m, target=256):
    """Largest multiple-of-8 divisor of m that is <= target (or m if m <= target)."""
    if m <= target:
        return m
    for t in range(target, 7, -8):
        if m % t == 0:
            return t
    return m


def _pick_col_tile(n, target=1024):
    """Largest multiple-of-128 divisor of n <= target (or full n)."""
    if n <= target:
        return n
    for t in range(target, 127, -128):
        if n % t == 0:
            return t
    return n


def _choose_seq_pad(l, b, target=256):
    """Pad the sequence length (multiple of 8) so B*Lp admits a decent row tile."""
    base = _round_up(l, 8)
    if b * base <= target:
        return base
    best_key, best_lp = None, base
    for cand in range(base, base + 72, 8):
        tm = _pick_row_tile(b * cand, target)
        key = ((b * cand) // tm, cand)          # minimise grid steps, then padding
        if best_key is None or key < best_key:
            best_key, best_lp = key, cand
    return best_lp


def _const_spec(shape):
    """BlockSpec for a grid-invariant operand (constant index_map, single buffer)."""
    index_map = lambda *args: (0,) * len(shape)
    if _SINGLE_BUFFER_WEIGHTS:
        return pl.BlockSpec(shape, index_map, pipeline_mode=pl.Buffered(1))
    return pl.BlockSpec(shape, index_map)


# ------------------------------ Pallas kernels -------------------------------


def _fused_linear_kernel(*refs, has_ln, has_res, activation):
    """[optional LN prologue] -> x @ W + b -> [optional QuickGELU] -> [optional +res]."""
    it = iter(refs)
    x_ref = next(it)
    if has_ln:
        g_ref = next(it)
        bln_ref = next(it)
    w_ref = next(it)
    b_ref = next(it)
    r_ref = next(it) if has_res else None
    o_ref = next(it)

    x = x_ref[...].astype(jnp.float32)
    if has_ln:
        mu = jnp.mean(x, axis=-1, keepdims=True)
        xc = x - mu
        var = jnp.mean(xc * xc, axis=-1, keepdims=True)
        x = xc * jax.lax.rsqrt(var + 1e-5) * g_ref[...] + bln_ref[...]
    y = jnp.dot(x.astype(jnp.bfloat16), w_ref[...],
                preferred_element_type=jnp.float32)
    y = y + b_ref[...]
    if activation == "quickgelu":
        y = y * jax.nn.sigmoid(1.702 * y)
    if has_res:
        y = y + r_ref[...].astype(jnp.float32)
    o_ref[...] = y.astype(o_ref.dtype)


def fused_linear(x, w, b, *, gamma=None, beta=None, residual=None,
                 activation="none", out_dtype=jnp.bfloat16):
    """y = [LN](x) @ w + b (+ act) (+ residual).  w is (K, N) pre-cast to bf16."""
    M, K = x.shape
    N = w.shape[1]
    tm = _pick_row_tile(M)
    has_ln = gamma is not None
    has_res = residual is not None

    in_specs = [pl.BlockSpec((tm, K), lambda i: (i, 0))]
    args = [x]
    if has_ln:
        in_specs += [_const_spec((1, K)), _const_spec((1, K))]
        args += [gamma.reshape(1, K), beta.reshape(1, K)]
    in_specs += [_const_spec((K, N)), _const_spec((1, N))]
    args += [w, b.reshape(1, N)]
    if has_res:
        in_specs.append(pl.BlockSpec((tm, N), lambda i: (i, 0)))
        args.append(residual)

    return pl.pallas_call(
        functools.partial(_fused_linear_kernel, has_ln=has_ln, has_res=has_res,
                          activation=activation),
        out_shape=jax.ShapeDtypeStruct((M, N), out_dtype),
        grid=(M // tm,),
        in_specs=in_specs,
        out_specs=pl.BlockSpec((tm, N), lambda i: (i, 0)),
        compiler_params=_cparams(("parallel",)),
    )(*args)


def _mlp_kernel(x_ref, g_ref, bln_ref, wfc_ref, bfc_ref, wpj_ref, bpj_ref,
                o_ref, acc_ref, xn_ref):
    """ln2 -> fc -> QuickGELU -> proj -> +residual; hidden dim tiled over grid axis 1."""
    j = pl.program_id(1)

    @pl.when(j == 0)
    def _():
        x = x_ref[...].astype(jnp.float32)
        mu = jnp.mean(x, axis=-1, keepdims=True)
        xc = x - mu
        var = jnp.mean(xc * xc, axis=-1, keepdims=True)
        xn = xc * jax.lax.rsqrt(var + 1e-5) * g_ref[...] + bln_ref[...]
        xn_ref[...] = xn.astype(jnp.bfloat16)
        acc_ref[...] = jnp.zeros_like(acc_ref)

    h = jnp.dot(xn_ref[...], wfc_ref[...], preferred_element_type=jnp.float32)
    h = h + bfc_ref[...]
    h = h * jax.nn.sigmoid(1.702 * h)                     # QuickGELU
    acc_ref[...] += jnp.dot(h.astype(jnp.bfloat16), wpj_ref[...],
                            preferred_element_type=jnp.float32)

    @pl.when(j == pl.num_programs(1) - 1)
    def _():
        y = acc_ref[...] + bpj_ref[...] + x_ref[...].astype(jnp.float32)  # pre-LN residual
        o_ref[...] = y.astype(o_ref.dtype)


def mlp_block(x, blk):
    M, D = x.shape
    H = blk["w_fc"].shape[1]
    tm = _pick_row_tile(M)
    th = _pick_col_tile(H)
    return pl.pallas_call(
        _mlp_kernel,
        out_shape=jax.ShapeDtypeStruct((M, D), jnp.bfloat16),
        grid=(M // tm, H // th),
        in_specs=[pl.BlockSpec((tm, D), lambda i, j: (i, 0)),
                  _const_spec((1, D)),
                  _const_spec((1, D)),
                  pl.BlockSpec((D, th), lambda i, j: (0, j)),
                  pl.BlockSpec((1, th), lambda i, j: (0, j)),
                  pl.BlockSpec((th, D), lambda i, j: (j, 0)),
                  _const_spec((1, D))],
        out_specs=pl.BlockSpec((tm, D), lambda i, j: (i, 0)),
        scratch_shapes=[pltpu.VMEM((tm, D), jnp.float32),
                        pltpu.VMEM((tm, D), jnp.bfloat16)],
        compiler_params=_cparams(("parallel", "arbitrary")),
    )(x, blk["ln2_g"].reshape(1, D), blk["ln2_b"].reshape(1, D),
      blk["w_fc"], blk["b_fc"].reshape(1, H),
      blk["w_proj"], blk["b_proj"].reshape(1, D))


def _lnpre_kernel(x_ref, pos_ref, g_ref, b_ref, o_ref):
    """(x + pos_emb) -> LayerNorm, row-tiled; output bf16."""
    x = x_ref[0].astype(jnp.float32) + pos_ref[...]
    mu = jnp.mean(x, axis=-1, keepdims=True)
    xc = x - mu
    var = jnp.mean(xc * xc, axis=-1, keepdims=True)
    o_ref[0] = (xc * jax.lax.rsqrt(var + 1e-5) * g_ref[...] + b_ref[...]
                ).astype(o_ref.dtype)


def ln_pre_posadd(x, pos, gamma, beta):
    B, Lp, D = x.shape
    ts = _pick_row_tile(Lp)
    return pl.pallas_call(
        _lnpre_kernel,
        out_shape=jax.ShapeDtypeStruct((B, Lp, D), jnp.bfloat16),
        grid=(B, Lp // ts),
        in_specs=[pl.BlockSpec((1, ts, D), lambda b, j: (b, j, 0)),
                  pl.BlockSpec((ts, D), lambda b, j: (j, 0)),
                  _const_spec((1, D)),
                  _const_spec((1, D))],
        out_specs=pl.BlockSpec((1, ts, D), lambda b, j: (b, j, 0)),
        compiler_params=_cparams(("parallel", "parallel")),
    )(x, pos, gamma.reshape(1, D), beta.reshape(1, D))


def _attention_kernel(qkv_ref, wo_ref, bo_ref, res_ref, o_ref, ho_ref, *,
                      heads, head_dim, scale, l_real):
    """All heads of one batch element; per-head results written straight into a bf16
    VMEM scratch slice; fused out-projection + bias + residual; padded keys masked."""
    D = heads * head_dim
    Lp = qkv_ref.shape[1]
    if l_real < Lp:
        key_idx = jax.lax.broadcasted_iota(jnp.int32, (1, Lp), 1)
        key_bias = jnp.where(key_idx < l_real, 0.0, -1e30).astype(jnp.float32)
    else:
        key_bias = None

    for h in range(heads):                        # static loop: one head live at a time
        q = qkv_ref[0, :, h * head_dim:(h + 1) * head_dim]
        k = qkv_ref[0, :, D + h * head_dim:D + (h + 1) * head_dim]
        v = qkv_ref[0, :, 2 * D + h * head_dim:2 * D + (h + 1) * head_dim]
        q = (q.astype(jnp.float32) * scale).astype(jnp.bfloat16)   # fold scale into q
        s = jax.lax.dot_general(q, k, (((1,), (1,)), ((), ())),
                                preferred_element_type=jnp.float32)
        if key_bias is not None:
            s = s + key_bias
        s = s - jnp.max(s, axis=-1, keepdims=True)
        p = jnp.exp(s)
        p = p * pl.reciprocal(jnp.sum(p, axis=-1, keepdims=True), approx=True)
        pv = jnp.dot(p.astype(jnp.bfloat16), v, preferred_element_type=jnp.float32)
        ho_ref[:, h * head_dim:(h + 1) * head_dim] = pv.astype(jnp.bfloat16)

    out = jnp.dot(ho_ref[...], wo_ref[...], preferred_element_type=jnp.float32)
    out = out + bo_ref[...] + res_ref[0].astype(jnp.float32)
    o_ref[0] = out.astype(o_ref.dtype)


def attention(qkv, w_out, b_out, residual, *, heads, head_dim, l_real):
    B, Lp, threeD = qkv.shape
    D = heads * head_dim
    return pl.pallas_call(
        functools.partial(_attention_kernel, heads=heads, head_dim=head_dim,
                          scale=head_dim ** (-0.5), l_real=l_real),
        out_shape=jax.ShapeDtypeStruct((B, Lp, D), jnp.bfloat16),
        grid=(B,),
        in_specs=[pl.BlockSpec((1, Lp, threeD), lambda b: (b, 0, 0)),
                  _const_spec((D, D)),
                  _const_spec((1, D)),
                  pl.BlockSpec((1, Lp, D), lambda b: (b, 0, 0))],
        out_specs=pl.BlockSpec((1, Lp, D), lambda b: (b, 0, 0)),
        scratch_shapes=[pltpu.VMEM((Lp, D), jnp.bfloat16)],
        compiler_params=_cparams(("parallel",)),
    )(qkv, w_out, b_out.reshape(1, D), residual)


# ------------------------- parameters (deterministic) -----------------------


def init_params(key, *, image_resolution, layers, width, patch_size, embed_dim, in_ch=3):
    g = image_resolution // patch_size
    seq = g * g + 1
    keys = iter(jax.random.split(key, 4 + 4 * layers))

    scale = width ** (-0.5)
    proj_std = scale * (2 * layers) ** (-0.5)
    attn_std = scale
    fc_std = (2 * width) ** (-0.5)

    # conv1 as im2col weight matrix, pre-transposed to (K, width), K padded to 128, bf16.
    kin = in_ch * patch_size * patch_size
    kpad = _round_up(kin, 128)
    conv_w = jax.random.normal(next(keys), (width, in_ch, patch_size, patch_size),
                               jnp.float32) * 0.02
    conv_mat = conv_w.transpose(1, 2, 3, 0).reshape(kin, width)
    conv_mat = jnp.pad(conv_mat, ((0, kpad - kin), (0, 0)))

    p = {
        "conv_mat": conv_mat.astype(jnp.bfloat16),
        "class_emb": jax.random.normal(next(keys), (width,), jnp.float32) * scale,
        "pos_emb": jax.random.normal(next(keys), (seq, width), jnp.float32) * 0.01,
        "ln_pre_g": jnp.ones((width,), jnp.float32),
        "ln_pre_b": jnp.zeros((width,), jnp.float32),
        "ln_post_g": jnp.ones((width,), jnp.float32),
        "ln_post_b": jnp.zeros((width,), jnp.float32),
        "proj": (jax.random.normal(next(keys), (width, embed_dim), jnp.float32)
                 * scale).astype(jnp.bfloat16),
        "blocks": [],
    }
    for _ in range(layers):
        # generated in PyTorch (out, in) layout, transposed + cast to bf16 ONCE here.
        w_qkv = jax.random.normal(next(keys), (3 * width, width), jnp.float32) * attn_std
        w_out = jax.random.normal(next(keys), (width, width), jnp.float32) * proj_std
        w_fc = jax.random.normal(next(keys), (4 * width, width), jnp.float32) * fc_std
        w_pj = jax.random.normal(next(keys), (width, 4 * width), jnp.float32) * proj_std
        p["blocks"].append({
            "ln1_g": jnp.ones((width,), jnp.float32),
            "ln1_b": jnp.zeros((width,), jnp.float32),
            "w_qkv": w_qkv.T.astype(jnp.bfloat16),     # (D, 3D)
            "b_qkv": jnp.zeros((3 * width,), jnp.float32),
            "w_out": w_out.T.astype(jnp.bfloat16),     # (D, D)
            "b_out": jnp.zeros((width,), jnp.float32),
            "ln2_g": jnp.ones((width,), jnp.float32),
            "ln2_b": jnp.zeros((width,), jnp.float32),
            "w_fc": w_fc.T.astype(jnp.bfloat16),       # (D, 4D)
            "b_fc": jnp.zeros((4 * width,), jnp.float32),
            "w_proj": w_pj.T.astype(jnp.bfloat16),     # (4D, D)
            "b_proj": jnp.zeros((width,), jnp.float32),
        })
    return p


# ------------------------------- forward pass --------------------------------


def encoder_block(x2, blk, *, B, Lp, L, heads):
    """x2: (B*Lp, D) bf16.  Residual attention block (pre-LN, QuickGELU MLP)."""
    D = x2.shape[1]
    Dh = D // heads

    # x = x + out_proj(attn(ln_1(x)))   [ln1 fused into QKV; out-proj + residual fused
    #                                    into the attention kernel]
    qkv = fused_linear(x2, blk["w_qkv"], blk["b_qkv"],
                       gamma=blk["ln1_g"], beta=blk["ln1_b"])          # (B*Lp, 3D) bf16
    x2 = attention(qkv.reshape(B, Lp, 3 * D), blk["w_out"], blk["b_out"],
                   x2.reshape(B, Lp, D), heads=heads, head_dim=Dh, l_real=L)
    x2 = x2.reshape(B * Lp, D)

    # x = x + mlp(ln_2(x))   [hidden-dim-tiled single kernel; hidden never hits HBM]
    return mlp_block(x2, blk)


def clip_image_encoder_forward(params, image, *, patch_size, heads):
    B, C, H, W = image.shape
    g = H // patch_size
    D = params["class_emb"].shape[0]
    kin = C * patch_size * patch_size
    kpad = params["conv_mat"].shape[0]

    # conv1 (stride == kernel == patch_size, bias=False) as im2col GEMM; K padded to 128.
    x = image.reshape(B, C, g, patch_size, g, patch_size)
    x = x.transpose(0, 2, 4, 1, 3, 5).reshape(B * g * g, kin)
    x = jnp.pad(x, ((0, 0), (0, kpad - kin)))
    patches = fused_linear(x, params["conv_mat"], jnp.zeros((D,), jnp.float32))
    patches = patches.reshape(B, g * g, D)                              # bf16

    # prepend class embedding; positional-embedding add is fused into ln_pre.
    cls = jnp.broadcast_to(params["class_emb"][None, None, :].astype(jnp.bfloat16),
                           (B, 1, D))
    x = jnp.concatenate([cls, patches], axis=1)                         # (B, L, D) bf16
    L = x.shape[1]

    # pad sequence (padded rows are inert; padded keys masked in attention).
    Lp = _choose_seq_pad(L, B)
    if Lp != L:
        x = jnp.pad(x, ((0, 0), (0, Lp - L), (0, 0)))
    pos = jnp.pad(params["pos_emb"], ((0, Lp - L), (0, 0)))

    x2 = ln_pre_posadd(x, pos, params["ln_pre_g"], params["ln_pre_b"])
    x2 = x2.reshape(B * Lp, D)

    # transformer (CLIP permutes to LND for nn.MultiheadAttention; math identical here).
    for blk in params["blocks"]:
        x2 = encoder_block(x2, blk, B=B, Lp=Lp, L=L, heads=heads)

    # ln_post on CLS token fused into the output projection (x @ proj, no bias).
    cls_tok = x2.reshape(B, Lp, D)[:, 0, :]
    return fused_linear(cls_tok, params["proj"],
                        jnp.zeros((params["proj"].shape[1],), jnp.float32),
                        gamma=params["ln_post_g"], beta=params["ln_post_b"],
                        out_dtype=jnp.float32)


# ----------------------------------- main ------------------------------------


if __name__ == "__main__":
    image_resolution = 16
    vision_patch_size = 8
    vision_layers = 2
    vision_width = 128
    vision_embed_dim = 64
    vision_heads = vision_width // 64

    key = jax.random.PRNGKey(0)
    pkey, xkey = jax.random.split(key)

    params = init_params(
        pkey,
        image_resolution=image_resolution,
        layers=vision_layers,
        width=vision_width,
        patch_size=vision_patch_size,
        embed_dim=vision_embed_dim,
    )
    image = jax.random.normal(xkey, (2, 3, image_resolution, image_resolution),
                              jnp.float32)

    def run_once():
        fwd = jax.jit(functools.partial(clip_image_encoder_forward,
                                        patch_size=vision_patch_size,
                                        heads=vision_heads))
        return jax.block_until_ready(fwd(params, image))

    try:
        out = run_once()
    except Exception:
        # pl.Buffered(1) single-buffering of grid-invariant weight blocks is a pure
        # VMEM optimization; fall back to default double-buffering if this build of
        # JAX/Mosaic rejects it, and retrace.
        _SINGLE_BUFFER_WEIGHTS = False
        out = run_once()

    assert out.shape == (2, vision_embed_dim), out.shape
    assert bool(jnp.all(jnp.isfinite(out)))
    print("KERNEL_OK")
</pallas_src>

<mosaic_0001>
module attributes {stable_mosaic.version = 11 : i64} {
  func.func @_fused_linear_kernel(%arg0: i32, %arg1: memref<8x256xf32, #tpu.memory_space<vmem>>, %arg2: memref<256x128xbf16, #tpu.memory_space<vmem>>, %arg3: memref<1x128xf32, #tpu.memory_space<vmem>>, %arg4: memref<8x128xbf16, #tpu.memory_space<vmem>>) attributes {dimension_semantics = [#tpu.dimension_semantics<parallel>], iteration_bounds = array<i64: 1>, scalar_prefetch = 0 : i64, scratch_operands = 0 : i64, tpu.core_type = #tpu.core_type<tc>, window_params = [{transform_indices = @transform_0, window_bounds = array<i64: 8, 256>}, {pipeline_mode = #tpu.pipeline_mode<synchronous>, transform_indices = @transform_1, window_bounds = array<i64: 256, 128>}, {pipeline_mode = #tpu.pipeline_mode<synchronous>, transform_indices = @transform_2, window_bounds = array<i64: 1, 128>}, {transform_indices = @transform_3, window_bounds = array<i64: 8, 128>}]} {
    %c0 = arith.constant 0 : index
    %c0_0 = arith.constant 0 : index
    %0 = vector.load %arg1[%c0, %c0_0] : memref<8x256xf32, #tpu.memory_space<vmem>>, vector<8x256xf32>
    %1 = arith.truncf %0 : vector<8x256xf32> to vector<8x256xbf16>
    %c0_1 = arith.constant 0 : index
    %c0_2 = arith.constant 0 : index
    %2 = vector.load %arg2[%c0_1, %c0_2] : memref<256x128xbf16, #tpu.memory_space<vmem>>, vector<256x128xbf16>
    %cst = arith.constant dense<0.000000e+00> : vector<8x128xf32>
    %3 = tpu.matmul %1, %2, %cst {dimension_numbers = #tpu.dot_dimension_numbers<[1], [0], [0], [1], [0, 0, 1, 1], [], []>} : vector<8x256xbf16>, vector<256x128xbf16>, vector<8x128xf32> -> vector<8x128xf32>
    %c0_3 = arith.constant 0 : index
    %c0_4 = arith.constant 0 : index
    %4 = vector.load %arg3[%c0_3, %c0_4] : memref<1x128xf32, #tpu.memory_space<vmem>>, vector<1x128xf32>
    %5 = vector.broadcast %4 : vector<1x128xf32> to vector<8x128xf32>
    %6 = arith.addf %3, %5 : vector<8x128xf32>
    %7 = arith.truncf %6 : vector<8x128xf32> to vector<8x128xbf16>
    %c0_5 = arith.constant 0 : index
    %c0_6 = arith.constant 0 : index
    %8 = vector.load %arg4[%c0_5, %c0_6] : memref<8x128xbf16, #tpu.memory_space<vmem>>, vector<8x128xbf16>
    tpu.vector_store %arg4[%c0_5, %c0_6], %7 {strides = array<i32>} : memref<8x128xbf16, #tpu.memory_space<vmem>>, vector<8x128xbf16>,
    return
  }
  func.func @transform_0(%arg0: i32) -> (i32, i32) {
    %c0_i32 = arith.constant 0 : i32
    %c0_i32_0 = arith.constant 0 : i32
    return %arg0, %c0_i32 : i32, i32
  }
  func.func @transform_1(%arg0: i32) -> (i32, i32) {
    %c0_i32 = arith.constant 0 : i32
    %c0_i32_0 = arith.constant 0 : i32
    %c0_i32_1 = arith.constant 0 : i32
    return %c0_i32, %c0_i32_0 : i32, i32
  }
  func.func @transform_2(%arg0: i32) -> (i32, i32) {
    %c0_i32 = arith.constant 0 : i32
    %c0_i32_0 = arith.constant 0 : i32
    %c0_i32_1 = arith.constant 0 : i32
    return %c0_i32, %c0_i32_0 : i32, i32
  }
  func.func @transform_3(%arg0: i32) -> (i32, i32) {
    %c0_i32 = arith.constant 0 : i32
    %c0_i32_0 = arith.constant 0 : i32
    return %arg0, %c0_i32 : i32, i32
  }
}

module attributes {stable_mosaic.version = 11 : i64} {
  func.func @_lnpre_kernel(%arg0: i32, %arg1: i32, %arg2: memref<1x8x128xbf16, #tpu.memory_space<vmem>>, %arg3: memref<8x128xf32, #tpu.memory_space<vmem>>, %arg4: memref<1x128xf32, #tpu.memory_space<vmem>>, %arg5: memref<1x128xf32, #tpu.memory_space<vmem>>, %arg6: memref<1x8x128xbf16, #tpu.memory_space<vmem>>) attributes {dimension_semantics = [#tpu.dimension_semantics<parallel>, #tpu.dimension_semantics<parallel>], iteration_bounds = array<i64: 2, 1>, scalar_prefetch = 0 : i64, scratch_operands = 0 : i64, tpu.core_type = #tpu.core_type<tc>, window_params = [{transform_indices = @transform_0, window_bounds = array<i64: 1, 8, 128>}, {transform_indices = @transform_1, window_bounds = array<i64: 8, 128>}, {pipeline_mode = #tpu.pipeline_mode<synchronous>, transform_indices = @transform_2, window_bounds = array<i64: 1, 128>}, {pipeline_mode = #tpu.pipeline_mode<synchronous>, transform_indices = @transform_3, window_bounds = array<i64: 1, 128>}, {transform_indices = @transform_4, window_bounds = array<i64: 1, 8, 128>}]} {
    %c0 = arith.constant 0 : index
    %c0_0 = arith.constant 0 : index
    %c0_1 = arith.constant 0 : index
    %0 = vector.load %arg2[%c0, %c0_0, %c0_1] : memref<1x8x128xbf16, #tpu.memory_space<vmem>>, vector<1x8x128xbf16>
    %1 = vector.shape_cast %0 : vector<1x8x128xbf16> to vector<8x128xbf16>
    %2 = arith.extf %1 : vector<8x128xbf16> to vector<8x128xf32>
    %c0_2 = arith.constant 0 : index
    %c0_3 = arith.constant 0 : index
    %3 = vector.load %arg3[%c0_2, %c0_3] : memref<8x128xf32, #tpu.memory_space<vmem>>, vector<8x128xf32>
    %4 = arith.addf %2, %3 : vector<8x128xf32>
    %cst = arith.constant dense<0.000000e+00> : vector<8xf32>
    %5 = vector.multi_reduction <add>, %4, %cst [1] : vector<8x128xf32> to vector<8xf32>
    %6 = vector.shape_cast %5 : vector<8xf32> to vector<8x1xf32>
    %cst_4 = arith.constant 1.280000e+02 : f32
    %7 = vector.broadcast %cst_4 : f32 to vector<8x1xf32>
    %8 = arith.divf %6, %7 : vector<8x1xf32>
    %9 = vector.broadcast %8 : vector<8x1xf32> to vector<8x128xf32>
    %10 = arith.subf %4, %9 : vector<8x128xf32>
    %11 = arith.mulf %10, %10 : vector<8x128xf32>
    %cst_5 = arith.constant dense<0.000000e+00> : vector<8xf32>
    %12 = vector.multi_reduction <add>, %11, %cst_5 [1] : vector<8x128xf32> to vector<8xf32>
    %13 = vector.shape_cast %12 : vector<8xf32> to vector<8x1xf32>
    %cst_6 = arith.constant 1.280000e+02 : f32
    %14 = vector.broadcast %cst_6 : f32 to vector<8x1xf32>
    %15 = arith.divf %13, %14 : vector<8x1xf32>
    %cst_7 = arith.constant 9.99999974E-6 : f32
    %16 = vector.broadcast %cst_7 : f32 to vector<8x1xf32>
    %17 = arith.addf %15, %16 : vector<8x1xf32>
    %18 = math.rsqrt %17 : vector<8x1xf32>
    %19 = vector.broadcast %18 : vector<8x1xf32> to vector<8x128xf32>
    %20 = arith.mulf %10, %19 : vector<8x128xf32>
    %c0_8 = arith.constant 0 : index
    %c0_9 = arith.constant 0 : index
    %21 = vector.load %arg4[%c0_8, %c0_9] : memref<1x128xf32, #tpu.memory_space<vmem>>, vector<1x128xf32>
    %22 = vector.broadcast %21 : vector<1x128xf32> to vector<8x128xf32>
    %23 = arith.mulf %20, %22 : vector<8x128xf32>
    %c0_10 = arith.constant 0 : index
    %c0_11 = arith.constant 0 : index
    %24 = vector.load %arg5[%c0_10, %c0_11] : memref<1x128xf32, #tpu.memory_space<vmem>>, vector<1x128xf32>
    %25 = vector.broadcast %24 : vector<1x128xf32> to vector<8x128xf32>
    %26 = arith.addf %23, %25 : vector<8x128xf32>
    %27 = arith.truncf %26 : vector<8x128xf32> to vector<8x128xbf16>
    %c0_12 = arith.constant 0 : index
    %c0_13 = arith.constant 0 : index
    %c0_14 = arith.constant 0 : index
    %28 = vector.load %arg6[%c0_12, %c0_13, %c0_14] : memref<1x8x128xbf16, #tpu.memory_space<vmem>>, vector<1x8x128xbf16>
    %29 = vector.shape_cast %28 : vector<1x8x128xbf16> to vector<8x128xbf16>
    %30 = vector.shape_cast %27 : vector<8x128xbf16> to vector<1x8x128xbf16>
    tpu.vector_store %arg6[%c0_12, %c0_13, %c0_14], %30 {strides = array<i32>} : memref<1x8x128xbf16, #tpu.memory_space<vmem>>, vector<1x8x128xbf16>,
    return
  }
  func.func @transform_0(%arg0: i32, %arg1: i32) -> (i32, i32, i32) {
    %c0_i32 = arith.constant 0 : i32
    %c0_i32_0 = arith.constant 0 : i32
    return %arg0, %arg1, %c0_i32 : i32, i32, i32
  }
  func.func @transform_1(%arg0: i32, %arg1: i32) -> (i32, i32) {
    %c0_i32 = arith.constant 0 : i32
    %c0_i32_0 = arith.constant 0 : i32
    return %arg1, %c0_i32 : i32, i32
  }
  func.func @transform_2(%arg0: i32, %arg1: i32) -> (i32, i32) {
    %c0_i32 = arith.constant 0 : i32
    %c0_i32_0 = arith.constant 0 : i32
    %c0_i32_1 = arith.constant 0 : i32
    return %c0_i32, %c0_i32_0 : i32, i32
  }
  func.func @transform_3(%arg0: i32, %arg1: i32) -> (i32, i32) {
    %c0_i32 = arith.constant 0 : i32
    %c0_i32_0 = arith.constant 0 : i32
    %c0_i32_1 = arith.constant 0 : i32
    return %c0_i32, %c0_i32_0 : i32, i32
  }
  func.func @transform_4(%arg0: i32, %arg1: i32) -> (i32, i32, i32) {
    %c0_i32 = arith.constant 0 : i32
    %c0_i32_0 = arith.constant 0 : i32
    return %arg0, %arg1, %c0_i32 : i32, i32, i32
  }
}

module attributes {stable_mosaic.version = 11 : i64} {
  func.func @_fused_linear_kernel(%arg0: i32, %arg1: memref<16x128xbf16, #tpu.memory_space<vmem>>, %arg2: memref<1x128xf32, #tpu.memory_space<vmem>>, %arg3: memref<1x128xf32, #tpu.memory_space<vmem>>, %arg4: memref<128x384xbf16, #tpu.memory_space<vmem>>, %arg5: memref<1x384xf32, #tpu.memory_space<vmem>>, %arg6: memref<16x384xbf16, #tpu.memory_space<vmem>>) attributes {dimension_semantics = [#tpu.dimension_semantics<parallel>], iteration_bounds = array<i64: 1>, scalar_prefetch = 0 : i64, scratch_operands = 0 : i64, tpu.core_type = #tpu.core_type<tc>, window_params = [{transform_indices = @transform_0, window_bounds = array<i64: 16, 128>}, {pipeline_mode = #tpu.pipeline_mode<synchronous>, transform_indices = @transform_1, window_bounds = array<i64: 1, 128>}, {pipeline_mode = #tpu.pipeline_mode<synchronous>, transform_indices = @transform_2, window_bounds = array<i64: 1, 128>}, {pipeline_mode = #tpu.pipeline_mode<synchronous>, transform_indices = @transform_3, window_bounds = array<i64: 128, 384>}, {pipeline_mode = #tpu.pipeline_mode<synchronous>, transform_indices = @transform_4, window_bounds = array<i64: 1, 384>}, {transform_indices = @transform_5, window_bounds = array<i64: 16, 384>}]} {
    %c0 = arith.constant 0 : index
    %c0_0 = arith.constant 0 : index
    %0 = vector.load %arg1[%c0, %c0_0] : memref<16x128xbf16, #tpu.memory_space<vmem>>, vector<16x128xbf16>
    %1 = arith.extf %0 : vector<16x128xbf16> to vector<16x128xf32>
    %cst = arith.constant dense<0.000000e+00> : vector<16xf32>
    %2 = vector.multi_reduction <add>, %1, %cst [1] : vector<16x128xf32> to vector<16xf32>
    %3 = vector.shape_cast %2 : vector<16xf32> to vector<16x1xf32>
    %cst_1 = arith.constant 1.280000e+02 : f32
    %4 = vector.broadcast %cst_1 : f32 to vector<16x1xf32>
    %5 = arith.divf %3, %4 : vector<16x1xf32>
    %6 = vector.broadcast %5 : vector<16x1xf32> to vector<16x128xf32>
    %7 = arith.subf %1, %6 : vector<16x128xf32>
    %8 = arith.mulf %7, %7 : vector<16x128xf32>
    %cst_2 = arith.constant dense<0.000000e+00> : vector<16xf32>
    %9 = vector.multi_reduction <add>, %8, %cst_2 [1] : vector<16x128xf32> to vector<16xf32>
    %10 = vector.shape_cast %9 : vector<16xf32> to vector<16x1xf32>
    %cst_3 = arith.constant 1.280000e+02 : f32
    %11 = vector.broadcast %cst_3 : f32 to vector<16x1xf32>
    %12 = arith.divf %10, %11 : vector<16x1xf32>
    %cst_4 = arith.constant 9.99999974E-6 : f32
    %13 = vector.broadcast %cst_4 : f32 to vector<16x1xf32>
    %14 = arith.addf %12, %13 : vector<16x1xf32>
    %15 = math.rsqrt %14 : vector<16x1xf32>
    %16 = vector.broadcast %15 : vector<16x1xf32> to vector<16x128xf32>
    %17 = arith.mulf %7, %16 : vector<16x128xf32>
    %c0_5 = arith.constant 0 : index
    %c0_6 = arith.constant 0 : index
    %18 = vector.load %arg2[%c0_5, %c0_6] : memref<1x128xf32, #tpu.memory_space<vmem>>, vector<1x128xf32>
    %19 = vector.broadcast %18 : vector<1x128xf32> to vector<16x128xf32>
    %20 = arith.mulf %17, %19 : vector<16x128xf32>
    %c0_7 = arith.constant 0 : index
    %c0_8 = arith.constant 0 : index
    %21 = vector.load %arg3[%c0_7, %c0_8] : memref<1x128xf32, #tpu.memory_space<vmem>>, vector<1x128xf32>
    %22 = vector.broadcast %21 : vector<1x128xf32> to vector<16x128xf32>
    %23 = arith.addf %20, %22 : vector<16x128xf32>
    %24 = arith.truncf %23 : vector<16x128xf32> to vector<16x128xbf16>
    %c0_9 = arith.constant 0 : index
    %c0_10 = arith.constant 0 : index
    %25 = vector.load %arg4[%c0_9, %c0_10] : memref<128x384xbf16, #tpu.memory_space<vmem>>, vector<128x384xbf16>
    %cst_11 = arith.constant dense<0.000000e+00> : vector<16x384xf32>
    %26 = tpu.matmul %24, %25, %cst_11 {dimension_numbers = #tpu.dot_dimension_numbers<[1], [0], [0], [1], [0, 0, 1, 1], [], []>} : vector<16x128xbf16>, vector<128x384xbf16>, vector<16x384xf32> -> vector<16x384xf32>
    %c0_12 = arith.constant 0 : index
    %c0_13 = arith.constant 0 : index
    %27 = vector.load %arg5[%c0_12, %c0_13] : memref<1x384xf32, #tpu.memory_space<vmem>>, vector<1x384xf32>
    %28 = vector.broadcast %27 : vector<1x384xf32> to vector<16x384xf32>
    %29 = arith.addf %26, %28 : vector<16x384xf32>
    %30 = arith.truncf %29 : vector<16x384xf32> to vector<16x384xbf16>
    %c0_14 = arith.constant 0 : index
    %c0_15 = arith.constant 0 : index
    %31 = vector.load %arg6[%c0_14, %c0_15] : memref<16x384xbf16, #tpu.memory_space<vmem>>, vector<16x384xbf16>
    tpu.vector_store %arg6[%c0_14, %c0_15], %30 {strides = array<i32>} : memref<16x384xbf16, #tpu.memory_space<vmem>>, vector<16x384xbf16>,
    return
  }
  func.func @transform_0(%arg0: i32) -> (i32, i32) {
    %c0_i32 = arith.constant 0 : i32
    %c0_i32_0 = arith.constant 0 : i32
    return %arg0, %c0_i32 : i32, i32
  }
  func.func @transform_1(%arg0: i32) -> (i32, i32) {
    %c0_i32 = arith.constant 0 : i32
    %c0_i32_0 = arith.constant 0 : i32
    %c0_i32_1 = arith.constant 0 : i32
    return %c0_i32, %c0_i32_0 : i32, i32
  }
  func.func @transform_2(%arg0: i32) -> (i32, i32) {
    %c0_i32 = arith.constant 0 : i32
    %c0_i32_0 = arith.constant 0 : i32
    %c0_i32_1 = arith.constant 0 : i32
    return %c0_i32, %c0_i32_0 : i32, i32
  }
  func.func @transform_3(%arg0: i32) -> (i32, i32) {
    %c0_i32 = arith.constant 0 : i32
    %c0_i32_0 = arith.constant 0 : i32
    %c0_i32_1 = arith.constant 0 : i32
    return %c0_i32, %c0_i32_0 : i32, i32
  }
  func.func @transform_4(%arg0: i32) -> (i32, i32) {
    %c0_i32 = arith.constant 0 : i32
    %c0_i32_0 = arith.constant 0 : i32
    %c0_i32_1 = arith.constant 0 : i32
    return %c0_i32, %c0_i32_0 : i32, i32
  }
  func.func @transform_5(%arg0: i32) -> (i32, i32) {
    %c0_i32 = arith.constant 0 : i32
    %c0_i32_0 = arith.constant 0 : i32
    return %arg0, %c0_i32 : i32, i32
  }
}

module attributes {stable_mosaic.version = 11 : i64} {
  func.func @_attention_kernel(%arg0: i32, %arg1: memref<1x8x384xbf16, #tpu.memory_space<vmem>>, %arg2: memref<128x128xbf16, #tpu.memory_space<vmem>>, %arg3: memref<1x128xf32, #tpu.memory_space<vmem>>, %arg4: memref<1x8x128xbf16, #tpu.memory_space<vmem>>, %arg5: memref<1x8x128xbf16, #tpu.memory_space<vmem>>, %arg6: memref<8x128xbf16, #tpu.memory_space<vmem>>) attributes {dimension_semantics = [#tpu.dimension_semantics<parallel>], iteration_bounds = array<i64: 2>, scalar_prefetch = 0 : i64, scratch_operands = 1 : i64, tpu.core_type = #tpu.core_type<tc>, window_params = [{transform_indices = @transform_0, window_bounds = array<i64: 1, 8, 384>}, {pipeline_mode = #tpu.pipeline_mode<synchronous>, transform_indices = @transform_1, window_bounds = array<i64: 128, 128>}, {pipeline_mode = #tpu.pipeline_mode<synchronous>, transform_indices = @transform_2, window_bounds = array<i64: 1, 128>}, {transform_indices = @transform_3, window_bounds = array<i64: 1, 8, 128>}, {transform_indices = @transform_4, window_bounds = array<i64: 1, 8, 128>}]} {
    %0 = tpu.iota {dimensions = array<i32: 1>} : vector<1x8xi32>
    %c5_i32 = arith.constant 5 : i32
    %1 = vector.broadcast %c5_i32 : i32 to vector<1x8xi32>
    %2 = arith.cmpi slt, %0, %1 : vector<1x8xi32>
    %cst = arith.constant 0.000000e+00 : f32
    %cst_0 = arith.constant -1.000000e+30 : f32
    %3 = vector.broadcast %cst : f32 to vector<1x8xf32>
    %4 = vector.broadcast %cst_0 : f32 to vector<1x8xf32>
    %5 = arith.select %2, %3, %4 : vector<1x8xi1>, vector<1x8xf32>
    %c0 = arith.constant 0 : index
    %c0_1 = arith.constant 0 : index
    %c0_2 = arith.constant 0 : index
    %6 = vector.load %arg1[%c0, %c0_1, %c0_2] : memref<1x8x384xbf16, #tpu.memory_space<vmem>>, vector<1x8x64xbf16>
    %7 = vector.shape_cast %6 : vector<1x8x64xbf16> to vector<8x64xbf16>
    %c0_3 = arith.constant 0 : index
    %c0_4 = arith.constant 0 : index
    %c128 = arith.constant 128 : index
    %8 = vector.load %arg1[%c0_3, %c0_4, %c128] : memref<1x8x384xbf16, #tpu.memory_space<vmem>>, vector<1x8x64xbf16>
    %9 = vector.shape_cast %8 : vector<1x8x64xbf16> to vector<8x64xbf16>
    %c0_5 = arith.constant 0 : index
    %c0_6 = arith.constant 0 : index
    %c256 = arith.constant 256 : index
    %10 = vector.load %arg1[%c0_5, %c0_6, %c256] : memref<1x8x384xbf16, #tpu.memory_space<vmem>>, vector<1x8x64xbf16>
    %11 = vector.shape_cast %10 : vector<1x8x64xbf16> to vector<8x64xbf16>
    %12 = arith.extf %7 : vector<8x64xbf16> to vector<8x64xf32>
    %cst_7 = arith.constant 1.250000e-01 : f32
    %13 = vector.broadcast %cst_7 : f32 to vector<8x64xf32>
    %14 = arith.mulf %12, %13 : vector<8x64xf32>
    %15 = arith.truncf %14 : vector<8x64xf32> to vector<8x64xbf16>
    %cst_8 = arith.constant dense<0.000000e+00> : vector<8x8xf32>
    %16 = tpu.matmul %15, %9, %cst_8 {dimension_numbers = #tpu.dot_dimension_numbers<[1], [1], [0], [0], [0, 0, 1, 0], [], []>} : vector<8x64xbf16>, vector<8x64xbf16>, vector<8x8xf32> -> vector<8x8xf32>
    %17 = vector.broadcast %5 : vector<1x8xf32> to vector<8x8xf32>
    %18 = arith.addf %16, %17 : vector<8x8xf32>
    %cst_9 = arith.constant dense<0xFF800000> : vector<8xf32>
    %19 = vector.multi_reduction <maximumf>, %18, %cst_9 [1] : vector<8x8xf32> to vector<8xf32>
    %20 = vector.shape_cast %19 : vector<8xf32> to vector<8x1xf32>
    %21 = vector.broadcast %20 : vector<8x1xf32> to vector<8x8xf32>
    %22 = arith.subf %18, %21 : vector<8x8xf32>
    %23 = math.exp %22 : vector<8x8xf32>
    %cst_10 = arith.constant dense<0.000000e+00> : vector<8xf32>
    %24 = vector.multi_reduction <add>, %23, %cst_10 [1] : vector<8x8xf32> to vector<8xf32>
    %25 = vector.shape_cast %24 : vector<8xf32> to vector<8x1xf32>
    %26 = tpu.reciprocal %25 {approx = true} : vector<8x1xf32> -> vector<8x1xf32>
    %27 = vector.broadcast %26 : vector<8x1xf32> to vector<8x8xf32>
    %28 = arith.mulf %23, %27 : vector<8x8xf32>
    %29 = arith.truncf %28 : vector<8x8xf32> to vector<8x8xbf16>
    %cst_11 = arith.constant dense<0.000000e+00> : vector<8x64xf32>
    %30 = tpu.matmul %29, %11, %cst_11 {dimension_numbers = #tpu.dot_dimension_numbers<[1], [0], [0], [1], [0, 0, 1, 1], [], []>} : vector<8x8xbf16>, vector<8x64xbf16>, vector<8x64xf32> -> vector<8x64xf32>
    %31 = arith.truncf %30 : vector<8x64xf32> to vector<8x64xbf16>
    %c0_12 = arith.constant 0 : index
    %c0_13 = arith.constant 0 : index
    %32 = vector.load %arg6[%c0_12, %c0_13] : memref<8x128xbf16, #tpu.memory_space<vmem>>, vector<8x64xbf16>
    tpu.vector_store %arg6[%c0_12, %c0_13], %31 {strides = array<i32>} : memref<8x128xbf16, #tpu.memory_space<vmem>>, vector<8x64xbf16>,
    %c0_14 = arith.constant 0 : index
    %c0_15 = arith.constant 0 : index
    %c64 = arith.constant 64 : index
    %33 = vector.load %arg1[%c0_14, %c0_15, %c64] : memref<1x8x384xbf16, #tpu.memory_space<vmem>>, vector<1x8x64xbf16>
    %34 = vector.shape_cast %33 : vector<1x8x64xbf16> to vector<8x64xbf16>
    %c0_16 = arith.constant 0 : index
    %c0_17 = arith.constant 0 : index
    %c192 = arith.constant 192 : index
    %35 = vector.load %arg1[%c0_16, %c0_17, %c192] : memref<1x8x384xbf16, #tpu.memory_space<vmem>>, vector<1x8x64xbf16>
    %36 = vector.shape_cast %35 : vector<1x8x64xbf16> to vector<8x64xbf16>
    %c0_18 = arith.constant 0 : index
    %c0_19 = arith.constant 0 : index
    %c320 = arith.constant 320 : index
    %37 = vector.load %arg1[%c0_18, %c0_19, %c320] : memref<1x8x384xbf16, #tpu.memory_space<vmem>>, vector<1x8x64xbf16>
    %38 = vector.shape_cast %37 : vector<1x8x64xbf16> to vector<8x64xbf16>
    %39 = arith.extf %34 : vector<8x64xbf16> to vector<8x64xf32>
    %cst_20 = arith.constant 1.250000e-01 : f32
    %40 = vector.broadcast %cst_20 : f32 to vector<8x64xf32>
    %41 = arith.mulf %39, %40 : vector<8x64xf32>
    %42 = arith.truncf %41 : vector<8x64xf32> to vector<8x64xbf16>
    %cst_21 = arith.constant dense<0.000000e+00> : vector<8x8xf32>
    %43 = tpu.matmul %42, %36, %cst_21 {dimension_numbers = #tpu.dot_dimension_numbers<[1], [1], [0], [0], [0, 0, 1, 0], [], []>} : vector<8x64xbf16>, vector<8x64xbf16>, vector<8x8xf32> -> vector<8x8xf32>
    %44 = vector.broadcast %5 : vector<1x8xf32> to vector<8x8xf32>
    %45 = arith.addf %43, %44 : vector<8x8xf32>
    %cst_22 = arith.constant dense<0xFF800000> : vector<8xf32>
    %46 = vector.multi_reduction <maximumf>, %45, %cst_22 [1] : vector<8x8xf32> to vector<8xf32>
    %47 = vector.shape_cast %46 : vector<8xf32> to vector<8x1xf32>
    %48 = vector.broadcast %47 : vector<8x1xf32> to vector<8x8xf32>
    %49 = arith.subf %45, %48 : vector<8x8xf32>
    %50 = math.exp %49 : vector<8x8xf32>
    %cst_23 = arith.constant dense<0.000000e+00> : vector<8xf32>
    %51 = vector.multi_reduction <add>, %50, %cst_23 [1] : vector<8x8xf32> to vector<8xf32>
    %52 = vector.shape_cast %51 : vector<8xf32> to vector<8x1xf32>
    %53 = tpu.reciprocal %52 {approx = true} : vector<8x1xf32> -> vector<8x1xf32>
    %54 = vector.broadcast %53 : vector<8x1xf32> to vector<8x8xf32>
    %55 = arith.mulf %50, %54 : vector<8x8xf32>
    %56 = arith.truncf %55 : vector<8x8xf32> to vector<8x8xbf16>
    %cst_24 = arith.constant dense<0.000000e+00> : vector<8x64xf32>
    %57 = tpu.matmul %56, %38, %cst_24 {dimension_numbers = #tpu.dot_dimension_numbers<[1], [0], [0], [1], [0, 0, 1, 1], [], []>} : vector<8x8xbf16>, vector<8x64xbf16>, vector<8x64xf32> -> vector<8x64xf32>
    %58 = arith.truncf %57 : vector<8x64xf32> to vector<8x64xbf16>
    %c0_25 = arith.constant 0 : index
    %c64_26 = arith.constant 64 : index
    %59 = vector.load %arg6[%c0_25, %c64_26] : memref<8x128xbf16, #tpu.memory_space<vmem>>, vector<8x64xbf16>
    tpu.vector_store %arg6[%c0_25, %c64_26], %58 {strides = array<i32>} : memref<8x128xbf16, #tpu.memory_space<vmem>>, vector<8x64xbf16>,
    %c0_27 = arith.constant 0 : index
    %c0_28 = arith.constant 0 : index
    %60 = vector.load %arg6[%c0_27, %c0_28] : memref<8x128xbf16, #tpu.memory_space<vmem>>, vector<8x128xbf16>
    %c0_29 = arith.constant 0 : index
    %c0_30 = arith.constant 0 : index
    %61 = vector.load %arg2[%c0_29, %c0_30] : memref<128x128xbf16, #tpu.memory_space<vmem>>, vector<128x128xbf16>
    %cst_31 = arith.constant dense<0.000000e+00> : vector<8x128xf32>
    %62 = tpu.matmul %60, %61, %cst_31 {dimension_numbers = #tpu.dot_dimension_numbers<[1], [0], [0], [1], [0, 0, 1, 1], [], []>} : vector<8x128xbf16>, vector<128x128xbf16>, vector<8x128xf32> -> vector<8x128xf32>
    %c0_32 = arith.constant 0 : index
    %c0_33 = arith.constant 0 : index
    %63 = vector.load %arg3[%c0_32, %c0_33] : memref<1x128xf32, #tpu.memory_space<vmem>>, vector<1x128xf32>
    %64 = vector.broadcast %63 : vector<1x128xf32> to vector<8x128xf32>
    %65 = arith.addf %62, %64 : vector<8x128xf32>
    %c0_34 = arith.constant 0 : index
    %c0_35 = arith.constant 0 : index
    %c0_36 = arith.constant 0 : index
    %66 = vector.load %arg4[%c0_34, %c0_35, %c0_36] : memref<1x8x128xbf16, #tpu.memory_space<vmem>>, vector<1x8x128xbf16>
    %67 = vector.shape_cast %66 : vector<1x8x128xbf16> to vector<8x128xbf16>
    %68 = arith.extf %67 : vector<8x128xbf16> to vector<8x128xf32>
    %69 = arith.addf %65, %68 : vector<8x128xf32>
    %70 = arith.truncf %69 : vector<8x128xf32> to vector<8x128xbf16>
    %c0_37 = arith.constant 0 : index
    %c0_38 = arith.constant 0 : index
    %c0_39 = arith.constant 0 : index
    %71 = vector.load %arg5[%c0_37, %c0_38, %c0_39] : memref<1x8x128xbf16, #tpu.memory_space<vmem>>, vector<1x8x128xbf16>
    %72 = vector.shape_cast %71 : vector<1x8x128xbf16> to vector<8x128xbf16>
    %73 = vector.shape_cast %70 : vector<8x128xbf16> to vector<1x8x128xbf16>
    tpu.vector_store %arg5[%c0_37, %c0_38, %c0_39], %73 {strides = array<i32>} : memref<1x8x128xbf16, #tpu.memory_space<vmem>>, vector<1x8x128xbf16>,
    return
  }
  func.func @transform_0(%arg0: i32) -> (i32, i32, i32) {
    %c0_i32 = arith.constant 0 : i32
    %c0_i32_0 = arith.constant 0 : i32
    %c0_i32_1 = arith.constant 0 : i32
    return %arg0, %c0_i32, %c0_i32_0 : i32, i32, i32
  }
  func.func @transform_1(%arg0: i32) -> (i32, i32) {
    %c0_i32 = arith.constant 0 : i32
    %c0_i32_0 = arith.constant 0 : i32
    %c0_i32_1 = arith.constant 0 : i32
    return %c0_i32, %c0_i32_0 : i32, i32
  }
  func.func @transform_2(%arg0: i32) -> (i32, i32) {
    %c0_i32 = arith.constant 0 : i32
    %c0_i32_0 = arith.constant 0 : i32
    %c0_i32_1 = arith.constant 0 : i32
    return %c0_i32, %c0_i32_0 : i32, i32
  }
  func.func @transform_3(%arg0: i32) -> (i32, i32, i32) {
    %c0_i32 = arith.constant 0 : i32
    %c0_i32_0 = arith.constant 0 : i32
    %c0_i32_1 = arith.constant 0 : i32
    return %arg0, %c0_i32, %c0_i32_0 : i32, i32, i32
  }
  func.func @transform_4(%arg0: i32) -> (i32, i32, i32) {
    %c0_i32 = arith.constant 0 : i32
    %c0_i32_0 = arith.constant 0 : i32
    %c0_i32_1 = arith.constant 0 : i32
    return %arg0, %c0_i32, %c0_i32_0 : i32, i32, i32
  }
}

module attributes {stable_mosaic.version = 11 : i64} {
  func.func @_mlp_kernel(%arg0: i32, %arg1: i32, %arg2: memref<16x128xbf16, #tpu.memory_space<vmem>>, %arg3: memref<1x128xf32, #tpu.memory_space<vmem>>, %arg4: memref<1x128xf32, #tpu.memory_space<vmem>>, %arg5: memref<128x512xbf16, #tpu.memory_space<vmem>>, %arg6: memref<1x512xf32, #tpu.memory_space<vmem>>, %arg7: memref<512x128xbf16, #tpu.memory_space<vmem>>, %arg8: memref<1x128xf32, #tpu.memory_space<vmem>>, %arg9: memref<16x128xbf16, #tpu.memory_space<vmem>>, %arg10: memref<16x128xf32, #tpu.memory_space<vmem>>, %arg11: memref<16x128xbf16, #tpu.memory_space<vmem>>) attributes {dimension_semantics = [#tpu.dimension_semantics<parallel>, #tpu.dimension_semantics<arbitrary>], iteration_bounds = array<i64: 1, 1>, scalar_prefetch = 0 : i64, scratch_operands = 2 : i64, tpu.core_type = #tpu.core_type<tc>, window_params = [{transform_indices = @transform_0, window_bounds = array<i64: 16, 128>}, {pipeline_mode = #tpu.pipeline_mode<synchronous>, transform_indices = @transform_1, window_bounds = array<i64: 1, 128>}, {pipeline_mode = #tpu.pipeline_mode<synchronous>, transform_indices = @transform_2, window_bounds = array<i64: 1, 128>}, {transform_indices = @transform_3, window_bounds = array<i64: 128, 512>}, {transform_indices = @transform_4, window_bounds = array<i64: 1, 512>}, {transform_indices = @transform_5, window_bounds = array<i64: 512, 128>}, {pipeline_mode = #tpu.pipeline_mode<synchronous>, transform_indices = @transform_6, window_bounds = array<i64: 1, 128>}, {transform_indices = @transform_7, window_bounds = array<i64: 16, 128>}]} {
    %c0_i32 = arith.constant 0 : i32
    %0 = arith.cmpi eq, %arg1, %c0_i32 : i32
    %1 = arith.extui %0 : i1 to i32
    %c0_i32_0 = arith.constant 0 : i32
    %2 = arith.cmpi ne, %1, %c0_i32_0 : i32
    scf.if %2 {
      %c0_17 = arith.constant 0 : index
      %c0_18 = arith.constant 0 : index
      %26 = vector.load %arg2[%c0_17, %c0_18] : memref<16x128xbf16, #tpu.memory_space<vmem>>, vector<16x128xbf16>
      %27 = arith.extf %26 : vector<16x128xbf16> to vector<16x128xf32>
      %cst_19 = arith.constant dense<0.000000e+00> : vector<16xf32>
      %28 = vector.multi_reduction <add>, %27, %cst_19 [1] : vector<16x128xf32> to vector<16xf32>
      %29 = vector.shape_cast %28 : vector<16xf32> to vector<16x1xf32>
      %cst_20 = arith.constant 1.280000e+02 : f32
      %30 = vector.broadcast %cst_20 : f32 to vector<16x1xf32>
      %31 = arith.divf %29, %30 : vector<16x1xf32>
      %32 = vector.broadcast %31 : vector<16x1xf32> to vector<16x128xf32>
      %33 = arith.subf %27, %32 : vector<16x128xf32>
      %34 = arith.mulf %33, %33 : vector<16x128xf32>
      %cst_21 = arith.constant dense<0.000000e+00> : vector<16xf32>
      %35 = vector.multi_reduction <add>, %34, %cst_21 [1] : vector<16x128xf32> to vector<16xf32>
      %36 = vector.shape_cast %35 : vector<16xf32> to vector<16x1xf32>
      %cst_22 = arith.constant 1.280000e+02 : f32
      %37 = vector.broadcast %cst_22 : f32 to vector<16x1xf32>
      %38 = arith.divf %36, %37 : vector<16x1xf32>
      %cst_23 = arith.constant 9.99999974E-6 : f32
      %39 = vector.broadcast %cst_23 : f32 to vector<16x1xf32>
      %40 = arith.addf %38, %39 : vector<16x1xf32>
      %41 = math.rsqrt %40 : vector<16x1xf32>
      %42 = vector.broadcast %41 : vector<16x1xf32> to vector<16x128xf32>
      %43 = arith.mulf %33, %42 : vector<16x128xf32>
      %c0_24 = arith.constant 0 : index
      %c0_25 = arith.constant 0 : index
      %44 = vector.load %arg3[%c0_24, %c0_25] : memref<1x128xf32, #tpu.memory_space<vmem>>, vector<1x128xf32>
      %45 = vector.broadcast %44 : vector<1x128xf32> to vector<16x128xf32>
      %46 = arith.mulf %43, %45 : vector<16x128xf32>
      %c0_26 = arith.constant 0 : index
      %c0_27 = arith.constant 0 : index
      %47 = vector.load %arg4[%c0_26, %c0_27] : memref<1x128xf32, #tpu.memory_space<vmem>>, vector<1x128xf32>
      %48 = vector.broadcast %47 : vector<1x128xf32> to vector<16x128xf32>
      %49 = arith.addf %46, %48 : vector<16x128xf32>
      %50 = arith.truncf %49 : vector<16x128xf32> to vector<16x128xbf16>
      %c0_28 = arith.constant 0 : index
      %c0_29 = arith.constant 0 : index
      %51 = vector.load %arg11[%c0_28, %c0_29] : memref<16x128xbf16, #tpu.memory_space<vmem>>, vector<16x128xbf16>
      tpu.vector_store %arg11[%c0_28, %c0_29], %50 {strides = array<i32>} : memref<16x128xbf16, #tpu.memory_space<vmem>>, vector<16x128xbf16>,
      %cst_30 = arith.constant 0.000000e+00 : f32
      %52 = vector.broadcast %cst_30 : f32 to vector<16x128xf32>
      %c0_31 = arith.constant 0 : index
      %c0_32 = arith.constant 0 : index
      %53 = vector.load %arg10[%c0_31, %c0_32] : memref<16x128xf32, #tpu.memory_space<vmem>>, vector<16x128xf32>
      tpu.vector_store %arg10[%c0_31, %c0_32], %52 {strides = array<i32>} : memref<16x128xf32, #tpu.memory_space<vmem>>, vector<16x128xf32>,
    } else {
    }
    %c0 = arith.constant 0 : index
    %c0_1 = arith.constant 0 : index
    %3 = vector.load %arg11[%c0, %c0_1] : memref<16x128xbf16, #tpu.memory_space<vmem>>, vector<16x128xbf16>
    %c0_2 = arith.constant 0 : index
    %c0_3 = arith.constant 0 : index
    %4 = vector.load %arg5[%c0_2, %c0_3] : memref<128x512xbf16, #tpu.memory_space<vmem>>, vector<128x512xbf16>
    %cst = arith.constant dense<0.000000e+00> : vector<16x512xf32>
    %5 = tpu.matmul %3, %4, %cst {dimension_numbers = #tpu.dot_dimension_numbers<[1], [0], [0], [1], [0, 0, 1, 1], [], []>} : vector<16x128xbf16>, vector<128x512xbf16>, vector<16x512xf32> -> vector<16x512xf32>
    %c0_4 = arith.constant 0 : index
    %c0_5 = arith.constant 0 : index
    %6 = vector.load %arg6[%c0_4, %c0_5] : memref<1x512xf32, #tpu.memory_space<vmem>>, vector<1x512xf32>
    %7 = vector.broadcast %6 : vector<1x512xf32> to vector<16x512xf32>
    %8 = arith.addf %5, %7 : vector<16x512xf32>
    %cst_6 = arith.constant 1.702000e+00 : f32
    %9 = vector.broadcast %cst_6 : f32 to vector<16x512xf32>
    %10 = arith.mulf %9, %8 : vector<16x512xf32>
    %11 = arith.negf %10 : vector<16x512xf32>
    %12 = math.exp %11 : vector<16x512xf32>
    %cst_7 = arith.constant 1.000000e+00 : f32
    %13 = vector.broadcast %cst_7 : f32 to vector<16x512xf32>
    %14 = arith.addf %13, %12 : vector<16x512xf32>
    %15 = arith.divf %13, %14 : vector<16x512xf32>
    %16 = arith.mulf %8, %15 : vector<16x512xf32>
    %c0_8 = arith.constant 0 : index
    %c0_9 = arith.constant 0 : index
    %17 = vector.load %arg10[%c0_8, %c0_9] : memref<16x128xf32, #tpu.memory_space<vmem>>, vector<16x128xf32>
    %18 = arith.truncf %16 : vector<16x512xf32> to vector<16x512xbf16>
    %c0_10 = arith.constant 0 : index
    %c0_11 = arith.constant 0 : index
    %19 = vector.load %arg7[%c0_10, %c0_11] : memref<512x128xbf16, #tpu.memory_space<vmem>>, vector<512x128xbf16>
    %cst_12 = arith.constant dense<0.000000e+00> : vector<16x128xf32>
    %20 = tpu.matmul %18, %19, %cst_12 {dimension_numbers = #tpu.dot_dimension_numbers<[1], [0], [0], [1], [0, 0, 1, 1], [], []>} : vector<16x512xbf16>, vector<512x128xbf16>, vector<16x128xf32> -> vector<16x128xf32>
    %21 = arith.addf %17, %20 : vector<16x128xf32>
    %c0_13 = arith.constant 0 : index
    %c0_14 = arith.constant 0 : index
    %22 = vector.load %arg10[%c0_13, %c0_14] : memref<16x128xf32, #tpu.memory_space<vmem>>, vector<16x128xf32>
    tpu.vector_store %arg10[%c0_13, %c0_14], %21 {strides = array<i32>} : memref<16x128xf32, #tpu.memory_space<vmem>>, vector<16x128xf32>,
    %c0_i32_15 = arith.constant 0 : i32
    %23 = arith.cmpi eq, %arg1, %c0_i32_15 : i32
    %24 = arith.extui %23 : i1 to i32
    %c0_i32_16 = arith.constant 0 : i32
    %25 = arith.cmpi ne, %24, %c0_i32_16 : i32
    scf.if %25 {
      %c0_17 = arith.constant 0 : index
      %c0_18 = arith.constant 0 : index
      %26 = vector.load %arg10[%c0_17, %c0_18] : memref<16x128xf32, #tpu.memory_space<vmem>>, vector<16x128xf32>
      %c0_19 = arith.constant 0 : index
      %c0_20 = arith.constant 0 : index
      %27 = vector.load %arg8[%c0_19, %c0_20] : memref<1x128xf32, #tpu.memory_space<vmem>>, vector<1x128xf32>
      %28 = vector.broadcast %27 : vector<1x128xf32> to vector<16x128xf32>
      %29 = arith.addf %26, %28 : vector<16x128xf32>
      %c0_21 = arith.constant 0 : index
      %c0_22 = arith.constant 0 : index
      %30 = vector.load %arg2[%c0_21, %c0_22] : memref<16x128xbf16, #tpu.memory_space<vmem>>, vector<16x128xbf16>
      %31 = arith.extf %30 : vector<16x128xbf16> to vector<16x128xf32>
      %32 = arith.addf %29, %31 : vector<16x128xf32>
      %33 = arith.truncf %32 : vector<16x128xf32> to vector<16x128xbf16>
      %c0_23 = arith.constant 0 : index
      %c0_24 = arith.constant 0 : index
      %34 = vector.load %arg9[%c0_23, %c0_24] : memref<16x128xbf16, #tpu.memory_space<vmem>>, vector<16x128xbf16>
      tpu.vector_store %arg9[%c0_23, %c0_24], %33 {strides = array<i32>} : memref<16x128xbf16, #tpu.memory_space<vmem>>, vector<16x128xbf16>,
    } else {
    }
    return
  }
  func.func @transform_0(%arg0: i32, %arg1: i32) -> (i32, i32) {
    %c0_i32 = arith.constant 0 : i32
    %c0_i32_0 = arith.constant 0 : i32
    return %arg0, %c0_i32 : i32, i32
  }
  func.func @transform_1(%arg0: i32, %arg1: i32) -> (i32, i32) {
    %c0_i32 = arith.constant 0 : i32
    %c0_i32_0 = arith.constant 0 : i32
    %c0_i32_1 = arith.constant 0 : i32
    return %c0_i32, %c0_i32_0 : i32, i32
  }
  func.func @transform_2(%arg0: i32, %arg1: i32) -> (i32, i32) {
    %c0_i32 = arith.constant 0 : i32
    %c0_i32_0 = arith.constant 0 : i32
    %c0_i32_1 = arith.constant 0 : i32
    return %c0_i32, %c0_i32_0 : i32, i32
  }
  func.func @transform_3(%arg0: i32, %arg1: i32) -> (i32, i32) {
    %c0_i32 = arith.constant 0 : i32
    %c0_i32_0 = arith.constant 0 : i32
    return %c0_i32, %arg1 : i32, i32
  }
  func.func @transform_4(%arg0: i32, %arg1: i32) -> (i32, i32) {
    %c0_i32 = arith.constant 0 : i32
    %c0_i32_0 = arith.constant 0 : i32
    return %c0_i32, %arg1 : i32, i32
  }
  func.func @transform_5(%arg0: i32, %arg1: i32) -> (i32, i32) {
    %c0_i32 = arith.constant 0 : i32
    %c0_i32_0 = arith.constant 0 : i32
    return %arg1, %c0_i32 : i32, i32
  }
  func.func @transform_6(%arg0: i32, %arg1: i32) -> (i32, i32) {
    %c0_i32 = arith.constant 0 : i32
    %c0_i32_0 = arith.constant 0 : i32
    %c0_i32_1 = arith.constant 0 : i32
    return %c0_i32, %c0_i32_0 : i32, i32
  }
  func.func @transform_7(%arg0: i32, %arg1: i32) -> (i32, i32) {
    %c0_i32 = arith.constant 0 : i32
    %c0_i32_0 = arith.constant 0 : i32
    return %arg0, %c0_i32 : i32, i32
  }
}

module attributes {stable_mosaic.version = 11 : i64} {
  func.func @_fused_linear_kernel(%arg0: i32, %arg1: memref<2x128xbf16, #tpu.memory_space<vmem>>, %arg2: memref<1x128xf32, #tpu.memory_space<vmem>>, %arg3: memref<1x128xf32, #tpu.memory_space<vmem>>, %arg4: memref<128x64xbf16, #tpu.memory_space<vmem>>, %arg5: memref<1x64xf32, #tpu.memory_space<vmem>>, %arg6: memref<2x64xf32, #tpu.memory_space<vmem>>) attributes {dimension_semantics = [#tpu.dimension_semantics<parallel>], iteration_bounds = array<i64: 1>, scalar_prefetch = 0 : i64, scratch_operands = 0 : i64, tpu.core_type = #tpu.core_type<tc>, window_params = [{transform_indices = @transform_0, window_bounds = array<i64: 2, 128>}, {pipeline_mode = #tpu.pipeline_mode<synchronous>, transform_indices = @transform_1, window_bounds = array<i64: 1, 128>}, {pipeline_mode = #tpu.pipeline_mode<synchronous>, transform_indices = @transform_2, window_bounds = array<i64: 1, 128>}, {pipeline_mode = #tpu.pipeline_mode<synchronous>, transform_indices = @transform_3, window_bounds = array<i64: 128, 64>}, {pipeline_mode = #tpu.pipeline_mode<synchronous>, transform_indices = @transform_4, window_bounds = array<i64: 1, 64>}, {transform_indices = @transform_5, window_bounds = array<i64: 2, 64>}]} {
    %c0 = arith.constant 0 : index
    %c0_0 = arith.constant 0 : index
    %0 = vector.load %arg1[%c0, %c0_0] : memref<2x128xbf16, #tpu.memory_space<vmem>>, vector<2x128xbf16>
    %1 = arith.extf %0 : vector<2x128xbf16> to vector<2x128xf32>
    %cst = arith.constant dense<0.000000e+00> : vector<2xf32>
    %2 = vector.multi_reduction <add>, %1, %cst [1] : vector<2x128xf32> to vector<2xf32>
    %3 = vector.shape_cast %2 : vector<2xf32> to vector<2x1xf32>
    %cst_1 = arith.constant 1.280000e+02 : f32
    %4 = vector.broadcast %cst_1 : f32 to vector<2x1xf32>
    %5 = arith.divf %3, %4 : vector<2x1xf32>
    %6 = vector.broadcast %5 : vector<2x1xf32> to vector<2x128xf32>
    %7 = arith.subf %1, %6 : vector<2x128xf32>
    %8 = arith.mulf %7, %7 : vector<2x128xf32>
    %cst_2 = arith.constant dense<0.000000e+00> : vector<2xf32>
    %9 = vector.multi_reduction <add>, %8, %cst_2 [1] : vector<2x128xf32> to vector<2xf32>
    %10 = vector.shape_cast %9 : vector<2xf32> to vector<2x1xf32>
    %cst_3 = arith.constant 1.280000e+02 : f32
    %11 = vector.broadcast %cst_3 : f32 to vector<2x1xf32>
    %12 = arith.divf %10, %11 : vector<2x1xf32>
    %cst_4 = arith.constant 9.99999974E-6 : f32
    %13 = vector.broadcast %cst_4 : f32 to vector<2x1xf32>
    %14 = arith.addf %12, %13 : vector<2x1xf32>
    %15 = math.rsqrt %14 : vector<2x1xf32>
    %16 = vector.broadcast %15 : vector<2x1xf32> to vector<2x128xf32>
    %17 = arith.mulf %7, %16 : vector<2x128xf32>
    %c0_5 = arith.constant 0 : index
    %c0_6 = arith.constant 0 : index
    %18 = vector.load %arg2[%c0_5, %c0_6] : memref<1x128xf32, #tpu.memory_space<vmem>>, vector<1x128xf32>
    %19 = vector.broadcast %18 : vector<1x128xf32> to vector<2x128xf32>
    %20 = arith.mulf %17, %19 : vector<2x128xf32>
    %c0_7 = arith.constant 0 : index
    %c0_8 = arith.constant 0 : index
    %21 = vector.load %arg3[%c0_7, %c0_8] : memref<1x128xf32, #tpu.memory_space<vmem>>, vector<1x128xf32>
    %22 = vector.broadcast %21 : vector<1x128xf32> to vector<2x128xf32>
    %23 = arith.addf %20, %22 : vector<2x128xf32>
    %24 = arith.truncf %23 : vector<2x128xf32> to vector<2x128xbf16>
    %c0_9 = arith.constant 0 : index
    %c0_10 = arith.constant 0 : index
    %25 = vector.load %arg4[%c0_9, %c0_10] : memref<128x64xbf16, #tpu.memory_space<vmem>>, vector<128x64xbf16>
    %cst_11 = arith.constant dense<0.000000e+00> : vector<2x64xf32>
    %26 = tpu.matmul %24, %25, %cst_11 {dimension_numbers = #tpu.dot_dimension_numbers<[1], [0], [0], [1], [0, 0, 1, 1], [], []>} : vector<2x128xbf16>, vector<128x64xbf16>, vector<2x64xf32> -> vector<2x64xf32>
    %c0_12 = arith.constant 0 : index
    %c0_13 = arith.constant 0 : index
    %27 = vector.load %arg5[%c0_12, %c0_13] : memref<1x64xf32, #tpu.memory_space<vmem>>, vector<1x64xf32>
    %28 = vector.broadcast %27 : vector<1x64xf32> to vector<2x64xf32>
    %29 = arith.addf %26, %28 : vector<2x64xf32>
    %c0_14 = arith.constant 0 : index
    %c0_15 = arith.constant 0 : index
    %30 = vector.load %arg6[%c0_14, %c0_15] : memref<2x64xf32, #tpu.memory_space<vmem>>, vector<2x64xf32>
    tpu.vector_store %arg6[%c0_14, %c0_15], %29 {strides = array<i32>} : memref<2x64xf32, #tpu.memory_space<vmem>>, vector<2x64xf32>,
    return
  }
  func.func @transform_0(%arg0: i32) -> (i32, i32) {
    %c0_i32 = arith.constant 0 : i32
    %c0_i32_0 = arith.constant 0 : i32
    return %arg0, %c0_i32 : i32, i32
  }
  func.func @transform_1(%arg0: i32) -> (i32, i32) {
    %c0_i32 = arith.constant 0 : i32
    %c0_i32_0 = arith.constant 0 : i32
    %c0_i32_1 = arith.constant 0 : i32
    return %c0_i32, %c0_i32_0 : i32, i32
  }
  func.func @transform_2(%arg0: i32) -> (i32, i32) {
    %c0_i32 = arith.constant 0 : i32
    %c0_i32_0 = arith.constant 0 : i32
    %c0_i32_1 = arith.constant 0 : i32
    return %c0_i32, %c0_i32_0 : i32, i32
  }
  func.func @transform_3(%arg0: i32) -> (i32, i32) {
    %c0_i32 = arith.constant 0 : i32
    %c0_i32_0 = arith.constant 0 : i32
    %c0_i32_1 = arith.constant 0 : i32
    return %c0_i32, %c0_i32_0 : i32, i32
  }
  func.func @transform_4(%arg0: i32) -> (i32, i32) {
    %c0_i32 = arith.constant 0 : i32
    %c0_i32_0 = arith.constant 0 : i32
    %c0_i32_1 = arith.constant 0 : i32
    return %c0_i32, %c0_i32_0 : i32, i32
  }
  func.func @transform_5(%arg0: i32) -> (i32, i32) {
    %c0_i32 = arith.constant 0 : i32
    %c0_i32_0 = arith.constant 0 : i32
    return %arg0, %c0_i32 : i32, i32
  }
}

module attributes {stable_mosaic.version = 11 : i64} {
  func.func @_fused_linear_kernel(%arg0: i32, %arg1: memref<8x256xf32, #tpu.memory_space<vmem>>, %arg2: memref<256x128xbf16, #tpu.memory_space<vmem>>, %arg3: memref<1x128xf32, #tpu.memory_space<vmem>>, %arg4: memref<8x128xbf16, #tpu.memory_space<vmem>>) attributes {dimension_semantics = [#tpu.dimension_semantics<parallel>], iteration_bounds = array<i64: 1>, scalar_prefetch = 0 : i64, scratch_operands = 0 : i64, tpu.core_type = #tpu.core_type<tc>, window_params = [{transform_indices = @transform_0, window_bounds = array<i64: 8, 256>}, {pipeline_mode = #tpu.pipeline_mode<synchronous>, transform_indices = @transform_1, window_bounds = array<i64: 256, 128>}, {pipeline_mode = #tpu.pipeline_mode<synchronous>, transform_indices = @transform_2, window_bounds = array<i64: 1, 128>}, {transform_indices = @transform_3, window_bounds = array<i64: 8, 128>}]} {
    %c0 = arith.constant 0 : index
    %c0_0 = arith.constant 0 : index
    %0 = vector.load %arg1[%c0, %c0_0] : memref<8x256xf32, #tpu.memory_space<vmem>>, vector<8x256xf32>
    %1 = arith.truncf %0 : vector<8x256xf32> to vector<8x256xbf16>
    %c0_1 = arith.constant 0 : index
    %c0_2 = arith.constant 0 : index
    %2 = vector.load %arg2[%c0_1, %c0_2] : memref<256x128xbf16, #tpu.memory_space<vmem>>, vector<256x128xbf16>
    %cst = arith.constant dense<0.000000e+00> : vector<8x128xf32>
    %3 = tpu.matmul %1, %2, %cst {dimension_numbers = #tpu.dot_dimension_numbers<[1], [0], [0], [1], [0, 0, 1, 1], [], []>} : vector<8x256xbf16>, vector<256x128xbf16>, vector<8x128xf32> -> vector<8x128xf32>
    %c0_3 = arith.constant 0 : index
    %c0_4 = arith.constant 0 : index
    %4 = vector.load %arg3[%c0_3, %c0_4] : memref<1x128xf32, #tpu.memory_space<vmem>>, vector<1x128xf32>
    %5 = vector.broadcast %4 : vector<1x128xf32> to vector<8x128xf32>
    %6 = arith.addf %3, %5 : vector<8x128xf32>
    %7 = arith.truncf %6 : vector<8x128xf32> to vector<8x128xbf16>
    %c0_5 = arith.constant 0 : index
    %c0_6 = arith.constant 0 : index
    %8 = vector.load %arg4[%c0_5, %c0_6] : memref<8x128xbf16, #tpu.memory_space<vmem>>, vector<8x128xbf16>
    tpu.vector_store %arg4[%c0_5, %c0_6], %7 {strides = array<i32>} : memref<8x128xbf16, #tpu.memory_space<vmem>>, vector<8x128xbf16>,
    return
  }
  func.func @transform_0(%arg0: i32) -> (i32, i32) {
    %c0_i32 = arith.constant 0 : i32
    %c0_i32_0 = arith.constant 0 : i32
    return %arg0, %c0_i32 : i32, i32
  }
  func.func @transform_1(%arg0: i32) -> (i32, i32) {
    %c0_i32 = arith.constant 0 : i32
    %c0_i32_0 = arith.constant 0 : i32
    %c0_i32_1 = arith.constant 0 : i32
    return %c0_i32, %c0_i32_0 : i32, i32
  }
  func.func @transform_2(%arg0: i32) -> (i32, i32) {
    %c0_i32 = arith.constant 0 : i32
    %c0_i32_0 = arith.constant 0 : i32
    %c0_i32_1 = arith.constant 0 : i32
    return %c0_i32, %c0_i32_0 : i32, i32
  }
  func.func @transform_3(%arg0: i32) -> (i32, i32) {
    %c0_i32 = arith.constant 0 : i32
    %c0_i32_0 = arith.constant 0 : i32
    return %arg0, %c0_i32 : i32, i32
  }
}

module attributes {stable_mosaic.version = 11 : i64} {
  func.func @_lnpre_kernel(%arg0: i32, %arg1: i32, %arg2: memref<1x8x128xbf16, #tpu.memory_space<vmem>>, %arg3: memref<8x128xf32, #tpu.memory_space<vmem>>, %arg4: memref<1x128xf32, #tpu.memory_space<vmem>>, %arg5: memref<1x128xf32, #tpu.memory_space<vmem>>, %arg6: memref<1x8x128xbf16, #tpu.memory_space<vmem>>) attributes {dimension_semantics = [#tpu.dimension_semantics<parallel>, #tpu.dimension_semantics<parallel>], iteration_bounds = array<i64: 2, 1>, scalar_prefetch = 0 : i64, scratch_operands = 0 : i64, tpu.core_type = #tpu.core_type<tc>, window_params = [{transform_indices = @transform_0, window_bounds = array<i64: 1, 8, 128>}, {transform_indices = @transform_1, window_bounds = array<i64: 8, 128>}, {pipeline_mode = #tpu.pipeline_mode<synchronous>, transform_indices = @transform_2, window_bounds = array<i64: 1, 128>}, {pipeline_mode = #tpu.pipeline_mode<synchronous>, transform_indices = @transform_3, window_bounds = array<i64: 1, 128>}, {transform_indices = @transform_4, window_bounds = array<i64: 1, 8, 128>}]} {
    %c0 = arith.constant 0 : index
    %c0_0 = arith.constant 0 : index
    %c0_1 = arith.constant 0 : index
    %0 = vector.load %arg2[%c0, %c0_0, %c0_1] : memref<1x8x128xbf16, #tpu.memory_space<vmem>>, vector<1x8x128xbf16>
    %1 = vector.shape_cast %0 : vector<1x8x128xbf16> to vector<8x128xbf16>
    %2 = arith.extf %1 : vector<8x128xbf16> to vector<8x128xf32>
    %c0_2 = arith.constant 0 : index
    %c0_3 = arith.constant 0 : index
    %3 = vector.load %arg3[%c0_2, %c0_3] : memref<8x128xf32, #tpu.memory_space<vmem>>, vector<8x128xf32>
    %4 = arith.addf %2, %3 : vector<8x128xf32>
    %cst = arith.constant dense<0.000000e+00> : vector<8xf32>
    %5 = vector.multi_reduction <add>, %4, %cst [1] : vector<8x128xf32> to vector<8xf32>
    %6 = vector.shape_cast %5 : vector<8xf32> to vector<8x1xf32>
    %cst_4 = arith.constant 1.280000e+02 : f32
    %7 = vector.broadcast %cst_4 : f32 to vector<8x1xf32>
    %8 = arith.divf %6, %7 : vector<8x1xf32>
    %9 = vector.broadcast %8 : vector<8x1xf32> to vector<8x128xf32>
    %10 = arith.subf %4, %9 : vector<8x128xf32>
    %11 = arith.mulf %10, %10 : vector<8x128xf32>
    %cst_5 = arith.constant dense<0.000000e+00> : vector<8xf32>
    %12 = vector.multi_reduction <add>, %11, %cst_5 [1] : vector<8x128xf32> to vector<8xf32>
    %13 = vector.shape_cast %12 : vector<8xf32> to vector<8x1xf32>
    %cst_6 = arith.constant 1.280000e+02 : f32
    %14 = vector.broadcast %cst_6 : f32 to vector<8x1xf32>
    %15 = arith.divf %13, %14 : vector<8x1xf32>
    %cst_7 = arith.constant 9.99999974E-6 : f32
    %16 = vector.broadcast %cst_7 : f32 to vector<8x1xf32>
    %17 = arith.addf %15, %16 : vector<8x1xf32>
    %18 = math.rsqrt %17 : vector<8x1xf32>
    %19 = vector.broadcast %18 : vector<8x1xf32> to vector<8x128xf32>
    %20 = arith.mulf %10, %19 : vector<8x128xf32>
    %c0_8 = arith.constant 0 : index
    %c0_9 = arith.constant 0 : index
    %21 = vector.load %arg4[%c0_8, %c0_9] : memref<1x128xf32, #tpu.memory_space<vmem>>, vector<1x128xf32>
    %22 = vector.broadcast %21 : vector<1x128xf32> to vector<8x128xf32>
    %23 = arith.mulf %20, %22 : vector<8x128xf32>
    %c0_10 = arith.constant 0 : index
    %c0_11 = arith.constant 0 : index
    %24 = vector.load %arg5[%c0_10, %c0_11] : memref<1x128xf32, #tpu.memory_space<vmem>>, vector<1x128xf32>
    %25 = vector.broadcast %24 : vector<1x128xf32> to vector<8x128xf32>
    %26 = arith.addf %23, %25 : vector<8x128xf32>
    %27 = arith.truncf %26 : vector<8x128xf32> to vector<8x128xbf16>
    %c0_12 = arith.constant 0 : index
    %c0_13 = arith.constant 0 : index
    %c0_14 = arith.constant 0 : index
    %28 = vector.load %arg6[%c0_12, %c0_13, %c0_14] : memref<1x8x128xbf16, #tpu.memory_space<vmem>>, vector<1x8x128xbf16>
    %29 = vector.shape_cast %28 : vector<1x8x128xbf16> to vector<8x128xbf16>
    %30 = vector.shape_cast %27 : vector<8x128xbf16> to vector<1x8x128xbf16>
    tpu.vector_store %arg6[%c0_12, %c0_13, %c0_14], %30 {strides = array<i32>} : memref<1x8x128xbf16, #tpu.memory_space<vmem>>, vector<1x8x128xbf16>,
    return
  }
  func.func @transform_0(%arg0: i32, %arg1: i32) -> (i32, i32, i32) {
    %c0_i32 = arith.constant 0 : i32
    %c0_i32_0 = arith.constant 0 : i32
    return %arg0, %arg1, %c0_i32 : i32, i32, i32
  }
  func.func @transform_1(%arg0: i32, %arg1: i32) -> (i32, i32) {
    %c0_i32 = arith.constant 0 : i32
    %c0_i32_0 = arith.constant 0 : i32
    return %arg1, %c0_i32 : i32, i32
  }
  func.func @transform_2(%arg0: i32, %arg1: i32) -> (i32, i32) {
    %c0_i32 = arith.constant 0 : i32
    %c0_i32_0 = arith.constant 0 : i32
    %c0_i32_1 = arith.constant 0 : i32
    return %c0_i32, %c0_i32_0 : i32, i32
  }
  func.func @transform_3(%arg0: i32, %arg1: i32) -> (i32, i32) {
    %c0_i32 = arith.constant 0 : i32
    %c0_i32_0 = arith.constant 0 : i32
    %c0_i32_1 = arith.constant 0 : i32
    return %c0_i32, %c0_i32_0 : i32, i32
  }
  func.func @transform_4(%arg0: i32, %arg1: i32) -> (i32, i32, i32) {
    %c0_i32 = arith.constant 0 : i32
    %c0_i32_0 = arith.constant 0 : i32
    return %arg0, %arg1, %c0_i32 : i32, i32, i32
  }
}

module attributes {stable_mosaic.version = 11 : i64} {
  func.func @_fused_linear_kernel(%arg0: i32, %arg1: memref<16x128xbf16, #tpu.memory_space<vmem>>, %arg2: memref<1x128xf32, #tpu.memory_space<vmem>>, %arg3: memref<1x128xf32, #tpu.memory_space<vmem>>, %arg4: memref<128x384xbf16, #tpu.memory_space<vmem>>, %arg5: memref<1x384xf32, #tpu.memory_space<vmem>>, %arg6: memref<16x384xbf16, #tpu.memory_space<vmem>>) attributes {dimension_semantics = [#tpu.dimension_semantics<parallel>], iteration_bounds = array<i64: 1>, scalar_prefetch = 0 : i64, scratch_operands = 0 : i64, tpu.core_type = #tpu.core_type<tc>, window_params = [{transform_indices = @transform_0, window_bounds = array<i64: 16, 128>}, {pipeline_mode = #tpu.pipeline_mode<synchronous>, transform_indices = @transform_1, window_bounds = array<i64: 1, 128>}, {pipeline_mode = #tpu.pipeline_mode<synchronous>, transform_indices = @transform_2, window_bounds = array<i64: 1, 128>}, {pipeline_mode = #tpu.pipeline_mode<synchronous>, transform_indices = @transform_3, window_bounds = array<i64: 128, 384>}, {pipeline_mode = #tpu.pipeline_mode<synchronous>, transform_indices = @transform_4, window_bounds = array<i64: 1, 384>}, {transform_indices = @transform_5, window_bounds = array<i64: 16, 384>}]} {
    %c0 = arith.constant 0 : index
    %c0_0 = arith.constant 0 : index
    %0 = vector.load %arg1[%c0, %c0_0] : memref<16x128xbf16, #tpu.memory_space<vmem>>, vector<16x128xbf16>
    %1 = arith.extf %0 : vector<16x128xbf16> to vector<16x128xf32>
    %cst = arith.constant dense<0.000000e+00> : vector<16xf32>
    %2 = vector.multi_reduction <add>, %1, %cst [1] : vector<16x128xf32> to vector<16xf32>
    %3 = vector.shape_cast %2 : vector<16xf32> to vector<16x1xf32>
    %cst_1 = arith.constant 1.280000e+02 : f32
    %4 = vector.broadcast %cst_1 : f32 to vector<16x1xf32>
    %5 = arith.divf %3, %4 : vector<16x1xf32>
    %6 = vector.broadcast %5 : vector<16x1xf32> to vector<16x128xf32>
    %7 = arith.subf %1, %6 : vector<16x128xf32>
    %8 = arith.mulf %7, %7 : vector<16x128xf32>
    %cst_2 = arith.constant dense<0.000000e+00> : vector<16xf32>
    %9 = vector.multi_reduction <add>, %8, %cst_2 [1] : vector<16x128xf32> to vector<16xf32>
    %10 = vector.shape_cast %9 : vector<16xf32> to vector<16x1xf32>
    %cst_3 = arith.constant 1.280000e+02 : f32
    %11 = vector.broadcast %cst_3 : f32 to vector<16x1xf32>
    %12 = arith.divf %10, %11 : vector<16x1xf32>
    %cst_4 = arith.constant 9.99999974E-6 : f32
    %13 = vector.broadcast %cst_4 : f32 to vector<16x1xf32>
    %14 = arith.addf %12, %13 : vector<16x1xf32>
    %15 = math.rsqrt %14 : vector<16x1xf32>
    %16 = vector.broadcast %15 : vector<16x1xf32> to vector<16x128xf32>
    %17 = arith.mulf %7, %16 : vector<16x128xf32>
    %c0_5 = arith.constant 0 : index
    %c0_6 = arith.constant 0 : index
    %18 = vector.load %arg2[%c0_5, %c0_6] : memref<1x128xf32, #tpu.memory_space<vmem>>, vector<1x128xf32>
    %19 = vector.broadcast %18 : vector<1x128xf32> to vector<16x128xf32>
    %20 = arith.mulf %17, %19 : vector<16x128xf32>
    %c0_7 = arith.constant 0 : index
    %c0_8 = arith.constant 0 : index
    %21 = vector.load %arg3[%c0_7, %c0_8] : memref<1x128xf32, #tpu.memory_space<vmem>>, vector<1x128xf32>
    %22 = vector.broadcast %21 : vector<1x128xf32> to vector<16x128xf32>
    %23 = arith.addf %20, %22 : vector<16x128xf32>
    %24 = arith.truncf %23 : vector<16x128xf32> to vector<16x128xbf16>
    %c0_9 = arith.constant 0 : index
    %c0_10 = arith.constant 0 : index
    %25 = vector.load %arg4[%c0_9, %c0_10] : memref<128x384xbf16, #tpu.memory_space<vmem>>, vector<128x384xbf16>
    %cst_11 = arith.constant dense<0.000000e+00> : vector<16x384xf32>
    %26 = tpu.matmul %24, %25, %cst_11 {dimension_numbers = #tpu.dot_dimension_numbers<[1], [0], [0], [1], [0, 0, 1, 1], [], []>} : vector<16x128xbf16>, vector<128x384xbf16>, vector<16x384xf32> -> vector<16x384xf32>
    %c0_12 = arith.constant 0 : index
    %c0_13 = arith.constant 0 : index
    %27 = vector.load %arg5[%c0_12, %c0_13] : memref<1x384xf32, #tpu.memory_space<vmem>>, vector<1x384xf32>
    %28 = vector.broadcast %27 : vector<1x384xf32> to vector<16x384xf32>
    %29 = arith.addf %26, %28 : vector<16x384xf32>
    %30 = arith.truncf %29 : vector<16x384xf32> to vector<16x384xbf16>
    %c0_14 = arith.constant 0 : index
    %c0_15 = arith.constant 0 : index
    %31 = vector.load %arg6[%c0_14, %c0_15] : memref<16x384xbf16, #tpu.memory_space<vmem>>, vector<16x384xbf16>
    tpu.vector_store %arg6[%c0_14, %c0_15], %30 {strides = array<i32>} : memref<16x384xbf16, #tpu.memory_space<vmem>>, vector<16x384xbf16>,
    return
  }
  func.func @transform_0(%arg0: i32) -> (i32, i32) {
    %c0_i32 = arith.constant 0 : i32
    %c0_i32_0 = arith.constant 0 : i32
    return %arg0, %c0_i32 : i32, i32
  }
  func.func @transform_1(%arg0: i32) -> (i32, i32) {
    %c0_i32 = arith.constant 0 : i32
    %c0_i32_0 = arith.constant 0 : i32
    %c0_i32_1 = arith.constant 0 : i32
    return %c0_i32, %c0_i32_0 : i32, i32
  }
  func.func @transform_2(%arg0: i32) -> (i32, i32) {
    %c0_i32 = arith.constant 0 : i32
    %c0_i32_0 = arith.constant 0 : i32
    %c0_i32_1 = arith.constant 0 : i32
    return %c0_i32, %c0_i32_0 : i32, i32
  }
  func.func @transform_3(%arg0: i32) -> (i32, i32) {
    %c0_i32 = arith.constant 0 : i32
    %c0_i32_0 = arith.constant 0 : i32
    %c0_i32_1 = arith.constant 0 : i32
    return %c0_i32, %c0_i32_0 : i32, i32
  }
  func.func @transform_4(%arg0: i32) -> (i32, i32) {
    %c0_i32 = arith.constant 0 : i32
    %c0_i32_0 = arith.constant 0 : i32
    %c0_i32_1 = arith.constant 0 : i32
    return %c0_i32, %c0_i32_0 : i32, i32
  }
  func.func @transform_5(%arg0: i32) -> (i32, i32) {
    %c0_i32 = arith.constant 0 : i32
    %c0_i32_0 = arith.constant 0 : i32
    return %arg0, %c0_i32 : i32, i32
  }
}

module attributes {stable_mosaic.version = 11 : i64} {
  func.func @_attention_kernel(%arg0: i32, %arg1: memref<1x8x384xbf16, #tpu.memory_space<vmem>>, %arg2: memref<128x128xbf16, #tpu.memory_space<vmem>>, %arg3: memref<1x128xf32, #tpu.memory_space<vmem>>, %arg4: memref<1x8x128xbf16, #tpu.memory_space<vmem>>, %arg5: memref<1x8x128xbf16, #tpu.memory_space<vmem>>, %arg6: memref<8x128xbf16, #tpu.memory_space<vmem>>) attributes {dimension_semantics = [#tpu.dimension_semantics<parallel>], iteration_bounds = array<i64: 2>, scalar_prefetch = 0 : i64, scratch_operands = 1 : i64, tpu.core_type = #tpu.core_type<tc>, window_params = [{transform_indices = @transform_0, window_bounds = array<i64: 1, 8, 384>}, {pipeline_mode = #tpu.pipeline_mode<synchronous>, transform_indices = @transform_1, window_bounds = array<i64: 128, 128>}, {pipeline_mode = #tpu.pipeline_mode<synchronous>, transform_indices = @transform_2, window_bounds = array<i64: 1, 128>}, {transform_indices = @transform_3, window_bounds = array<i64: 1, 8, 128>}, {transform_indices = @transform_4, window_bounds = array<i64: 1, 8, 128>}]} {
    %0 = tpu.iota {dimensions = array<i32: 1>} : vector<1x8xi32>
    %c5_i32 = arith.constant 5 : i32
    %1 = vector.broadcast %c5_i32 : i32 to vector<1x8xi32>
    %2 = arith.cmpi slt, %0, %1 : vector<1x8xi32>
    %cst = arith.constant 0.000000e+00 : f32
    %cst_0 = arith.constant -1.000000e+30 : f32
    %3 = vector.broadcast %cst : f32 to vector<1x8xf32>
    %4 = vector.broadcast %cst_0 : f32 to vector<1x8xf32>
    %5 = arith.select %2, %3, %4 : vector<1x8xi1>, vector<1x8xf32>
    %c0 = arith.constant 0 : index
    %c0_1 = arith.constant 0 : index
    %c0_2 = arith.constant 0 : index
    %6 = vector.load %arg1[%c0, %c0_1, %c0_2] : memref<1x8x384xbf16, #tpu.memory_space<vmem>>, vector<1x8x64xbf16>
    %7 = vector.shape_cast %6 : vector<1x8x64xbf16> to vector<8x64xbf16>
    %c0_3 = arith.constant 0 : index
    %c0_4 = arith.constant 0 : index
    %c128 = arith.constant 128 : index
    %8 = vector.load %arg1[%c0_3, %c0_4, %c128] : memref<1x8x384xbf16, #tpu.memory_space<vmem>>, vector<1x8x64xbf16>
    %9 = vector.shape_cast %8 : vector<1x8x64xbf16> to vector<8x64xbf16>
    %c0_5 = arith.constant 0 : index
    %c0_6 = arith.constant 0 : index
    %c256 = arith.constant 256 : index
    %10 = vector.load %arg1[%c0_5, %c0_6, %c256] : memref<1x8x384xbf16, #tpu.memory_space<vmem>>, vector<1x8x64xbf16>
    %11 = vector.shape_cast %10 : vector<1x8x64xbf16> to vector<8x64xbf16>
    %12 = arith.extf %7 : vector<8x64xbf16> to vector<8x64xf32>
    %cst_7 = arith.constant 1.250000e-01 : f32
    %13 = vector.broadcast %cst_7 : f32 to vector<8x64xf32>
    %14 = arith.mulf %12, %13 : vector<8x64xf32>
    %15 = arith.truncf %14 : vector<8x64xf32> to vector<8x64xbf16>
    %cst_8 = arith.constant dense<0.000000e+00> : vector<8x8xf32>
    %16 = tpu.matmul %15, %9, %cst_8 {dimension_numbers = #tpu.dot_dimension_numbers<[1], [1], [0], [0], [0, 0, 1, 0], [], []>} : vector<8x64xbf16>, vector<8x64xbf16>, vector<8x8xf32> -> vector<8x8xf32>
    %17 = vector.broadcast %5 : vector<1x8xf32> to vector<8x8xf32>
    %18 = arith.addf %16, %17 : vector<8x8xf32>
    %cst_9 = arith.constant dense<0xFF800000> : vector<8xf32>
    %19 = vector.multi_reduction <maximumf>, %18, %cst_9 [1] : vector<8x8xf32> to vector<8xf32>
    %20 = vector.shape_cast %19 : vector<8xf32> to vector<8x1xf32>
    %21 = vector.broadcast %20 : vector<8x1xf32> to vector<8x8xf32>
    %22 = arith.subf %18, %21 : vector<8x8xf32>
    %23 = math.exp %22 : vector<8x8xf32>
    %cst_10 = arith.constant dense<0.000000e+00> : vector<8xf32>
    %24 = vector.multi_reduction <add>, %23, %cst_10 [1] : vector<8x8xf32> to vector<8xf32>
    %25 = vector.shape_cast %24 : vector<8xf32> to vector<8x1xf32>
    %26 = tpu.reciprocal %25 {approx = true} : vector<8x1xf32> -> vector<8x1xf32>
    %27 = vector.broadcast %26 : vector<8x1xf32> to vector<8x8xf32>
    %28 = arith.mulf %23, %27 : vector<8x8xf32>
    %29 = arith.truncf %28 : vector<8x8xf32> to vector<8x8xbf16>
    %cst_11 = arith.constant dense<0.000000e+00> : vector<8x64xf32>
    %30 = tpu.matmul %29, %11, %cst_11 {dimension_numbers = #tpu.dot_dimension_numbers<[1], [0], [0], [1], [0, 0, 1, 1], [], []>} : vector<8x8xbf16>, vector<8x64xbf16>, vector<8x64xf32> -> vector<8x64xf32>
    %31 = arith.truncf %30 : vector<8x64xf32> to vector<8x64xbf16>
    %c0_12 = arith.constant 0 : index
    %c0_13 = arith.constant 0 : index
    %32 = vector.load %arg6[%c0_12, %c0_13] : memref<8x128xbf16, #tpu.memory_space<vmem>>, vector<8x64xbf16>
    tpu.vector_store %arg6[%c0_12, %c0_13], %31 {strides = array<i32>} : memref<8x128xbf16, #tpu.memory_space<vmem>>, vector<8x64xbf16>,
    %c0_14 = arith.constant 0 : index
    %c0_15 = arith.constant 0 : index
    %c64 = arith.constant 64 : index
    %33 = vector.load %arg1[%c0_14, %c0_15, %c64] : memref<1x8x384xbf16, #tpu.memory_space<vmem>>, vector<1x8x64xbf16>
    %34 = vector.shape_cast %33 : vector<1x8x64xbf16> to vector<8x64xbf16>
    %c0_16 = arith.constant 0 : index
    %c0_17 = arith.constant 0 : index
    %c192 = arith.constant 192 : index
    %35 = vector.load %arg1[%c0_16, %c0_17, %c192] : memref<1x8x384xbf16, #tpu.memory_space<vmem>>, vector<1x8x64xbf16>
    %36 = vector.shape_cast %35 : vector<1x8x64xbf16> to vector<8x64xbf16>
    %c0_18 = arith.constant 0 : index
    %c0_19 = arith.constant 0 : index
    %c320 = arith.constant 320 : index
    %37 = vector.load %arg1[%c0_18, %c0_19, %c320] : memref<1x8x384xbf16, #tpu.memory_space<vmem>>, vector<1x8x64xbf16>
    %38 = vector.shape_cast %37 : vector<1x8x64xbf16> to vector<8x64xbf16>
    %39 = arith.extf %34 : vector<8x64xbf16> to vector<8x64xf32>
    %cst_20 = arith.constant 1.250000e-01 : f32
    %40 = vector.broadcast %cst_20 : f32 to vector<8x64xf32>
    %41 = arith.mulf %39, %40 : vector<8x64xf32>
    %42 = arith.truncf %41 : vector<8x64xf32> to vector<8x64xbf16>
    %cst_21 = arith.constant dense<0.000000e+00> : vector<8x8xf32>
    %43 = tpu.matmul %42, %36, %cst_21 {dimension_numbers = #tpu.dot_dimension_numbers<[1], [1], [0], [0], [0, 0, 1, 0], [], []>} : vector<8x64xbf16>, vector<8x64xbf16>, vector<8x8xf32> -> vector<8x8xf32>
    %44 = vector.broadcast %5 : vector<1x8xf32> to vector<8x8xf32>
    %45 = arith.addf %43, %44 : vector<8x8xf32>
    %cst_22 = arith.constant dense<0xFF800000> : vector<8xf32>
    %46 = vector.multi_reduction <maximumf>, %45, %cst_22 [1] : vector<8x8xf32> to vector<8xf32>
    %47 = vector.shape_cast %46 : vector<8xf32> to vector<8x1xf32>
    %48 = vector.broadcast %47 : vector<8x1xf32> to vector<8x8xf32>
    %49 = arith.subf %45, %48 : vector<8x8xf32>
    %50 = math.exp %49 : vector<8x8xf32>
    %cst_23 = arith.constant dense<0.000000e+00> : vector<8xf32>
    %51 = vector.multi_reduction <add>, %50, %cst_23 [1] : vector<8x8xf32> to vector<8xf32>
    %52 = vector.shape_cast %51 : vector<8xf32> to vector<8x1xf32>
    %53 = tpu.reciprocal %52 {approx = true} : vector<8x1xf32> -> vector<8x1xf32>
    %54 = vector.broadcast %53 : vector<8x1xf32> to vector<8x8xf32>
    %55 = arith.mulf %50, %54 : vector<8x8xf32>
    %56 = arith.truncf %55 : vector<8x8xf32> to vector<8x8xbf16>
    %cst_24 = arith.constant dense<0.000000e+00> : vector<8x64xf32>
    %57 = tpu.matmul %56, %38, %cst_24 {dimension_numbers = #tpu.dot_dimension_numbers<[1], [0], [0], [1], [0, 0, 1, 1], [], []>} : vector<8x8xbf16>, vector<8x64xbf16>, vector<8x64xf32> -> vector<8x64xf32>
    %58 = arith.truncf %57 : vector<8x64xf32> to vector<8x64xbf16>
    %c0_25 = arith.constant 0 : index
    %c64_26 = arith.constant 64 : index
    %59 = vector.load %arg6[%c0_25, %c64_26] : memref<8x128xbf16, #tpu.memory_space<vmem>>, vector<8x64xbf16>
    tpu.vector_store %arg6[%c0_25, %c64_26], %58 {strides = array<i32>} : memref<8x128xbf16, #tpu.memory_space<vmem>>, vector<8x64xbf16>,
    %c0_27 = arith.constant 0 : index
    %c0_28 = arith.constant 0 : index
    %60 = vector.load %arg6[%c0_27, %c0_28] : memref<8x128xbf16, #tpu.memory_space<vmem>>, vector<8x128xbf16>
    %c0_29 = arith.constant 0 : index
    %c0_30 = arith.constant 0 : index
    %61 = vector.load %arg2[%c0_29, %c0_30] : memref<128x128xbf16, #tpu.memory_space<vmem>>, vector<128x128xbf16>
    %cst_31 = arith.constant dense<0.000000e+00> : vector<8x128xf32>
    %62 = tpu.matmul %60, %61, %cst_31 {dimension_numbers = #tpu.dot_dimension_numbers<[1], [0], [0], [1], [0, 0, 1, 1], [], []>} : vector<8x128xbf16>, vector<128x128xbf16>, vector<8x128xf32> -> vector<8x128xf32>
    %c0_32 = arith.constant 0 : index
    %c0_33 = arith.constant 0 : index
    %63 = vector.load %arg3[%c0_32, %c0_33] : memref<1x128xf32, #tpu.memory_space<vmem>>, vector<1x128xf32>
    %64 = vector.broadcast %63 : vector<1x128xf32> to vector<8x128xf32>
    %65 = arith.addf %62, %64 : vector<8x128xf32>
    %c0_34 = arith.constant 0 : index
    %c0_35 = arith.constant 0 : index
    %c0_36 = arith.constant 0 : index
    %66 = vector.load %arg4[%c0_34, %c0_35, %c0_36] : memref<1x8x128xbf16, #tpu.memory_space<vmem>>, vector<1x8x128xbf16>
    %67 = vector.shape_cast %66 : vector<1x8x128xbf16> to vector<8x128xbf16>
    %68 = arith.extf %67 : vector<8x128xbf16> to vector<8x128xf32>
    %69 = arith.addf %65, %68 : vector<8x128xf32>
    %70 = arith.truncf %69 : vector<8x128xf32> to vector<8x128xbf16>
    %c0_37 = arith.constant 0 : index
    %c0_38 = arith.constant 0 : index
    %c0_39 = arith.constant 0 : index
    %71 = vector.load %arg5[%c0_37, %c0_38, %c0_39] : memref<1x8x128xbf16, #tpu.memory_space<vmem>>, vector<1x8x128xbf16>
    %72 = vector.shape_cast %71 : vector<1x8x128xbf16> to vector<8x128xbf16>
    %73 = vector.shape_cast %70 : vector<8x128xbf16> to vector<1x8x128xbf16>
    tpu.vector_store %arg5[%c0_37, %c0_38, %c0_39], %73 {strides = array<i32>} : memref<1x8x128xbf16, #tpu.memory_space<vmem>>, vector<1x8x128xbf16>,
    return
  }
  func.func @transform_0(%arg0: i32) -> (i32, i32, i32) {
    %c0_i32 = arith.constant 0 : i32
    %c0_i32_0 = arith.constant 0 : i32
    %c0_i32_1 = arith.constant 0 : i32
    return %arg0, %c0_i32, %c0_i32_0 : i32, i32, i32
  }
  func.func @transform_1(%arg0: i32) -> (i32, i32) {
    %c0_i32 = arith.constant 0 : i32
    %c0_i32_0 = arith.constant 0 : i32
    %c0_i32_1 = arith.constant 0 : i32
    return %c0_i32, %c0_i32_0 : i32, i32
  }
  func.func @transform_2(%arg0: i32) -> (i32, i32) {
    %c0_i32 = arith.constant 0 : i32
    %c0_i32_0 = arith.constant 0 : i32
    %c0_i32_1 = arith.constant 0 : i32
    return %c0_i32, %c0_i32_0 : i32, i32
  }
  func.func @transform_3(%arg0: i32) -> (i32, i32, i32) {
    %c0_i32 = arith.constant 0 : i32
    %c0_i32_0 = arith.constant 0 : i32
    %c0_i32_1 = arith.constant 0 : i32
    return %arg0, %c0_i32, %c0_i32_0 : i32, i32, i32
  }
  func.func @transform_4(%arg0: i32) -> (i32, i32, i32) {
    %c0_i32 = arith.constant 0 : i32
    %c0_i32_0 = arith.constant 0 : i32
    %c0_i32_1 = arith.constant 0 : i32
    return %arg0, %c0_i32, %c0_i32_0 : i32, i32, i32
  }
}

module attributes {stable_mosaic.version = 11 : i64} {
  func.func @_mlp_kernel(%arg0: i32, %arg1: i32, %arg2: memref<16x128xbf16, #tpu.memory_space<vmem>>, %arg3: memref<1x128xf32, #tpu.memory_space<vmem>>, %arg4: memref<1x128xf32, #tpu.memory_space<vmem>>, %arg5: memref<128x512xbf16, #tpu.memory_space<vmem>>, %arg6: memref<1x512xf32, #tpu.memory_space<vmem>>, %arg7: memref<512x128xbf16, #tpu.memory_space<vmem>>, %arg8: memref<1x128xf32, #tpu.memory_space<vmem>>, %arg9: memref<16x128xbf16, #tpu.memory_space<vmem>>, %arg10: memref<16x128xf32, #tpu.memory_space<vmem>>, %arg11: memref<16x128xbf16, #tpu.memory_space<vmem>>) attributes {dimension_semantics = [#tpu.dimension_semantics<parallel>, #tpu.dimension_semantics<arbitrary>], iteration_bounds = array<i64: 1, 1>, scalar_prefetch = 0 : i64, scratch_operands = 2 : i64, tpu.core_type = #tpu.core_type<tc>, window_params = [{transform_indices = @transform_0, window_bounds = array<i64: 16, 128>}, {pipeline_mode = #tpu.pipeline_mode<synchronous>, transform_indices = @transform_1, window_bounds = array<i64: 1, 128>}, {pipeline_mode = #tpu.pipeline_mode<synchronous>, transform_indices = @transform_2, window_bounds = array<i64: 1, 128>}, {transform_indices = @transform_3, window_bounds = array<i64: 128, 512>}, {transform_indices = @transform_4, window_bounds = array<i64: 1, 512>}, {transform_indices = @transform_5, window_bounds = array<i64: 512, 128>}, {pipeline_mode = #tpu.pipeline_mode<synchronous>, transform_indices = @transform_6, window_bounds = array<i64: 1, 128>}, {transform_indices = @transform_7, window_bounds = array<i64: 16, 128>}]} {
    %c0_i32 = arith.constant 0 : i32
    %0 = arith.cmpi eq, %arg1, %c0_i32 : i32
    %1 = arith.extui %0 : i1 to i32
    %c0_i32_0 = arith.constant 0 : i32
    %2 = arith.cmpi ne, %1, %c0_i32_0 : i32
    scf.if %2 {
      %c0_17 = arith.constant 0 : index
      %c0_18 = arith.constant 0 : index
      %26 = vector.load %arg2[%c0_17, %c0_18] : memref<16x128xbf16, #tpu.memory_space<vmem>>, vector<16x128xbf16>
      %27 = arith.extf %26 : vector<16x128xbf16> to vector<16x128xf32>
      %cst_19 = arith.constant dense<0.000000e+00> : vector<16xf32>
      %28 = vector.multi_reduction <add>, %27, %cst_19 [1] : vector<16x128xf32> to vector<16xf32>
      %29 = vector.shape_cast %28 : vector<16xf32> to vector<16x1xf32>
      %cst_20 = arith.constant 1.280000e+02 : f32
      %30 = vector.broadcast %cst_20 : f32 to vector<16x1xf32>
      %31 = arith.divf %29, %30 : vector<16x1xf32>
      %32 = vector.broadcast %31 : vector<16x1xf32> to vector<16x128xf32>
      %33 = arith.subf %27, %32 : vector<16x128xf32>
      %34 = arith.mulf %33, %33 : vector<16x128xf32>
      %cst_21 = arith.constant dense<0.000000e+00> : vector<16xf32>
      %35 = vector.multi_reduction <add>, %34, %cst_21 [1] : vector<16x128xf32> to vector<16xf32>
      %36 = vector.shape_cast %35 : vector<16xf32> to vector<16x1xf32>
      %cst_22 = arith.constant 1.280000e+02 : f32
      %37 = vector.broadcast %cst_22 : f32 to vector<16x1xf32>
      %38 = arith.divf %36, %37 : vector<16x1xf32>
      %cst_23 = arith.constant 9.99999974E-6 : f32
      %39 = vector.broadcast %cst_23 : f32 to vector<16x1xf32>
      %40 = arith.addf %38, %39 : vector<16x1xf32>
      %41 = math.rsqrt %40 : vector<16x1xf32>
      %42 = vector.broadcast %41 : vector<16x1xf32> to vector<16x128xf32>
      %43 = arith.mulf %33, %42 : vector<16x128xf32>
      %c0_24 = arith.constant 0 : index
      %c0_25 = arith.constant 0 : index
      %44 = vector.load %arg3[%c0_24, %c0_25] : memref<1x128xf32, #tpu.memory_space<vmem>>, vector<1x128xf32>
      %45 = vector.broadcast %44 : vector<1x128xf32> to vector<16x128xf32>
      %46 = arith.mulf %43, %45 : vector<16x128xf32>
      %c0_26 = arith.constant 0 : index
      %c0_27 = arith.constant 0 : index
      %47 = vector.load %arg4[%c0_26, %c0_27] : memref<1x128xf32, #tpu.memory_space<vmem>>, vector<1x128xf32>
      %48 = vector.broadcast %47 : vector<1x128xf32> to vector<16x128xf32>
      %49 = arith.addf %46, %48 : vector<16x128xf32>
      %50 = arith.truncf %49 : vector<16x128xf32> to vector<16x128xbf16>
      %c0_28 = arith.constant 0 : index
      %c0_29 = arith.constant 0 : index
      %51 = vector.load %arg11[%c0_28, %c0_29] : memref<16x128xbf16, #tpu.memory_space<vmem>>, vector<16x128xbf16>
      tpu.vector_store %arg11[%c0_28, %c0_29], %50 {strides = array<i32>} : memref<16x128xbf16, #tpu.memory_space<vmem>>, vector<16x128xbf16>,
      %cst_30 = arith.constant 0.000000e+00 : f32
      %52 = vector.broadcast %cst_30 : f32 to vector<16x128xf32>
      %c0_31 = arith.constant 0 : index
      %c0_32 = arith.constant 0 : index
      %53 = vector.load %arg10[%c0_31, %c0_32] : memref<16x128xf32, #tpu.memory_space<vmem>>, vector<16x128xf32>
      tpu.vector_store %arg10[%c0_31, %c0_32], %52 {strides = array<i32>} : memref<16x128xf32, #tpu.memory_space<vmem>>, vector<16x128xf32>,
    } else {
    }
    %c0 = arith.constant 0 : index
    %c0_1 = arith.constant 0 : index
    %3 = vector.load %arg11[%c0, %c0_1] : memref<16x128xbf16, #tpu.memory_space<vmem>>, vector<16x128xbf16>
    %c0_2 = arith.constant 0 : index
    %c0_3 = arith.constant 0 : index
    %4 = vector.load %arg5[%c0_2, %c0_3] : memref<128x512xbf16, #tpu.memory_space<vmem>>, vector<128x512xbf16>
    %cst = arith.constant dense<0.000000e+00> : vector<16x512xf32>
    %5 = tpu.matmul %3, %4, %cst {dimension_numbers = #tpu.dot_dimension_numbers<[1], [0], [0], [1], [0, 0, 1, 1], [], []>} : vector<16x128xbf16>, vector<128x512xbf16>, vector<16x512xf32> -> vector<16x512xf32>
    %c0_4 = arith.constant 0 : index
    %c0_5 = arith.constant 0 : index
    %6 = vector.load %arg6[%c0_4, %c0_5] : memref<1x512xf32, #tpu.memory_space<vmem>>, vector<1x512xf32>
    %7 = vector.broadcast %6 : vector<1x512xf32> to vector<16x512xf32>
    %8 = arith.addf %5, %7 : vector<16x512xf32>
    %cst_6 = arith.constant 1.702000e+00 : f32
    %9 = vector.broadcast %cst_6 : f32 to vector<16x512xf32>
    %10 = arith.mulf %9, %8 : vector<16x512xf32>
    %11 = arith.negf %10 : vector<16x512xf32>
    %12 = math.exp %11 : vector<16x512xf32>
    %cst_7 = arith.constant 1.000000e+00 : f32
    %13 = vector.broadcast %cst_7 : f32 to vector<16x512xf32>
    %14 = arith.addf %13, %12 : vector<16x512xf32>
    %15 = arith.divf %13, %14 : vector<16x512xf32>
    %16 = arith.mulf %8, %15 : vector<16x512xf32>
    %c0_8 = arith.constant 0 : index
    %c0_9 = arith.constant 0 : index
    %17 = vector.load %arg10[%c0_8, %c0_9] : memref<16x128xf32, #tpu.memory_space<vmem>>, vector<16x128xf32>
    %18 = arith.truncf %16 : vector<16x512xf32> to vector<16x512xbf16>
    %c0_10 = arith.constant 0 : index
    %c0_11 = arith.constant 0 : index
    %19 = vector.load %arg7[%c0_10, %c0_11] : memref<512x128xbf16, #tpu.memory_space<vmem>>, vector<512x128xbf16>
    %cst_12 = arith.constant dense<0.000000e+00> : vector<16x128xf32>
    %20 = tpu.matmul %18, %19, %cst_12 {dimension_numbers = #tpu.dot_dimension_numbers<[1], [0], [0], [1], [0, 0, 1, 1], [], []>} : vector<16x512xbf16>, vector<512x128xbf16>, vector<16x128xf32> -> vector<16x128xf32>
    %21 = arith.addf %17, %20 : vector<16x128xf32>
    %c0_13 = arith.constant 0 : index
    %c0_14 = arith.constant 0 : index
    %22 = vector.load %arg10[%c0_13, %c0_14] : memref<16x128xf32, #tpu.memory_space<vmem>>, vector<16x128xf32>
    tpu.vector_store %arg10[%c0_13, %c0_14], %21 {strides = array<i32>} : memref<16x128xf32, #tpu.memory_space<vmem>>, vector<16x128xf32>,
    %c0_i32_15 = arith.constant 0 : i32
    %23 = arith.cmpi eq, %arg1, %c0_i32_15 : i32
    %24 = arith.extui %23 : i1 to i32
    %c0_i32_16 = arith.constant 0 : i32
    %25 = arith.cmpi ne, %24, %c0_i32_16 : i32
    scf.if %25 {
      %c0_17 = arith.constant 0 : index
      %c0_18 = arith.constant 0 : index
      %26 = vector.load %arg10[%c0_17, %c0_18] : memref<16x128xf32, #tpu.memory_space<vmem>>, vector<16x128xf32>
      %c0_19 = arith.constant 0 : index
      %c0_20 = arith.constant 0 : index
      %27 = vector.load %arg8[%c0_19, %c0_20] : memref<1x128xf32, #tpu.memory_space<vmem>>, vector<1x128xf32>
      %28 = vector.broadcast %27 : vector<1x128xf32> to vector<16x128xf32>
      %29 = arith.addf %26, %28 : vector<16x128xf32>
      %c0_21 = arith.constant 0 : index
      %c0_22 = arith.constant 0 : index
      %30 = vector.load %arg2[%c0_21, %c0_22] : memref<16x128xbf16, #tpu.memory_space<vmem>>, vector<16x128xbf16>
      %31 = arith.extf %30 : vector<16x128xbf16> to vector<16x128xf32>
      %32 = arith.addf %29, %31 : vector<16x128xf32>
      %33 = arith.truncf %32 : vector<16x128xf32> to vector<16x128xbf16>
      %c0_23 = arith.constant 0 : index
      %c0_24 = arith.constant 0 : index
      %34 = vector.load %arg9[%c0_23, %c0_24] : memref<16x128xbf16, #tpu.memory_space<vmem>>, vector<16x128xbf16>
      tpu.vector_store %arg9[%c0_23, %c0_24], %33 {strides = array<i32>} : memref<16x128xbf16, #tpu.memory_space<vmem>>, vector<16x128xbf16>,
    } else {
    }
    return
  }
  func.func @transform_0(%arg0: i32, %arg1: i32) -> (i32, i32) {
    %c0_i32 = arith.constant 0 : i32
    %c0_i32_0 = arith.constant 0 : i32
    return %arg0, %c0_i32 : i32, i32
  }
  func.func @transform_1(%arg0: i32, %arg1: i32) -> (i32, i32) {
    %c0_i32 = arith.constant 0 : i32
    %c0_i32_0 = arith.constant 0 : i32
    %c0_i32_1 = arith.constant 0 : i32
    return %c0_i32, %c0_i32_0 : i32, i32
  }
  func.func @transform_2(%arg0: i32, %arg1: i32) -> (i32, i32) {
    %c0_i32 = arith.constant 0 : i32
    %c0_i32_0 = arith.constant 0 : i32
    %c0_i32_1 = arith.constant 0 : i32
    return %c0_i32, %c0_i32_0 : i32, i32
  }
  func.func @transform_3(%arg0: i32, %arg1: i32) -> (i32, i32) {
    %c0_i32 = arith.constant 0 : i32
    %c0_i32_0 = arith.constant 0 : i32
    return %c0_i32, %arg1 : i32, i32
  }
  func.func @transform_4(%arg0: i32, %arg1: i32) -> (i32, i32) {
    %c0_i32 = arith.constant 0 : i32
    %c0_i32_0 = arith.constant 0 : i32
    return %c0_i32, %arg1 : i32, i32
  }
  func.func @transform_5(%arg0: i32, %arg1: i32) -> (i32, i32) {
    %c0_i32 = arith.constant 0 : i32
    %c0_i32_0 = arith.constant 0 : i32
    return %arg1, %c0_i32 : i32, i32
  }
  func.func @transform_6(%arg0: i32, %arg1: i32) -> (i32, i32) {
    %c0_i32 = arith.constant 0 : i32
    %c0_i32_0 = arith.constant 0 : i32
    %c0_i32_1 = arith.constant 0 : i32
    return %c0_i32, %c0_i32_0 : i32, i32
  }
  func.func @transform_7(%arg0: i32, %arg1: i32) -> (i32, i32) {
    %c0_i32 = arith.constant 0 : i32
    %c0_i32_0 = arith.constant 0 : i32
    return %arg0, %c0_i32 : i32, i32
  }
}

module attributes {stable_mosaic.version = 11 : i64} {
  func.func @_fused_linear_kernel(%arg0: i32, %arg1: memref<2x128xbf16, #tpu.memory_space<vmem>>, %arg2: memref<1x128xf32, #tpu.memory_space<vmem>>, %arg3: memref<1x128xf32, #tpu.memory_space<vmem>>, %arg4: memref<128x64xbf16, #tpu.memory_space<vmem>>, %arg5: memref<1x64xf32, #tpu.memory_space<vmem>>, %arg6: memref<2x64xf32, #tpu.memory_space<vmem>>) attributes {dimension_semantics = [#tpu.dimension_semantics<parallel>], iteration_bounds = array<i64: 1>, scalar_prefetch = 0 : i64, scratch_operands = 0 : i64, tpu.core_type = #tpu.core_type<tc>, window_params = [{transform_indices = @transform_0, window_bounds = array<i64: 2, 128>}, {pipeline_mode = #tpu.pipeline_mode<synchronous>, transform_indices = @transform_1, window_bounds = array<i64: 1, 128>}, {pipeline_mode = #tpu.pipeline_mode<synchronous>, transform_indices = @transform_2, window_bounds = array<i64: 1, 128>}, {pipeline_mode = #tpu.pipeline_mode<synchronous>, transform_indices = @transform_3, window_bounds = array<i64: 128, 64>}, {pipeline_mode = #tpu.pipeline_mode<synchronous>, transform_indices = @transform_4, window_bounds = array<i64: 1, 64>}, {transform_indices = @transform_5, window_bounds = array<i64: 2, 64>}]} {
    %c0 = arith.constant 0 : index
    %c0_0 = arith.constant 0 : index
    %0 = vector.load %arg1[%c0, %c0_0] : memref<2x128xbf16, #tpu.memory_space<vmem>>, vector<2x128xbf16>
    %1 = arith.extf %0 : vector<2x128xbf16> to vector<2x128xf32>
    %cst = arith.constant dense<0.000000e+00> : vector<2xf32>
    %2 = vector.multi_reduction <add>, %1, %cst [1] : vector<2x128xf32> to vector<2xf32>
    %3 = vector.shape_cast %2 : vector<2xf32> to vector<2x1xf32>
    %cst_1 = arith.constant 1.280000e+02 : f32
    %4 = vector.broadcast %cst_1 : f32 to vector<2x1xf32>
    %5 = arith.divf %3, %4 : vector<2x1xf32>
    %6 = vector.broadcast %5 : vector<2x1xf32> to vector<2x128xf32>
    %7 = arith.subf %1, %6 : vector<2x128xf32>
    %8 = arith.mulf %7, %7 : vector<2x128xf32>
    %cst_2 = arith.constant dense<0.000000e+00> : vector<2xf32>
    %9 = vector.multi_reduction <add>, %8, %cst_2 [1] : vector<2x128xf32> to vector<2xf32>
    %10 = vector.shape_cast %9 : vector<2xf32> to vector<2x1xf32>
    %cst_3 = arith.constant 1.280000e+02 : f32
    %11 = vector.broadcast %cst_3 : f32 to vector<2x1xf32>
    %12 = arith.divf %10, %11 : vector<2x1xf32>
    %cst_4 = arith.constant 9.99999974E-6 : f32
    %13 = vector.broadcast %cst_4 : f32 to vector<2x1xf32>
    %14 = arith.addf %12, %13 : vector<2x1xf32>
    %15 = math.rsqrt %14 : vector<2x1xf32>
    %16 = vector.broadcast %15 : vector<2x1xf32> to vector<2x128xf32>
    %17 = arith.mulf %7, %16 : vector<2x128xf32>
    %c0_5 = arith.constant 0 : index
    %c0_6 = arith.constant 0 : index
    %18 = vector.load %arg2[%c0_5, %c0_6] : memref<1x128xf32, #tpu.memory_space<vmem>>, vector<1x128xf32>
    %19 = vector.broadcast %18 : vector<1x128xf32> to vector<2x128xf32>
    %20 = arith.mulf %17, %19 : vector<2x128xf32>
    %c0_7 = arith.constant 0 : index
    %c0_8 = arith.constant 0 : index
    %21 = vector.load %arg3[%c0_7, %c0_8] : memref<1x128xf32, #tpu.memory_space<vmem>>, vector<1x128xf32>
    %22 = vector.broadcast %21 : vector<1x128xf32> to vector<2x128xf32>
    %23 = arith.addf %20, %22 : vector<2x128xf32>
    %24 = arith.truncf %23 : vector<2x128xf32> to vector<2x128xbf16>
    %c0_9 = arith.constant 0 : index
    %c0_10 = arith.constant 0 : index
    %25 = vector.load %arg4[%c0_9, %c0_10] : memref<128x64xbf16, #tpu.memory_space<vmem>>, vector<128x64xbf16>
    %cst_11 = arith.constant dense<0.000000e+00> : vector<2x64xf32>
    %26 = tpu.matmul %24, %25, %cst_11 {dimension_numbers = #tpu.dot_dimension_numbers<[1], [0], [0], [1], [0, 0, 1, 1], [], []>} : vector<2x128xbf16>, vector<128x64xbf16>, vector<2x64xf32> -> vector<2x64xf32>
    %c0_12 = arith.constant 0 : index
    %c0_13 = arith.constant 0 : index
    %27 = vector.load %arg5[%c0_12, %c0_13] : memref<1x64xf32, #tpu.memory_space<vmem>>, vector<1x64xf32>
    %28 = vector.broadcast %27 : vector<1x64xf32> to vector<2x64xf32>
    %29 = arith.addf %26, %28 : vector<2x64xf32>
    %c0_14 = arith.constant 0 : index
    %c0_15 = arith.constant 0 : index
    %30 = vector.load %arg6[%c0_14, %c0_15] : memref<2x64xf32, #tpu.memory_space<vmem>>, vector<2x64xf32>
    tpu.vector_store %arg6[%c0_14, %c0_15], %29 {strides = array<i32>} : memref<2x64xf32, #tpu.memory_space<vmem>>, vector<2x64xf32>,
    return
  }
  func.func @transform_0(%arg0: i32) -> (i32, i32) {
    %c0_i32 = arith.constant 0 : i32
    %c0_i32_0 = arith.constant 0 : i32
    return %arg0, %c0_i32 : i32, i32
  }
  func.func @transform_1(%arg0: i32) -> (i32, i32) {
    %c0_i32 = arith.constant 0 : i32
    %c0_i32_0 = arith.constant 0 : i32
    %c0_i32_1 = arith.constant 0 : i32
    return %c0_i32, %c0_i32_0 : i32, i32
  }
  func.func @transform_2(%arg0: i32) -> (i32, i32) {
    %c0_i32 = arith.constant 0 : i32
    %c0_i32_0 = arith.constant 0 : i32
    %c0_i32_1 = arith.constant 0 : i32
    return %c0_i32, %c0_i32_0 : i32, i32
  }
  func.func @transform_3(%arg0: i32) -> (i32, i32) {
    %c0_i32 = arith.constant 0 : i32
    %c0_i32_0 = arith.constant 0 : i32
    %c0_i32_1 = arith.constant 0 : i32
    return %c0_i32, %c0_i32_0 : i32, i32
  }
  func.func @transform_4(%arg0: i32) -> (i32, i32) {
    %c0_i32 = arith.constant 0 : i32
    %c0_i32_0 = arith.constant 0 : i32
    %c0_i32_1 = arith.constant 0 : i32
    return %c0_i32, %c0_i32_0 : i32, i32
  }
  func.func @transform_5(%arg0: i32) -> (i32, i32) {
    %c0_i32 = arith.constant 0 : i32
    %c0_i32_0 = arith.constant 0 : i32
    return %arg0, %c0_i32 : i32, i32
  }
}

</mosaic_0001>

<llo_original>
// kernel: clip_image_encoder_forward.10
$region0: #{clip_image_encoder_forward.10}
  #allocation0 [shape = 'u32[]', space=smem, size = 0x4, offset = 0x4, fixed_abs, tag = 'smem constant byte address 0x4 - core index']
  #allocation1 [shape = 'u32[144,128]{1,0:T(1,128)}', space=vmem, size = 0x12000, scoped, tag = 'internal scratch']
  %s0 = inlined_call_operand.hbm [shape: bf16[2,8,128], index: 0, kind: input, shape index: {}]
  %s1 = inlined_call_operand.hbm [shape: f32[8,128], index: 1, kind: input, shape index: {}]
  %s2 = inlined_call_operand.hbm [shape: f32[1,128], index: 2, kind: input, shape index: {}]
  %s3 = inlined_call_operand.hbm [shape: f32[1,128], index: 3, kind: input, shape index: {}]
  %s4 = inlined_call_operand.hbm [shape: bf16[2,8,128], index: 4, kind: output, shape index: {}]
  %s5 = sld [smem:[#allocation0]]
  $region65: #{clip_image_encoder_forward.10} parent=0
    _
  %s7 = ssub.s32 1, %s5
  %s8 = scalar_select 0, %s7, %s5
  $region1: #{clip_image_encoder_forward.10} parent=0
    #allocation2 [shape = 'u8[4096]{0}', space=vmem, size = 0x1000, scoped, tag = 'input window, operand 0']
    #allocation3 [shape = 's32[2]{0}', space=sflag, size = 0x8, scoped, tag = 'scoped memory for clip_image_encoder_forward.10']
    #allocation4 [shape = 's32[2]{0}', space=sflag, size = 0x8, scoped, tag = 'scoped memory for clip_image_encoder_forward.10']
    #allocation5 [shape = 'u8[4096]{0}', space=vmem, size = 0x1000, scoped, tag = 'input window, operand 1, single buffered']
    #allocation6 [shape = 's32[1]{0}', space=sflag, size = 0x4, scoped, tag = 'scoped memory for clip_image_encoder_forward.10']
    #allocation7 [shape = 'u8[512]{0}', space=vmem, size = 0x400, scoped, tag = 'input window, operand 2, single buffered']
    #allocation8 [shape = 'u8[512]{0}', space=vmem, size = 0x400, scoped, tag = 'input window, operand 3, single buffered']
    #allocation9 [shape = 's32[1]{0}', space=sflag, size = 0x4, scoped, tag = 'scoped memory for clip_image_encoder_forward.10']
    #allocation10 [shape = 'u8[4096]{0}', space=vmem, size = 0x1000, scoped, tag = 'output window, operand 0']
    %9 = vsyncpa [#allocation3], 0
    %s10 = scalar_lea.sflag [#allocation3], 1
    %11 = vsyncpa %s10, 0
    %12 = vsyncpa [#allocation6], 0
    %13 = vsyncpa [#allocation9], 0
    %14 = vsyncpa [#allocation4], 0
    %s15 = scalar_lea.sflag [#allocation4], 1
    %16 = vsyncpa %s15, 0
    loop: start=0, step=1, limit=4
    $region2: #{clip_image_encoder_forward.10} parent=1 // loop_pre_header
      _
    $region3: #{clip_image_encoder_forward.10} parent=1 // loop_header
      %s18 = sphi 0, %s22
      %p19 = scmp.ge.s32.totalorder %s18, 4
      %s25 = sphi 0, %s37
      %s26 = sphi 0, %s33
      %s27 = sphi 0, %s25
      %s28 = sphi 0, %s26
      %s29 = sphi 0, %s27
      %s30 = sphi 0, %s28
      %s42 = sphi 0, %s44
      %s45 = sphi 0, %s42
      %s46 = sphi 0, %s45
      %s62 = sphi 0, %s46
      %s68 = sphi 0, %s70
      %s71 = sphi 0, %s68
      %s72 = sphi 0, %s71
      %s88 = sphi 0, %s72
      %s92 = sphi 0, %s92
      %s94 = sphi 0, %s92
      %s95 = sphi 0, %s94
      %s109 = sphi 0, %s95
      %s113 = sphi 0, %s113
      %s115 = sphi 0, %s113
      %s116 = sphi 0, %s115
      %s130 = sphi 0, %s116
      %s138 = sphi 0, %s140
      %s141 = sphi 0, %s138
      %s142 = sphi 0, %s141
      %s158 = sphi 0, %s142
    $region4: #{clip_image_encoder_forward.10} parent=1 // loop_header_branch
      %21 = sbr.rel (%p19) target = $region8
    $region5: #{clip_image_encoder_forward.10} parent=1 // loop_body
      %s23 = ssub.s32 %s18, 1
      %s24 = ssub.s32 %s18, 2
      %s31 = sadd.s32 1, %s26
      %p32 = scmp.ge.s32.totalorder %s31, 1
      %s33 = scalar_select %p32, 0, %s31
      %s34 = sadd.s32 1, %s25
      %s35 = scalar_select %p32, %s34, %s25
      %p36 = scmp.ge.s32.totalorder %s35, 2
      %s37 = scalar_select %p36, 0, %s35
      %s38 = ssub.s32 %s25, %s37
      %s39 = ssub.s32 %s26, %s33
      %s40 = sor.u32 %s38, %s39
      %p41 = scmp.eq.s32.totalorder %s40, 0
      %s43 = sadd.s32 %s42, 1
      %s44 = scalar_select %p41, %s42, %s43
      %p47 = pneg %p41
      %p48 = scmp.eq.s32.totalorder %s18, 1
      %p49 = por %p47, %p48
      %p50 = scmp.ne.s32.totalorder %s42, %s45
      %p51 = scmp.eq.s32.totalorder %s18, 0
      %p52 = por %p50, %p51
      %p53 = scmp.ne.s32.totalorder %s42, %s45
      %p54 = scmp.eq.s32.totalorder %s23, 1
      %p55 = por %p53, %p54
      %p56 = scmp.ne.s32.totalorder %s45, %s46
      %p57 = scmp.eq.s32.totalorder %s23, 0
      %p58 = por %p56, %p57
      %p59 = scmp.ne.s32.totalorder %s45, %s46
      %p60 = scmp.eq.s32.totalorder %s24, 1
      %p61 = por %p59, %p60
      %p63 = scmp.ne.s32.totalorder %s46, %s62
      %p64 = scmp.eq.s32.totalorder %s24, 0
      %p65 = por %p63, %p64
      %s66 = ssub.s32 %s26, %s33
      %p67 = scmp.eq.s32.totalorder %s66, 0
      %s69 = sadd.s32 %s68, 1
      %s70 = scalar_select %p67, %s68, %s69
      %p73 = pneg %p67
      %p74 = scmp.eq.s32.totalorder %s18, 1
      %p75 = por %p73, %p74
      %p76 = scmp.ne.s32.totalorder %s68, %s71
      %p77 = scmp.eq.s32.totalorder %s18, 0
      %p78 = por %p76, %p77
      %p79 = scmp.ne.s32.totalorder %s68, %s71
      %p80 = scmp.eq.s32.totalorder %s23, 1
      %p81 = por %p79, %p80
      %p82 = scmp.ne.s32.totalorder %s71, %s72
      %p83 = scmp.eq.s32.totalorder %s23, 0
      %p84 = por %p82, %p83
      %p85 = scmp.ne.s32.totalorder %s71, %s72
      %p86 = scmp.eq.s32.totalorder %s24, 1
      %p87 = por %p85, %p86
      %p89 = scmp.ne.s32.totalorder %s72, %s88
      %p90 = scmp.eq.s32.totalorder %s24, 0
      %p91 = por %p89, %p90
      %s93 = sadd.s32 %s92, 1
      %p96 = scmp.eq.s32.totalorder %s18, 1
      %p97 = scmp.ne.s32.totalorder %s92, %s94
      %p98 = scmp.eq.s32.totalorder %s18, 0
      %p99 = por %p97, %p98
      %p100 = scmp.ne.s32.totalorder %s92, %s94
      %p101 = scmp.eq.s32.totalorder %s23, 1
      %p102 = por %p100, %p101
      %p103 = scmp.ne.s32.totalorder %s94, %s95
      %p104 = scmp.eq.s32.totalorder %s23, 0
      %p105 = por %p103, %p104
      %p106 = scmp.ne.s32.totalorder %s94, %s95
      %p107 = scmp.eq.s32.totalorder %s24, 1
      %p108 = por %p106, %p107
      %p110 = scmp.ne.s32.totalorder %s95, %s109
      %p111 = scmp.eq.s32.totalorder %s24, 0
      %p112 = por %p110, %p111
      %s114 = sadd.s32 %s113, 1
      %p117 = scmp.eq.s32.totalorder %s18, 1
      %p118 = scmp.ne.s32.totalorder %s113, %s115
      %p119 = scmp.eq.s32.totalorder %s18, 0
      %p120 = por %p118, %p119
      %p121 = scmp.ne.s32.totalorder %s113, %s115
      %p122 = scmp.eq.s32.totalorder %s23, 1
      %p123 = por %p121, %p122
      %p124 = scmp.ne.s32.totalorder %s115, %s116
      %p125 = scmp.eq.s32.totalorder %s23, 0
      %p126 = por %p124, %p125
      %p127 = scmp.ne.s32.totalorder %s115, %s116
      %p128 = scmp.eq.s32.totalorder %s24, 1
      %p129 = por %p127, %p128
      %p131 = scmp.ne.s32.totalorder %s116, %s130
      %p132 = scmp.eq.s32.totalorder %s24, 0
      %p133 = por %p131, %p132
      %s134 = ssub.s32 %s25, %s37
      %s135 = ssub.s32 %s26, %s33
      %s136 = sor.u32 %s134, %s135
      %p137 = scmp.eq.s32.totalorder %s136, 0
      %s139 = sadd.s32 %s138, 1
      %s140 = scalar_select %p137, %s138, %s139
      %p143 = pneg %p137
      %p144 = scmp.eq.s32.totalorder %s18, 1
      %p145 = por %p143, %p144
      %p146 = scmp.ne.s32.totalorder %s138, %s141
      %p147 = scmp.eq.s32.totalorder %s18, 0
      %p148 = por %p146, %p147
      %p149 = scmp.ne.s32.totalorder %s138, %s141
      %p150 = scmp.eq.s32.totalorder %s23, 1
      %p151 = por %p149, %p150
      %p152 = scmp.ne.s32.totalorder %s141, %s142
      %p153 = scmp.eq.s32.totalorder %s23, 0
      %p154 = por %p152, %p153
      %p155 = scmp.ne.s32.totalorder %s141, %s142
      %p156 = scmp.eq.s32.totalorder %s24, 1
      %p157 = por %p155, %p156
      %p159 = scmp.ne.s32.totalorder %s142, %s158
      %p160 = scmp.eq.s32.totalorder %s24, 0
      %p161 = por %p159, %p160
      %p162 = scmp.le.s32.totalorder 1, %s18
      %p163 = scmp.lt.s32.totalorder %s18, 3
      %p164 = pnand %p162, %p163
      %p165 = pneg %p164
      // Predicated region
      $region9: #{clip_image_encoder_forward.10} parent=5 // pred_check
        _
      $region10: #{clip_image_encoder_forward.10} parent=5 // pred_check_branch
        %167 = sbr.rel (%p164) target = $region12
      $region11: #{clip_image_encoder_forward.10} parent=5 // pred_region
        %s168 = ssub.s32 %s18, 1
        // Predicated region
        $region13: #{clip_image_encoder_forward.10} parent=11 // pred_check
          %p169 = pneg %p84
        $region14: #{clip_image_encoder_forward.10} parent=11 // pred_check_branch
          %171 = sbr.rel (%p169) target = $region16
        $region15: #{clip_image_encoder_forward.10} parent=11 // pred_region
          %s173 = ssub.s32 128, 128
          %174 = vsyncadd [#allocation6], %s173
          %s175 = smul.addr %s28, 128
          %s176 = scalar_lea.hbm %s1, %s175
          %s178 = sshll.u32 [#allocation5], 4
          %s179 = int_to_ptr.vmem [resolvable:$true] %s178
          %181 = dma.hbm_to_vmem [thread:$0]  %s176, 128, %s179, [#allocation6]
        $region16: #{clip_image_encoder_forward.10} parent=11 // pred_fallthru
          _
        // Predicated region
        $region17: #{clip_image_encoder_forward.10} parent=11 // pred_check
          %p182 = pneg %p105
        $region18: #{clip_image_encoder_forward.10} parent=11 // pred_check_branch
          %184 = sbr.rel (%p182) target = $region20
        $region19: #{clip_image_encoder_forward.10} parent=11 // pred_region
          %s186 = ssub.s32 16, 16
          %187 = vsyncadd [#allocation6], %s186
          %s189 = sshll.u32 [#allocation7], 4
          %s190 = int_to_ptr.vmem [resolvable:$true] %s189
          %192 = dma.hbm_to_vmem [thread:$0]  %s2, 16, %s190, [#allocation6]
        $region20: #{clip_image_encoder_forward.10} parent=11 // pred_fallthru
          _
        // Predicated region
        $region21: #{clip_image_encoder_forward.10} parent=11 // pred_check
          %p193 = pneg %p126
        $region22: #{clip_image_encoder_forward.10} parent=11 // pred_check_branch
          %195 = sbr.rel (%p193) target = $region24
        $region23: #{clip_image_encoder_forward.10} parent=11 // pred_region
          %s197 = ssub.s32 16, 16
          %198 = vsyncadd [#allocation9], %s197
          %s200 = sshll.u32 [#allocation8], 4
          %s201 = int_to_ptr.vmem [resolvable:$true] %s200
          %203 = dma.hbm_to_vmem [thread:$0]  %s3, 16, %s201, [#allocation9]
        $region24: #{clip_image_encoder_forward.10} parent=11 // pred_fallthru
          _
      $region12: #{clip_image_encoder_forward.10} parent=5 // pred_fallthru
        _
      %p204 = scmp.lt.s32.totalorder %s18, 2
      // Predicated region
      $region25: #{clip_image_encoder_forward.10} parent=5 // pred_check
        %p205 = pneg %p204
      $region26: #{clip_image_encoder_forward.10} parent=5 // pred_check_branch
        %207 = sbr.rel (%p205) target = $region28
      $region27: #{clip_image_encoder_forward.10} parent=5 // pred_region
        // Predicated region
        $region29: #{clip_image_encoder_forward.10} parent=27 // pred_check
          %p208 = pneg %p52
        $region30: #{clip_image_encoder_forward.10} parent=27 // pred_check_branch
          %210 = sbr.rel (%p208) target = $region32
        $region31: #{clip_image_encoder_forward.10} parent=27 // pred_region
          %s211 = sand.u32 %s42, 1
          %s212 = scalar_lea.sflag [#allocation3], %s211
          %s213 = sand.u32 %s42, 1
          %s214 = smul.addr %s213, 4
          %s215 = scalar_lea.vmem [#allocation2], %s214
          %s217 = ssub.s32 64, 64
          %218 = vsyncadd %s212, %s217
          %s219 = sadd.s32 %s26, %s25
          %s220 = smul.addr %s219, 64
          %s221 = scalar_lea.hbm %s0, %s220
          %s223 = sshll.u32 %s215, 4
          %s224 = int_to_ptr.vmem [resolvable:$true] %s223
          %226 = dma.hbm_to_vmem [thread:$0]  %s221, 64, %s224, %s212
        $region32: #{clip_image_encoder_forward.10} parent=27 // pred_fallthru
          _
      $region28: #{clip_image_encoder_forward.10} parent=5 // pred_fallthru
        _
      %p227 = scmp.le.s32.totalorder 1, %s18
      %p228 = scmp.lt.s32.totalorder %s18, 3
      %p229 = pnand %p227, %p228
      %p230 = pneg %p229
      // Predicated region
      $region33: #{clip_image_encoder_forward.10} parent=5 // pred_check
        _
      $region34: #{clip_image_encoder_forward.10} parent=5 // pred_check_branch
        %232 = sbr.rel (%p229) target = $region36
      $region35: #{clip_image_encoder_forward.10} parent=5 // pred_region
        %s233 = ssub.s32 %s18, 1
        %s234 = sand.u32 %s45, 1
        %s235 = scalar_lea.sflag [#allocation3], %s234
        %s236 = sand.u32 %s45, 1
        %s237 = smul.addr %s236, 4
        %s238 = scalar_lea.vmem [#allocation2], %s237
        // Predicated region
        $region37: #{clip_image_encoder_forward.10} parent=35 // pred_check
          %p239 = pneg %p58
        $region38: #{clip_image_encoder_forward.10} parent=35 // pred_check_branch
          %241 = sbr.rel (%p239) target = $region40
        $region39: #{clip_image_encoder_forward.10} parent=35 // pred_region
          %242 = dma.done %s235, 64
        $region40: #{clip_image_encoder_forward.10} parent=35 // pred_fallthru
          _
        // Predicated region
        $region41: #{clip_image_encoder_forward.10} parent=35 // pred_check
          %p243 = pneg %p84
        $region42: #{clip_image_encoder_forward.10} parent=35 // pred_check_branch
          %245 = sbr.rel (%p243) target = $region44
        $region43: #{clip_image_encoder_forward.10} parent=35 // pred_region
          %246 = dma.done [#allocation6], 128
        $region44: #{clip_image_encoder_forward.10} parent=35 // pred_fallthru
          _
        // Predicated region
        $region45: #{clip_image_encoder_forward.10} parent=35 // pred_check
          %p247 = pneg %p105
        $region46: #{clip_image_encoder_forward.10} parent=35 // pred_check_branch
          %249 = sbr.rel (%p247) target = $region48
        $region47: #{clip_image_encoder_forward.10} parent=35 // pred_region
          %250 = dma.done [#allocation6], 16
        $region48: #{clip_image_encoder_forward.10} parent=35 // pred_fallthru
          _
        // Predicated region
        $region49: #{clip_image_encoder_forward.10} parent=35 // pred_check
          %p251 = pneg %p126
        $region50: #{clip_image_encoder_forward.10} parent=35 // pred_check_branch
          %253 = sbr.rel (%p251) target = $region52
        $region51: #{clip_image_encoder_forward.10} parent=35 // pred_region
          %254 = dma.done [#allocation9], 16
        $region52: #{clip_image_encoder_forward.10} parent=35 // pred_fallthru
          _
        %s255 = sand.u32 %s45, 1
        %s256 = scalar_lea.sflag [#allocation3], %s255
        %s257 = sand.u32 %s45, 1
        %s258 = smul.addr %s257, 4
        %s259 = scalar_lea.vmem [#allocation2], %s258
        %p260 = pneg %p58
        %p261 = pneg %p55
        %p262 = pneg %p84
        %p263 = pneg %p81
        %p264 = pneg %p105
        %p265 = pneg %p102
        %p266 = pneg %p126
        %p267 = pneg %p123
        %p268 = pneg %p154
        %p269 = pneg %p151
        %s270 = sand.u32 %s141, 1
        %s271 = scalar_lea.sflag [#allocation4], %s270
        %s272 = sand.u32 %s141, 1
        %s273 = smul.addr %s272, 4
        %s274 = scalar_lea.vmem [#allocation10], %s273
        %v275 = vld [vmem:[%s238] sm:$0xf]
        %v276 = vunpack.c.l.bf16 %v275
        %v277 = vld [vmem:[#allocation5] sm:$0xff]
        %v278 = vadd.f32 %v276, %v277
        %279 = vadd.xlane.f32.xlu0 %v278
        %v280 = vpop.xlane.xlu0 %279
        %v281 = vrcp.pop 128.0
        %v282 = vmul.f32 %v280, %v281
        %v283 = vsub.f32 %v278, %v282
        %v284 = vmul.f32 %v283, %v283
        %285 = vadd.xlane.f32.xlu0 %v284
        %v286 = vpop.xlane.xlu0 %285
        %v287 = vmul.f32 %v286, %v281
        %v288 = vadd.f32 %v287, 1e-05
        %v289 = vrsqrt.pop %v288
        %v290 = vmul.f32 %v283, %v289
        %v291 = vld [vmem:[#allocation7] sm:$0x1]
        %v293 = vlaneseq
        %v294 = vshrl.u32 %v293, 7
        %v295 = vsub.s32 0, %v294
        %v296 = vrot.slane %v291, %v295
        %v298 = vmul.f32 %v290, %v296
        %v299 = vld [vmem:[#allocation8] sm:$0x1]
        %v301 = vlaneseq
        %v302 = vshrl.u32 %v301, 7
        %v303 = vsub.s32 0, %v302
        %v304 = vrot.slane %v299, %v303
        %v306 = vadd.f32 %v298, %v304
        %v307 = vpack.c.bf16 %v306, %v306
        %308 = vst [vmem:[%s274] sm:$0xf] %v307
        %s309 = sand.u32 %s141, 1
        %s310 = scalar_lea.sflag [#allocation4], %s309
        %s311 = sand.u32 %s141, 1
        %s312 = smul.addr %s311, 4
        %s313 = scalar_lea.vmem [#allocation10], %s312
        // Predicated region
        $region53: #{clip_image_encoder_forward.10} parent=35 // pred_check
          %p314 = pneg %p151
        $region54: #{clip_image_encoder_forward.10} parent=35 // pred_check_branch
          %316 = sbr.rel (%p314) target = $region56
        $region55: #{clip_image_encoder_forward.10} parent=35 // pred_region
          %s318 = ssub.s32 64, 64
          %319 = vsyncadd %s310, %s318
          %s320 = sadd.s32 %s28, %s27
          %s321 = smul.addr %s320, 64
          %s322 = scalar_lea.hbm %s4, %s321
          %s324 = sshll.u32 %s313, 4
          %s325 = int_to_ptr.vmem [resolvable:$true] %s324
          %327 = dma.vmem_to_hbm [thread:$0]  %s325, 64, %s322, %s310
        $region56: #{clip_image_encoder_forward.10} parent=35 // pred_fallthru
          _
      $region36: #{clip_image_encoder_forward.10} parent=5 // pred_fallthru
        _
      %p328 = scmp.le.s32.totalorder 2, %s18
      // Predicated region
      $region57: #{clip_image_encoder_forward.10} parent=5 // pred_check
        %p329 = pneg %p328
      $region58: #{clip_image_encoder_forward.10} parent=5 // pred_check_branch
        %331 = sbr.rel (%p329) target = $region60
      $region59: #{clip_image_encoder_forward.10} parent=5 // pred_region
        %s332 = ssub.s32 %s18, 2
        // Predicated region
        $region61: #{clip_image_encoder_forward.10} parent=59 // pred_check
          %p333 = pneg %p157
        $region62: #{clip_image_encoder_forward.10} parent=59 // pred_check_branch
          %335 = sbr.rel (%p333) target = $region64
        $region63: #{clip_image_encoder_forward.10} parent=59 // pred_region
          %s336 = sand.u32 %s142, 1
          %s337 = scalar_lea.sflag [#allocation4], %s336
          %s338 = sand.u32 %s142, 1
          %s339 = smul.addr %s338, 4
          %s340 = scalar_lea.vmem [#allocation10], %s339
          %341 = dma.done %s337, 64
        $region64: #{clip_image_encoder_forward.10} parent=59 // pred_fallthru
          _
      $region60: #{clip_image_encoder_forward.10} parent=5 // pred_fallthru
        _
    $region6: #{clip_image_encoder_forward.10} parent=1 // loop_footer
      %s22 = sadd.s32 1, %s18
    $region7: #{clip_image_encoder_forward.10} parent=1 // loop_footer_branch
      %17 = sbr.rel target = $region3
    $region8: #{clip_image_encoder_forward.10} parent=1 // loop_exit
      _
    %342 = vsyncpa [#allocation3], 1
    %s343 = scalar_lea.sflag [#allocation3], 1
    %344 = vsyncpa %s343, 1
    %345 = vsyncpa [#allocation6], 1
    %346 = vsyncpa [#allocation9], 1
    %347 = vsyncpa [#allocation4], 1
    %s348 = scalar_lea.sflag [#allocation4], 1
    %349 = vsyncpa %s348, 1

// kernel: clip_image_encoder_forward.9
$region0: #{clip_image_encoder_forward.9}
  #allocation0 [shape = 'u32[]', space=smem, size = 0x4, offset = 0x4, fixed_abs, tag = 'smem constant byte address 0x4 - core index']
  #allocation1 [shape = 'u32[144,128]{1,0:T(1,128)}', space=vmem, size = 0x12000, scoped, tag = 'internal scratch']
  %s0 = inlined_call_operand.hbm [shape: f32[8,256], index: 0, kind: input, shape index: {}]
  %s1 = inlined_call_operand.hbm [shape: bf16[256,128], index: 1, kind: input, shape index: {}]
  %s2 = inlined_call_operand.hbm [shape: f32[1,128], index: 2, kind: input, shape index: {}]
  %s3 = inlined_call_operand.hbm [shape: bf16[8,128], index: 3, kind: output, shape index: {}]
  %s4 = sld [smem:[#allocation0]]
  $region34: #{clip_image_encoder_forward.9} parent=0
    _
  %s6 = ssub.s32 1, %s4
  %s7 = scalar_select 0, %s6, %s4
  $region1: #{clip_image_encoder_forward.9} parent=0
    #allocation2 [shape = 'u8[8192]{0}', space=vmem, size = 0x2000, scoped, tag = 'input window, operand 0, single buffered']
    #allocation3 [shape = 's32[1]{0}', space=sflag, size = 0x4, scoped, tag = 'scoped memory for clip_image_encoder_forward.9']
    #allocation4 [shape = 's32[1]{0}', space=sflag, size = 0x4, scoped, tag = 'scoped memory for clip_image_encoder_forward.9']
    #allocation5 [shape = 'u8[65536]{0}', space=vmem, size = 0x10000, scoped, tag = 'input window, operand 1, single buffered']
    #allocation6 [shape = 's32[1]{0}', space=sflag, size = 0x4, scoped, tag = 'scoped memory for clip_image_encoder_forward.9']
    #allocation7 [shape = 'u8[512]{0}', space=vmem, size = 0x400, scoped, tag = 'input window, operand 2, single buffered']
    #allocation8 [shape = 'u8[2048]{0}', space=vmem, size = 0x800, scoped, tag = 'output window, operand 0, single buffered']
    %8 = vsyncpa [#allocation3], 0
    %9 = vsyncpa [#allocation6], 0
    %10 = vsyncpa [#allocation4], 0
    // Predicated region
    $region2: #{clip_image_encoder_forward.9} parent=1 // pred_check
      _
    $region3: #{clip_image_encoder_forward.9} parent=1 // pred_check_branch
      %12 = sbr.rel (0) target = $region5
    $region4: #{clip_image_encoder_forward.9} parent=1 // pred_region
      %s14 = ssub.s32 256, 256
      %15 = vsyncadd [#allocation3], %s14
      %s17 = sshll.u32 [#allocation2], 4
      %s18 = int_to_ptr.vmem [resolvable:$true] %s17
      %20 = dma.hbm_to_vmem [thread:$0]  %s0, 256, %s18, [#allocation3]
    $region5: #{clip_image_encoder_forward.9} parent=1 // pred_fallthru
      _
    // Predicated region
    $region6: #{clip_image_encoder_forward.9} parent=1 // pred_check
      _
    $region7: #{clip_image_encoder_forward.9} parent=1 // pred_check_branch
      %22 = sbr.rel (0) target = $region9
    $region8: #{clip_image_encoder_forward.9} parent=1 // pred_region
      %s24 = ssub.s32 2048, 2048
      %25 = vsyncadd [#allocation6], %s24
      %s26 = sshll.u32 [#allocation5], 4
      %s27 = int_to_ptr.vmem [resolvable:$true] %s26
      %32 = dma.hbm_to_vmem [thread:$0]  %s1, 2048, %s27, [#allocation6], 64, 64, 4
    $region9: #{clip_image_encoder_forward.9} parent=1 // pred_fallthru
      _
    // Predicated region
    $region10: #{clip_image_encoder_forward.9} parent=1 // pred_check
      _
    $region11: #{clip_image_encoder_forward.9} parent=1 // pred_check_branch
      %34 = sbr.rel (0) target = $region13
    $region12: #{clip_image_encoder_forward.9} parent=1 // pred_region
      %s36 = ssub.s32 16, 16
      %37 = vsyncadd [#allocation6], %s36
      %s39 = sshll.u32 [#allocation7], 4
      %s40 = int_to_ptr.vmem [resolvable:$true] %s39
      %42 = dma.hbm_to_vmem [thread:$0]  %s2, 16, %s40, [#allocation6]
    $region13: #{clip_image_encoder_forward.9} parent=1 // pred_fallthru
      _
    // Predicated region
    $region14: #{clip_image_encoder_forward.9} parent=1 // pred_check
      _
    $region15: #{clip_image_encoder_forward.9} parent=1 // pred_check_branch
      %44 = sbr.rel (0) target = $region17
    $region16: #{clip_image_encoder_forward.9} parent=1 // pred_region
      %45 = dma.done [#allocation3], 256
    $region17: #{clip_image_encoder_forward.9} parent=1 // pred_fallthru
      _
    // Predicated region
    $region18: #{clip_image_encoder_forward.9} parent=1 // pred_check
      _
    $region19: #{clip_image_encoder_forward.9} parent=1 // pred_check_branch
      %47 = sbr.rel (0) target = $region21
    $region20: #{clip_image_encoder_forward.9} parent=1 // pred_region
      %48 = dma.done [#allocation6], 2048
    $region21: #{clip_image_encoder_forward.9} parent=1 // pred_fallthru
      _
    // Predicated region
    $region22: #{clip_image_encoder_forward.9} parent=1 // pred_check
      _
    $region23: #{clip_image_encoder_forward.9} parent=1 // pred_check_branch
      %50 = sbr.rel (0) target = $region25
    $region24: #{clip_image_encoder_forward.9} parent=1 // pred_region
      %51 = dma.done [#allocation6], 16
    $region25: #{clip_image_encoder_forward.9} parent=1 // pred_fallthru
      _
    %v53 = vld [vmem:[#allocation2] sm:$0xff]
    %v54 = vld [vmem:[#allocation2 + $0x8] sm:$0xff]
    %v55 = vpack.c.bf16 %v53, %v53
    %v56 = vpack.c.bf16 %v54, %v54
    %v57 = vld [vmem:[#allocation5] sm:$0xf]
    %v58 = vld [vmem:[#allocation5 + $0x4] sm:$0xf]
    %v59 = vld [vmem:[#allocation5 + $0x8] sm:$0xf]
    %v60 = vld [vmem:[#allocation5 + $0xc] sm:$0xf]
    %v61 = vld [vmem:[#allocation5 + $0x10] sm:$0xf]
    %v62 = vld [vmem:[#allocation5 + $0x14] sm:$0xf]
    %v63 = vld [vmem:[#allocation5 + $0x18] sm:$0xf]
    %v64 = vld [vmem:[#allocation5 + $0x1c] sm:$0xf]
    %v65 = vld [vmem:[#allocation5 + $0x20] sm:$0xf]
    %v66 = vld [vmem:[#allocation5 + $0x24] sm:$0xf]
    %v67 = vld [vmem:[#allocation5 + $0x28] sm:$0xf]
    %v68 = vld [vmem:[#allocation5 + $0x2c] sm:$0xf]
    %v69 = vld [vmem:[#allocation5 + $0x30] sm:$0xf]
    %v70 = vld [vmem:[#allocation5 + $0x34] sm:$0xf]
    %v71 = vld [vmem:[#allocation5 + $0x38] sm:$0xf]
    %v72 = vld [vmem:[#allocation5 + $0x3c] sm:$0xf]
    %v73 = vld [vmem:[#allocation5 + $0x40] sm:$0xf]
    %v74 = vld [vmem:[#allocation5 + $0x44] sm:$0xf]
    %v75 = vld [vmem:[#allocation5 + $0x48] sm:$0xf]
    %v76 = vld [vmem:[#allocation5 + $0x4c] sm:$0xf]
    %v77 = vld [vmem:[#allocation5 + $0x50] sm:$0xf]
    %v78 = vld [vmem:[#allocation5 + $0x54] sm:$0xf]
    %v79 = vld [vmem:[#allocation5 + $0x58] sm:$0xf]
    %v80 = vld [vmem:[#allocation5 + $0x5c] sm:$0xf]
    %v81 = vld [vmem:[#allocation5 + $0x60] sm:$0xf]
    %v82 = vld [vmem:[#allocation5 + $0x64] sm:$0xf]
    %v83 = vld [vmem:[#allocation5 + $0x68] sm:$0xf]
    %v84 = vld [vmem:[#allocation5 + $0x6c] sm:$0xf]
    %v85 = vld [vmem:[#allocation5 + $0x70] sm:$0xf]
    %v86 = vld [vmem:[#allocation5 + $0x74] sm:$0xf]
    %v87 = vld [vmem:[#allocation5 + $0x78] sm:$0xf]
    %v88 = vld [vmem:[#allocation5 + $0x7c] sm:$0xf]
    %v89 = vld [vmem:[#allocation7] sm:$0x1]
    %v91 = vlaneseq
    %v92 = vshrl.u32 %v91, 7
    %v93 = vsub.s32 0, %v92
    %v94 = vrot.slane %v89, %v93
    %v128 = vunpack.c.l.b16 %v57
    %v129 = vunpack.c.l.b16 %v58
    %v130 = vunpack.c.l.b16 %v59
    %v131 = vunpack.c.l.b16 %v60
    %v132 = vunpack.c.l.b16 %v61
    %v133 = vunpack.c.l.b16 %v62
    %v134 = vunpack.c.l.b16 %v63
    %v135 = vunpack.c.l.b16 %v64
    %v136 = vunpack.c.l.b16 %v65
    %v137 = vunpack.c.l.b16 %v66
    %v138 = vunpack.c.l.b16 %v67
    %v139 = vunpack.c.l.b16 %v68
    %v140 = vunpack.c.l.b16 %v69
    %v141 = vunpack.c.l.b16 %v70
    %v142 = vunpack.c.l.b16 %v71
    %v143 = vunpack.c.l.b16 %v72
    %v144 = vunpack.c.l.b16 %v73
    %v145 = vunpack.c.l.b16 %v74
    %v146 = vunpack.c.l.b16 %v75
    %v147 = vunpack.c.l.b16 %v76
    %v148 = vunpack.c.l.b16 %v77
    %v149 = vunpack.c.l.b16 %v78
    %v150 = vunpack.c.l.b16 %v79
    %v151 = vunpack.c.l.b16 %v80
    %v152 = vunpack.c.l.b16 %v81
    %v153 = vunpack.c.l.b16 %v82
    %v154 = vunpack.c.l.b16 %v83
    %v155 = vunpack.c.l.b16 %v84
    %v156 = vunpack.c.l.b16 %v85
    %v157 = vunpack.c.l.b16 %v86
    %v158 = vunpack.c.l.b16 %v87
    %v159 = vunpack.c.l.b16 %v88
    %v160 = vpack.c.b16 %v129, %v128
    %v161 = vpack.c.b16 %v131, %v130
    %v162 = vpack.c.b16 %v133, %v132
    %v163 = vpack.c.b16 %v135, %v134
    %v164 = vpack.c.b16 %v137, %v136
    %v165 = vpack.c.b16 %v139, %v138
    %v166 = vpack.c.b16 %v141, %v140
    %v167 = vpack.c.b16 %v143, %v142
    %v168 = vpack.c.b16 %v145, %v144
    %v169 = vpack.c.b16 %v147, %v146
    %v170 = vpack.c.b16 %v149, %v148
    %v171 = vpack.c.b16 %v151, %v150
    %v172 = vpack.c.b16 %v153, %v152
    %v173 = vpack.c.b16 %v155, %v154
    %v174 = vpack.c.b16 %v157, %v156
    %v175 = vpack.c.b16 %v159, %v158
    %192 = vmatprep.subr.bf16.mxu0 0
    %193 = vmatpush1.bf16.msra.mxu0 %v160
    %194 = vmatprep.subr.bf16.mxu0 0
    %195 = vmatpush1.bf16.msra.mxu0 %v161
    %196 = vmatprep.subr.bf16.mxu0 0
    %197 = vmatpush1.bf16.msra.mxu0 %v162
    %198 = vmatprep.subr.bf16.mxu0 0
    %199 = vmatpush1.bf16.msra.mxu0 %v163
    %200 = vmatprep.subr.bf16.mxu0 0
    %201 = vmatpush1.bf16.msra.mxu0 %v164
    %202 = vmatprep.subr.bf16.mxu0 0
    %203 = vmatpush1.bf16.msra.mxu0 %v165
    %204 = vmatprep.subr.bf16.mxu0 0
    %205 = vmatpush1.bf16.msra.mxu0 %v166
    %206 = vmatprep.subr.bf16.mxu0 0
    %207 = vmatpush1.bf16.msra.mxu0 %v167
    %208 = vmatprep.subr.bf16.mxu0 0
    %209 = vmatpush1.bf16.msra.mxu0 %v168
    %210 = vmatprep.subr.bf16.mxu0 0
    %211 = vmatpush1.bf16.msra.mxu0 %v169
    %212 = vmatprep.subr.bf16.mxu0 0
    %213 = vmatpush1.bf16.msra.mxu0 %v170
    %214 = vmatprep.subr.bf16.mxu0 0
    %215 = vmatpush1.bf16.msra.mxu0 %v171
    %216 = vmatprep.subr.bf16.mxu0 0
    %217 = vmatpush1.bf16.msra.mxu0 %v172
    %218 = vmatprep.subr.bf16.mxu0 0
    %219 = vmatpush1.bf16.msra.mxu0 %v173
    %220 = vmatprep.subr.bf16.mxu0 0
    %221 = vmatpush1.bf16.msra.mxu0 %v174
    %222 = vmatprep.subr.bf16.mxu0 0
    %223 = vmatpush1.bf16.msra.mxu0 %v175
    %224 = vmatprep.mubr.bf16.mxu0 %v56
    %225 = vmatmul.mubr.bf16.gmra.mrb[0].mxu0 %v55
    %v226 = vpop.f32.mrb[0].mxu0
    %v227 = vadd.f32 %v94, %v226
    %v228 = vpop.f32.mrb[0].mxu0
    %v229 = vpop.f32.mrb[0].mxu0
    %v230 = vpop.f32.mrb[0].mxu0
    %231 = vdwg.mxu0
    %v232 = vpack.c.bf16 %v227, %v227
    %233 = vst [vmem:[#allocation8] sm:$0xf] %v232
    // Predicated region
    $region26: #{clip_image_encoder_forward.9} parent=1 // pred_check
      _
    $region27: #{clip_image_encoder_forward.9} parent=1 // pred_check_branch
      %235 = sbr.rel (0) target = $region29
    $region28: #{clip_image_encoder_forward.9} parent=1 // pred_region
      %s237 = ssub.s32 64, 64
      %238 = vsyncadd [#allocation4], %s237
      %s240 = sshll.u32 [#allocation8], 4
      %s241 = int_to_ptr.vmem [resolvable:$true] %s240
      %243 = dma.vmem_to_hbm [thread:$0]  %s241, 64, %s3, [#allocation4]
    $region29: #{clip_image_encoder_forward.9} parent=1 // pred_fallthru
      _
    // Predicated region
    $region30: #{clip_image_encoder_forward.9} parent=1 // pred_check
      _
    $region31: #{clip_image_encoder_forward.9} parent=1 // pred_check_branch
      %245 = sbr.rel (0) target = $region33
    $region32: #{clip_image_encoder_forward.9} parent=1 // pred_region
      %246 = dma.done [#allocation4], 64
    $region33: #{clip_image_encoder_forward.9} parent=1 // pred_fallthru
      _
    %247 = vsyncpa [#allocation3], 1
    %248 = vsyncpa [#allocation6], 1
    %249 = vsyncpa [#allocation4], 1

// kernel: clip_image_encoder_forward.11
$region0: #{clip_image_encoder_forward.11}
  #allocation0 [shape = 'u32[]', space=smem, size = 0x4, offset = 0x4, fixed_abs, tag = 'smem constant byte address 0x4 - core index']
  #allocation1 [shape = 'u32[144,128]{1,0:T(1,128)}', space=vmem, size = 0x12000, scoped, tag = 'internal scratch']
  %s0 = inlined_call_operand.hbm [shape: bf16[16,128], index: 0, kind: input, shape index: {}]
  %s1 = inlined_call_operand.hbm [shape: f32[1,128], index: 1, kind: input, shape index: {}]
  %s2 = inlined_call_operand.hbm [shape: f32[1,128], index: 2, kind: input, shape index: {}]
  %s3 = inlined_call_operand.hbm [shape: bf16[128,384], index: 3, kind: input, shape index: {}]
  %s4 = inlined_call_operand.hbm [shape: f32[1,384], index: 4, kind: input, shape index: {}]
  %s5 = inlined_call_operand.hbm [shape: bf16[16,384], index: 5, kind: output, shape index: {}]
  %s6 = sld [smem:[#allocation0]]
  $region50: #{clip_image_encoder_forward.11} parent=0
    _
  %s8 = ssub.s32 1, %s6
  %s9 = scalar_select 0, %s8, %s6
  $region1: #{clip_image_encoder_forward.11} parent=0
    #allocation2 [shape = 'u8[4096]{0}', space=vmem, size = 0x1000, scoped, tag = 'input window, operand 0, single buffered']
    #allocation3 [shape = 's32[1]{0}', space=sflag, size = 0x4, scoped, tag = 'scoped memory for clip_image_encoder_forward.11']
    #allocation4 [shape = 's32[1]{0}', space=sflag, size = 0x4, scoped, tag = 'scoped memory for clip_image_encoder_forward.11']
    #allocation5 [shape = 'u8[512]{0}', space=vmem, size = 0x400, scoped, tag = 'input window, operand 1, single buffered']
    #allocation6 [shape = 's32[1]{0}', space=sflag, size = 0x4, scoped, tag = 'scoped memory for clip_image_encoder_forward.11']
    #allocation7 [shape = 'u8[512]{0}', space=vmem, size = 0x400, scoped, tag = 'input window, operand 2, single buffered']
    #allocation8 [shape = 'u8[98304]{0}', space=vmem, size = 0x18000, scoped, tag = 'input window, operand 3, single buffered']
    #allocation9 [shape = 's32[1]{0}', space=sflag, size = 0x4, scoped, tag = 'scoped memory for clip_image_encoder_forward.11']
    #allocation10 [shape = 'u8[1536]{0}', space=vmem, size = 0x800, scoped, tag = 'input window, operand 4, single buffered']
    #allocation11 [shape = 'u8[12288]{0}', space=vmem, size = 0x3000, scoped, tag = 'output window, operand 0, single buffered']
    %10 = vsyncpa [#allocation3], 0
    %11 = vsyncpa [#allocation6], 0
    %12 = vsyncpa [#allocation9], 0
    %13 = vsyncpa [#allocation4], 0
    // Predicated region
    $region2: #{clip_image_encoder_forward.11} parent=1 // pred_check
      _
    $region3: #{clip_image_encoder_forward.11} parent=1 // pred_check_branch
      %15 = sbr.rel (0) target = $region5
    $region4: #{clip_image_encoder_forward.11} parent=1 // pred_region
      %s17 = ssub.s32 128, 128
      %18 = vsyncadd [#allocation3], %s17
      %s19 = sshll.u32 [#allocation2], 4
      %s20 = int_to_ptr.vmem [resolvable:$true] %s19
      %25 = dma.hbm_to_vmem [thread:$0]  %s0, 128, %s20, [#allocation3], 64, 64, 4
    $region5: #{clip_image_encoder_forward.11} parent=1 // pred_fallthru
      _
    // Predicated region
    $region6: #{clip_image_encoder_forward.11} parent=1 // pred_check
      _
    $region7: #{clip_image_encoder_forward.11} parent=1 // pred_check_branch
      %27 = sbr.rel (0) target = $region9
    $region8: #{clip_image_encoder_forward.11} parent=1 // pred_region
      %s29 = ssub.s32 16, 16
      %30 = vsyncadd [#allocation6], %s29
      %s32 = sshll.u32 [#allocation5], 4
      %s33 = int_to_ptr.vmem [resolvable:$true] %s32
      %35 = dma.hbm_to_vmem [thread:$0]  %s1, 16, %s33, [#allocation6]
    $region9: #{clip_image_encoder_forward.11} parent=1 // pred_fallthru
      _
    // Predicated region
    $region10: #{clip_image_encoder_forward.11} parent=1 // pred_check
      _
    $region11: #{clip_image_encoder_forward.11} parent=1 // pred_check_branch
      %37 = sbr.rel (0) target = $region13
    $region12: #{clip_image_encoder_forward.11} parent=1 // pred_region
      %s39 = ssub.s32 16, 16
      %40 = vsyncadd [#allocation6], %s39
      %s42 = sshll.u32 [#allocation7], 4
      %s43 = int_to_ptr.vmem [resolvable:$true] %s42
      %45 = dma.hbm_to_vmem [thread:$0]  %s2, 16, %s43, [#allocation6]
    $region13: #{clip_image_encoder_forward.11} parent=1 // pred_fallthru
      _
    // Predicated region
    $region14: #{clip_image_encoder_forward.11} parent=1 // pred_check
      _
    $region15: #{clip_image_encoder_forward.11} parent=1 // pred_check_branch
      %47 = sbr.rel (0) target = $region17
    $region16: #{clip_image_encoder_forward.11} parent=1 // pred_region
      %s49 = ssub.s32 3072, 3072
      %50 = vsyncadd [#allocation9], %s49
      %s51 = sshll.u32 [#allocation8], 4
      %s52 = int_to_ptr.vmem [resolvable:$true] %s51
      %57 = dma.hbm_to_vmem [thread:$0]  %s3, 3072, %s52, [#allocation9], 192, 192, 12
    $region17: #{clip_image_encoder_forward.11} parent=1 // pred_fallthru
      _
    // Predicated region
    $region18: #{clip_image_encoder_forward.11} parent=1 // pred_check
      _
    $region19: #{clip_image_encoder_forward.11} parent=1 // pred_check_branch
      %59 = sbr.rel (0) target = $region21
    $region20: #{clip_image_encoder_forward.11} parent=1 // pred_region
      %s61 = ssub.s32 48, 48
      %62 = vsyncadd [#allocation9], %s61
      %s64 = sshll.u32 [#allocation10], 4
      %s65 = int_to_ptr.vmem [resolvable:$true] %s64
      %67 = dma.hbm_to_vmem [thread:$0]  %s4, 48, %s65, [#allocation9]
    $region21: #{clip_image_encoder_forward.11} parent=1 // pred_fallthru
      _
    // Predicated region
    $region22: #{clip_image_encoder_forward.11} parent=1 // pred_check
      _
    $region23: #{clip_image_encoder_forward.11} parent=1 // pred_check_branch
      %69 = sbr.rel (0) target = $region25
    $region24: #{clip_image_encoder_forward.11} parent=1 // pred_region
      %70 = dma.done [#allocation3], 128
    $region25: #{clip_image_encoder_forward.11} parent=1 // pred_fallthru
      _
    // Predicated region
    $region26: #{clip_image_encoder_forward.11} parent=1 // pred_check
      _
    $region27: #{clip_image_encoder_forward.11} parent=1 // pred_check_branch
      %72 = sbr.rel (0) target = $region29
    $region28: #{clip_image_encoder_forward.11} parent=1 // pred_region
      %73 = dma.done [#allocation6], 16
    $region29: #{clip_image_encoder_forward.11} parent=1 // pred_fallthru
      _
    // Predicated region
    $region30: #{clip_image_encoder_forward.11} parent=1 // pred_check
      _
    $region31: #{clip_image_encoder_forward.11} parent=1 // pred_check_branch
      %75 = sbr.rel (0) target = $region33
    $region32: #{clip_image_encoder_forward.11} parent=1 // pred_region
      %76 = dma.done [#allocation6], 16
    $region33: #{clip_image_encoder_forward.11} parent=1 // pred_fallthru
      _
    // Predicated region
    $region34: #{clip_image_encoder_forward.11} parent=1 // pred_check
      _
    $region35: #{clip_image_encoder_forward.11} parent=1 // pred_check_branch
      %78 = sbr.rel (0) target = $region37
    $region36: #{clip_image_encoder_forward.11} parent=1 // pred_region
      %79 = dma.done [#allocation9], 3072
    $region37: #{clip_image_encoder_forward.11} parent=1 // pred_fallthru
      _
    // Predicated region
    $region38: #{clip_image_encoder_forward.11} parent=1 // pred_check
      _
    $region39: #{clip_image_encoder_forward.11} parent=1 // pred_check_branch
      %81 = sbr.rel (0) target = $region41
    $region40: #{clip_image_encoder_forward.11} parent=1 // pred_region
      %82 = dma.done [#allocation9], 48
    $region41: #{clip_image_encoder_forward.11} parent=1 // pred_fallthru
      _
    %v84 = vld [vmem:[#allocation2] sm:$0xf]
    %v85 = vld [vmem:[#allocation2 + $0x4] sm:$0xf]
    %v86 = vunpack.c.l.bf16 %v84
    %v87 = vunpack.c.l.bf16 %v85
    %88 = vadd.xlane.f32.xlu0 %v86
    %v89 = vpop.xlane.xlu0 %88
    %90 = vadd.xlane.f32.xlu0 %v87
    %v91 = vpop.xlane.xlu0 %90
    %v92 = vrcp.pop 128.0
    %v93 = vmul.f32 %v89, %v92
    %v94 = vmul.f32 %v91, %v92
    %v95 = vsub.f32 %v86, %v93
    %v96 = vsub.f32 %v87, %v94
    %v97 = vmul.f32 %v95, %v95
    %v98 = vmul.f32 %v96, %v96
    %99 = vadd.xlane.f32.xlu0 %v97
    %v100 = vpop.xlane.xlu0 %99
    %101 = vadd.xlane.f32.xlu0 %v98
    %v102 = vpop.xlane.xlu0 %101
    %v103 = vmul.f32 %v100, %v92
    %v104 = vmul.f32 %v102, %v92
    %v105 = vadd.f32 %v103, 1e-05
    %v106 = vadd.f32 %v104, 1e-05
    %v107 = vrsqrt.pop %v105
    %v108 = vrsqrt.pop %v106
    %v109 = vmul.f32 %v95, %v107
    %v110 = vmul.f32 %v96, %v108
    %v111 = vld [vmem:[#allocation5] sm:$0x1]
    %v113 = vlaneseq
    %v114 = vshrl.u32 %v113, 7
    %v115 = vsub.s32 0, %v114
    %v116 = vrot.slane %v111, %v115
    %v118 = vmul.f32 %v109, %v116
    %v119 = vmul.f32 %v110, %v116
    %v120 = vld [vmem:[#allocation7] sm:$0x1]
    %v122 = vlaneseq
    %v123 = vshrl.u32 %v122, 7
    %v124 = vsub.s32 0, %v123
    %v125 = vrot.slane %v120, %v124
    %v127 = vadd.f32 %v118, %v125
    %v128 = vadd.f32 %v119, %v125
    %v129 = vpack.c.bf16 %v128, %v127
    %v130 = vld [vmem:[#allocation8] sm:$0xff]
    %v131 = vld [vmem:[#allocation8 + $0x8] sm:$0xf]
    %v132 = vld [vmem:[#allocation8 + $0xc] sm:$0xff]
    %v133 = vld [vmem:[#allocation8 + $0x14] sm:$0xf]
    %v134 = vld [vmem:[#allocation8 + $0x18] sm:$0xff]
    %v135 = vld [vmem:[#allocation8 + $0x20] sm:$0xf]
    %v136 = vld [vmem:[#allocation8 + $0x24] sm:$0xff]
    %v137 = vld [vmem:[#allocation8 + $0x2c] sm:$0xf]
    %v138 = vld [vmem:[#allocation8 + $0x30] sm:$0xff]
    %v139 = vld [vmem:[#allocation8 + $0x38] sm:$0xf]
    %v140 = vld [vmem:[#allocation8 + $0x3c] sm:$0xff]
    %v141 = vld [vmem:[#allocation8 + $0x44] sm:$0xf]
    %v142 = vld [vmem:[#allocation8 + $0x48] sm:$0xff]
    %v143 = vld [vmem:[#allocation8 + $0x50] sm:$0xf]
    %v144 = vld [vmem:[#allocation8 + $0x54] sm:$0xff]
    %v145 = vld [vmem:[#allocation8 + $0x5c] sm:$0xf]
    %v146 = vld [vmem:[#allocation8 + $0x60] sm:$0xff]
    %v147 = vld [vmem:[#allocation8 + $0x68] sm:$0xf]
    %v148 = vld [vmem:[#allocation8 + $0x6c] sm:$0xff]
    %v149 = vld [vmem:[#allocation8 + $0x74] sm:$0xf]
    %v150 = vld [vmem:[#allocation8 + $0x78] sm:$0xff]
    %v151 = vld [vmem:[#allocation8 + $0x80] sm:$0xf]
    %v152 = vld [vmem:[#allocation8 + $0x84] sm:$0xff]
    %v153 = vld [vmem:[#allocation8 + $0x8c] sm:$0xf]
    %v154 = vld [vmem:[#allocation8 + $0x90] sm:$0xff]
    %v155 = vld [vmem:[#allocation8 + $0x98] sm:$0xf]
    %v156 = vld [vmem:[#allocation8 + $0x9c] sm:$0xff]
    %v157 = vld [vmem:[#allocation8 + $0xa4] sm:$0xf]
    %v158 = vld [vmem:[#allocation8 + $0xa8] sm:$0xff]
    %v159 = vld [vmem:[#allocation8 + $0xb0] sm:$0xf]
    %v160 = vld [vmem:[#allocation8 + $0xb4] sm:$0xff]
    %v161 = vld [vmem:[#allocation8 + $0xbc] sm:$0xf]
    %v162 = vld [vmem:[#allocation10] sm:$0x7]
    %v164 = vlaneseq
    %v165 = vshrl.u32 %v164, 7
    %v166 = vsub.s32 0, %v165
    %v167 = vrot.slane %v162, %v166
    %v168 = vlaneseq
    %v169 = vshrl.u32 %v168, 7
    %v170 = vsub.s32 1, %v169
    %v171 = vrot.slane %v162, %v170
    %v172 = vlaneseq
    %v173 = vshrl.u32 %v172, 7
    %v174 = vsub.s32 2, %v173
    %v175 = vrot.slane %v162, %v174
    %v211 = vunpack.c.l.b16 %v130
    %v212 = vunpack.c.h.b16 %v130
    %v213 = vunpack.c.l.b16 %v131
    %v214 = vunpack.c.l.b16 %v132
    %v215 = vunpack.c.h.b16 %v132
    %v216 = vunpack.c.l.b16 %v133
    %v217 = vunpack.c.l.b16 %v134
    %v218 = vunpack.c.h.b16 %v134
    %v219 = vunpack.c.l.b16 %v135
    %v220 = vunpack.c.l.b16 %v136
    %v221 = vunpack.c.h.b16 %v136
    %v222 = vunpack.c.l.b16 %v137
    %v223 = vunpack.c.l.b16 %v138
    %v224 = vunpack.c.h.b16 %v138
    %v225 = vunpack.c.l.b16 %v139
    %v226 = vunpack.c.l.b16 %v140
    %v227 = vunpack.c.h.b16 %v140
    %v228 = vunpack.c.l.b16 %v141
    %v229 = vunpack.c.l.b16 %v142
    %v230 = vunpack.c.h.b16 %v142
    %v231 = vunpack.c.l.b16 %v143
    %v232 = vunpack.c.l.b16 %v144
    %v233 = vunpack.c.h.b16 %v144
    %v234 = vunpack.c.l.b16 %v145
    %v235 = vunpack.c.l.b16 %v146
    %v236 = vunpack.c.h.b16 %v146
    %v237 = vunpack.c.l.b16 %v147
    %v238 = vunpack.c.l.b16 %v148
    %v239 = vunpack.c.h.b16 %v148
    %v240 = vunpack.c.l.b16 %v149
    %v241 = vunpack.c.l.b16 %v150
    %v242 = vunpack.c.h.b16 %v150
    %v243 = vunpack.c.l.b16 %v151
    %v244 = vunpack.c.l.b16 %v152
    %v245 = vunpack.c.h.b16 %v152
    %v246 = vunpack.c.l.b16 %v153
    %v247 = vunpack.c.l.b16 %v154
    %v248 = vunpack.c.h.b16 %v154
    %v249 = vunpack.c.l.b16 %v155
    %v250 = vunpack.c.l.b16 %v156
    %v251 = vunpack.c.h.b16 %v156
    %v252 = vunpack.c.l.b16 %v157
    %v253 = vunpack.c.l.b16 %v158
    %v254 = vunpack.c.h.b16 %v158
    %v255 = vunpack.c.l.b16 %v159
    %v256 = vunpack.c.l.b16 %v160
    %v257 = vunpack.c.h.b16 %v160
    %v258 = vunpack.c.l.b16 %v161
    %v259 = vpack.c.b16 %v214, %v211
    %v260 = vpack.c.b16 %v215, %v212
    %v261 = vpack.c.b16 %v216, %v213
    %v262 = vpack.c.b16 %v220, %v217
    %v263 = vpack.c.b16 %v221, %v218
    %v264 = vpack.c.b16 %v222, %v219
    %v265 = vpack.c.b16 %v226, %v223
    %v266 = vpack.c.b16 %v227, %v224
    %v267 = vpack.c.b16 %v228, %v225
    %v268 = vpack.c.b16 %v232, %v229
    %v269 = vpack.c.b16 %v233, %v230
    %v270 = vpack.c.b16 %v234, %v231
    %v271 = vpack.c.b16 %v238, %v235
    %v272 = vpack.c.b16 %v239, %v236
    %v273 = vpack.c.b16 %v240, %v237
    %v274 = vpack.c.b16 %v244, %v241
    %v275 = vpack.c.b16 %v245, %v242
    %v276 = vpack.c.b16 %v246, %v243
    %v277 = vpack.c.b16 %v250, %v247
    %v278 = vpack.c.b16 %v251, %v248
    %v279 = vpack.c.b16 %v252, %v249
    %v280 = vpack.c.b16 %v256, %v253
    %v281 = vpack.c.b16 %v257, %v254
    %v282 = vpack.c.b16 %v258, %v255
    %307 = vmatprep.subr.bf16.mxu0 %v260
    %308 = vmatpush1.bf16.msra.mxu0 %v259
    %309 = vmatprep.subr.bf16.mxu0 %v263
    %310 = vmatpush1.bf16.msra.mxu0 %v262
    %311 = vmatprep.subr.bf16.mxu0 %v266
    %312 = vmatpush1.bf16.msra.mxu0 %v265
    %313 = vmatprep.subr.bf16.mxu0 %v269
    %314 = vmatpush1.bf16.msra.mxu0 %v268
    %315 = vmatprep.subr.bf16.mxu0 %v272
    %316 = vmatpush1.bf16.msra.mxu0 %v271
    %317 = vmatprep.subr.bf16.mxu0 %v275
    %318 = vmatpush1.bf16.msra.mxu0 %v274
    %319 = vmatprep.subr.bf16.mxu0 %v278
    %320 = vmatpush1.bf16.msra.mxu0 %v277
    %321 = vmatprep.subr.bf16.mxu0 %v281
    %322 = vmatpush1.bf16.msra.mxu0 %v280
    %323 = vmatprep.subr.bf16.mxu0 0
    %324 = vmatpush1.bf16.msra.mxu0 0
    %325 = vmatprep.subr.bf16.mxu0 0
    %326 = vmatpush1.bf16.msra.mxu0 0
    %327 = vmatprep.subr.bf16.mxu0 0
    %328 = vmatpush1.bf16.msra.mxu0 0
    %329 = vmatprep.subr.bf16.mxu0 0
    %330 = vmatpush1.bf16.msra.mxu0 0
    %331 = vmatprep.subr.bf16.mxu0 0
    %332 = vmatpush1.bf16.msra.mxu0 0
    %333 = vmatprep.subr.bf16.mxu0 0
    %334 = vmatpush1.bf16.msra.mxu0 0
    %335 = vmatprep.subr.bf16.mxu0 0
    %336 = vmatpush1.bf16.msra.mxu0 0
    %337 = vmatprep.subr.bf16.mxu0 0
    %338 = vmatpush1.bf16.msra.mxu0 0
    %339 = vmatprep.mubr.bf16.mxu0 0
    %340 = vmatmul.mubr.bf16.gmra.mrb[0].mxu0 %v129
    %v341 = vpop.f32.mrb[0].mxu0
    %v342 = vadd.f32 %v167, %v341
    %v343 = vpop.f32.mrb[0].mxu0
    %v344 = vadd.f32 %v171, %v343
    %v345 = vpop.f32.mrb[0].mxu0
    %v346 = vadd.f32 %v167, %v345
    %v347 = vpop.f32.mrb[0].mxu0
    %v348 = vadd.f32 %v171, %v347
    %349 = vdwg.mxu0
    %350 = vmatprep.subr.bf16.mxu0 0
    %351 = vmatpush1.bf16.msra.mxu0 %v261
    %352 = vmatprep.subr.bf16.mxu0 0
    %353 = vmatpush1.bf16.msra.mxu0 %v264
    %354 = vmatprep.subr.bf16.mxu0 0
    %355 = vmatpush1.bf16.msra.mxu0 %v267
    %356 = vmatprep.subr.bf16.mxu0 0
    %357 = vmatpush1.bf16.msra.mxu0 %v270
    %358 = vmatprep.subr.bf16.mxu0 0
    %359 = vmatpush1.bf16.msra.mxu0 %v273
    %360 = vmatprep.subr.bf16.mxu0 0
    %361 = vmatpush1.bf16.msra.mxu0 %v276
    %362 = vmatprep.subr.bf16.mxu0 0
    %363 = vmatpush1.bf16.msra.mxu0 %v279
    %364 = vmatprep.subr.bf16.mxu0 0
    %365 = vmatpush1.bf16.msra.mxu0 %v282
    %366 = vmatprep.subr.bf16.mxu0 0
    %367 = vmatpush1.bf16.msra.mxu0 0
    %368 = vmatprep.subr.bf16.mxu0 0
    %369 = vmatpush1.bf16.msra.mxu0 0
    %370 = vmatprep.subr.bf16.mxu0 0
    %371 = vmatpush1.bf16.msra.mxu0 0
    %372 = vmatprep.subr.bf16.mxu0 0
    %373 = vmatpush1.bf16.msra.mxu0 0
    %374 = vmatprep.subr.bf16.mxu0 0
    %375 = vmatpush1.bf16.msra.mxu0 0
    %376 = vmatprep.subr.bf16.mxu0 0
    %377 = vmatpush1.bf16.msra.mxu0 0
    %378 = vmatprep.subr.bf16.mxu0 0
    %379 = vmatpush1.bf16.msra.mxu0 0
    %380 = vmatprep.subr.bf16.mxu0 0
    %381 = vmatpush1.bf16.msra.mxu0 0
    %382 = vmatprep.mubr.bf16.mxu0 0
    %383 = vmatmul.mubr.bf16.gmra.mrb[0].mxu0 %v129
    %v384 = vpop.f32.mrb[0].mxu0
    %v385 = vadd.f32 %v175, %v384
    %v386 = vpop.f32.mrb[0].mxu0
    %v387 = vpop.f32.mrb[0].mxu0
    %v388 = vadd.f32 %v175, %v387
    %v389 = vpop.f32.mrb[0].mxu0
    %390 = vdwg.mxu0
    %v391 = vpack.c.bf16 %v346, %v342
    %v392 = vpack.c.bf16 %v348, %v344
    %v393 = vpack.c.bf16 %v388, %v385
    %v397 = vunpack.c.l.b16 %v391
    %v398 = vunpack.c.l.b16 %v392
    %v399 = vunpack.c.l.b16 %v393
    %v400 = vunpack.c.h.b16 %v391
    %v401 = vunpack.c.h.b16 %v392
    %v402 = vunpack.c.h.b16 %v393
    %v403 = vpack.c.b16 %v398, %v397
    %v404 = vpack.c.b16 %v399, %v399
    %v405 = vpack.c.b16 %v401, %v400
    %v406 = vpack.c.b16 %v402, %v402
    %411 = vst [vmem:[#allocation11] sm:$0xff] %v403
    %412 = vst [vmem:[#allocation11 + $0x8] sm:$0xf] %v404
    %413 = vst [vmem:[#allocation11 + $0xc] sm:$0xff] %v405
    %414 = vst [vmem:[#allocation11 + $0x14] sm:$0xf] %v406
    // Predicated region
    $region42: #{clip_image_encoder_forward.11} parent=1 // pred_check
      _
    $region43: #{clip_image_encoder_forward.11} parent=1 // pred_check_branch
      %416 = sbr.rel (0) target = $region45
    $region44: #{clip_image_encoder_forward.11} parent=1 // pred_region
      %s418 = ssub.s32 384, 384
      %419 = vsyncadd [#allocation4], %s418
      %s420 = sshll.u32 [#allocation11], 4
      %s421 = int_to_ptr.vmem [resolvable:$true] %s420
      %426 = dma.vmem_to_hbm [thread:$0]  %s421, 384, %s5, [#allocation4], 192, 192, 12
    $region45: #{clip_image_encoder_forward.11} parent=1 // pred_fallthru
      _
    // Predicated region
    $region46: #{clip_image_encoder_forward.11} parent=1 // pred_check
      _
    $region47: #{clip_image_encoder_forward.11} parent=1 // pred_check_branch
      %428 = sbr.rel (0) target = $region49
    $region48: #{clip_image_encoder_forward.11} parent=1 // pred_region
      %429 = dma.done [#allocation4], 384
    $region49: #{clip_image_encoder_forward.11} parent=1 // pred_fallthru
      _
    %430 = vsyncpa [#allocation3], 1
    %431 = vsyncpa [#allocation6], 1
    %432 = vsyncpa [#allocation9], 1
    %433 = vsyncpa [#allocation4], 1

// kernel: clip_image_encoder_forward.12
$region0: #{clip_image_encoder_forward.12}
  #allocation0 [shape = 'u32[]', space=smem, size = 0x4, offset = 0x4, fixed_abs, tag = 'smem constant byte address 0x4 - core index']
  #allocation1 [shape = 'u32[144,128]{1,0:T(1,128)}', space=vmem, size = 0x12000, scoped, tag = 'internal scratch']
  #allocation2 [shape = 'bf16[8,128]{1,0:T(8,128)(2,1)}', space=vmem, size = 0x800, scoped, tag = 'scratch operand']
  %s0 = inlined_call_operand.hbm [shape: bf16[2,8,384], index: 0, kind: input, shape index: {}]
  %s1 = inlined_call_operand.hbm [shape: bf16[128,128], index: 1, kind: input, shape index: {}]
  %s2 = inlined_call_operand.hbm [shape: f32[1,128], index: 2, kind: input, shape index: {}]
  %s3 = inlined_call_operand.hbm [shape: bf16[2,8,128], index: 3, kind: input, shape index: {}]
  %s4 = inlined_call_operand.hbm [shape: bf16[2,8,128], index: 4, kind: output, shape index: {}]
  %s5 = sld [smem:[#allocation0]]
  $region65: #{clip_image_encoder_forward.12} parent=0
    _
  %s7 = ssub.s32 1, %s5
  %s8 = scalar_select 0, %s7, %s5
  $region1: #{clip_image_encoder_forward.12} parent=0
    #allocation3 [shape = 'u8[12288]{0}', space=vmem, size = 0x3000, scoped, tag = 'input window, operand 0']
    #allocation4 [shape = 's32[2]{0}', space=sflag, size = 0x8, scoped, tag = 'scoped memory for clip_image_encoder_forward.12']
    #allocation5 [shape = 's32[2]{0}', space=sflag, size = 0x8, scoped, tag = 'scoped memory for clip_image_encoder_forward.12']
    #allocation6 [shape = 'u8[32768]{0}', space=vmem, size = 0x8000, scoped, tag = 'input window, operand 1, single buffered']
    #allocation7 [shape = 's32[1]{0}', space=sflag, size = 0x4, scoped, tag = 'scoped memory for clip_image_encoder_forward.12']
    #allocation8 [shape = 'u8[512]{0}', space=vmem, size = 0x400, scoped, tag = 'input window, operand 2, single buffered']
    #allocation9 [shape = 'u8[4096]{0}', space=vmem, size = 0x1000, scoped, tag = 'input window, operand 3']
    #allocation10 [shape = 's32[2]{0}', space=sflag, size = 0x8, scoped, tag = 'scoped memory for clip_image_encoder_forward.12']
    #allocation11 [shape = 'u8[4096]{0}', space=vmem, size = 0x1000, scoped, tag = 'output window, operand 0']
    %9 = vsyncpa [#allocation4], 0
    %s10 = scalar_lea.sflag [#allocation4], 1
    %11 = vsyncpa %s10, 0
    %12 = vsyncpa [#allocation7], 0
    %13 = vsyncpa [#allocation10], 0
    %s14 = scalar_lea.sflag [#allocation10], 1
    %15 = vsyncpa %s14, 0
    %16 = vsyncpa [#allocation5], 0
    %s17 = scalar_lea.sflag [#allocation5], 1
    %18 = vsyncpa %s17, 0
    loop: start=0, step=1, limit=4
    $region2: #{clip_image_encoder_forward.12} parent=1 // loop_pre_header
      _
    $region3: #{clip_image_encoder_forward.12} parent=1 // loop_header
      %s20 = sphi 0, %s24
      %p21 = scmp.ge.s32.totalorder %s20, 4
      %s30 = sphi 0, %s32
      %s33 = sphi 0, %s30
      %s34 = sphi 0, %s33
      %s50 = sphi 0, %s34
      %s54 = sphi 0, %s54
      %s56 = sphi 0, %s54
      %s57 = sphi 0, %s56
      %s71 = sphi 0, %s57
      %s75 = sphi 0, %s75
      %s77 = sphi 0, %s75
      %s78 = sphi 0, %s77
      %s92 = sphi 0, %s78
      %s98 = sphi 0, %s100
      %s101 = sphi 0, %s98
      %s102 = sphi 0, %s101
      %s118 = sphi 0, %s102
      %s124 = sphi 0, %s126
      %s127 = sphi 0, %s124
      %s128 = sphi 0, %s127
      %s144 = sphi 0, %s128
    $region4: #{clip_image_encoder_forward.12} parent=1 // loop_header_branch
      %23 = sbr.rel (%p21) target = $region8
    $region5: #{clip_image_encoder_forward.12} parent=1 // loop_body
      %s25 = ssub.s32 %s20, 1
      %s26 = ssub.s32 %s20, 2
      %s27 = sadd.s32 %s20, 1
      %s28 = ssub.s32 %s20, %s27
      %p29 = scmp.eq.s32.totalorder %s28, 0
      %s31 = sadd.s32 %s30, 1
      %s32 = scalar_select %p29, %s30, %s31
      %p35 = pneg %p29
      %p36 = scmp.eq.s32.totalorder %s20, 1
      %p37 = por %p35, %p36
      %p38 = scmp.ne.s32.totalorder %s30, %s33
      %p39 = scmp.eq.s32.totalorder %s20, 0
      %p40 = por %p38, %p39
      %p41 = scmp.ne.s32.totalorder %s30, %s33
      %p42 = scmp.eq.s32.totalorder %s25, 1
      %p43 = por %p41, %p42
      %p44 = scmp.ne.s32.totalorder %s33, %s34
      %p45 = scmp.eq.s32.totalorder %s25, 0
      %p46 = por %p44, %p45
      %p47 = scmp.ne.s32.totalorder %s33, %s34
      %p48 = scmp.eq.s32.totalorder %s26, 1
      %p49 = por %p47, %p48
      %p51 = scmp.ne.s32.totalorder %s34, %s50
      %p52 = scmp.eq.s32.totalorder %s26, 0
      %p53 = por %p51, %p52
      %s55 = sadd.s32 %s54, 1
      %p58 = scmp.eq.s32.totalorder %s20, 1
      %p59 = scmp.ne.s32.totalorder %s54, %s56
      %p60 = scmp.eq.s32.totalorder %s20, 0
      %p61 = por %p59, %p60
      %p62 = scmp.ne.s32.totalorder %s54, %s56
      %p63 = scmp.eq.s32.totalorder %s25, 1
      %p64 = por %p62, %p63
      %p65 = scmp.ne.s32.totalorder %s56, %s57
      %p66 = scmp.eq.s32.totalorder %s25, 0
      %p67 = por %p65, %p66
      %p68 = scmp.ne.s32.totalorder %s56, %s57
      %p69 = scmp.eq.s32.totalorder %s26, 1
      %p70 = por %p68, %p69
      %p72 = scmp.ne.s32.totalorder %s57, %s71
      %p73 = scmp.eq.s32.totalorder %s26, 0
      %p74 = por %p72, %p73
      %s76 = sadd.s32 %s75, 1
      %p79 = scmp.eq.s32.totalorder %s20, 1
      %p80 = scmp.ne.s32.totalorder %s75, %s77
      %p81 = scmp.eq.s32.totalorder %s20, 0
      %p82 = por %p80, %p81
      %p83 = scmp.ne.s32.totalorder %s75, %s77
      %p84 = scmp.eq.s32.totalorder %s25, 1
      %p85 = por %p83, %p84
      %p86 = scmp.ne.s32.totalorder %s77, %s78
      %p87 = scmp.eq.s32.totalorder %s25, 0
      %p88 = por %p86, %p87
      %p89 = scmp.ne.s32.totalorder %s77, %s78
      %p90 = scmp.eq.s32.totalorder %s26, 1
      %p91 = por %p89, %p90
      %p93 = scmp.ne.s32.totalorder %s78, %s92
      %p94 = scmp.eq.s32.totalorder %s26, 0
      %p95 = por %p93, %p94
      %s96 = ssub.s32 %s20, %s27
      %p97 = scmp.eq.s32.totalorder %s96, 0
      %s99 = sadd.s32 %s98, 1
      %s100 = scalar_select %p97, %s98, %s99
      %p103 = pneg %p97
      %p104 = scmp.eq.s32.totalorder %s20, 1
      %p105 = por %p103, %p104
      %p106 = scmp.ne.s32.totalorder %s98, %s101
      %p107 = scmp.eq.s32.totalorder %s20, 0
      %p108 = por %p106, %p107
      %p109 = scmp.ne.s32.totalorder %s98, %s101
      %p110 = scmp.eq.s32.totalorder %s25, 1
      %p111 = por %p109, %p110
      %p112 = scmp.ne.s32.totalorder %s101, %s102
      %p113 = scmp.eq.s32.totalorder %s25, 0
      %p114 = por %p112, %p113
      %p115 = scmp.ne.s32.totalorder %s101, %s102
      %p116 = scmp.eq.s32.totalorder %s26, 1
      %p117 = por %p115, %p116
      %p119 = scmp.ne.s32.totalorder %s102, %s118
      %p120 = scmp.eq.s32.totalorder %s26, 0
      %p121 = por %p119, %p120
      %s122 = ssub.s32 %s20, %s27
      %p123 = scmp.eq.s32.totalorder %s122, 0
      %s125 = sadd.s32 %s124, 1
      %s126 = scalar_select %p123, %s124, %s125
      %p129 = pneg %p123
      %p130 = scmp.eq.s32.totalorder %s20, 1
      %p131 = por %p129, %p130
      %p132 = scmp.ne.s32.totalorder %s124, %s127
      %p133 = scmp.eq.s32.totalorder %s20, 0
      %p134 = por %p132, %p133
      %p135 = scmp.ne.s32.totalorder %s124, %s127
      %p136 = scmp.eq.s32.totalorder %s25, 1
      %p137 = por %p135, %p136
      %p138 = scmp.ne.s32.totalorder %s127, %s128
      %p139 = scmp.eq.s32.totalorder %s25, 0
      %p140 = por %p138, %p139
      %p141 = scmp.ne.s32.totalorder %s127, %s128
      %p142 = scmp.eq.s32.totalorder %s26, 1
      %p143 = por %p141, %p142
      %p145 = scmp.ne.s32.totalorder %s128, %s144
      %p146 = scmp.eq.s32.totalorder %s26, 0
      %p147 = por %p145, %p146
      %p148 = scmp.le.s32.totalorder 1, %s20
      %p149 = scmp.lt.s32.totalorder %s20, 3
      %p150 = pnand %p148, %p149
      %p151 = pneg %p150
      // Predicated region
      $region9: #{clip_image_encoder_forward.12} parent=5 // pred_check
        _
      $region10: #{clip_image_encoder_forward.12} parent=5 // pred_check_branch
        %153 = sbr.rel (%p150) target = $region12
      $region11: #{clip_image_encoder_forward.12} parent=5 // pred_region
        %s154 = ssub.s32 %s20, 1
        // Predicated region
        $region13: #{clip_image_encoder_forward.12} parent=11 // pred_check
          %p155 = pneg %p67
        $region14: #{clip_image_encoder_forward.12} parent=11 // pred_check_branch
          %157 = sbr.rel (%p155) target = $region16
        $region15: #{clip_image_encoder_forward.12} parent=11 // pred_region
          %s159 = ssub.s32 1024, 1024
          %160 = vsyncadd [#allocation7], %s159
          %s161 = sshll.u32 [#allocation6], 4
          %s162 = int_to_ptr.vmem [resolvable:$true] %s161
          %167 = dma.hbm_to_vmem [thread:$0]  %s1, 1024, %s162, [#allocation7], 64, 64, 4
        $region16: #{clip_image_encoder_forward.12} parent=11 // pred_fallthru
          _
        // Predicated region
        $region17: #{clip_image_encoder_forward.12} parent=11 // pred_check
          %p168 = pneg %p88
        $region18: #{clip_image_encoder_forward.12} parent=11 // pred_check_branch
          %170 = sbr.rel (%p168) target = $region20
        $region19: #{clip_image_encoder_forward.12} parent=11 // pred_region
          %s172 = ssub.s32 16, 16
          %173 = vsyncadd [#allocation7], %s172
          %s175 = sshll.u32 [#allocation8], 4
          %s176 = int_to_ptr.vmem [resolvable:$true] %s175
          %178 = dma.hbm_to_vmem [thread:$0]  %s2, 16, %s176, [#allocation7]
        $region20: #{clip_image_encoder_forward.12} parent=11 // pred_fallthru
          _
      $region12: #{clip_image_encoder_forward.12} parent=5 // pred_fallthru
        _
      %p179 = scmp.lt.s32.totalorder %s20, 2
      // Predicated region
      $region21: #{clip_image_encoder_forward.12} parent=5 // pred_check
        %p180 = pneg %p179
      $region22: #{clip_image_encoder_forward.12} parent=5 // pred_check_branch
        %182 = sbr.rel (%p180) target = $region24
      $region23: #{clip_image_encoder_forward.12} parent=5 // pred_region
        // Predicated region
        $region25: #{clip_image_encoder_forward.12} parent=23 // pred_check
          %p183 = pneg %p40
        $region26: #{clip_image_encoder_forward.12} parent=23 // pred_check_branch
          %185 = sbr.rel (%p183) target = $region28
        $region27: #{clip_image_encoder_forward.12} parent=23 // pred_region
          %s186 = sand.u32 %s30, 1
          %s187 = scalar_lea.sflag [#allocation4], %s186
          %s188 = sand.u32 %s30, 1
          %s189 = smul.addr %s188, 12
          %s190 = scalar_lea.vmem [#allocation3], %s189
          %s192 = ssub.s32 192, 192
          %193 = vsyncadd %s187, %s192
          %s194 = smul.addr %s20, 3
          %s195 = smul.addr %s194, 64
          %s196 = scalar_lea.hbm %s0, %s195
          %s198 = sshll.u32 %s190, 4
          %s199 = int_to_ptr.vmem [resolvable:$true] %s198
          %201 = dma.hbm_to_vmem [thread:$0]  %s196, 192, %s199, %s187
        $region28: #{clip_image_encoder_forward.12} parent=23 // pred_fallthru
          _
        // Predicated region
        $region29: #{clip_image_encoder_forward.12} parent=23 // pred_check
          %p202 = pneg %p108
        $region30: #{clip_image_encoder_forward.12} parent=23 // pred_check_branch
          %204 = sbr.rel (%p202) target = $region32
        $region31: #{clip_image_encoder_forward.12} parent=23 // pred_region
          %s205 = sand.u32 %s98, 1
          %s206 = scalar_lea.sflag [#allocation10], %s205
          %s207 = sand.u32 %s98, 1
          %s208 = smul.addr %s207, 4
          %s209 = scalar_lea.vmem [#allocation9], %s208
          %s211 = ssub.s32 64, 64
          %212 = vsyncadd %s206, %s211
          %s213 = smul.addr %s20, 64
          %s214 = scalar_lea.hbm %s3, %s213
          %s216 = sshll.u32 %s209, 4
          %s217 = int_to_ptr.vmem [resolvable:$true] %s216
          %219 = dma.hbm_to_vmem [thread:$0]  %s214, 64, %s217, %s206
        $region32: #{clip_image_encoder_forward.12} parent=23 // pred_fallthru
          _
      $region24: #{clip_image_encoder_forward.12} parent=5 // pred_fallthru
        _
      %p220 = scmp.le.s32.totalorder 1, %s20
      %p221 = scmp.lt.s32.totalorder %s20, 3
      %p222 = pnand %p220, %p221
      %p223 = pneg %p222
      // Predicated region
      $region33: #{clip_image_encoder_forward.12} parent=5 // pred_check
        _
      $region34: #{clip_image_encoder_forward.12} parent=5 // pred_check_branch
        %225 = sbr.rel (%p222) target = $region36
      $region35: #{clip_image_encoder_forward.12} parent=5 // pred_region
        %s226 = ssub.s32 %s20, 1
        %s227 = sand.u32 %s33, 1
        %s228 = scalar_lea.sflag [#allocation4], %s227
        %s229 = sand.u32 %s33, 1
        %s230 = smul.addr %s229, 12
        %s231 = scalar_lea.vmem [#allocation3], %s230
        // Predicated region
        $region37: #{clip_image_encoder_forward.12} parent=35 // pred_check
          %p232 = pneg %p46
        $region38: #{clip_image_encoder_forward.12} parent=35 // pred_check_branch
          %234 = sbr.rel (%p232) target = $region40
        $region39: #{clip_image_encoder_forward.12} parent=35 // pred_region
          %235 = dma.done %s228, 192
        $region40: #{clip_image_encoder_forward.12} parent=35 // pred_fallthru
          _
        // Predicated region
        $region41: #{clip_image_encoder_forward.12} parent=35 // pred_check
          %p236 = pneg %p67
        $region42: #{clip_image_encoder_forward.12} parent=35 // pred_check_branch
          %238 = sbr.rel (%p236) target = $region44
        $region43: #{clip_image_encoder_forward.12} parent=35 // pred_region
          %239 = dma.done [#allocation7], 1024
        $region44: #{clip_image_encoder_forward.12} parent=35 // pred_fallthru
          _
        // Predicated region
        $region45: #{clip_image_encoder_forward.12} parent=35 // pred_check
          %p240 = pneg %p88
        $region46: #{clip_image_encoder_forward.12} parent=35 // pred_check_branch
          %242 = sbr.rel (%p240) target = $region48
        $region47: #{clip_image_encoder_forward.12} parent=35 // pred_region
          %243 = dma.done [#allocation7], 16
        $region48: #{clip_image_encoder_forward.12} parent=35 // pred_fallthru
          _
        %s244 = sand.u32 %s101, 1
        %s245 = scalar_lea.sflag [#allocation10], %s244
        %s246 = sand.u32 %s101, 1
        %s247 = smul.addr %s246, 4
        %s248 = scalar_lea.vmem [#allocation9], %s247
        // Predicated region
        $region49: #{clip_image_encoder_forward.12} parent=35 // pred_check
          %p249 = pneg %p114
        $region50: #{clip_image_encoder_forward.12} parent=35 // pred_check_branch
          %251 = sbr.rel (%p249) target = $region52
        $region51: #{clip_image_encoder_forward.12} parent=35 // pred_region
          %252 = dma.done %s245, 64
        $region52: #{clip_image_encoder_forward.12} parent=35 // pred_fallthru
          _
        %s253 = sand.u32 %s33, 1
        %s254 = scalar_lea.sflag [#allocation4], %s253
        %s255 = sand.u32 %s33, 1
        %s256 = smul.addr %s255, 12
        %s257 = scalar_lea.vmem [#allocation3], %s256
        %p258 = pneg %p46
        %p259 = pneg %p43
        %p260 = pneg %p67
        %p261 = pneg %p64
        %p262 = pneg %p88
        %p263 = pneg %p85
        %s264 = sand.u32 %s101, 1
        %s265 = scalar_lea.sflag [#allocation10], %s264
        %s266 = sand.u32 %s101, 1
        %s267 = smul.addr %s266, 4
        %s268 = scalar_lea.vmem [#allocation9], %s267
        %p269 = pneg %p114
        %p270 = pneg %p111
        %p271 = pneg %p140
        %p272 = pneg %p137
        %s273 = sand.u32 %s127, 1
        %s274 = scalar_lea.sflag [#allocation5], %s273
        %s275 = sand.u32 %s127, 1
        %s276 = smul.addr %s275, 4
        %s277 = scalar_lea.vmem [#allocation11], %s276
        %v279 = vlaneseq
        %v280 = vand.u32 %v279, 127
        %vm281 = vcmp.lt.s32.totalorder %v280, 5
        %v282 = vsel %vm281, 0.0, -1e+30
        %v283 = vld [vmem:[%s231] sm:$0xf]
        %v284 = vld [vmem:[%s231 + $0x4] sm:$0xf]
        %v285 = vld [vmem:[%s231 + $0x8] sm:$0xf]
        %v286 = vunpack.c.l.bf16 %v283
        %v287 = vmul.f32 %v286, 0.125
        %v288 = vpack.c.bf16 %v287, %v287
        %vm289 = vcmask 523264
        %v291 = vsel %vm289, %v288, 0
        %v294 = vsel %vm289, %v284, 0
        %296 = vmatprep.subr.bf16.mxu0 0
        %297 = vmatpush1.bf16.xpose.msra.mxu0 %v294
        %298 = vmatprep.subr.bf16.mxu0 0
        %299 = vmatpush1.bf16.xpose.msra.mxu0 0
        %300 = vmatprep.subr.bf16.mxu0 0
        %301 = vmatpush1.bf16.xpose.msra.mxu0 0
        %302 = vmatprep.subr.bf16.mxu0 0
        %303 = vmatpush1.bf16.xpose.msra.mxu0 0
        %304 = vmatprep.subr.bf16.mxu0 0
        %305 = vmatpush1.bf16.xpose.msra.mxu0 0
        %306 = vmatprep.subr.bf16.mxu0 0
        %307 = vmatpush1.bf16.xpose.msra.mxu0 0
        %308 = vmatprep.subr.bf16.mxu0 0
        %309 = vmatpush1.bf16.xpose.msra.mxu0 0
        %310 = vmatprep.subr.bf16.mxu0 0
        %311 = vmatpush1.bf16.xpose.msra.mxu0 0
        %312 = vmatprep.subr.bf16.mxu0 0
        %313 = vmatpush1.bf16.xpose.msra.mxu0 0
        %314 = vmatprep.subr.bf16.mxu0 0
        %315 = vmatpush1.bf16.xpose.msra.mxu0 0
        %316 = vmatprep.subr.bf16.mxu0 0
        %317 = vmatpush1.bf16.xpose.msra.mxu0 0
        %318 = vmatprep.subr.bf16.mxu0 0
        %319 = vmatpush1.bf16.xpose.msra.mxu0 0
        %320 = vmatprep.subr.bf16.mxu0 0
        %321 = vmatpush1.bf16.xpose.msra.mxu0 0
        %322 = vmatprep.subr.bf16.mxu0 0
        %323 = vmatpush1.bf16.xpose.msra.mxu0 0
        %324 = vmatprep.subr.bf16.mxu0 0
        %325 = vmatpush1.bf16.xpose.msra.mxu0 0
        %326 = vmatprep.subr.bf16.mxu0 0
        %327 = vmatpush1.bf16.xpose.msra.mxu0 0
        %328 = vmatprep.mubr.bf16.mxu0 0
        %329 = vmatmul.mubr.bf16.gmra.mrb[0].mxu0 %v291
        %v330 = vpop.f32.mrb[0].mxu0
        %v331 = vadd.f32 %v282, %v330
        %v332 = vpop.f32.mrb[0].mxu0
        %v333 = vpop.f32.mrb[0].mxu0
        %v334 = vpop.f32.mrb[0].mxu0
        %335 = vdwg.mxu0
        %vm336 = vcmask 64512
        %v337 = vsel %vm336, %v331, -inf
        %338 = vmax.xlane.f32.xlu0 %v337
        %v339 = vpop.xlane.xlu0 %338
        %v340 = vsub.f32 %v331, %v339
        %v341 = vmul.f32 %v340, 1.442695
        %v342 = vpow.pop %v341
        %v343 = vsel %vm336, %v342, 0.0
        %344 = vadd.xlane.f32.xlu0 %v343
        %v345 = vpop.xlane.xlu0 %344
        %v346 = vrcp.pop %v345
        %v347 = vmul.f32 %v342, %v346
        %v348 = vpack.c.bf16 %v347, %v347
        %v350 = vsel %vm336, %v348, 0
        %vm352 = vcmask 1043456
        %v354 = vsel %vm352, %v285, 0
        %356 = vmatprep.subr.bf16.mxu0 0
        %357 = vmatpush1.bf16.msra.mxu0 %v354
        %358 = vmatprep.subr.bf16.mxu0 0
        %359 = vmatpush1.bf16.msra.mxu0 0
        %360 = vmatprep.subr.bf16.mxu0 0
        %361 = vmatpush1.bf16.msra.mxu0 0
        %362 = vmatprep.subr.bf16.mxu0 0
        %363 = vmatpush1.bf16.msra.mxu0 0
        %364 = vmatprep.subr.bf16.mxu0 0
        %365 = vmatpush1.bf16.msra.mxu0 0
        %366 = vmatprep.subr.bf16.mxu0 0
        %367 = vmatpush1.bf16.msra.mxu0 0
        %368 = vmatprep.subr.bf16.mxu0 0
        %369 = vmatpush1.bf16.msra.mxu0 0
        %370 = vmatprep.subr.bf16.mxu0 0
        %371 = vmatpush1.bf16.msra.mxu0 0
        %372 = vmatprep.subr.bf16.mxu0 0
        %373 = vmatpush1.bf16.msra.mxu0 0
        %374 = vmatprep.subr.bf16.mxu0 0
        %375 = vmatpush1.bf16.msra.mxu0 0
        %376 = vmatprep.subr.bf16.mxu0 0
        %377 = vmatpush1.bf16.msra.mxu0 0
        %378 = vmatprep.subr.bf16.mxu0 0
        %379 = vmatpush1.bf16.msra.mxu0 0
        %380 = vmatprep.subr.bf16.mxu0 0
        %381 = vmatpush1.bf16.msra.mxu0 0
        %382 = vmatprep.subr.bf16.mxu0 0
        %383 = vmatpush1.bf16.msra.mxu0 0
        %384 = vmatprep.subr.bf16.mxu0 0
        %385 = vmatpush1.bf16.msra.mxu0 0
        %386 = vmatprep.subr.bf16.mxu0 0
        %387 = vmatpush1.bf16.msra.mxu0 0
        %388 = vmatprep.mubr.bf16.mxu0 0
        %389 = vmatmul.mubr.bf16.gmra.mrb[0].mxu0 %v350
        %v390 = vpop.f32.mrb[0].mxu0
        %v391 = vadd.f32 0.0, %v390
        %v392 = vpop.f32.mrb[0].mxu0
        %v393 = vpop.f32.mrb[0].mxu0
        %v394 = vpop.f32.mrb[0].mxu0
        %395 = vdwg.mxu0
        %v396 = vpack.c.bf16 %v391, %v391
        %vm397 = vcmask 519168
        %398 = vst.msk [vmem:[#allocation2] sm:$0xf] %vm397, %v396
        %v399 = vld [vmem:[%s231] sm:$0xf]
        %v400 = vld [vmem:[%s231 + $0x4] sm:$0xf]
        %v401 = vld [vmem:[%s231 + $0x8] sm:$0xf]
        %v402 = vunpack.c.l.bf16 %v399
        %v403 = vmul.f32 %v402, 0.125
        %v404 = vpack.c.bf16 %v403, %v403
        %406 = vrot.lane.b32.xlu0 %v404, 64
        %v407 = vpop.permute.xlu0 %406
        %v409 = vunpack.c.l.b16 %v400
        %v410 = vpack.c.b16 %v409, %v409
        %411 = vrot.lane.b32.xlu0 %v410, 64
        %v412 = vpop.permute.xlu0 %411
        %v414 = vsel %vm289, %v407, 0
        %v417 = vsel %vm289, %v412, 0
        %419 = vmatprep.subr.bf16.mxu0 0
        %420 = vmatpush1.bf16.xpose.msra.mxu0 %v417
        %421 = vmatprep.subr.bf16.mxu0 0
        %422 = vmatpush1.bf16.xpose.msra.mxu0 0
        %423 = vmatprep.subr.bf16.mxu0 0
        %424 = vmatpush1.bf16.xpose.msra.mxu0 0
        %425 = vmatprep.subr.bf16.mxu0 0
        %426 = vmatpush1.bf16.xpose.msra.mxu0 0
        %427 = vmatprep.subr.bf16.mxu0 0
        %428 = vmatpush1.bf16.xpose.msra.mxu0 0
        %429 = vmatprep.subr.bf16.mxu0 0
        %430 = vmatpush1.bf16.xpose.msra.mxu0 0
        %431 = vmatprep.subr.bf16.mxu0 0
        %432 = vmatpush1.bf16.xpose.msra.mxu0 0
        %433 = vmatprep.subr.bf16.mxu0 0
        %434 = vmatpush1.bf16.xpose.msra.mxu0 0
        %435 = vmatprep.subr.bf16.mxu0 0
        %436 = vmatpush1.bf16.xpose.msra.mxu0 0
        %437 = vmatprep.subr.bf16.mxu0 0
        %438 = vmatpush1.bf16.xpose.msra.mxu0 0
        %439 = vmatprep.subr.bf16.mxu0 0
        %440 = vmatpush1.bf16.xpose.msra.mxu0 0
        %441 = vmatprep.subr.bf16.mxu0 0
        %442 = vmatpush1.bf16.xpose.msra.mxu0 0
        %443 = vmatprep.subr.bf16.mxu0 0
        %444 = vmatpush1.bf16.xpose.msra.mxu0 0
        %445 = vmatprep.subr.bf16.mxu0 0
        %446 = vmatpush1.bf16.xpose.msra.mxu0 0
        %447 = vmatprep.subr.bf16.mxu0 0
        %448 = vmatpush1.bf16.xpose.msra.mxu0 0
        %449 = vmatprep.subr.bf16.mxu0 0
        %450 = vmatpush1.bf16.xpose.msra.mxu0 0
        %451 = vmatprep.mubr.bf16.mxu0 0
        %452 = vmatmul.mubr.bf16.gmra.mrb[0].mxu0 %v414
        %v453 = vpop.f32.mrb[0].mxu0
        %v454 = vadd.f32 %v282, %v453
        %v455 = vpop.f32.mrb[0].mxu0
        %v456 = vpop.f32.mrb[0].mxu0
        %v457 = vpop.f32.mrb[0].mxu0
        %458 = vdwg.mxu0
        %v459 = vsel %vm336, %v454, -inf
        %460 = vmax.xlane.f32.xlu0 %v459
        %v461 = vpop.xlane.xlu0 %460
        %v462 = vsub.f32 %v454, %v461
        %v463 = vmul.f32 %v462, 1.442695
        %v464 = vpow.pop %v463
        %v465 = vsel %vm336, %v464, 0.0
        %466 = vadd.xlane.f32.xlu0 %v465
        %v467 = vpop.xlane.xlu0 %466
        %v468 = vrcp.pop %v467
        %v469 = vmul.f32 %v464, %v468
        %v470 = vpack.c.bf16 %v469, %v469
        %v472 = vunpack.c.l.b16 %v401
        %v473 = vpack.c.b16 %v472, %v472
        %474 = vrot.lane.b32.xlu0 %v473, 64
        %v475 = vpop.permute.xlu0 %474
        %v477 = vsel %vm336, %v470, 0
        %v480 = vsel %vm352, %v475, 0
        %482 = vmatprep.subr.bf16.mxu0 0
        %483 = vmatpush1.bf16.msra.mxu0 %v480
        %484 = vmatprep.subr.bf16.mxu0 0
        %485 = vmatpush1.bf16.msra.mxu0 0
        %486 = vmatprep.subr.bf16.mxu0 0
        %487 = vmatpush1.bf16.msra.mxu0 0
        %488 = vmatprep.subr.bf16.mxu0 0
        %489 = vmatpush1.bf16.msra.mxu0 0
        %490 = vmatprep.subr.bf16.mxu0 0
        %491 = vmatpush1.bf16.msra.mxu0 0
        %492 = vmatprep.subr.bf16.mxu0 0
        %493 = vmatpush1.bf16.msra.mxu0 0
        %494 = vmatprep.subr.bf16.mxu0 0
        %495 = vmatpush1.bf16.msra.mxu0 0
        %496 = vmatprep.subr.bf16.mxu0 0
        %497 = vmatpush1.bf16.msra.mxu0 0
        %498 = vmatprep.subr.bf16.mxu0 0
        %499 = vmatpush1.bf16.msra.mxu0 0
        %500 = vmatprep.subr.bf16.mxu0 0
        %501 = vmatpush1.bf16.msra.mxu0 0
        %502 = vmatprep.subr.bf16.mxu0 0
        %503 = vmatpush1.bf16.msra.mxu0 0
        %504 = vmatprep.subr.bf16.mxu0 0
        %505 = vmatpush1.bf16.msra.mxu0 0
        %506 = vmatprep.subr.bf16.mxu0 0
        %507 = vmatpush1.bf16.msra.mxu0 0
        %508 = vmatprep.subr.bf16.mxu0 0
        %509 = vmatpush1.bf16.msra.mxu0 0
        %510 = vmatprep.subr.bf16.mxu0 0
        %511 = vmatpush1.bf16.msra.mxu0 0
        %512 = vmatprep.subr.bf16.mxu0 0
        %513 = vmatpush1.bf16.msra.mxu0 0
        %514 = vmatprep.mubr.bf16.mxu0 0
        %515 = vmatmul.mubr.bf16.gmra.mrb[0].mxu0 %v477
        %v516 = vpop.f32.mrb[0].mxu0
        %v517 = vadd.f32 0.0, %v516
        %v518 = vpop.f32.mrb[0].mxu0
        %v519 = vpop.f32.mrb[0].mxu0
        %v520 = vpop.f32.mrb[0].mxu0
        %521 = vdwg.mxu0
        %v522 = vpack.c.bf16 %v517, %v517
        %v524 = vunpack.c.l.b16 %v522
        %v525 = vpack.c.b16 %v524, %v524
        %526 = vrot.lane.b32.xlu0 %v525, 64
        %v527 = vpop.permute.xlu0 %526
        %vm529 = vcmask 1043968
        %530 = vst.msk [vmem:[#allocation2] sm:$0xf] %vm529, %v527
        %v531 = vld [vmem:[#allocation2] sm:$0xf]
        %v532 = vld [vmem:[#allocation6] sm:$0xf]
        %v533 = vld [vmem:[#allocation6 + $0x4] sm:$0xf]
        %v534 = vld [vmem:[#allocation6 + $0x8] sm:$0xf]
        %v535 = vld [vmem:[#allocation6 + $0xc] sm:$0xf]
        %v536 = vld [vmem:[#allocation6 + $0x10] sm:$0xf]
        %v537 = vld [vmem:[#allocation6 + $0x14] sm:$0xf]
        %v538 = vld [vmem:[#allocation6 + $0x18] sm:$0xf]
        %v539 = vld [vmem:[#allocation6 + $0x1c] sm:$0xf]
        %v540 = vld [vmem:[#allocation6 + $0x20] sm:$0xf]
        %v541 = vld [vmem:[#allocation6 + $0x24] sm:$0xf]
        %v542 = vld [vmem:[#allocation6 + $0x28] sm:$0xf]
        %v543 = vld [vmem:[#allocation6 + $0x2c] sm:$0xf]
        %v544 = vld [vmem:[#allocation6 + $0x30] sm:$0xf]
        %v545 = vld [vmem:[#allocation6 + $0x34] sm:$0xf]
        %v546 = vld [vmem:[#allocation6 + $0x38] sm:$0xf]
        %v547 = vld [vmem:[#allocation6 + $0x3c] sm:$0xf]
        %v548 = vld [vmem:[#allocation8] sm:$0x1]
        %v550 = vlaneseq
        %v551 = vshrl.u32 %v550, 7
        %v552 = vsub.s32 0, %v551
        %v553 = vrot.slane %v548, %v552
        %v571 = vunpack.c.l.b16 %v532
        %v572 = vunpack.c.l.b16 %v533
        %v573 = vunpack.c.l.b16 %v534
        %v574 = vunpack.c.l.b16 %v535
        %v575 = vunpack.c.l.b16 %v536
        %v576 = vunpack.c.l.b16 %v537
        %v577 = vunpack.c.l.b16 %v538
        %v578 = vunpack.c.l.b16 %v539
        %v579 = vunpack.c.l.b16 %v540
        %v580 = vunpack.c.l.b16 %v541
        %v581 = vunpack.c.l.b16 %v542
        %v582 = vunpack.c.l.b16 %v543
        %v583 = vunpack.c.l.b16 %v544
        %v584 = vunpack.c.l.b16 %v545
        %v585 = vunpack.c.l.b16 %v546
        %v586 = vunpack.c.l.b16 %v547
        %v587 = vpack.c.b16 %v572, %v571
        %v588 = vpack.c.b16 %v574, %v573
        %v589 = vpack.c.b16 %v576, %v575
        %v590 = vpack.c.b16 %v578, %v577
        %v591 = vpack.c.b16 %v580, %v579
        %v592 = vpack.c.b16 %v582, %v581
        %v593 = vpack.c.b16 %v584, %v583
        %v594 = vpack.c.b16 %v586, %v585
        %603 = vmatprep.subr.bf16.mxu0 0
        %604 = vmatpush1.bf16.msra.mxu0 %v587
        %605 = vmatprep.subr.bf16.mxu0 0
        %606 = vmatpush1.bf16.msra.mxu0 %v588
        %607 = vmatprep.subr.bf16.mxu0 0
        %608 = vmatpush1.bf16.msra.mxu0 %v589
        %609 = vmatprep.subr.bf16.mxu0 0
        %610 = vmatpush1.bf16.msra.mxu0 %v590
        %611 = vmatprep.subr.bf16.mxu0 0
        %612 = vmatpush1.bf16.msra.mxu0 %v591
        %613 = vmatprep.subr.bf16.mxu0 0
        %614 = vmatpush1.bf16.msra.mxu0 %v592
        %615 = vmatprep.subr.bf16.mxu0 0
        %616 = vmatpush1.bf16.msra.mxu0 %v593
        %617 = vmatprep.subr.bf16.mxu0 0
        %618 = vmatpush1.bf16.msra.mxu0 %v594
        %619 = vmatprep.subr.bf16.mxu0 0
        %620 = vmatpush1.bf16.msra.mxu0 0
        %621 = vmatprep.subr.bf16.mxu0 0
        %622 = vmatpush1.bf16.msra.mxu0 0
        %623 = vmatprep.subr.bf16.mxu0 0
        %624 = vmatpush1.bf16.msra.mxu0 0
        %625 = vmatprep.subr.bf16.mxu0 0
        %626 = vmatpush1.bf16.msra.mxu0 0
        %627 = vmatprep.subr.bf16.mxu0 0
        %628 = vmatpush1.bf16.msra.mxu0 0
        %629 = vmatprep.subr.bf16.mxu0 0
        %630 = vmatpush1.bf16.msra.mxu0 0
        %631 = vmatprep.subr.bf16.mxu0 0
        %632 = vmatpush1.bf16.msra.mxu0 0
        %633 = vmatprep.subr.bf16.mxu0 0
        %634 = vmatpush1.bf16.msra.mxu0 0
        %635 = vmatprep.mubr.bf16.mxu0 0
        %636 = vmatmul.mubr.bf16.gmra.mrb[0].mxu0 %v531
        %v637 = vpop.f32.mrb[0].mxu0
        %v638 = vadd.f32 %v553, %v637
        %v639 = vpop.f32.mrb[0].mxu0
        %v640 = vpop.f32.mrb[0].mxu0
        %v641 = vpop.f32.mrb[0].mxu0
        %642 = vdwg.mxu0
        %v643 = vld [vmem:[%s248] sm:$0xf]
        %v644 = vunpack.c.l.bf16 %v643
        %v645 = vadd.f32 %v638, %v644
        %v646 = vpack.c.bf16 %v645, %v645
        %647 = vst [vmem:[%s277] sm:$0xf] %v646
        %s648 = sand.u32 %s127, 1
        %s649 = scalar_lea.sflag [#allocation5], %s648
        %s650 = sand.u32 %s127, 1
        %s651 = smul.addr %s650, 4
        %s652 = scalar_lea.vmem [#allocation11], %s651
        // Predicated region
        $region53: #{clip_image_encoder_forward.12} parent=35 // pred_check
          %p653 = pneg %p137
        $region54: #{clip_image_encoder_forward.12} parent=35 // pred_check_branch
          %655 = sbr.rel (%p653) target = $region56
        $region55: #{clip_image_encoder_forward.12} parent=35 // pred_region
          %s657 = ssub.s32 64, 64
          %658 = vsyncadd %s649, %s657
          %s659 = smul.addr %s25, 64
          %s660 = scalar_lea.hbm %s4, %s659
          %s662 = sshll.u32 %s652, 4
          %s663 = int_to_ptr.vmem [resolvable:$true] %s662
          %665 = dma.vmem_to_hbm [thread:$0]  %s663, 64, %s660, %s649
        $region56: #{clip_image_encoder_forward.12} parent=35 // pred_fallthru
          _
      $region36: #{clip_image_encoder_forward.12} parent=5 // pred_fallthru
        _
      %p666 = scmp.le.s32.totalorder 2, %s20
      // Predicated region
      $region57: #{clip_image_encoder_forward.12} parent=5 // pred_check
        %p667 = pneg %p666
      $region58: #{clip_image_encoder_forward.12} parent=5 // pred_check_branch
        %669 = sbr.rel (%p667) target = $region60
      $region59: #{clip_image_encoder_forward.12} parent=5 // pred_region
        %s670 = ssub.s32 %s20, 2
        // Predicated region
        $region61: #{clip_image_encoder_forward.12} parent=59 // pred_check
          %p671 = pneg %p143
        $region62: #{clip_image_encoder_forward.12} parent=59 // pred_check_branch
          %673 = sbr.rel (%p671) target = $region64
        $region63: #{clip_image_encoder_forward.12} parent=59 // pred_region
          %s674 = sand.u32 %s128, 1
          %s675 = scalar_lea.sflag [#allocation5], %s674
          %s676 = sand.u32 %s128, 1
          %s677 = smul.addr %s676, 4
          %s678 = scalar_lea.vmem [#allocation11], %s677
          %679 = dma.done %s675, 64
        $region64: #{clip_image_encoder_forward.12} parent=59 // pred_fallthru
          _
      $region60: #{clip_image_encoder_forward.12} parent=5 // pred_fallthru
        _
    $region6: #{clip_image_encoder_forward.12} parent=1 // loop_footer
      %s24 = sadd.s32 1, %s20
    $region7: #{clip_image_encoder_forward.12} parent=1 // loop_footer_branch
      %19 = sbr.rel target = $region3
    $region8: #{clip_image_encoder_forward.12} parent=1 // loop_exit
      _
    %680 = vsyncpa [#allocation4], 1
    %s681 = scalar_lea.sflag [#allocation4], 1
    %682 = vsyncpa %s681, 1
    %683 = vsyncpa [#allocation7], 1
    %684 = vsyncpa [#allocation10], 1
    %s685 = scalar_lea.sflag [#allocation10], 1
    %686 = vsyncpa %s685, 1
    %687 = vsyncpa [#allocation5], 1
    %s688 = scalar_lea.sflag [#allocation5], 1
    %689 = vsyncpa %s688, 1

// kernel: clip_image_encoder_forward.17
$region0: #{clip_image_encoder_forward.17}
  #allocation0 [shape = 'u32[]', space=smem, size = 0x4, offset = 0x4, fixed_abs, tag = 'smem constant byte address 0x4 - core index']
  #allocation1 [shape = 'u32[144,128]{1,0:T(1,128)}', space=vmem, size = 0x12000, scoped, tag = 'internal scratch']
  %s0 = inlined_call_operand.hbm [shape: bf16[2,128], index: 0, kind: input, shape index: {}]
  %s1 = inlined_call_operand.hbm [shape: f32[1,128], index: 1, kind: input, shape index: {}]
  %s2 = inlined_call_operand.hbm [shape: f32[1,128], index: 2, kind: input, shape index: {}]
  %s3 = inlined_call_operand.hbm [shape: bf16[128,64], index: 3, kind: input, shape index: {}]
  %s4 = inlined_call_operand.hbm [shape: f32[1,64], index: 4, kind: input, shape index: {}]
  %s5 = inlined_call_operand.hbm [shape: f32[2,64], index: 5, kind: output, shape index: {}]
  %s6 = sld [smem:[#allocation0]]
  $region50: #{clip_image_encoder_forward.17} parent=0
    _
  %s8 = ssub.s32 1, %s6
  %s9 = scalar_select 0, %s8, %s6
  $region1: #{clip_image_encoder_forward.17} parent=0
    #allocation2 [shape = 'u8[512]{0}', space=vmem, size = 0x400, scoped, tag = 'input window, operand 0, single buffered']
    #allocation3 [shape = 's32[1]{0}', space=sflag, size = 0x4, scoped, tag = 'scoped memory for clip_image_encoder_forward.17']
    #allocation4 [shape = 's32[1]{0}', space=sflag, size = 0x4, scoped, tag = 'scoped memory for clip_image_encoder_forward.17']
    #allocation5 [shape = 'u8[512]{0}', space=vmem, size = 0x400, scoped, tag = 'input window, operand 1, single buffered']
    #allocation6 [shape = 's32[1]{0}', space=sflag, size = 0x4, scoped, tag = 'scoped memory for clip_image_encoder_forward.17']
    #allocation7 [shape = 'u8[512]{0}', space=vmem, size = 0x400, scoped, tag = 'input window, operand 2, single buffered']
    #allocation8 [shape = 'u8[32768]{0}', space=vmem, size = 0x8000, scoped, tag = 'input window, operand 3, single buffered']
    #allocation9 [shape = 's32[1]{0}', space=sflag, size = 0x4, scoped, tag = 'scoped memory for clip_image_encoder_forward.17']
    #allocation10 [shape = 'u8[512]{0}', space=vmem, size = 0x400, scoped, tag = 'input window, operand 4, single buffered']
    #allocation11 [shape = 'u8[1024]{0}', space=vmem, size = 0x400, scoped, tag = 'output window, operand 0, single buffered']
    %10 = vsyncpa [#allocation3], 0
    %11 = vsyncpa [#allocation6], 0
    %12 = vsyncpa [#allocation9], 0
    %13 = vsyncpa [#allocation4], 0
    // Predicated region
    $region2: #{clip_image_encoder_forward.17} parent=1 // pred_check
      _
    $region3: #{clip_image_encoder_forward.17} parent=1 // pred_check_branch
      %15 = sbr.rel (0) target = $region5
    $region4: #{clip_image_encoder_forward.17} parent=1 // pred_region
      %s17 = ssub.s32 16, 16
      %18 = vsyncadd [#allocation3], %s17
      %s20 = sshll.u32 [#allocation2], 4
      %s21 = int_to_ptr.vmem [resolvable:$true] %s20
      %23 = dma.hbm_to_vmem [thread:$0]  %s0, 16, %s21, [#allocation3]
    $region5: #{clip_image_encoder_forward.17} parent=1 // pred_fallthru
      _
    // Predicated region
    $region6: #{clip_image_encoder_forward.17} parent=1 // pred_check
      _
    $region7: #{clip_image_encoder_forward.17} parent=1 // pred_check_branch
      %25 = sbr.rel (0) target = $region9
    $region8: #{clip_image_encoder_forward.17} parent=1 // pred_region
      %s27 = ssub.s32 16, 16
      %28 = vsyncadd [#allocation6], %s27
      %s30 = sshll.u32 [#allocation5], 4
      %s31 = int_to_ptr.vmem [resolvable:$true] %s30
      %33 = dma.hbm_to_vmem [thread:$0]  %s1, 16, %s31, [#allocation6]
    $region9: #{clip_image_encoder_forward.17} parent=1 // pred_fallthru
      _
    // Predicated region
    $region10: #{clip_image_encoder_forward.17} parent=1 // pred_check
      _
    $region11: #{clip_image_encoder_forward.17} parent=1 // pred_check_branch
      %35 = sbr.rel (0) target = $region13
    $region12: #{clip_image_encoder_forward.17} parent=1 // pred_region
      %s37 = ssub.s32 16, 16
      %38 = vsyncadd [#allocation6], %s37
      %s40 = sshll.u32 [#allocation7], 4
      %s41 = int_to_ptr.vmem [resolvable:$true] %s40
      %43 = dma.hbm_to_vmem [thread:$0]  %s2, 16, %s41, [#allocation6]
    $region13: #{clip_image_encoder_forward.17} parent=1 // pred_fallthru
      _
    // Predicated region
    $region14: #{clip_image_encoder_forward.17} parent=1 // pred_check
      _
    $region15: #{clip_image_encoder_forward.17} parent=1 // pred_check_branch
      %45 = sbr.rel (0) target = $region17
    $region16: #{clip_image_encoder_forward.17} parent=1 // pred_region
      %s47 = ssub.s32 1024, 1024
      %48 = vsyncadd [#allocation9], %s47
      %s49 = sshll.u32 [#allocation8], 4
      %s50 = int_to_ptr.vmem [resolvable:$true] %s49
      %55 = dma.hbm_to_vmem [thread:$0]  %s3, 1024, %s50, [#allocation9], 64, 64, 4
    $region17: #{clip_image_encoder_forward.17} parent=1 // pred_fallthru
      _
    // Predicated region
    $region18: #{clip_image_encoder_forward.17} parent=1 // pred_check
      _
    $region19: #{clip_image_encoder_forward.17} parent=1 // pred_check_branch
      %57 = sbr.rel (0) target = $region21
    $region20: #{clip_image_encoder_forward.17} parent=1 // pred_region
      %s59 = ssub.s32 16, 16
      %60 = vsyncadd [#allocation9], %s59
      %s62 = sshll.u32 [#allocation10], 4
      %s63 = int_to_ptr.vmem [resolvable:$true] %s62
      %65 = dma.hbm_to_vmem [thread:$0]  %s4, 16, %s63, [#allocation9]
    $region21: #{clip_image_encoder_forward.17} parent=1 // pred_fallthru
      _
    // Predicated region
    $region22: #{clip_image_encoder_forward.17} parent=1 // pred_check
      _
    $region23: #{clip_image_encoder_forward.17} parent=1 // pred_check_branch
      %67 = sbr.rel (0) target = $region25
    $region24: #{clip_image_encoder_forward.17} parent=1 // pred_region
      %68 = dma.done [#allocation3], 16
    $region25: #{clip_image_encoder_forward.17} parent=1 // pred_fallthru
      _
    // Predicated region
    $region26: #{clip_image_encoder_forward.17} parent=1 // pred_check
      _
    $region27: #{clip_image_encoder_forward.17} parent=1 // pred_check_branch
      %70 = sbr.rel (0) target = $region29
    $region28: #{clip_image_encoder_forward.17} parent=1 // pred_region
      %71 = dma.done [#allocation6], 16
    $region29: #{clip_image_encoder_forward.17} parent=1 // pred_fallthru
      _
    // Predicated region
    $region30: #{clip_image_encoder_forward.17} parent=1 // pred_check
      _
    $region31: #{clip_image_encoder_forward.17} parent=1 // pred_check_branch
      %73 = sbr.rel (0) target = $region33
    $region32: #{clip_image_encoder_forward.17} parent=1 // pred_region
      %74 = dma.done [#allocation6], 16
    $region33: #{clip_image_encoder_forward.17} parent=1 // pred_fallthru
      _
    // Predicated region
    $region34: #{clip_image_encoder_forward.17} parent=1 // pred_check
      _
    $region35: #{clip_image_encoder_forward.17} parent=1 // pred_check_branch
      %76 = sbr.rel (0) target = $region37
    $region36: #{clip_image_encoder_forward.17} parent=1 // pred_region
      %77 = dma.done [#allocation9], 1024
    $region37: #{clip_image_encoder_forward.17} parent=1 // pred_fallthru
      _
    // Predicated region
    $region38: #{clip_image_encoder_forward.17} parent=1 // pred_check
      _
    $region39: #{clip_image_encoder_forward.17} parent=1 // pred_check_branch
      %79 = sbr.rel (0) target = $region41
    $region40: #{clip_image_encoder_forward.17} parent=1 // pred_region
      %80 = dma.done [#allocation9], 16
    $region41: #{clip_image_encoder_forward.17} parent=1 // pred_fallthru
      _
    %v82 = vld [vmem:[#allocation2] sm:$0x1]
    %v83 = vunpack.c.l.bf16 %v82
    %vm84 = vcmask 1041408
    %v85 = vsel %vm84, %v83, 0.0
    %86 = vadd.xlane.f32.xlu0 %v85
    %v87 = vpop.xlane.xlu0 %86
    %v88 = vrcp.pop 128.0
    %v89 = vmul.f32 %v87, %v88
    %v90 = vsub.f32 %v83, %v89
    %v91 = vmul.f32 %v90, %v90
    %v92 = vsel %vm84, %v91, 0.0
    %93 = vadd.xlane.f32.xlu0 %v92
    %v94 = vpop.xlane.xlu0 %93
    %v95 = vmul.f32 %v94, %v88
    %v96 = vadd.f32 %v95, 1e-05
    %v97 = vrsqrt.pop %v96
    %v98 = vmul.f32 %v90, %v97
    %v99 = vld [vmem:[#allocation5] sm:$0x1]
    %v101 = vlaneseq
    %v102 = vshrl.u32 %v101, 7
    %v103 = vsub.s32 0, %v102
    %v104 = vrot.slane %v99, %v103
    %v106 = vmul.f32 %v98, %v104
    %v107 = vld [vmem:[#allocation7] sm:$0x1]
    %v109 = vlaneseq
    %v110 = vshrl.u32 %v109, 7
    %v111 = vsub.s32 0, %v110
    %v112 = vrot.slane %v107, %v111
    %v114 = vadd.f32 %v106, %v112
    %v115 = vpack.c.bf16 %v114, %v114
    %v116 = vld [vmem:[#allocation8] sm:$0xf]
    %v117 = vld [vmem:[#allocation8 + $0x4] sm:$0xf]
    %v118 = vld [vmem:[#allocation8 + $0x8] sm:$0xf]
    %v119 = vld [vmem:[#allocation8 + $0xc] sm:$0xf]
    %v120 = vld [vmem:[#allocation8 + $0x10] sm:$0xf]
    %v121 = vld [vmem:[#allocation8 + $0x14] sm:$0xf]
    %v122 = vld [vmem:[#allocation8 + $0x18] sm:$0xf]
    %v123 = vld [vmem:[#allocation8 + $0x1c] sm:$0xf]
    %v124 = vld [vmem:[#allocation8 + $0x20] sm:$0xf]
    %v125 = vld [vmem:[#allocation8 + $0x24] sm:$0xf]
    %v126 = vld [vmem:[#allocation8 + $0x28] sm:$0xf]
    %v127 = vld [vmem:[#allocation8 + $0x2c] sm:$0xf]
    %v128 = vld [vmem:[#allocation8 + $0x30] sm:$0xf]
    %v129 = vld [vmem:[#allocation8 + $0x34] sm:$0xf]
    %v130 = vld [vmem:[#allocation8 + $0x38] sm:$0xf]
    %v131 = vld [vmem:[#allocation8 + $0x3c] sm:$0xf]
    %v132 = vld [vmem:[#allocation10] sm:$0x1]
    %v134 = vlaneseq
    %v135 = vshrl.u32 %v134, 7
    %v136 = vsub.s32 0, %v135
    %v137 = vrot.slane %v132, %v136
    %v155 = vunpack.c.l.b16 %v116
    %v156 = vunpack.c.l.b16 %v117
    %v157 = vunpack.c.l.b16 %v118
    %v158 = vunpack.c.l.b16 %v119
    %v159 = vunpack.c.l.b16 %v120
    %v160 = vunpack.c.l.b16 %v121
    %v161 = vunpack.c.l.b16 %v122
    %v162 = vunpack.c.l.b16 %v123
    %v163 = vunpack.c.l.b16 %v124
    %v164 = vunpack.c.l.b16 %v125
    %v165 = vunpack.c.l.b16 %v126
    %v166 = vunpack.c.l.b16 %v127
    %v167 = vunpack.c.l.b16 %v128
    %v168 = vunpack.c.l.b16 %v129
    %v169 = vunpack.c.l.b16 %v130
    %v170 = vunpack.c.l.b16 %v131
    %v171 = vpack.c.b16 %v156, %v155
    %v172 = vpack.c.b16 %v158, %v157
    %v173 = vpack.c.b16 %v160, %v159
    %v174 = vpack.c.b16 %v162, %v161
    %v175 = vpack.c.b16 %v164, %v163
    %v176 = vpack.c.b16 %v166, %v165
    %v177 = vpack.c.b16 %v168, %v167
    %v178 = vpack.c.b16 %v170, %v169
    %187 = vmatprep.subr.bf16.mxu0 0
    %188 = vmatpush1.bf16.msra.mxu0 %v171
    %189 = vmatprep.subr.bf16.mxu0 0
    %190 = vmatpush1.bf16.msra.mxu0 %v172
    %191 = vmatprep.subr.bf16.mxu0 0
    %192 = vmatpush1.bf16.msra.mxu0 %v173
    %193 = vmatprep.subr.bf16.mxu0 0
    %194 = vmatpush1.bf16.msra.mxu0 %v174
    %195 = vmatprep.subr.bf16.mxu0 0
    %196 = vmatpush1.bf16.msra.mxu0 %v175
    %197 = vmatprep.subr.bf16.mxu0 0
    %198 = vmatpush1.bf16.msra.mxu0 %v176
    %199 = vmatprep.subr.bf16.mxu0 0
    %200 = vmatpush1.bf16.msra.mxu0 %v177
    %201 = vmatprep.subr.bf16.mxu0 0
    %202 = vmatpush1.bf16.msra.mxu0 %v178
    %203 = vmatprep.subr.bf16.mxu0 0
    %204 = vmatpush1.bf16.msra.mxu0 0
    %205 = vmatprep.subr.bf16.mxu0 0
    %206 = vmatpush1.bf16.msra.mxu0 0
    %207 = vmatprep.subr.bf16.mxu0 0
    %208 = vmatpush1.bf16.msra.mxu0 0
    %209 = vmatprep.subr.bf16.mxu0 0
    %210 = vmatpush1.bf16.msra.mxu0 0
    %211 = vmatprep.subr.bf16.mxu0 0
    %212 = vmatpush1.bf16.msra.mxu0 0
    %213 = vmatprep.subr.bf16.mxu0 0
    %214 = vmatpush1.bf16.msra.mxu0 0
    %215 = vmatprep.subr.bf16.mxu0 0
    %216 = vmatpush1.bf16.msra.mxu0 0
    %217 = vmatprep.subr.bf16.mxu0 0
    %218 = vmatpush1.bf16.msra.mxu0 0
    %219 = vmatprep.mubr.bf16.mxu0 0
    %220 = vmatmul.mubr.bf16.gmra.mrb[0].mxu0 %v115
    %v221 = vpop.f32.mrb[0].mxu0
    %v222 = vadd.f32 %v137, %v221
    %v223 = vpop.f32.mrb[0].mxu0
    %v224 = vpop.f32.mrb[0].mxu0
    %v225 = vpop.f32.mrb[0].mxu0
    %226 = vdwg.mxu0
    %vm227 = vcmask 517120
    %228 = vst.msk [vmem:[#allocation11] sm:$0x3] %vm227, %v222
    // Predicated region
    $region42: #{clip_image_encoder_forward.17} parent=1 // pred_check
      _
    $region43: #{clip_image_encoder_forward.17} parent=1 // pred_check_branch
      %230 = sbr.rel (0) target = $region45
    $region44: #{clip_image_encoder_forward.17} parent=1 // pred_region
      %s232 = ssub.s32 32, 32
      %233 = vsyncadd [#allocation4], %s232
      %s235 = sshll.u32 [#allocation11], 4
      %s236 = int_to_ptr.vmem [resolvable:$true] %s235
      %238 = dma.vmem_to_hbm [thread:$0]  %s236, 32, %s5, [#allocation4]
    $region45: #{clip_image_encoder_forward.17} parent=1 // pred_fallthru
      _
    // Predicated region
    $region46: #{clip_image_encoder_forward.17} parent=1 // pred_check
      _
    $region47: #{clip_image_encoder_forward.17} parent=1 // pred_check_branch
      %240 = sbr.rel (0) target = $region49
    $region48: #{clip_image_encoder_forward.17} parent=1 // pred_region
      %241 = dma.done [#allocation4], 32
    $region49: #{clip_image_encoder_forward.17} parent=1 // pred_fallthru
      _
    %242 = vsyncpa [#allocation3], 1
    %243 = vsyncpa [#allocation6], 1
    %244 = vsyncpa [#allocation9], 1
    %245 = vsyncpa [#allocation4], 1

// kernel: clip_image_encoder_forward.13
$region0: #{clip_image_encoder_forward.13}
  #allocation0 [shape = 'u32[]', space=smem, size = 0x4, offset = 0x4, fixed_abs, tag = 'smem constant byte address 0x4 - core index']
  #allocation1 [shape = 'u32[144,128]{1,0:T(1,128)}', space=vmem, size = 0x12000, scoped, tag = 'internal scratch']
  #allocation2 [shape = 'f32[16,128]{1,0:T(8,128)}', space=vmem, size = 0x2000, scoped, tag = 'scratch operand']
  #allocation3 [shape = 'bf16[16,128]{1,0:T(16,128)(2,1)}', space=vmem, size = 0x1000, scoped, tag = 'scratch operand']
  %s0 = inlined_call_operand.hbm [shape: bf16[16,128], index: 0, kind: input, shape index: {}]
  %s1 = inlined_call_operand.hbm [shape: f32[1,128], index: 1, kind: input, shape index: {}]
  %s2 = inlined_call_operand.hbm [shape: f32[1,128], index: 2, kind: input, shape index: {}]
  %s3 = inlined_call_operand.hbm [shape: bf16[128,512], index: 3, kind: input, shape index: {}]
  %s4 = inlined_call_operand.hbm [shape: f32[1,512], index: 4, kind: input, shape index: {}]
  %s5 = inlined_call_operand.hbm [shape: bf16[512,128], index: 5, kind: input, shape index: {}]
  %s6 = inlined_call_operand.hbm [shape: f32[1,128], index: 6, kind: input, shape index: {}]
  %s7 = inlined_call_operand.hbm [shape: bf16[16,128], index: 7, kind: output, shape index: {}]
  %s8 = sld [smem:[#allocation0]]
  $region74: #{clip_image_encoder_forward.13} parent=0
    _
  %s10 = ssub.s32 1, %s8
  %s11 = scalar_select 0, %s10, %s8
  $region1: #{clip_image_encoder_forward.13} parent=0
    #allocation4 [shape = 'u8[4096]{0}', space=vmem, size = 0x1000, scoped, tag = 'input window, operand 0, single buffered']
    #allocation5 [shape = 's32[1]{0}', space=sflag, size = 0x4, scoped, tag = 'scoped memory for clip_image_encoder_forward.13']
    #allocation6 [shape = 's32[1]{0}', space=sflag, size = 0x4, scoped, tag = 'scoped memory for clip_image_encoder_forward.13']
    #allocation7 [shape = 'u8[512]{0}', space=vmem, size = 0x400, scoped, tag = 'input window, operand 1, single buffered']
    #allocation8 [shape = 's32[1]{0}', space=sflag, size = 0x4, scoped, tag = 'scoped memory for clip_image_encoder_forward.13']
    #allocation9 [shape = 'u8[512]{0}', space=vmem, size = 0x400, scoped, tag = 'input window, operand 2, single buffered']
    #allocation10 [shape = 'u8[131072]{0}', space=vmem, size = 0x20000, scoped, tag = 'input window, operand 3, single buffered']
    #allocation11 [shape = 's32[1]{0}', space=sflag, size = 0x4, scoped, tag = 'scoped memory for clip_image_encoder_forward.13']
    #allocation12 [shape = 'u8[2048]{0}', space=vmem, size = 0x800, scoped, tag = 'input window, operand 4, single buffered']
    #allocation13 [shape = 'u8[131072]{0}', space=vmem, size = 0x20000, scoped, tag = 'input window, operand 5, single buffered']
    #allocation14 [shape = 's32[1]{0}', space=sflag, size = 0x4, scoped, tag = 'scoped memory for clip_image_encoder_forward.13']
    #allocation15 [shape = 'u8[512]{0}', space=vmem, size = 0x400, scoped, tag = 'input window, operand 6, single buffered']
    #allocation16 [shape = 'u8[4096]{0}', space=vmem, size = 0x1000, scoped, tag = 'output window, operand 0, single buffered']
    %12 = vsyncpa [#allocation5], 0
    %13 = vsyncpa [#allocation8], 0
    %14 = vsyncpa [#allocation11], 0
    %15 = vsyncpa [#allocation14], 0
    %16 = vsyncpa [#allocation6], 0
    // Predicated region
    $region2: #{clip_image_encoder_forward.13} parent=1 // pred_check
      _
    $region3: #{clip_image_encoder_forward.13} parent=1 // pred_check_branch
      %18 = sbr.rel (0) target = $region5
    $region4: #{clip_image_encoder_forward.13} parent=1 // pred_region
      %s20 = ssub.s32 128, 128
      %21 = vsyncadd [#allocation5], %s20
      %s22 = sshll.u32 [#allocation4], 4
      %s23 = int_to_ptr.vmem [resolvable:$true] %s22
      %28 = dma.hbm_to_vmem [thread:$0]  %s0, 128, %s23, [#allocation5], 64, 64, 4
    $region5: #{clip_image_encoder_forward.13} parent=1 // pred_fallthru
      _
    // Predicated region
    $region6: #{clip_image_encoder_forward.13} parent=1 // pred_check
      _
    $region7: #{clip_image_encoder_forward.13} parent=1 // pred_check_branch
      %30 = sbr.rel (0) target = $region9
    $region8: #{clip_image_encoder_forward.13} parent=1 // pred_region
      %s32 = ssub.s32 16, 16
      %33 = vsyncadd [#allocation8], %s32
      %s35 = sshll.u32 [#allocation7], 4
      %s36 = int_to_ptr.vmem [resolvable:$true] %s35
      %38 = dma.hbm_to_vmem [thread:$0]  %s1, 16, %s36, [#allocation8]
    $region9: #{clip_image_encoder_forward.13} parent=1 // pred_fallthru
      _
    // Predicated region
    $region10: #{clip_image_encoder_forward.13} parent=1 // pred_check
      _
    $region11: #{clip_image_encoder_forward.13} parent=1 // pred_check_branch
      %40 = sbr.rel (0) target = $region13
    $region12: #{clip_image_encoder_forward.13} parent=1 // pred_region
      %s42 = ssub.s32 16, 16
      %43 = vsyncadd [#allocation8], %s42
      %s45 = sshll.u32 [#allocation9], 4
      %s46 = int_to_ptr.vmem [resolvable:$true] %s45
      %48 = dma.hbm_to_vmem [thread:$0]  %s2, 16, %s46, [#allocation8]
    $region13: #{clip_image_encoder_forward.13} parent=1 // pred_fallthru
      _
    // Predicated region
    $region14: #{clip_image_encoder_forward.13} parent=1 // pred_check
      _
    $region15: #{clip_image_encoder_forward.13} parent=1 // pred_check_branch
      %50 = sbr.rel (0) target = $region17
    $region16: #{clip_image_encoder_forward.13} parent=1 // pred_region
      %s52 = ssub.s32 4096, 4096
      %53 = vsyncadd [#allocation11], %s52
      %s54 = sshll.u32 [#allocation10], 4
      %s55 = int_to_ptr.vmem [resolvable:$true] %s54
      %60 = dma.hbm_to_vmem [thread:$0]  %s3, 4096, %s55, [#allocation11], 256, 256, 16
    $region17: #{clip_image_encoder_forward.13} parent=1 // pred_fallthru
      _
    // Predicated region
    $region18: #{clip_image_encoder_forward.13} parent=1 // pred_check
      _
    $region19: #{clip_image_encoder_forward.13} parent=1 // pred_check_branch
      %62 = sbr.rel (0) target = $region21
    $region20: #{clip_image_encoder_forward.13} parent=1 // pred_region
      %s64 = ssub.s32 64, 64
      %65 = vsyncadd [#allocation11], %s64
      %s67 = sshll.u32 [#allocation12], 4
      %s68 = int_to_ptr.vmem [resolvable:$true] %s67
      %70 = dma.hbm_to_vmem [thread:$0]  %s4, 64, %s68, [#allocation11]
    $region21: #{clip_image_encoder_forward.13} parent=1 // pred_fallthru
      _
    // Predicated region
    $region22: #{clip_image_encoder_forward.13} parent=1 // pred_check
      _
    $region23: #{clip_image_encoder_forward.13} parent=1 // pred_check_branch
      %72 = sbr.rel (0) target = $region25
    $region24: #{clip_image_encoder_forward.13} parent=1 // pred_region
      %s74 = ssub.s32 4096, 4096
      %75 = vsyncadd [#allocation14], %s74
      %s76 = sshll.u32 [#allocation13], 4
      %s77 = int_to_ptr.vmem [resolvable:$true] %s76
      %82 = dma.hbm_to_vmem [thread:$0]  %s5, 4096, %s77, [#allocation14], 64, 64, 4
    $region25: #{clip_image_encoder_forward.13} parent=1 // pred_fallthru
      _
    // Predicated region
    $region26: #{clip_image_encoder_forward.13} parent=1 // pred_check
      _
    $region27: #{clip_image_encoder_forward.13} parent=1 // pred_check_branch
      %84 = sbr.rel (0) target = $region29
    $region28: #{clip_image_encoder_forward.13} parent=1 // pred_region
      %s86 = ssub.s32 16, 16
      %87 = vsyncadd [#allocation14], %s86
      %s89 = sshll.u32 [#allocation15], 4
      %s90 = int_to_ptr.vmem [resolvable:$true] %s89
      %92 = dma.hbm_to_vmem [thread:$0]  %s6, 16, %s90, [#allocation14]
    $region29: #{clip_image_encoder_forward.13} parent=1 // pred_fallthru
      _
    // Predicated region
    $region30: #{clip_image_encoder_forward.13} parent=1 // pred_check
      _
    $region31: #{clip_image_encoder_forward.13} parent=1 // pred_check_branch
      %94 = sbr.rel (0) target = $region33
    $region32: #{clip_image_encoder_forward.13} parent=1 // pred_region
      %95 = dma.done [#allocation5], 128
    $region33: #{clip_image_encoder_forward.13} parent=1 // pred_fallthru
      _
    // Predicated region
    $region34: #{clip_image_encoder_forward.13} parent=1 // pred_check
      _
    $region35: #{clip_image_encoder_forward.13} parent=1 // pred_check_branch
      %97 = sbr.rel (0) target = $region37
    $region36: #{clip_image_encoder_forward.13} parent=1 // pred_region
      %98 = dma.done [#allocation8], 16
    $region37: #{clip_image_encoder_forward.13} parent=1 // pred_fallthru
      _
    // Predicated region
    $region38: #{clip_image_encoder_forward.13} parent=1 // pred_check
      _
    $region39: #{clip_image_encoder_forward.13} parent=1 // pred_check_branch
      %100 = sbr.rel (0) target = $region41
    $region40: #{clip_image_encoder_forward.13} parent=1 // pred_region
      %101 = dma.done [#allocation8], 16
    $region41: #{clip_image_encoder_forward.13} parent=1 // pred_fallthru
      _
    // Predicated region
    $region42: #{clip_image_encoder_forward.13} parent=1 // pred_check
      _
    $region43: #{clip_image_encoder_forward.13} parent=1 // pred_check_branch
      %103 = sbr.rel (0) target = $region45
    $region44: #{clip_image_encoder_forward.13} parent=1 // pred_region
      %104 = dma.done [#allocation11], 4096
    $region45: #{clip_image_encoder_forward.13} parent=1 // pred_fallthru
      _
    // Predicated region
    $region46: #{clip_image_encoder_forward.13} parent=1 // pred_check
      _
    $region47: #{clip_image_encoder_forward.13} parent=1 // pred_check_branch
      %106 = sbr.rel (0) target = $region49
    $region48: #{clip_image_encoder_forward.13} parent=1 // pred_region
      %107 = dma.done [#allocation11], 64
    $region49: #{clip_image_encoder_forward.13} parent=1 // pred_fallthru
      _
    // Predicated region
    $region50: #{clip_image_encoder_forward.13} parent=1 // pred_check
      _
    $region51: #{clip_image_encoder_forward.13} parent=1 // pred_check_branch
      %109 = sbr.rel (0) target = $region53
    $region52: #{clip_image_encoder_forward.13} parent=1 // pred_region
      %110 = dma.done [#allocation14], 4096
    $region53: #{clip_image_encoder_forward.13} parent=1 // pred_fallthru
      _
    // Predicated region
    $region54: #{clip_image_encoder_forward.13} parent=1 // pred_check
      _
    $region55: #{clip_image_encoder_forward.13} parent=1 // pred_check_branch
      %112 = sbr.rel (0) target = $region57
    $region56: #{clip_image_encoder_forward.13} parent=1 // pred_region
      %113 = dma.done [#allocation14], 16
    $region57: #{clip_image_encoder_forward.13} parent=1 // pred_fallthru
      _
    %p115 = scmp.eq.s32.totalorder 0, 0
    // Predicated region
    $region58: #{clip_image_encoder_forward.13} parent=1 // pred_check
      %p116 = pneg %p115
    $region59: #{clip_image_encoder_forward.13} parent=1 // pred_check_branch
      %118 = sbr.rel (%p116) target = $region61
    $region60: #{clip_image_encoder_forward.13} parent=1 // pred_region
      %v119 = vld [vmem:[#allocation4] sm:$0xf]
      %v120 = vld [vmem:[#allocation4 + $0x4] sm:$0xf]
      %v121 = vunpack.c.l.bf16 %v119
      %v122 = vunpack.c.l.bf16 %v120
      %123 = vadd.xlane.f32.xlu0 %v121
      %v124 = vpop.xlane.xlu0 %123
      %125 = vadd.xlane.f32.xlu0 %v122
      %v126 = vpop.xlane.xlu0 %125
      %v127 = vrcp.pop 128.0
      %v128 = vmul.f32 %v124, %v127
      %v129 = vmul.f32 %v126, %v127
      %v130 = vsub.f32 %v121, %v128
      %v131 = vsub.f32 %v122, %v129
      %v132 = vmul.f32 %v130, %v130
      %v133 = vmul.f32 %v131, %v131
      %134 = vadd.xlane.f32.xlu0 %v132
      %v135 = vpop.xlane.xlu0 %134
      %136 = vadd.xlane.f32.xlu0 %v133
      %v137 = vpop.xlane.xlu0 %136
      %v138 = vmul.f32 %v135, %v127
      %v139 = vmul.f32 %v137, %v127
      %v140 = vadd.f32 %v138, 1e-05
      %v141 = vadd.f32 %v139, 1e-05
      %v142 = vrsqrt.pop %v140
      %v143 = vrsqrt.pop %v141
      %v144 = vmul.f32 %v130, %v142
      %v145 = vmul.f32 %v131, %v143
      %v146 = vld [vmem:[#allocation7] sm:$0x1]
      %v148 = vlaneseq
      %v149 = vshrl.u32 %v148, 7
      %v150 = vsub.s32 0, %v149
      %v151 = vrot.slane %v146, %v150
      %v153 = vmul.f32 %v144, %v151
      %v154 = vmul.f32 %v145, %v151
      %v155 = vld [vmem:[#allocation9] sm:$0x1]
      %v157 = vlaneseq
      %v158 = vshrl.u32 %v157, 7
      %v159 = vsub.s32 0, %v158
      %v160 = vrot.slane %v155, %v159
      %v162 = vadd.f32 %v153, %v160
      %v163 = vadd.f32 %v154, %v160
      %v164 = vpack.c.bf16 %v163, %v162
      %165 = vst [vmem:[#allocation3] sm:$0xff] %v164
      %166 = vst [vmem:[#allocation2] sm:$0xff] 0.0
      %167 = vst [vmem:[#allocation2 + $0x8] sm:$0xff] 0.0
    $region61: #{clip_image_encoder_forward.13} parent=1 // pred_fallthru
      _
    %v168 = vld [vmem:[#allocation3] sm:$0xff]
    %v169 = vld [vmem:[#allocation10] sm:$0xff]
    %v170 = vld [vmem:[#allocation10 + $0x8] sm:$0xff]
    %v171 = vld [vmem:[#allocation10 + $0x10] sm:$0xff]
    %v172 = vld [vmem:[#allocation10 + $0x18] sm:$0xff]
    %v173 = vld [vmem:[#allocation10 + $0x20] sm:$0xff]
    %v174 = vld [vmem:[#allocation10 + $0x28] sm:$0xff]
    %v175 = vld [vmem:[#allocation10 + $0x30] sm:$0xff]
    %v176 = vld [vmem:[#allocation10 + $0x38] sm:$0xff]
    %v177 = vld [vmem:[#allocation10 + $0x40] sm:$0xff]
    %v178 = vld [vmem:[#allocation10 + $0x48] sm:$0xff]
    %v179 = vld [vmem:[#allocation10 + $0x50] sm:$0xff]
    %v180 = vld [vmem:[#allocation10 + $0x58] sm:$0xff]
    %v181 = vld [vmem:[#allocation10 + $0x60] sm:$0xff]
    %v182 = vld [vmem:[#allocation10 + $0x68] sm:$0xff]
    %v183 = vld [vmem:[#allocation10 + $0x70] sm:$0xff]
    %v184 = vld [vmem:[#allocation10 + $0x78] sm:$0xff]
    %v185 = vld [vmem:[#allocation10 + $0x80] sm:$0xff]
    %v186 = vld [vmem:[#allocation10 + $0x88] sm:$0xff]
    %v187 = vld [vmem:[#allocation10 + $0x90] sm:$0xff]
    %v188 = vld [vmem:[#allocation10 + $0x98] sm:$0xff]
    %v189 = vld [vmem:[#allocation10 + $0xa0] sm:$0xff]
    %v190 = vld [vmem:[#allocation10 + $0xa8] sm:$0xff]
    %v191 = vld [vmem:[#allocation10 + $0xb0] sm:$0xff]
    %v192 = vld [vmem:[#allocation10 + $0xb8] sm:$0xff]
    %v193 = vld [vmem:[#allocation10 + $0xc0] sm:$0xff]
    %v194 = vld [vmem:[#allocation10 + $0xc8] sm:$0xff]
    %v195 = vld [vmem:[#allocation10 + $0xd0] sm:$0xff]
    %v196 = vld [vmem:[#allocation10 + $0xd8] sm:$0xff]
    %v197 = vld [vmem:[#allocation10 + $0xe0] sm:$0xff]
    %v198 = vld [vmem:[#allocation10 + $0xe8] sm:$0xff]
    %v199 = vld [vmem:[#allocation10 + $0xf0] sm:$0xff]
    %v200 = vld [vmem:[#allocation10 + $0xf8] sm:$0xff]
    %v201 = vld [vmem:[#allocation12] sm:$0xf]
    %v203 = vlaneseq
    %v204 = vshrl.u32 %v203, 7
    %v205 = vsub.s32 0, %v204
    %v206 = vrot.slane %v201, %v205
    %v207 = vlaneseq
    %v208 = vshrl.u32 %v207, 7
    %v209 = vsub.s32 1, %v208
    %v210 = vrot.slane %v201, %v209
    %v211 = vlaneseq
    %v212 = vshrl.u32 %v211, 7
    %v213 = vsub.s32 2, %v212
    %v214 = vrot.slane %v201, %v213
    %v215 = vlaneseq
    %v216 = vshrl.u32 %v215, 7
    %v217 = vsub.s32 3, %v216
    %v218 = vrot.slane %v201, %v217
    %v255 = vunpack.c.l.b16 %v169
    %v256 = vunpack.c.h.b16 %v169
    %v257 = vunpack.c.l.b16 %v170
    %v258 = vunpack.c.h.b16 %v170
    %v259 = vunpack.c.l.b16 %v171
    %v260 = vunpack.c.h.b16 %v171
    %v261 = vunpack.c.l.b16 %v172
    %v262 = vunpack.c.h.b16 %v172
    %v263 = vunpack.c.l.b16 %v173
    %v264 = vunpack.c.h.b16 %v173
    %v265 = vunpack.c.l.b16 %v174
    %v266 = vunpack.c.h.b16 %v174
    %v267 = vunpack.c.l.b16 %v175
    %v268 = vunpack.c.h.b16 %v175
    %v269 = vunpack.c.l.b16 %v176
    %v270 = vunpack.c.h.b16 %v176
    %v271 = vunpack.c.l.b16 %v177
    %v272 = vunpack.c.h.b16 %v177
    %v273 = vunpack.c.l.b16 %v178
    %v274 = vunpack.c.h.b16 %v178
    %v275 = vunpack.c.l.b16 %v179
    %v276 = vunpack.c.h.b16 %v179
    %v277 = vunpack.c.l.b16 %v180
    %v278 = vunpack.c.h.b16 %v180
    %v279 = vunpack.c.l.b16 %v181
    %v280 = vunpack.c.h.b16 %v181
    %v281 = vunpack.c.l.b16 %v182
    %v282 = vunpack.c.h.b16 %v182
    %v283 = vunpack.c.l.b16 %v183
    %v284 = vunpack.c.h.b16 %v183
    %v285 = vunpack.c.l.b16 %v184
    %v286 = vunpack.c.h.b16 %v184
    %v287 = vunpack.c.l.b16 %v185
    %v288 = vunpack.c.h.b16 %v185
    %v289 = vunpack.c.l.b16 %v186
    %v290 = vunpack.c.h.b16 %v186
    %v291 = vunpack.c.l.b16 %v187
    %v292 = vunpack.c.h.b16 %v187
    %v293 = vunpack.c.l.b16 %v188
    %v294 = vunpack.c.h.b16 %v188
    %v295 = vunpack.c.l.b16 %v189
    %v296 = vunpack.c.h.b16 %v189
    %v297 = vunpack.c.l.b16 %v190
    %v298 = vunpack.c.h.b16 %v190
    %v299 = vunpack.c.l.b16 %v191
    %v300 = vunpack.c.h.b16 %v191
    %v301 = vunpack.c.l.b16 %v192
    %v302 = vunpack.c.h.b16 %v192
    %v303 = vunpack.c.l.b16 %v193
    %v304 = vunpack.c.h.b16 %v193
    %v305 = vunpack.c.l.b16 %v194
    %v306 = vunpack.c.h.b16 %v194
    %v307 = vunpack.c.l.b16 %v195
    %v308 = vunpack.c.h.b16 %v195
    %v309 = vunpack.c.l.b16 %v196
    %v310 = vunpack.c.h.b16 %v196
    %v311 = vunpack.c.l.b16 %v197
    %v312 = vunpack.c.h.b16 %v197
    %v313 = vunpack.c.l.b16 %v198
    %v314 = vunpack.c.h.b16 %v198
    %v315 = vunpack.c.l.b16 %v199
    %v316 = vunpack.c.h.b16 %v199
    %v317 = vunpack.c.l.b16 %v200
    %v318 = vunpack.c.h.b16 %v200
    %v319 = vpack.c.b16 %v259, %v255
    %v320 = vpack.c.b16 %v260, %v256
    %v321 = vpack.c.b16 %v261, %v257
    %v322 = vpack.c.b16 %v262, %v258
    %v323 = vpack.c.b16 %v267, %v263
    %v324 = vpack.c.b16 %v268, %v264
    %v325 = vpack.c.b16 %v269, %v265
    %v326 = vpack.c.b16 %v270, %v266
    %v327 = vpack.c.b16 %v275, %v271
    %v328 = vpack.c.b16 %v276, %v272
    %v329 = vpack.c.b16 %v277, %v273
    %v330 = vpack.c.b16 %v278, %v274
    %v331 = vpack.c.b16 %v283, %v279
    %v332 = vpack.c.b16 %v284, %v280
    %v333 = vpack.c.b16 %v285, %v281
    %v334 = vpack.c.b16 %v286, %v282
    %v335 = vpack.c.b16 %v291, %v287
    %v336 = vpack.c.b16 %v292, %v288
    %v337 = vpack.c.b16 %v293, %v289
    %v338 = vpack.c.b16 %v294, %v290
    %v339 = vpack.c.b16 %v299, %v295
    %v340 = vpack.c.b16 %v300, %v296
    %v341 = vpack.c.b16 %v301, %v297
    %v342 = vpack.c.b16 %v302, %v298
    %v343 = vpack.c.b16 %v307, %v303
    %v344 = vpack.c.b16 %v308, %v304
    %v345 = vpack.c.b16 %v309, %v305
    %v346 = vpack.c.b16 %v310, %v306
    %v347 = vpack.c.b16 %v315, %v311
    %v348 = vpack.c.b16 %v316, %v312
    %v349 = vpack.c.b16 %v317, %v313
    %v350 = vpack.c.b16 %v318, %v314
    %383 = vmatprep.subr.bf16.mxu0 %v320
    %384 = vmatpush1.bf16.msra.mxu0 %v319
    %385 = vmatprep.subr.bf16.mxu0 %v324
    %386 = vmatpush1.bf16.msra.mxu0 %v323
    %387 = vmatprep.subr.bf16.mxu0 %v328
    %388 = vmatpush1.bf16.msra.mxu0 %v327
    %389 = vmatprep.subr.bf16.mxu0 %v332
    %390 = vmatpush1.bf16.msra.mxu0 %v331
    %391 = vmatprep.subr.bf16.mxu0 %v336
    %392 = vmatpush1.bf16.msra.mxu0 %v335
    %393 = vmatprep.subr.bf16.mxu0 %v340
    %394 = vmatpush1.bf16.msra.mxu0 %v339
    %395 = vmatprep.subr.bf16.mxu0 %v344
    %396 = vmatpush1.bf16.msra.mxu0 %v343
    %397 = vmatprep.subr.bf16.mxu0 %v348
    %398 = vmatpush1.bf16.msra.mxu0 %v347
    %399 = vmatprep.subr.bf16.mxu0 0
    %400 = vmatpush1.bf16.msra.mxu0 0
    %401 = vmatprep.subr.bf16.mxu0 0
    %402 = vmatpush1.bf16.msra.mxu0 0
    %403 = vmatprep.subr.bf16.mxu0 0
    %404 = vmatpush1.bf16.msra.mxu0 0
    %405 = vmatprep.subr.bf16.mxu0 0
    %406 = vmatpush1.bf16.msra.mxu0 0
    %407 = vmatprep.subr.bf16.mxu0 0
    %408 = vmatpush1.bf16.msra.mxu0 0
    %409 = vmatprep.subr.bf16.mxu0 0
    %410 = vmatpush1.bf16.msra.mxu0 0
    %411 = vmatprep.subr.bf16.mxu0 0
    %412 = vmatpush1.bf16.msra.mxu0 0
    %413 = vmatprep.subr.bf16.mxu0 0
    %414 = vmatpush1.bf16.msra.mxu0 0
    %415 = vmatprep.mubr.bf16.mxu0 0
    %416 = vmatmul.mubr.bf16.gmra.mrb[0].mxu0 %v168
    %v417 = vpop.f32.mrb[0].mxu0
    %v418 = vadd.f32 %v206, %v417
    %v419 = vpop.f32.mrb[0].mxu0
    %v420 = vadd.f32 %v210, %v419
    %v421 = vpop.f32.mrb[0].mxu0
    %v422 = vadd.f32 %v206, %v421
    %v423 = vpop.f32.mrb[0].mxu0
    %v424 = vadd.f32 %v210, %v423
    %425 = vdwg.mxu0
    %426 = vmatprep.subr.bf16.mxu0 %v322
    %427 = vmatpush1.bf16.msra.mxu0 %v321
    %428 = vmatprep.subr.bf16.mxu0 %v326
    %429 = vmatpush1.bf16.msra.mxu0 %v325
    %430 = vmatprep.subr.bf16.mxu0 %v330
    %431 = vmatpush1.bf16.msra.mxu0 %v329
    %432 = vmatprep.subr.bf16.mxu0 %v334
    %433 = vmatpush1.bf16.msra.mxu0 %v333
    %434 = vmatprep.subr.bf16.mxu0 %v338
    %435 = vmatpush1.bf16.msra.mxu0 %v337
    %436 = vmatprep.subr.bf16.mxu0 %v342
    %437 = vmatpush1.bf16.msra.mxu0 %v341
    %438 = vmatprep.subr.bf16.mxu0 %v346
    %439 = vmatpush1.bf16.msra.mxu0 %v345
    %440 = vmatprep.subr.bf16.mxu0 %v350
    %441 = vmatpush1.bf16.msra.mxu0 %v349
    %442 = vmatprep.subr.bf16.mxu0 0
    %443 = vmatpush1.bf16.msra.mxu0 0
    %444 = vmatprep.subr.bf16.mxu0 0
    %445 = vmatpush1.bf16.msra.mxu0 0
    %446 = vmatprep.subr.bf16.mxu0 0
    %447 = vmatpush1.bf16.msra.mxu0 0
    %448 = vmatprep.subr.bf16.mxu0 0
    %449 = vmatpush1.bf16.msra.mxu0 0
    %450 = vmatprep.subr.bf16.mxu0 0
    %451 = vmatpush1.bf16.msra.mxu0 0
    %452 = vmatprep.subr.bf16.mxu0 0
    %453 = vmatpush1.bf16.msra.mxu0 0
    %454 = vmatprep.subr.bf16.mxu0 0
    %455 = vmatpush1.bf16.msra.mxu0 0
    %456 = vmatprep.subr.bf16.mxu0 0
    %457 = vmatpush1.bf16.msra.mxu0 0
    %458 = vmatprep.mubr.bf16.mxu0 0
    %459 = vmatmul.mubr.bf16.gmra.mrb[0].mxu0 %v168
    %v460 = vpop.f32.mrb[0].mxu0
    %v461 = vadd.f32 %v214, %v460
    %v462 = vpop.f32.mrb[0].mxu0
    %v463 = vadd.f32 %v218, %v462
    %v464 = vpop.f32.mrb[0].mxu0
    %v465 = vadd.f32 %v214, %v464
    %v466 = vpop.f32.mrb[0].mxu0
    %v467 = vadd.f32 %v218, %v466
    %468 = vdwg.mxu0
    %v469 = vmul.f32 %v418, 1.702
    %v470 = vmul.f32 %v420, 1.702
    %v471 = vmul.f32 %v461, 1.702
    %v472 = vmul.f32 %v463, 1.702
    %v473 = vmul.f32 %v422, 1.702
    %v474 = vmul.f32 %v424, 1.702
    %v475 = vmul.f32 %v465, 1.702
    %v476 = vmul.f32 %v467, 1.702
    %v477 = vxor.u32 %v469, 2147483648
    %v478 = vxor.u32 %v470, 2147483648
    %v479 = vxor.u32 %v471, 2147483648
    %v480 = vxor.u32 %v472, 2147483648
    %v481 = vxor.u32 %v473, 2147483648
    %v482 = vxor.u32 %v474, 2147483648
    %v483 = vxor.u32 %v475, 2147483648
    %v484 = vxor.u32 %v476, 2147483648
    %v485 = vmul.f32 %v477, 1.442695
    %v486 = vpow.pop %v485
    %v487 = vmul.f32 %v478, 1.442695
    %v488 = vpow.pop %v487
    %v489 = vmul.f32 %v479, 1.442695
    %v490 = vpow.pop %v489
    %v491 = vmul.f32 %v480, 1.442695
    %v492 = vpow.pop %v491
    %v493 = vmul.f32 %v481, 1.442695
    %v494 = vpow.pop %v493
    %v495 = vmul.f32 %v482, 1.442695
    %v496 = vpow.pop %v495
    %v497 = vmul.f32 %v483, 1.442695
    %v498 = vpow.pop %v497
    %v499 = vmul.f32 %v484, 1.442695
    %v500 = vpow.pop %v499
    %v501 = vadd.f32 %v486, 1.0
    %v502 = vadd.f32 %v488, 1.0
    %v503 = vadd.f32 %v490, 1.0
    %v504 = vadd.f32 %v492, 1.0
    %v505 = vadd.f32 %v494, 1.0
    %v506 = vadd.f32 %v496, 1.0
    %v507 = vadd.f32 %v498, 1.0
    %v508 = vadd.f32 %v500, 1.0
    %v509 = vrcp.pop %v501
    %v510 = vmul.f32 1.0, %v509
    %v511 = vrcp.pop %v502
    %v512 = vmul.f32 1.0, %v511
    %v513 = vrcp.pop %v503
    %v514 = vmul.f32 1.0, %v513
    %v515 = vrcp.pop %v504
    %v516 = vmul.f32 1.0, %v515
    %v517 = vrcp.pop %v505
    %v518 = vmul.f32 1.0, %v517
    %v519 = vrcp.pop %v506
    %v520 = vmul.f32 1.0, %v519
    %v521 = vrcp.pop %v507
    %v522 = vmul.f32 1.0, %v521
    %v523 = vrcp.pop %v508
    %v524 = vmul.f32 1.0, %v523
    %v525 = vmul.f32 %v418, %v510
    %v526 = vmul.f32 %v420, %v512
    %v527 = vmul.f32 %v461, %v514
    %v528 = vmul.f32 %v463, %v516
    %v529 = vmul.f32 %v422, %v518
    %v530 = vmul.f32 %v424, %v520
    %v531 = vmul.f32 %v465, %v522
    %v532 = vmul.f32 %v467, %v524
    %v533 = vld [vmem:[#allocation2] sm:$0xff]
    %v534 = vld [vmem:[#allocation2 + $0x8] sm:$0xff]
    %v535 = vpack.c.bf16 %v529, %v525
    %v536 = vpack.c.bf16 %v530, %v526
    %v537 = vpack.c.bf16 %v531, %v527
    %v538 = vpack.c.bf16 %v532, %v528
    %v539 = vld [vmem:[#allocation13] sm:$0xf]
    %v540 = vld [vmem:[#allocation13 + $0x4] sm:$0xf]
    %v541 = vld [vmem:[#allocation13 + $0x8] sm:$0xf]
    %v542 = vld [vmem:[#allocation13 + $0xc] sm:$0xf]
    %v543 = vld [vmem:[#allocation13 + $0x10] sm:$0xf]
    %v544 = vld [vmem:[#allocation13 + $0x14] sm:$0xf]
    %v545 = vld [vmem:[#allocation13 + $0x18] sm:$0xf]
    %v546 = vld [vmem:[#allocation13 + $0x1c] sm:$0xf]
    %v547 = vld [vmem:[#allocation13 + $0x20] sm:$0xf]
    %v548 = vld [vmem:[#allocation13 + $0x24] sm:$0xf]
    %v549 = vld [vmem:[#allocation13 + $0x28] sm:$0xf]
    %v550 = vld [vmem:[#allocation13 + $0x2c] sm:$0xf]
    %v551 = vld [vmem:[#allocation13 + $0x30] sm:$0xf]
    %v552 = vld [vmem:[#allocation13 + $0x34] sm:$0xf]
    %v553 = vld [vmem:[#allocation13 + $0x38] sm:$0xf]
    %v554 = vld [vmem:[#allocation13 + $0x3c] sm:$0xf]
    %v555 = vld [vmem:[#allocation13 + $0x40] sm:$0xf]
    %v556 = vld [vmem:[#allocation13 + $0x44] sm:$0xf]
    %v557 = vld [vmem:[#allocation13 + $0x48] sm:$0xf]
    %v558 = vld [vmem:[#allocation13 + $0x4c] sm:$0xf]
    %v559 = vld [vmem:[#allocation13 + $0x50] sm:$0xf]
    %v560 = vld [vmem:[#allocation13 + $0x54] sm:$0xf]
    %v561 = vld [vmem:[#allocation13 + $0x58] sm:$0xf]
    %v562 = vld [vmem:[#allocation13 + $0x5c] sm:$0xf]
    %v563 = vld [vmem:[#allocation13 + $0x60] sm:$0xf]
    %v564 = vld [vmem:[#allocation13 + $0x64] sm:$0xf]
    %v565 = vld [vmem:[#allocation13 + $0x68] sm:$0xf]
    %v566 = vld [vmem:[#allocation13 + $0x6c] sm:$0xf]
    %v567 = vld [vmem:[#allocation13 + $0x70] sm:$0xf]
    %v568 = vld [vmem:[#allocation13 + $0x74] sm:$0xf]
    %v569 = vld [vmem:[#allocation13 + $0x78] sm:$0xf]
    %v570 = vld [vmem:[#allocation13 + $0x7c] sm:$0xf]
    %v571 = vld [vmem:[#allocation13 + $0x80] sm:$0xf]
    %v572 = vld [vmem:[#allocation13 + $0x84] sm:$0xf]
    %v573 = vld [vmem:[#allocation13 + $0x88] sm:$0xf]
    %v574 = vld [vmem:[#allocation13 + $0x8c] sm:$0xf]
    %v575 = vld [vmem:[#allocation13 + $0x90] sm:$0xf]
    %v576 = vld [vmem:[#allocation13 + $0x94] sm:$0xf]
    %v577 = vld [vmem:[#allocation13 + $0x98] sm:$0xf]
    %v578 = vld [vmem:[#allocation13 + $0x9c] sm:$0xf]
    %v579 = vld [vmem:[#allocation13 + $0xa0] sm:$0xf]
    %v580 = vld [vmem:[#allocation13 + $0xa4] sm:$0xf]
    %v581 = vld [vmem:[#allocation13 + $0xa8] sm:$0xf]
    %v582 = vld [vmem:[#allocation13 + $0xac] sm:$0xf]
    %v583 = vld [vmem:[#allocation13 + $0xb0] sm:$0xf]
    %v584 = vld [vmem:[#allocation13 + $0xb4] sm:$0xf]
    %v585 = vld [vmem:[#allocation13 + $0xb8] sm:$0xf]
    %v586 = vld [vmem:[#allocation13 + $0xbc] sm:$0xf]
    %v587 = vld [vmem:[#allocation13 + $0xc0] sm:$0xf]
    %v588 = vld [vmem:[#allocation13 + $0xc4] sm:$0xf]
    %v589 = vld [vmem:[#allocation13 + $0xc8] sm:$0xf]
    %v590 = vld [vmem:[#allocation13 + $0xcc] sm:$0xf]
    %v591 = vld [vmem:[#allocation13 + $0xd0] sm:$0xf]
    %v592 = vld [vmem:[#allocation13 + $0xd4] sm:$0xf]
    %v593 = vld [vmem:[#allocation13 + $0xd8] sm:$0xf]
    %v594 = vld [vmem:[#allocation13 + $0xdc] sm:$0xf]
    %v595 = vld [vmem:[#allocation13 + $0xe0] sm:$0xf]
    %v596 = vld [vmem:[#allocation13 + $0xe4] sm:$0xf]
    %v597 = vld [vmem:[#allocation13 + $0xe8] sm:$0xf]
    %v598 = vld [vmem:[#allocation13 + $0xec] sm:$0xf]
    %v599 = vld [vmem:[#allocation13 + $0xf0] sm:$0xf]
    %v600 = vld [vmem:[#allocation13 + $0xf4] sm:$0xf]
    %v601 = vld [vmem:[#allocation13 + $0xf8] sm:$0xf]
    %v602 = vld [vmem:[#allocation13 + $0xfc] sm:$0xf]
    %v667 = vunpack.c.l.b16 %v539
    %v668 = vunpack.c.l.b16 %v540
    %v669 = vunpack.c.l.b16 %v541
    %v670 = vunpack.c.l.b16 %v542
    %v671 = vunpack.c.l.b16 %v543
    %v672 = vunpack.c.l.b16 %v544
    %v673 = vunpack.c.l.b16 %v545
    %v674 = vunpack.c.l.b16 %v546
    %v675 = vunpack.c.l.b16 %v547
    %v676 = vunpack.c.l.b16 %v548
    %v677 = vunpack.c.l.b16 %v549
    %v678 = vunpack.c.l.b16 %v550
    %v679 = vunpack.c.l.b16 %v551
    %v680 = vunpack.c.l.b16 %v552
    %v681 = vunpack.c.l.b16 %v553
    %v682 = vunpack.c.l.b16 %v554
    %v683 = vunpack.c.l.b16 %v555
    %v684 = vunpack.c.l.b16 %v556
    %v685 = vunpack.c.l.b16 %v557
    %v686 = vunpack.c.l.b16 %v558
    %v687 = vunpack.c.l.b16 %v559
    %v688 = vunpack.c.l.b16 %v560
    %v689 = vunpack.c.l.b16 %v561
    %v690 = vunpack.c.l.b16 %v562
    %v691 = vunpack.c.l.b16 %v563
    %v692 = vunpack.c.l.b16 %v564
    %v693 = vunpack.c.l.b16 %v565
    %v694 = vunpack.c.l.b16 %v566
    %v695 = vunpack.c.l.b16 %v567
    %v696 = vunpack.c.l.b16 %v568
    %v697 = vunpack.c.l.b16 %v569
    %v698 = vunpack.c.l.b16 %v570
    %v699 = vunpack.c.l.b16 %v571
    %v700 = vunpack.c.l.b16 %v572
    %v701 = vunpack.c.l.b16 %v573
    %v702 = vunpack.c.l.b16 %v574
    %v703 = vunpack.c.l.b16 %v575
    %v704 = vunpack.c.l.b16 %v576
    %v705 = vunpack.c.l.b16 %v577
    %v706 = vunpack.c.l.b16 %v578
    %v707 = vunpack.c.l.b16 %v579
    %v708 = vunpack.c.l.b16 %v580
    %v709 = vunpack.c.l.b16 %v581
    %v710 = vunpack.c.l.b16 %v582
    %v711 = vunpack.c.l.b16 %v583
    %v712 = vunpack.c.l.b16 %v584
    %v713 = vunpack.c.l.b16 %v585
    %v714 = vunpack.c.l.b16 %v586
    %v715 = vunpack.c.l.b16 %v587
    %v716 = vunpack.c.l.b16 %v588
    %v717 = vunpack.c.l.b16 %v589
    %v718 = vunpack.c.l.b16 %v590
    %v719 = vunpack.c.l.b16 %v591
    %v720 = vunpack.c.l.b16 %v592
    %v721 = vunpack.c.l.b16 %v593
    %v722 = vunpack.c.l.b16 %v594
    %v723 = vunpack.c.l.b16 %v595
    %v724 = vunpack.c.l.b16 %v596
    %v725 = vunpack.c.l.b16 %v597
    %v726 = vunpack.c.l.b16 %v598
    %v727 = vunpack.c.l.b16 %v599
    %v728 = vunpack.c.l.b16 %v600
    %v729 = vunpack.c.l.b16 %v601
    %v730 = vunpack.c.l.b16 %v602
    %v731 = vpack.c.b16 %v668, %v667
    %v732 = vpack.c.b16 %v670, %v669
    %v733 = vpack.c.b16 %v672, %v671
    %v734 = vpack.c.b16 %v674, %v673
    %v735 = vpack.c.b16 %v676, %v675
    %v736 = vpack.c.b16 %v678, %v677
    %v737 = vpack.c.b16 %v680, %v679
    %v738 = vpack.c.b16 %v682, %v681
    %v739 = vpack.c.b16 %v684, %v683
    %v740 = vpack.c.b16 %v686, %v685
    %v741 = vpack.c.b16 %v688, %v687
    %v742 = vpack.c.b16 %v690, %v689
    %v743 = vpack.c.b16 %v692, %v691
    %v744 = vpack.c.b16 %v694, %v693
    %v745 = vpack.c.b16 %v696, %v695
    %v746 = vpack.c.b16 %v698, %v697
    %v747 = vpack.c.b16 %v700, %v699
    %v748 = vpack.c.b16 %v702, %v701
    %v749 = vpack.c.b16 %v704, %v703
    %v750 = vpack.c.b16 %v706, %v705
    %v751 = vpack.c.b16 %v708, %v707
    %v752 = vpack.c.b16 %v710, %v709
    %v753 = vpack.c.b16 %v712, %v711
    %v754 = vpack.c.b16 %v714, %v713
    %v755 = vpack.c.b16 %v716, %v715
    %v756 = vpack.c.b16 %v718, %v717
    %v757 = vpack.c.b16 %v720, %v719
    %v758 = vpack.c.b16 %v722, %v721
    %v759 = vpack.c.b16 %v724, %v723
    %v760 = vpack.c.b16 %v726, %v725
    %v761 = vpack.c.b16 %v728, %v727
    %v762 = vpack.c.b16 %v730, %v729
    %795 = vmatprep.subr.bf16.mxu0 0
    %796 = vmatpush1.bf16.msra.mxu0 %v731
    %797 = vmatprep.subr.bf16.mxu0 0
    %798 = vmatpush1.bf16.msra.mxu0 %v732
    %799 = vmatprep.subr.bf16.mxu0 0
    %800 = vmatpush1.bf16.msra.mxu0 %v733
    %801 = vmatprep.subr.bf16.mxu0 0
    %802 = vmatpush1.bf16.msra.mxu0 %v734
    %803 = vmatprep.subr.bf16.mxu0 0
    %804 = vmatpush1.bf16.msra.mxu0 %v735
    %805 = vmatprep.subr.bf16.mxu0 0
    %806 = vmatpush1.bf16.msra.mxu0 %v736
    %807 = vmatprep.subr.bf16.mxu0 0
    %808 = vmatpush1.bf16.msra.mxu0 %v737
    %809 = vmatprep.subr.bf16.mxu0 0
    %810 = vmatpush1.bf16.msra.mxu0 %v738
    %811 = vmatprep.subr.bf16.mxu0 0
    %812 = vmatpush1.bf16.msra.mxu0 %v739
    %813 = vmatprep.subr.bf16.mxu0 0
    %814 = vmatpush1.bf16.msra.mxu0 %v740
    %815 = vmatprep.subr.bf16.mxu0 0
    %816 = vmatpush1.bf16.msra.mxu0 %v741
    %817 = vmatprep.subr.bf16.mxu0 0
    %818 = vmatpush1.bf16.msra.mxu0 %v742
    %819 = vmatprep.subr.bf16.mxu0 0
    %820 = vmatpush1.bf16.msra.mxu0 %v743
    %821 = vmatprep.subr.bf16.mxu0 0
    %822 = vmatpush1.bf16.msra.mxu0 %v744
    %823 = vmatprep.subr.bf16.mxu0 0
    %824 = vmatpush1.bf16.msra.mxu0 %v745
    %825 = vmatprep.subr.bf16.mxu0 0
    %826 = vmatpush1.bf16.msra.mxu0 %v746
    %827 = vmatprep.mubr.bf16.mxu0 %v536
    %828 = vmatmul.mubr.bf16.gmra.mrb[0].mxu0 %v535
    %v829 = vpop.f32.mrb[0].mxu0
    %v830 = vadd.f32 0.0, %v829
    %v831 = vpop.f32.mrb[0].mxu0
    %v832 = vpop.f32.mrb[0].mxu0
    %v833 = vadd.f32 0.0, %v832
    %v834 = vpop.f32.mrb[0].mxu0
    %835 = vdwg.mxu0
    %836 = vmatprep.subr.bf16.mxu0 0
    %837 = vmatpush1.bf16.msra.mxu0 %v747
    %838 = vmatprep.subr.bf16.mxu0 0
    %839 = vmatpush1.bf16.msra.mxu0 %v748
    %840 = vmatprep.subr.bf16.mxu0 0
    %841 = vmatpush1.bf16.msra.mxu0 %v749
    %842 = vmatprep.subr.bf16.mxu0 0
    %843 = vmatpush1.bf16.msra.mxu0 %v750
    %844 = vmatprep.subr.bf16.mxu0 0
    %845 = vmatpush1.bf16.msra.mxu0 %v751
    %846 = vmatprep.subr.bf16.mxu0 0
    %847 = vmatpush1.bf16.msra.mxu0 %v752
    %848 = vmatprep.subr.bf16.mxu0 0
    %849 = vmatpush1.bf16.msra.mxu0 %v753
    %850 = vmatprep.subr.bf16.mxu0 0
    %851 = vmatpush1.bf16.msra.mxu0 %v754
    %852 = vmatprep.subr.bf16.mxu0 0
    %853 = vmatpush1.bf16.msra.mxu0 %v755
    %854 = vmatprep.subr.bf16.mxu0 0
    %855 = vmatpush1.bf16.msra.mxu0 %v756
    %856 = vmatprep.subr.bf16.mxu0 0
    %857 = vmatpush1.bf16.msra.mxu0 %v757
    %858 = vmatprep.subr.bf16.mxu0 0
    %859 = vmatpush1.bf16.msra.mxu0 %v758
    %860 = vmatprep.subr.bf16.mxu0 0
    %861 = vmatpush1.bf16.msra.mxu0 %v759
    %862 = vmatprep.subr.bf16.mxu0 0
    %863 = vmatpush1.bf16.msra.mxu0 %v760
    %864 = vmatprep.subr.bf16.mxu0 0
    %865 = vmatpush1.bf16.msra.mxu0 %v761
    %866 = vmatprep.subr.bf16.mxu0 0
    %867 = vmatpush1.bf16.msra.mxu0 %v762
    %868 = vmatprep.mubr.bf16.mxu0 %v538
    %869 = vmatmul.mubr.bf16.gmra.mrb[0].mxu0 %v537
    %v870 = vpop.f32.mrb[0].mxu0
    %v871 = vadd.f32 %v830, %v870
    %v872 = vpop.f32.mrb[0].mxu0
    %v873 = vpop.f32.mrb[0].mxu0
    %v874 = vadd.f32 %v833, %v873
    %v875 = vpop.f32.mrb[0].mxu0
    %876 = vdwg.mxu0
    %v877 = vadd.f32 %v533, %v871
    %v878 = vadd.f32 %v534, %v874
    %879 = vst [vmem:[#allocation2] sm:$0xff] %v877
    %880 = vst [vmem:[#allocation2 + $0x8] sm:$0xff] %v878
    // Predicated region
    $region62: #{clip_image_encoder_forward.13} parent=1 // pred_check
      %p881 = pneg %p115
    $region63: #{clip_image_encoder_forward.13} parent=1 // pred_check_branch
      %883 = sbr.rel (%p881) target = $region65
    $region64: #{clip_image_encoder_forward.13} parent=1 // pred_region
      %v884 = vld [vmem:[#allocation2] sm:$0xff]
      %v885 = vld [vmem:[#allocation2 + $0x8] sm:$0xff]
      %v886 = vld [vmem:[#allocation15] sm:$0x1]
      %v888 = vlaneseq
      %v889 = vshrl.u32 %v888, 7
      %v890 = vsub.s32 0, %v889
      %v891 = vrot.slane %v886, %v890
      %v893 = vadd.f32 %v884, %v891
      %v894 = vadd.f32 %v885, %v891
      %v895 = vld [vmem:[#allocation4] sm:$0xf]
      %v896 = vld [vmem:[#allocation4 + $0x4] sm:$0xf]
      %v897 = vunpack.c.l.bf16 %v895
      %v898 = vunpack.c.l.bf16 %v896
      %v899 = vadd.f32 %v893, %v897
      %v900 = vadd.f32 %v894, %v898
      %v901 = vpack.c.bf16 %v900, %v899
      %v903 = vunpack.c.l.b16 %v901
      %v904 = vunpack.c.h.b16 %v901
      %v905 = vpack.c.b16 %v903, %v903
      %v906 = vpack.c.b16 %v904, %v904
      %909 = vst [vmem:[#allocation16] sm:$0xf] %v905
      %910 = vst [vmem:[#allocation16 + $0x4] sm:$0xf] %v906
    $region65: #{clip_image_encoder_forward.13} parent=1 // pred_fallthru
      _
    // Predicated region
    $region66: #{clip_image_encoder_forward.13} parent=1 // pred_check
      _
    $region67: #{clip_image_encoder_forward.13} parent=1 // pred_check_branch
      %912 = sbr.rel (0) target = $region69
    $region68: #{clip_image_encoder_forward.13} parent=1 // pred_region
      %s914 = ssub.s32 128, 128
      %915 = vsyncadd [#allocation6], %s914
      %s916 = sshll.u32 [#allocation16], 4
      %s917 = int_to_ptr.vmem [resolvable:$true] %s916
      %922 = dma.vmem_to_hbm [thread:$0]  %s917, 128, %s7, [#allocation6], 64, 64, 4
    $region69: #{clip_image_encoder_forward.13} parent=1 // pred_fallthru
      _
    // Predicated region
    $region70: #{clip_image_encoder_forward.13} parent=1 // pred_check
      _
    $region71: #{clip_image_encoder_forward.13} parent=1 // pred_check_branch
      %924 = sbr.rel (0) target = $region73
    $region72: #{clip_image_encoder_forward.13} parent=1 // pred_region
      %925 = dma.done [#allocation6], 128
    $region73: #{clip_image_encoder_forward.13} parent=1 // pred_fallthru
      _
    %926 = vsyncpa [#allocation5], 1
    %927 = vsyncpa [#allocation8], 1
    %928 = vsyncpa [#allocation11], 1
    %929 = vsyncpa [#allocation14], 1
    %930 = vsyncpa [#allocation6], 1

// kernel: clip_image_encoder_forward.9
$region0: #{clip_image_encoder_forward.9}
  #allocation0 [shape = 'u32[]', space=smem, size = 0x4, offset = 0x4, fixed_abs, tag = 'smem constant byte address 0x4 - core index']
  #allocation1 [shape = 'u32[144,128]{1,0:T(1,128)}', space=vmem, size = 0x12000, scoped, tag = 'internal scratch']
  %s0 = inlined_call_operand.hbm [shape: f32[8,256], index: 0, kind: input, shape index: {}]
  %s1 = inlined_call_operand.hbm [shape: bf16[256,128], index: 1, kind: input, shape index: {}]
  %s2 = inlined_call_operand.hbm [shape: f32[1,128], index: 2, kind: input, shape index: {}]
  %s3 = inlined_call_operand.hbm [shape: bf16[8,128], index: 3, kind: output, shape index: {}]
  %s4 = sld [smem:[#allocation0]]
  $region34: #{clip_image_encoder_forward.9} parent=0
    _
  %s6 = ssub.s32 1, %s4
  %s7 = scalar_select 0, %s6, %s4
  $region1: #{clip_image_encoder_forward.9} parent=0
    #allocation2 [shape = 'u8[8192]{0}', space=vmem, size = 0x2000, scoped, tag = 'input window, operand 0, single buffered']
    #allocation3 [shape = 's32[1]{0}', space=sflag, size = 0x4, scoped, tag = 'scoped memory for clip_image_encoder_forward.9']
    #allocation4 [shape = 's32[1]{0}', space=sflag, size = 0x4, scoped, tag = 'scoped memory for clip_image_encoder_forward.9']
    #allocation5 [shape = 'u8[65536]{0}', space=vmem, size = 0x10000, scoped, tag = 'input window, operand 1, single buffered']
    #allocation6 [shape = 's32[1]{0}', space=sflag, size = 0x4, scoped, tag = 'scoped memory for clip_image_encoder_forward.9']
    #allocation7 [shape = 'u8[512]{0}', space=vmem, size = 0x400, scoped, tag = 'input window, operand 2, single buffered']
    #allocation8 [shape = 'u8[2048]{0}', space=vmem, size = 0x800, scoped, tag = 'output window, operand 0, single buffered']
    %8 = vsyncpa [#allocation3], 0
    %9 = vsyncpa [#allocation6], 0
    %10 = vsyncpa [#allocation4], 0
    // Predicated region
    $region2: #{clip_image_encoder_forward.9} parent=1 // pred_check
      _
    $region3: #{clip_image_encoder_forward.9} parent=1 // pred_check_branch
      %12 = sbr.rel (0) target = $region5
    $region4: #{clip_image_encoder_forward.9} parent=1 // pred_region
      %s14 = ssub.s32 256, 256
      %15 = vsyncadd [#allocation3], %s14
      %s17 = sshll.u32 [#allocation2], 4
      %s18 = int_to_ptr.vmem [resolvable:$true] %s17
      %20 = dma.hbm_to_vmem [thread:$0]  %s0, 256, %s18, [#allocation3]
    $region5: #{clip_image_encoder_forward.9} parent=1 // pred_fallthru
      _
    // Predicated region
    $region6: #{clip_image_encoder_forward.9} parent=1 // pred_check
      _
    $region7: #{clip_image_encoder_forward.9} parent=1 // pred_check_branch
      %22 = sbr.rel (0) target = $region9
    $region8: #{clip_image_encoder_forward.9} parent=1 // pred_region
      %s24 = ssub.s32 2048, 2048
      %25 = vsyncadd [#allocation6], %s24
      %s26 = sshll.u32 [#allocation5], 4
      %s27 = int_to_ptr.vmem [resolvable:$true] %s26
      %32 = dma.hbm_to_vmem [thread:$0]  %s1, 2048, %s27, [#allocation6], 64, 64, 4
    $region9: #{clip_image_encoder_forward.9} parent=1 // pred_fallthru
      _
    // Predicated region
    $region10: #{clip_image_encoder_forward.9} parent=1 // pred_check
      _
    $region11: #{clip_image_encoder_forward.9} parent=1 // pred_check_branch
      %34 = sbr.rel (0) target = $region13
    $region12: #{clip_image_encoder_forward.9} parent=1 // pred_region
      %s36 = ssub.s32 16, 16
      %37 = vsyncadd [#allocation6], %s36
      %s39 = sshll.u32 [#allocation7], 4
      %s40 = int_to_ptr.vmem [resolvable:$true] %s39
      %42 = dma.hbm_to_vmem [thread:$0]  %s2, 16, %s40, [#allocation6]
    $region13: #{clip_image_encoder_forward.9} parent=1 // pred_fallthru
      _
    // Predicated region
    $region14: #{clip_image_encoder_forward.9} parent=1 // pred_check
      _
    $region15: #{clip_image_encoder_forward.9} parent=1 // pred_check_branch
      %44 = sbr.rel (0) target = $region17
    $region16: #{clip_image_encoder_forward.9} parent=1 // pred_region
      %45 = dma.done [#allocation3], 256
    $region17: #{clip_image_encoder_forward.9} parent=1 // pred_fallthru
      _
    // Predicated region
    $region18: #{clip_image_encoder_forward.9} parent=1 // pred_check
      _
    $region19: #{clip_image_encoder_forward.9} parent=1 // pred_check_branch
      %47 = sbr.rel (0) target = $region21
    $region20: #{clip_image_encoder_forward.9} parent=1 // pred_region
      %48 = dma.done [#allocation6], 2048
    $region21: #{clip_image_encoder_forward.9} parent=1 // pred_fallthru
      _
    // Predicated region
    $region22: #{clip_image_encoder_forward.9} parent=1 // pred_check
      _
    $region23: #{clip_image_encoder_forward.9} parent=1 // pred_check_branch
      %50 = sbr.rel (0) target = $region25
    $region24: #{clip_image_encoder_forward.9} parent=1 // pred_region
      %51 = dma.done [#allocation6], 16
    $region25: #{clip_image_encoder_forward.9} parent=1 // pred_fallthru
      _
    %v53 = vld [vmem:[#allocation2] sm:$0xff]
    %v54 = vld [vmem:[#allocation2 + $0x8] sm:$0xff]
    %v55 = vpack.c.bf16 %v53, %v53
    %v56 = vpack.c.bf16 %v54, %v54
    %v57 = vld [vmem:[#allocation5] sm:$0xf]
    %v58 = vld [vmem:[#allocation5 + $0x4] sm:$0xf]
    %v59 = vld [vmem:[#allocation5 + $0x8] sm:$0xf]
    %v60 = vld [vmem:[#allocation5 + $0xc] sm:$0xf]
    %v61 = vld [vmem:[#allocation5 + $0x10] sm:$0xf]
    %v62 = vld [vmem:[#allocation5 + $0x14] sm:$0xf]
    %v63 = vld [vmem:[#allocation5 + $0x18] sm:$0xf]
    %v64 = vld [vmem:[#allocation5 + $0x1c] sm:$0xf]
    %v65 = vld [vmem:[#allocation5 + $0x20] sm:$0xf]
    %v66 = vld [vmem:[#allocation5 + $0x24] sm:$0xf]
    %v67 = vld [vmem:[#allocation5 + $0x28] sm:$0xf]
    %v68 = vld [vmem:[#allocation5 + $0x2c] sm:$0xf]
    %v69 = vld [vmem:[#allocation5 + $0x30] sm:$0xf]
    %v70 = vld [vmem:[#allocation5 + $0x34] sm:$0xf]
    %v71 = vld [vmem:[#allocation5 + $0x38] sm:$0xf]
    %v72 = vld [vmem:[#allocation5 + $0x3c] sm:$0xf]
    %v73 = vld [vmem:[#allocation5 + $0x40] sm:$0xf]
    %v74 = vld [vmem:[#allocation5 + $0x44] sm:$0xf]
    %v75 = vld [vmem:[#allocation5 + $0x48] sm:$0xf]
    %v76 = vld [vmem:[#allocation5 + $0x4c] sm:$0xf]
    %v77 = vld [vmem:[#allocation5 + $0x50] sm:$0xf]
    %v78 = vld [vmem:[#allocation5 + $0x54] sm:$0xf]
    %v79 = vld [vmem:[#allocation5 + $0x58] sm:$0xf]
    %v80 = vld [vmem:[#allocation5 + $0x5c] sm:$0xf]
    %v81 = vld [vmem:[#allocation5 + $0x60] sm:$0xf]
    %v82 = vld [vmem:[#allocation5 + $0x64] sm:$0xf]
    %v83 = vld [vmem:[#allocation5 + $0x68] sm:$0xf]
    %v84 = vld [vmem:[#allocation5 + $0x6c] sm:$0xf]
    %v85 = vld [vmem:[#allocation5 + $0x70] sm:$0xf]
    %v86 = vld [vmem:[#allocation5 + $0x74] sm:$0xf]
    %v87 = vld [vmem:[#allocation5 + $0x78] sm:$0xf]
    %v88 = vld [vmem:[#allocation5 + $0x7c] sm:$0xf]
    %v89 = vld [vmem:[#allocation7] sm:$0x1]
    %v91 = vlaneseq
    %v92 = vshrl.u32 %v91, 7
    %v93 = vsub.s32 0, %v92
    %v94 = vrot.slane %v89, %v93
    %v128 = vunpack.c.l.b16 %v57
    %v129 = vunpack.c.l.b16 %v58
    %v130 = vunpack.c.l.b16 %v59
    %v131 = vunpack.c.l.b16 %v60
    %v132 = vunpack.c.l.b16 %v61
    %v133 = vunpack.c.l.b16 %v62
    %v134 = vunpack.c.l.b16 %v63
    %v135 = vunpack.c.l.b16 %v64
    %v136 = vunpack.c.l.b16 %v65
    %v137 = vunpack.c.l.b16 %v66
    %v138 = vunpack.c.l.b16 %v67
    %v139 = vunpack.c.l.b16 %v68
    %v140 = vunpack.c.l.b16 %v69
    %v141 = vunpack.c.l.b16 %v70
    %v142 = vunpack.c.l.b16 %v71
    %v143 = vunpack.c.l.b16 %v72
    %v144 = vunpack.c.l.b16 %v73
    %v145 = vunpack.c.l.b16 %v74
    %v146 = vunpack.c.l.b16 %v75
    %v147 = vunpack.c.l.b16 %v76
    %v148 = vunpack.c.l.b16 %v77
    %v149 = vunpack.c.l.b16 %v78
    %v150 = vunpack.c.l.b16 %v79
    %v151 = vunpack.c.l.b16 %v80
    %v152 = vunpack.c.l.b16 %v81
    %v153 = vunpack.c.l.b16 %v82
    %v154 = vunpack.c.l.b16 %v83
    %v155 = vunpack.c.l.b16 %v84
    %v156 = vunpack.c.l.b16 %v85
    %v157 = vunpack.c.l.b16 %v86
    %v158 = vunpack.c.l.b16 %v87
    %v159 = vunpack.c.l.b16 %v88
    %v160 = vpack.c.b16 %v129, %v128
    %v161 = vpack.c.b16 %v131, %v130
    %v162 = vpack.c.b16 %v133, %v132
    %v163 = vpack.c.b16 %v135, %v134
    %v164 = vpack.c.b16 %v137, %v136
    %v165 = vpack.c.b16 %v139, %v138
    %v166 = vpack.c.b16 %v141, %v140
    %v167 = vpack.c.b16 %v143, %v142
    %v168 = vpack.c.b16 %v145, %v144
    %v169 = vpack.c.b16 %v147, %v146
    %v170 = vpack.c.b16 %v149, %v148
    %v171 = vpack.c.b16 %v151, %v150
    %v172 = vpack.c.b16 %v153, %v152
    %v173 = vpack.c.b16 %v155, %v154
    %v174 = vpack.c.b16 %v157, %v156
    %v175 = vpack.c.b16 %v159, %v158
    %192 = vmatprep.subr.bf16.mxu0 0
    %193 = vmatpush1.bf16.msra.mxu0 %v160
    %194 = vmatprep.subr.bf16.mxu0 0
    %195 = vmatpush1.bf16.msra.mxu0 %v161
    %196 = vmatprep.subr.bf16.mxu0 0
    %197 = vmatpush1.bf16.msra.mxu0 %v162
    %198 = vmatprep.subr.bf16.mxu0 0
    %199 = vmatpush1.bf16.msra.mxu0 %v163
    %200 = vmatprep.subr.bf16.mxu0 0
    %201 = vmatpush1.bf16.msra.mxu0 %v164
    %202 = vmatprep.subr.bf16.mxu0 0
    %203 = vmatpush1.bf16.msra.mxu0 %v165
    %204 = vmatprep.subr.bf16.mxu0 0
    %205 = vmatpush1.bf16.msra.mxu0 %v166
    %206 = vmatprep.subr.bf16.mxu0 0
    %207 = vmatpush1.bf16.msra.mxu0 %v167
    %208 = vmatprep.subr.bf16.mxu0 0
    %209 = vmatpush1.bf16.msra.mxu0 %v168
    %210 = vmatprep.subr.bf16.mxu0 0
    %211 = vmatpush1.bf16.msra.mxu0 %v169
    %212 = vmatprep.subr.bf16.mxu0 0
    %213 = vmatpush1.bf16.msra.mxu0 %v170
    %214 = vmatprep.subr.bf16.mxu0 0
    %215 = vmatpush1.bf16.msra.mxu0 %v171
    %216 = vmatprep.subr.bf16.mxu0 0
    %217 = vmatpush1.bf16.msra.mxu0 %v172
    %218 = vmatprep.subr.bf16.mxu0 0
    %219 = vmatpush1.bf16.msra.mxu0 %v173
    %220 = vmatprep.subr.bf16.mxu0 0
    %221 = vmatpush1.bf16.msra.mxu0 %v174
    %222 = vmatprep.subr.bf16.mxu0 0
    %223 = vmatpush1.bf16.msra.mxu0 %v175
    %224 = vmatprep.mubr.bf16.mxu0 %v56
    %225 = vmatmul.mubr.bf16.gmra.mrb[0].mxu0 %v55
    %v226 = vpop.f32.mrb[0].mxu0
    %v227 = vadd.f32 %v94, %v226
    %v228 = vpop.f32.mrb[0].mxu0
    %v229 = vpop.f32.mrb[0].mxu0
    %v230 = vpop.f32.mrb[0].mxu0
    %231 = vdwg.mxu0
    %v232 = vpack.c.bf16 %v227, %v227
    %233 = vst [vmem:[#allocation8] sm:$0xf] %v232
    // Predicated region
    $region26: #{clip_image_encoder_forward.9} parent=1 // pred_check
      _
    $region27: #{clip_image_encoder_forward.9} parent=1 // pred_check_branch
      %235 = sbr.rel (0) target = $region29
    $region28: #{clip_image_encoder_forward.9} parent=1 // pred_region
      %s237 = ssub.s32 64, 64
      %238 = vsyncadd [#allocation4], %s237
      %s240 = sshll.u32 [#allocation8], 4
      %s241 = int_to_ptr.vmem [resolvable:$true] %s240
      %243 = dma.vmem_to_hbm [thread:$0]  %s241, 64, %s3, [#allocation4]
    $region29: #{clip_image_encoder_forward.9} parent=1 // pred_fallthru
      _
    // Predicated region
    $region30: #{clip_image_encoder_forward.9} parent=1 // pred_check
      _
    $region31: #{clip_image_encoder_forward.9} parent=1 // pred_check_branch
      %245 = sbr.rel (0) target = $region33
    $region32: #{clip_image_encoder_forward.9} parent=1 // pred_region
      %246 = dma.done [#allocation4], 64
    $region33: #{clip_image_encoder_forward.9} parent=1 // pred_fallthru
      _
    %247 = vsyncpa [#allocation3], 1
    %248 = vsyncpa [#allocation6], 1
    %249 = vsyncpa [#allocation4], 1

// kernel: clip_image_encoder_forward.10
$region0: #{clip_image_encoder_forward.10}
  #allocation0 [shape = 'u32[]', space=smem, size = 0x4, offset = 0x4, fixed_abs, tag = 'smem constant byte address 0x4 - core index']
  #allocation1 [shape = 'u32[144,128]{1,0:T(1,128)}', space=vmem, size = 0x12000, scoped, tag = 'internal scratch']
  %s0 = inlined_call_operand.hbm [shape: bf16[2,8,128], index: 0, kind: input, shape index: {}]
  %s1 = inlined_call_operand.hbm [shape: f32[8,128], index: 1, kind: input, shape index: {}]
  %s2 = inlined_call_operand.hbm [shape: f32[1,128], index: 2, kind: input, shape index: {}]
  %s3 = inlined_call_operand.hbm [shape: f32[1,128], index: 3, kind: input, shape index: {}]
  %s4 = inlined_call_operand.hbm [shape: bf16[2,8,128], index: 4, kind: output, shape index: {}]
  %s5 = sld [smem:[#allocation0]]
  $region65: #{clip_image_encoder_forward.10} parent=0
    _
  %s7 = ssub.s32 1, %s5
  %s8 = scalar_select 0, %s7, %s5
  $region1: #{clip_image_encoder_forward.10} parent=0
    #allocation2 [shape = 'u8[4096]{0}', space=vmem, size = 0x1000, scoped, tag = 'input window, operand 0']
    #allocation3 [shape = 's32[2]{0}', space=sflag, size = 0x8, scoped, tag = 'scoped memory for clip_image_encoder_forward.10']
    #allocation4 [shape = 's32[2]{0}', space=sflag, size = 0x8, scoped, tag = 'scoped memory for clip_image_encoder_forward.10']
    #allocation5 [shape = 'u8[4096]{0}', space=vmem, size = 0x1000, scoped, tag = 'input window, operand 1, single buffered']
    #allocation6 [shape = 's32[1]{0}', space=sflag, size = 0x4, scoped, tag = 'scoped memory for clip_image_encoder_forward.10']
    #allocation7 [shape = 'u8[512]{0}', space=vmem, size = 0x400, scoped, tag = 'input window, operand 2, single buffered']
    #allocation8 [shape = 'u8[512]{0}', space=vmem, size = 0x400, scoped, tag = 'input window, operand 3, single buffered']
    #allocation9 [shape = 's32[1]{0}', space=sflag, size = 0x4, scoped, tag = 'scoped memory for clip_image_encoder_forward.10']
    #allocation10 [shape = 'u8[4096]{0}', space=vmem, size = 0x1000, scoped, tag = 'output window, operand 0']
    %9 = vsyncpa [#allocation3], 0
    %s10 = scalar_lea.sflag [#allocation3], 1
    %11 = vsyncpa %s10, 0
    %12 = vsyncpa [#allocation6], 0
    %13 = vsyncpa [#allocation9], 0
    %14 = vsyncpa [#allocation4], 0
    %s15 = scalar_lea.sflag [#allocation4], 1
    %16 = vsyncpa %s15, 0
    loop: start=0, step=1, limit=4
    $region2: #{clip_image_encoder_forward.10} parent=1 // loop_pre_header
      _
    $region3: #{clip_image_encoder_forward.10} parent=1 // loop_header
      %s18 = sphi 0, %s22
      %p19 = scmp.ge.s32.totalorder %s18, 4
      %s25 = sphi 0, %s37
      %s26 = sphi 0, %s33
      %s27 = sphi 0, %s25
      %s28 = sphi 0, %s26
      %s29 = sphi 0, %s27
      %s30 = sphi 0, %s28
      %s42 = sphi 0, %s44
      %s45 = sphi 0, %s42
      %s46 = sphi 0, %s45
      %s62 = sphi 0, %s46
      %s68 = sphi 0, %s70
      %s71 = sphi 0, %s68
      %s72 = sphi 0, %s71
      %s88 = sphi 0, %s72
      %s92 = sphi 0, %s92
      %s94 = sphi 0, %s92
      %s95 = sphi 0, %s94
      %s109 = sphi 0, %s95
      %s113 = sphi 0, %s113
      %s115 = sphi 0, %s113
      %s116 = sphi 0, %s115
      %s130 = sphi 0, %s116
      %s138 = sphi 0, %s140
      %s141 = sphi 0, %s138
      %s142 = sphi 0, %s141
      %s158 = sphi 0, %s142
    $region4: #{clip_image_encoder_forward.10} parent=1 // loop_header_branch
      %21 = sbr.rel (%p19) target = $region8
    $region5: #{clip_image_encoder_forward.10} parent=1 // loop_body
      %s23 = ssub.s32 %s18, 1
      %s24 = ssub.s32 %s18, 2
      %s31 = sadd.s32 1, %s26
      %p32 = scmp.ge.s32.totalorder %s31, 1
      %s33 = scalar_select %p32, 0, %s31
      %s34 = sadd.s32 1, %s25
      %s35 = scalar_select %p32, %s34, %s25
      %p36 = scmp.ge.s32.totalorder %s35, 2
      %s37 = scalar_select %p36, 0, %s35
      %s38 = ssub.s32 %s25, %s37
      %s39 = ssub.s32 %s26, %s33
      %s40 = sor.u32 %s38, %s39
      %p41 = scmp.eq.s32.totalorder %s40, 0
      %s43 = sadd.s32 %s42, 1
      %s44 = scalar_select %p41, %s42, %s43
      %p47 = pneg %p41
      %p48 = scmp.eq.s32.totalorder %s18, 1
      %p49 = por %p47, %p48
      %p50 = scmp.ne.s32.totalorder %s42, %s45
      %p51 = scmp.eq.s32.totalorder %s18, 0
      %p52 = por %p50, %p51
      %p53 = scmp.ne.s32.totalorder %s42, %s45
      %p54 = scmp.eq.s32.totalorder %s23, 1
      %p55 = por %p53, %p54
      %p56 = scmp.ne.s32.totalorder %s45, %s46
      %p57 = scmp.eq.s32.totalorder %s23, 0
      %p58 = por %p56, %p57
      %p59 = scmp.ne.s32.totalorder %s45, %s46
      %p60 = scmp.eq.s32.totalorder %s24, 1
      %p61 = por %p59, %p60
      %p63 = scmp.ne.s32.totalorder %s46, %s62
      %p64 = scmp.eq.s32.totalorder %s24, 0
      %p65 = por %p63, %p64
      %s66 = ssub.s32 %s26, %s33
      %p67 = scmp.eq.s32.totalorder %s66, 0
      %s69 = sadd.s32 %s68, 1
      %s70 = scalar_select %p67, %s68, %s69
      %p73 = pneg %p67
      %p74 = scmp.eq.s32.totalorder %s18, 1
      %p75 = por %p73, %p74
      %p76 = scmp.ne.s32.totalorder %s68, %s71
      %p77 = scmp.eq.s32.totalorder %s18, 0
      %p78 = por %p76, %p77
      %p79 = scmp.ne.s32.totalorder %s68, %s71
      %p80 = scmp.eq.s32.totalorder %s23, 1
      %p81 = por %p79, %p80
      %p82 = scmp.ne.s32.totalorder %s71, %s72
      %p83 = scmp.eq.s32.totalorder %s23, 0
      %p84 = por %p82, %p83
      %p85 = scmp.ne.s32.totalorder %s71, %s72
      %p86 = scmp.eq.s32.totalorder %s24, 1
      %p87 = por %p85, %p86
      %p89 = scmp.ne.s32.totalorder %s72, %s88
      %p90 = scmp.eq.s32.totalorder %s24, 0
      %p91 = por %p89, %p90
      %s93 = sadd.s32 %s92, 1
      %p96 = scmp.eq.s32.totalorder %s18, 1
      %p97 = scmp.ne.s32.totalorder %s92, %s94
      %p98 = scmp.eq.s32.totalorder %s18, 0
      %p99 = por %p97, %p98
      %p100 = scmp.ne.s32.totalorder %s92, %s94
      %p101 = scmp.eq.s32.totalorder %s23, 1
      %p102 = por %p100, %p101
      %p103 = scmp.ne.s32.totalorder %s94, %s95
      %p104 = scmp.eq.s32.totalorder %s23, 0
      %p105 = por %p103, %p104
      %p106 = scmp.ne.s32.totalorder %s94, %s95
      %p107 = scmp.eq.s32.totalorder %s24, 1
      %p108 = por %p106, %p107
      %p110 = scmp.ne.s32.totalorder %s95, %s109
      %p111 = scmp.eq.s32.totalorder %s24, 0
      %p112 = por %p110, %p111
      %s114 = sadd.s32 %s113, 1
      %p117 = scmp.eq.s32.totalorder %s18, 1
      %p118 = scmp.ne.s32.totalorder %s113, %s115
      %p119 = scmp.eq.s32.totalorder %s18, 0
      %p120 = por %p118, %p119
      %p121 = scmp.ne.s32.totalorder %s113, %s115
      %p122 = scmp.eq.s32.totalorder %s23, 1
      %p123 = por %p121, %p122
      %p124 = scmp.ne.s32.totalorder %s115, %s116
      %p125 = scmp.eq.s32.totalorder %s23, 0
      %p126 = por %p124, %p125
      %p127 = scmp.ne.s32.totalorder %s115, %s116
      %p128 = scmp.eq.s32.totalorder %s24, 1
      %p129 = por %p127, %p128
      %p131 = scmp.ne.s32.totalorder %s116, %s130
      %p132 = scmp.eq.s32.totalorder %s24, 0
      %p133 = por %p131, %p132
      %s134 = ssub.s32 %s25, %s37
      %s135 = ssub.s32 %s26, %s33
      %s136 = sor.u32 %s134, %s135
      %p137 = scmp.eq.s32.totalorder %s136, 0
      %s139 = sadd.s32 %s138, 1
      %s140 = scalar_select %p137, %s138, %s139
      %p143 = pneg %p137
      %p144 = scmp.eq.s32.totalorder %s18, 1
      %p145 = por %p143, %p144
      %p146 = scmp.ne.s32.totalorder %s138, %s141
      %p147 = scmp.eq.s32.totalorder %s18, 0
      %p148 = por %p146, %p147
      %p149 = scmp.ne.s32.totalorder %s138, %s141
      %p150 = scmp.eq.s32.totalorder %s23, 1
      %p151 = por %p149, %p150
      %p152 = scmp.ne.s32.totalorder %s141, %s142
      %p153 = scmp.eq.s32.totalorder %s23, 0
      %p154 = por %p152, %p153
      %p155 = scmp.ne.s32.totalorder %s141, %s142
      %p156 = scmp.eq.s32.totalorder %s24, 1
      %p157 = por %p155, %p156
      %p159 = scmp.ne.s32.totalorder %s142, %s158
      %p160 = scmp.eq.s32.totalorder %s24, 0
      %p161 = por %p159, %p160
      %p162 = scmp.le.s32.totalorder 1, %s18
      %p163 = scmp.lt.s32.totalorder %s18, 3
      %p164 = pnand %p162, %p163
      %p165 = pneg %p164
      // Predicated region
      $region9: #{clip_image_encoder_forward.10} parent=5 // pred_check
        _
      $region10: #{clip_image_encoder_forward.10} parent=5 // pred_check_branch
        %167 = sbr.rel (%p164) target = $region12
      $region11: #{clip_image_encoder_forward.10} parent=5 // pred_region
        %s168 = ssub.s32 %s18, 1
        // Predicated region
        $region13: #{clip_image_encoder_forward.10} parent=11 // pred_check
          %p169 = pneg %p84
        $region14: #{clip_image_encoder_forward.10} parent=11 // pred_check_branch
          %171 = sbr.rel (%p169) target = $region16
        $region15: #{clip_image_encoder_forward.10} parent=11 // pred_region
          %s173 = ssub.s32 128, 128
          %174 = vsyncadd [#allocation6], %s173
          %s175 = smul.addr %s28, 128
          %s176 = scalar_lea.hbm %s1, %s175
          %s178 = sshll.u32 [#allocation5], 4
          %s179 = int_to_ptr.vmem [resolvable:$true] %s178
          %181 = dma.hbm_to_vmem [thread:$0]  %s176, 128, %s179, [#allocation6]
        $region16: #{clip_image_encoder_forward.10} parent=11 // pred_fallthru
          _
        // Predicated region
        $region17: #{clip_image_encoder_forward.10} parent=11 // pred_check
          %p182 = pneg %p105
        $region18: #{clip_image_encoder_forward.10} parent=11 // pred_check_branch
          %184 = sbr.rel (%p182) target = $region20
        $region19: #{clip_image_encoder_forward.10} parent=11 // pred_region
          %s186 = ssub.s32 16, 16
          %187 = vsyncadd [#allocation6], %s186
          %s189 = sshll.u32 [#allocation7], 4
          %s190 = int_to_ptr.vmem [resolvable:$true] %s189
          %192 = dma.hbm_to_vmem [thread:$0]  %s2, 16, %s190, [#allocation6]
        $region20: #{clip_image_encoder_forward.10} parent=11 // pred_fallthru
          _
        // Predicated region
        $region21: #{clip_image_encoder_forward.10} parent=11 // pred_check
          %p193 = pneg %p126
        $region22: #{clip_image_encoder_forward.10} parent=11 // pred_check_branch
          %195 = sbr.rel (%p193) target = $region24
        $region23: #{clip_image_encoder_forward.10} parent=11 // pred_region
          %s197 = ssub.s32 16, 16
          %198 = vsyncadd [#allocation9], %s197
          %s200 = sshll.u32 [#allocation8], 4
          %s201 = int_to_ptr.vmem [resolvable:$true] %s200
          %203 = dma.hbm_to_vmem [thread:$0]  %s3, 16, %s201, [#allocation9]
        $region24: #{clip_image_encoder_forward.10} parent=11 // pred_fallthru
          _
      $region12: #{clip_image_encoder_forward.10} parent=5 // pred_fallthru
        _
      %p204 = scmp.lt.s32.totalorder %s18, 2
      // Predicated region
      $region25: #{clip_image_encoder_forward.10} parent=5 // pred_check
        %p205 = pneg %p204
      $region26: #{clip_image_encoder_forward.10} parent=5 // pred_check_branch
        %207 = sbr.rel (%p205) target = $region28
      $region27: #{clip_image_encoder_forward.10} parent=5 // pred_region
        // Predicated region
        $region29: #{clip_image_encoder_forward.10} parent=27 // pred_check
          %p208 = pneg %p52
        $region30: #{clip_image_encoder_forward.10} parent=27 // pred_check_branch
          %210 = sbr.rel (%p208) target = $region32
        $region31: #{clip_image_encoder_forward.10} parent=27 // pred_region
          %s211 = sand.u32 %s42, 1
          %s212 = scalar_lea.sflag [#allocation3], %s211
          %s213 = sand.u32 %s42, 1
          %s214 = smul.addr %s213, 4
          %s215 = scalar_lea.vmem [#allocation2], %s214
          %s217 = ssub.s32 64, 64
          %218 = vsyncadd %s212, %s217
          %s219 = sadd.s32 %s26, %s25
          %s220 = smul.addr %s219, 64
          %s221 = scalar_lea.hbm %s0, %s220
          %s223 = sshll.u32 %s215, 4
          %s224 = int_to_ptr.vmem [resolvable:$true] %s223
          %226 = dma.hbm_to_vmem [thread:$0]  %s221, 64, %s224, %s212
        $region32: #{clip_image_encoder_forward.10} parent=27 // pred_fallthru
          _
      $region28: #{clip_image_encoder_forward.10} parent=5 // pred_fallthru
        _
      %p227 = scmp.le.s32.totalorder 1, %s18
      %p228 = scmp.lt.s32.totalorder %s18, 3
      %p229 = pnand %p227, %p228
      %p230 = pneg %p229
      // Predicated region
      $region33: #{clip_image_encoder_forward.10} parent=5 // pred_check
        _
      $region34: #{clip_image_encoder_forward.10} parent=5 // pred_check_branch
        %232 = sbr.rel (%p229) target = $region36
      $region35: #{clip_image_encoder_forward.10} parent=5 // pred_region
        %s233 = ssub.s32 %s18, 1
        %s234 = sand.u32 %s45, 1
        %s235 = scalar_lea.sflag [#allocation3], %s234
        %s236 = sand.u32 %s45, 1
        %s237 = smul.addr %s236, 4
        %s238 = scalar_lea.vmem [#allocation2], %s237
        // Predicated region
        $region37: #{clip_image_encoder_forward.10} parent=35 // pred_check
          %p239 = pneg %p58
        $region38: #{clip_image_encoder_forward.10} parent=35 // pred_check_branch
          %241 = sbr.rel (%p239) target = $region40
        $region39: #{clip_image_encoder_forward.10} parent=35 // pred_region
          %242 = dma.done %s235, 64
        $region40: #{clip_image_encoder_forward.10} parent=35 // pred_fallthru
          _
        // Predicated region
        $region41: #{clip_image_encoder_forward.10} parent=35 // pred_check
          %p243 = pneg %p84
        $region42: #{clip_image_encoder_forward.10} parent=35 // pred_check_branch
          %245 = sbr.rel (%p243) target = $region44
        $region43: #{clip_image_encoder_forward.10} parent=35 // pred_region
          %246 = dma.done [#allocation6], 128
        $region44: #{clip_image_encoder_forward.10} parent=35 // pred_fallthru
          _
        // Predicated region
        $region45: #{clip_image_encoder_forward.10} parent=35 // pred_check
          %p247 = pneg %p105
        $region46: #{clip_image_encoder_forward.10} parent=35 // pred_check_branch
          %249 = sbr.rel (%p247) target = $region48
        $region47: #{clip_image_encoder_forward.10} parent=35 // pred_region
          %250 = dma.done [#allocation6], 16
        $region48: #{clip_image_encoder_forward.10} parent=35 // pred_fallthru
          _
        // Predicated region
        $region49: #{clip_image_encoder_forward.10} parent=35 // pred_check
          %p251 = pneg %p126
        $region50: #{clip_image_encoder_forward.10} parent=35 // pred_check_branch
          %253 = sbr.rel (%p251) target = $region52
        $region51: #{clip_image_encoder_forward.10} parent=35 // pred_region
          %254 = dma.done [#allocation9], 16
        $region52: #{clip_image_encoder_forward.10} parent=35 // pred_fallthru
          _
        %s255 = sand.u32 %s45, 1
        %s256 = scalar_lea.sflag [#allocation3], %s255
        %s257 = sand.u32 %s45, 1
        %s258 = smul.addr %s257, 4
        %s259 = scalar_lea.vmem [#allocation2], %s258
        %p260 = pneg %p58
        %p261 = pneg %p55
        %p262 = pneg %p84
        %p263 = pneg %p81
        %p264 = pneg %p105
        %p265 = pneg %p102
        %p266 = pneg %p126
        %p267 = pneg %p123
        %p268 = pneg %p154
        %p269 = pneg %p151
        %s270 = sand.u32 %s141, 1
        %s271 = scalar_lea.sflag [#allocation4], %s270
        %s272 = sand.u32 %s141, 1
        %s273 = smul.addr %s272, 4
        %s274 = scalar_lea.vmem [#allocation10], %s273
        %v275 = vld [vmem:[%s238] sm:$0xf]
        %v276 = vunpack.c.l.bf16 %v275
        %v277 = vld [vmem:[#allocation5] sm:$0xff]
        %v278 = vadd.f32 %v276, %v277
        %279 = vadd.xlane.f32.xlu0 %v278
        %v280 = vpop.xlane.xlu0 %279
        %v281 = vrcp.pop 128.0
        %v282 = vmul.f32 %v280, %v281
        %v283 = vsub.f32 %v278, %v282
        %v284 = vmul.f32 %v283, %v283
        %285 = vadd.xlane.f32.xlu0 %v284
        %v286 = vpop.xlane.xlu0 %285
        %v287 = vmul.f32 %v286, %v281
        %v288 = vadd.f32 %v287, 1e-05
        %v289 = vrsqrt.pop %v288
        %v290 = vmul.f32 %v283, %v289
        %v291 = vld [vmem:[#allocation7] sm:$0x1]
        %v293 = vlaneseq
        %v294 = vshrl.u32 %v293, 7
        %v295 = vsub.s32 0, %v294
        %v296 = vrot.slane %v291, %v295
        %v298 = vmul.f32 %v290, %v296
        %v299 = vld [vmem:[#allocation8] sm:$0x1]
        %v301 = vlaneseq
        %v302 = vshrl.u32 %v301, 7
        %v303 = vsub.s32 0, %v302
        %v304 = vrot.slane %v299, %v303
        %v306 = vadd.f32 %v298, %v304
        %v307 = vpack.c.bf16 %v306, %v306
        %308 = vst [vmem:[%s274] sm:$0xf] %v307
        %s309 = sand.u32 %s141, 1
        %s310 = scalar_lea.sflag [#allocation4], %s309
        %s311 = sand.u32 %s141, 1
        %s312 = smul.addr %s311, 4
        %s313 = scalar_lea.vmem [#allocation10], %s312
        // Predicated region
        $region53: #{clip_image_encoder_forward.10} parent=35 // pred_check
          %p314 = pneg %p151
        $region54: #{clip_image_encoder_forward.10} parent=35 // pred_check_branch
          %316 = sbr.rel (%p314) target = $region56
        $region55: #{clip_image_encoder_forward.10} parent=35 // pred_region
          %s318 = ssub.s32 64, 64
          %319 = vsyncadd %s310, %s318
          %s320 = sadd.s32 %s28, %s27
          %s321 = smul.addr %s320, 64
          %s322 = scalar_lea.hbm %s4, %s321
          %s324 = sshll.u32 %s313, 4
          %s325 = int_to_ptr.vmem [resolvable:$true] %s324
          %327 = dma.vmem_to_hbm [thread:$0]  %s325, 64, %s322, %s310
        $region56: #{clip_image_encoder_forward.10} parent=35 // pred_fallthru
          _
      $region36: #{clip_image_encoder_forward.10} parent=5 // pred_fallthru
        _
      %p328 = scmp.le.s32.totalorder 2, %s18
      // Predicated region
      $region57: #{clip_image_encoder_forward.10} parent=5 // pred_check
        %p329 = pneg %p328
      $region58: #{clip_image_encoder_forward.10} parent=5 // pred_check_branch
        %331 = sbr.rel (%p329) target = $region60
      $region59: #{clip_image_encoder_forward.10} parent=5 // pred_region
        %s332 = ssub.s32 %s18, 2
        // Predicated region
        $region61: #{clip_image_encoder_forward.10} parent=59 // pred_check
          %p333 = pneg %p157
        $region62: #{clip_image_encoder_forward.10} parent=59 // pred_check_branch
          %335 = sbr.rel (%p333) target = $region64
        $region63: #{clip_image_encoder_forward.10} parent=59 // pred_region
          %s336 = sand.u32 %s142, 1
          %s337 = scalar_lea.sflag [#allocation4], %s336
          %s338 = sand.u32 %s142, 1
          %s339 = smul.addr %s338, 4
          %s340 = scalar_lea.vmem [#allocation10], %s339
          %341 = dma.done %s337, 64
        $region64: #{clip_image_encoder_forward.10} parent=59 // pred_fallthru
          _
      $region60: #{clip_image_encoder_forward.10} parent=5 // pred_fallthru
        _
    $region6: #{clip_image_encoder_forward.10} parent=1 // loop_footer
      %s22 = sadd.s32 1, %s18
    $region7: #{clip_image_encoder_forward.10} parent=1 // loop_footer_branch
      %17 = sbr.rel target = $region3
    $region8: #{clip_image_encoder_forward.10} parent=1 // loop_exit
      _
    %342 = vsyncpa [#allocation3], 1
    %s343 = scalar_lea.sflag [#allocation3], 1
    %344 = vsyncpa %s343, 1
    %345 = vsyncpa [#allocation6], 1
    %346 = vsyncpa [#allocation9], 1
    %347 = vsyncpa [#allocation4], 1
    %s348 = scalar_lea.sflag [#allocation4], 1
    %349 = vsyncpa %s348, 1

// kernel: clip_image_encoder_forward.11
$region0: #{clip_image_encoder_forward.11}
  #allocation0 [shape = 'u32[]', space=smem, size = 0x4, offset = 0x4, fixed_abs, tag = 'smem constant byte address 0x4 - core index']
  #allocation1 [shape = 'u32[144,128]{1,0:T(1,128)}', space=vmem, size = 0x12000, scoped, tag = 'internal scratch']
  %s0 = inlined_call_operand.hbm [shape: bf16[16,128], index: 0, kind: input, shape index: {}]
  %s1 = inlined_call_operand.hbm [shape: f32[1,128], index: 1, kind: input, shape index: {}]
  %s2 = inlined_call_operand.hbm [shape: f32[1,128], index: 2, kind: input, shape index: {}]
  %s3 = inlined_call_operand.hbm [shape: bf16[128,384], index: 3, kind: input, shape index: {}]
  %s4 = inlined_call_operand.hbm [shape: f32[1,384], index: 4, kind: input, shape index: {}]
  %s5 = inlined_call_operand.hbm [shape: bf16[16,384], index: 5, kind: output, shape index: {}]
  %s6 = sld [smem:[#allocation0]]
  $region50: #{clip_image_encoder_forward.11} parent=0
    _
  %s8 = ssub.s32 1, %s6
  %s9 = scalar_select 0, %s8, %s6
  $region1: #{clip_image_encoder_forward.11} parent=0
    #allocation2 [shape = 'u8[4096]{0}', space=vmem, size = 0x1000, scoped, tag = 'input window, operand 0, single buffered']
    #allocation3 [shape = 's32[1]{0}', space=sflag, size = 0x4, scoped, tag = 'scoped memory for clip_image_encoder_forward.11']
    #allocation4 [shape = 's32[1]{0}', space=sflag, size = 0x4, scoped, tag = 'scoped memory for clip_image_encoder_forward.11']
    #allocation5 [shape = 'u8[512]{0}', space=vmem, size = 0x400, scoped, tag = 'input window, operand 1, single buffered']
    #allocation6 [shape = 's32[1]{0}', space=sflag, size = 0x4, scoped, tag = 'scoped memory for clip_image_encoder_forward.11']
    #allocation7 [shape = 'u8[512]{0}', space=vmem, size = 0x400, scoped, tag = 'input window, operand 2, single buffered']
    #allocation8 [shape = 'u8[98304]{0}', space=vmem, size = 0x18000, scoped, tag = 'input window, operand 3, single buffered']
    #allocation9 [shape = 's32[1]{0}', space=sflag, size = 0x4, scoped, tag = 'scoped memory for clip_image_encoder_forward.11']
    #allocation10 [shape = 'u8[1536]{0}', space=vmem, size = 0x800, scoped, tag = 'input window, operand 4, single buffered']
    #allocation11 [shape = 'u8[12288]{0}', space=vmem, size = 0x3000, scoped, tag = 'output window, operand 0, single buffered']
    %10 = vsyncpa [#allocation3], 0
    %11 = vsyncpa [#allocation6], 0
    %12 = vsyncpa [#allocation9], 0
    %13 = vsyncpa [#allocation4], 0
    // Predicated region
    $region2: #{clip_image_encoder_forward.11} parent=1 // pred_check
      _
    $region3: #{clip_image_encoder_forward.11} parent=1 // pred_check_branch
      %15 = sbr.rel (0) target = $region5
    $region4: #{clip_image_encoder_forward.11} parent=1 // pred_region
      %s17 = ssub.s32 128, 128
      %18 = vsyncadd [#allocation3], %s17
      %s19 = sshll.u32 [#allocation2], 4
      %s20 = int_to_ptr.vmem [resolvable:$true] %s19
      %25 = dma.hbm_to_vmem [thread:$0]  %s0, 128, %s20, [#allocation3], 64, 64, 4
    $region5: #{clip_image_encoder_forward.11} parent=1 // pred_fallthru
      _
    // Predicated region
    $region6: #{clip_image_encoder_forward.11} parent=1 // pred_check
      _
    $region7: #{clip_image_encoder_forward.11} parent=1 // pred_check_branch
      %27 = sbr.rel (0) target = $region9
    $region8: #{clip_image_encoder_forward.11} parent=1 // pred_region
      %s29 = ssub.s32 16, 16
      %30 = vsyncadd [#allocation6], %s29
      %s32 = sshll.u32 [#allocation5], 4
      %s33 = int_to_ptr.vmem [resolvable:$true] %s32
      %35 = dma.hbm_to_vmem [thread:$0]  %s1, 16, %s33, [#allocation6]
    $region9: #{clip_image_encoder_forward.11} parent=1 // pred_fallthru
      _
    // Predicated region
    $region10: #{clip_image_encoder_forward.11} parent=1 // pred_check
      _
    $region11: #{clip_image_encoder_forward.11} parent=1 // pred_check_branch
      %37 = sbr.rel (0) target = $region13
    $region12: #{clip_image_encoder_forward.11} parent=1 // pred_region
      %s39 = ssub.s32 16, 16
      %40 = vsyncadd [#allocation6], %s39
      %s42 = sshll.u32 [#allocation7], 4
      %s43 = int_to_ptr.vmem [resolvable:$true] %s42
      %45 = dma.hbm_to_vmem [thread:$0]  %s2, 16, %s43, [#allocation6]
    $region13: #{clip_image_encoder_forward.11} parent=1 // pred_fallthru
      _
    // Predicated region
    $region14: #{clip_image_encoder_forward.11} parent=1 // pred_check
      _
    $region15: #{clip_image_encoder_forward.11} parent=1 // pred_check_branch
      %47 = sbr.rel (0) target = $region17
    $region16: #{clip_image_encoder_forward.11} parent=1 // pred_region
      %s49 = ssub.s32 3072, 3072
      %50 = vsyncadd [#allocation9], %s49
      %s51 = sshll.u32 [#allocation8], 4
      %s52 = int_to_ptr.vmem [resolvable:$true] %s51
      %57 = dma.hbm_to_vmem [thread:$0]  %s3, 3072, %s52, [#allocation9], 192, 192, 12
    $region17: #{clip_image_encoder_forward.11} parent=1 // pred_fallthru
      _
    // Predicated region
    $region18: #{clip_image_encoder_forward.11} parent=1 // pred_check
      _
    $region19: #{clip_image_encoder_forward.11} parent=1 // pred_check_branch
      %59 = sbr.rel (0) target = $region21
    $region20: #{clip_image_encoder_forward.11} parent=1 // pred_region
      %s61 = ssub.s32 48, 48
      %62 = vsyncadd [#allocation9], %s61
      %s64 = sshll.u32 [#allocation10], 4
      %s65 = int_to_ptr.vmem [resolvable:$true] %s64
      %67 = dma.hbm_to_vmem [thread:$0]  %s4, 48, %s65, [#allocation9]
    $region21: #{clip_image_encoder_forward.11} parent=1 // pred_fallthru
      _
    // Predicated region
    $region22: #{clip_image_encoder_forward.11} parent=1 // pred_check
      _
    $region23: #{clip_image_encoder_forward.11} parent=1 // pred_check_branch
      %69 = sbr.rel (0) target = $region25
    $region24: #{clip_image_encoder_forward.11} parent=1 // pred_region
      %70 = dma.done [#allocation3], 128
    $region25: #{clip_image_encoder_forward.11} parent=1 // pred_fallthru
      _
    // Predicated region
    $region26: #{clip_image_encoder_forward.11} parent=1 // pred_check
      _
    $region27: #{clip_image_encoder_forward.11} parent=1 // pred_check_branch
      %72 = sbr.rel (0) target = $region29
    $region28: #{clip_image_encoder_forward.11} parent=1 // pred_region
      %73 = dma.done [#allocation6], 16
    $region29: #{clip_image_encoder_forward.11} parent=1 // pred_fallthru
      _
    // Predicated region
    $region30: #{clip_image_encoder_forward.11} parent=1 // pred_check
      _
    $region31: #{clip_image_encoder_forward.11} parent=1 // pred_check_branch
      %75 = sbr.rel (0) target = $region33
    $region32: #{clip_image_encoder_forward.11} parent=1 // pred_region
      %76 = dma.done [#allocation6], 16
    $region33: #{clip_image_encoder_forward.11} parent=1 // pred_fallthru
      _
    // Predicated region
    $region34: #{clip_image_encoder_forward.11} parent=1 // pred_check
      _
    $region35: #{clip_image_encoder_forward.11} parent=1 // pred_check_branch
      %78 = sbr.rel (0) target = $region37
    $region36: #{clip_image_encoder_forward.11} parent=1 // pred_region
      %79 = dma.done [#allocation9], 3072
    $region37: #{clip_image_encoder_forward.11} parent=1 // pred_fallthru
      _
    // Predicated region
    $region38: #{clip_image_encoder_forward.11} parent=1 // pred_check
      _
    $region39: #{clip_image_encoder_forward.11} parent=1 // pred_check_branch
      %81 = sbr.rel (0) target = $region41
    $region40: #{clip_image_encoder_forward.11} parent=1 // pred_region
      %82 = dma.done [#allocation9], 48
    $region41: #{clip_image_encoder_forward.11} parent=1 // pred_fallthru
      _
    %v84 = vld [vmem:[#allocation2] sm:$0xf]
    %v85 = vld [vmem:[#allocation2 + $0x4] sm:$0xf]
    %v86 = vunpack.c.l.bf16 %v84
    %v87 = vunpack.c.l.bf16 %v85
    %88 = vadd.xlane.f32.xlu0 %v86
    %v89 = vpop.xlane.xlu0 %88
    %90 = vadd.xlane.f32.xlu0 %v87
    %v91 = vpop.xlane.xlu0 %90
    %v92 = vrcp.pop 128.0
    %v93 = vmul.f32 %v89, %v92
    %v94 = vmul.f32 %v91, %v92
    %v95 = vsub.f32 %v86, %v93
    %v96 = vsub.f32 %v87, %v94
    %v97 = vmul.f32 %v95, %v95
    %v98 = vmul.f32 %v96, %v96
    %99 = vadd.xlane.f32.xlu0 %v97
    %v100 = vpop.xlane.xlu0 %99
    %101 = vadd.xlane.f32.xlu0 %v98
    %v102 = vpop.xlane.xlu0 %101
    %v103 = vmul.f32 %v100, %v92
    %v104 = vmul.f32 %v102, %v92
    %v105 = vadd.f32 %v103, 1e-05
    %v106 = vadd.f32 %v104, 1e-05
    %v107 = vrsqrt.pop %v105
    %v108 = vrsqrt.pop %v106
    %v109 = vmul.f32 %v95, %v107
    %v110 = vmul.f32 %v96, %v108
    %v111 = vld [vmem:[#allocation5] sm:$0x1]
    %v113 = vlaneseq
    %v114 = vshrl.u32 %v113, 7
    %v115 = vsub.s32 0, %v114
    %v116 = vrot.slane %v111, %v115
    %v118 = vmul.f32 %v109, %v116
    %v119 = vmul.f32 %v110, %v116
    %v120 = vld [vmem:[#allocation7] sm:$0x1]
    %v122 = vlaneseq
    %v123 = vshrl.u32 %v122, 7
    %v124 = vsub.s32 0, %v123
    %v125 = vrot.slane %v120, %v124
    %v127 = vadd.f32 %v118, %v125
    %v128 = vadd.f32 %v119, %v125
    %v129 = vpack.c.bf16 %v128, %v127
    %v130 = vld [vmem:[#allocation8] sm:$0xff]
    %v131 = vld [vmem:[#allocation8 + $0x8] sm:$0xf]
    %v132 = vld [vmem:[#allocation8 + $0xc] sm:$0xff]
    %v133 = vld [vmem:[#allocation8 + $0x14] sm:$0xf]
    %v134 = vld [vmem:[#allocation8 + $0x18] sm:$0xff]
    %v135 = vld [vmem:[#allocation8 + $0x20] sm:$0xf]
    %v136 = vld [vmem:[#allocation8 + $0x24] sm:$0xff]
    %v137 = vld [vmem:[#allocation8 + $0x2c] sm:$0xf]
    %v138 = vld [vmem:[#allocation8 + $0x30] sm:$0xff]
    %v139 = vld [vmem:[#allocation8 + $0x38] sm:$0xf]
    %v140 = vld [vmem:[#allocation8 + $0x3c] sm:$0xff]
    %v141 = vld [vmem:[#allocation8 + $0x44] sm:$0xf]
    %v142 = vld [vmem:[#allocation8 + $0x48] sm:$0xff]
    %v143 = vld [vmem:[#allocation8 + $0x50] sm:$0xf]
    %v144 = vld [vmem:[#allocation8 + $0x54] sm:$0xff]
    %v145 = vld [vmem:[#allocation8 + $0x5c] sm:$0xf]
    %v146 = vld [vmem:[#allocation8 + $0x60] sm:$0xff]
    %v147 = vld [vmem:[#allocation8 + $0x68] sm:$0xf]
    %v148 = vld [vmem:[#allocation8 + $0x6c] sm:$0xff]
    %v149 = vld [vmem:[#allocation8 + $0x74] sm:$0xf]
    %v150 = vld [vmem:[#allocation8 + $0x78] sm:$0xff]
    %v151 = vld [vmem:[#allocation8 + $0x80] sm:$0xf]
    %v152 = vld [vmem:[#allocation8 + $0x84] sm:$0xff]
    %v153 = vld [vmem:[#allocation8 + $0x8c] sm:$0xf]
    %v154 = vld [vmem:[#allocation8 + $0x90] sm:$0xff]
    %v155 = vld [vmem:[#allocation8 + $0x98] sm:$0xf]
    %v156 = vld [vmem:[#allocation8 + $0x9c] sm:$0xff]
    %v157 = vld [vmem:[#allocation8 + $0xa4] sm:$0xf]
    %v158 = vld [vmem:[#allocation8 + $0xa8] sm:$0xff]
    %v159 = vld [vmem:[#allocation8 + $0xb0] sm:$0xf]
    %v160 = vld [vmem:[#allocation8 + $0xb4] sm:$0xff]
    %v161 = vld [vmem:[#allocation8 + $0xbc] sm:$0xf]
    %v162 = vld [vmem:[#allocation10] sm:$0x7]
    %v164 = vlaneseq
    %v165 = vshrl.u32 %v164, 7
    %v166 = vsub.s32 0, %v165
    %v167 = vrot.slane %v162, %v166
    %v168 = vlaneseq
    %v169 = vshrl.u32 %v168, 7
    %v170 = vsub.s32 1, %v169
    %v171 = vrot.slane %v162, %v170
    %v172 = vlaneseq
    %v173 = vshrl.u32 %v172, 7
    %v174 = vsub.s32 2, %v173
    %v175 = vrot.slane %v162, %v174
    %v211 = vunpack.c.l.b16 %v130
    %v212 = vunpack.c.h.b16 %v130
    %v213 = vunpack.c.l.b16 %v131
    %v214 = vunpack.c.l.b16 %v132
    %v215 = vunpack.c.h.b16 %v132
    %v216 = vunpack.c.l.b16 %v133
    %v217 = vunpack.c.l.b16 %v134
    %v218 = vunpack.c.h.b16 %v134
    %v219 = vunpack.c.l.b16 %v135
    %v220 = vunpack.c.l.b16 %v136
    %v221 = vunpack.c.h.b16 %v136
    %v222 = vunpack.c.l.b16 %v137
    %v223 = vunpack.c.l.b16 %v138
    %v224 = vunpack.c.h.b16 %v138
    %v225 = vunpack.c.l.b16 %v139
    %v226 = vunpack.c.l.b16 %v140
    %v227 = vunpack.c.h.b16 %v140
    %v228 = vunpack.c.l.b16 %v141
    %v229 = vunpack.c.l.b16 %v142
    %v230 = vunpack.c.h.b16 %v142
    %v231 = vunpack.c.l.b16 %v143
    %v232 = vunpack.c.l.b16 %v144
    %v233 = vunpack.c.h.b16 %v144
    %v234 = vunpack.c.l.b16 %v145
    %v235 = vunpack.c.l.b16 %v146
    %v236 = vunpack.c.h.b16 %v146
    %v237 = vunpack.c.l.b16 %v147
    %v238 = vunpack.c.l.b16 %v148
    %v239 = vunpack.c.h.b16 %v148
    %v240 = vunpack.c.l.b16 %v149
    %v241 = vunpack.c.l.b16 %v150
    %v242 = vunpack.c.h.b16 %v150
    %v243 = vunpack.c.l.b16 %v151
    %v244 = vunpack.c.l.b16 %v152
    %v245 = vunpack.c.h.b16 %v152
    %v246 = vunpack.c.l.b16 %v153
    %v247 = vunpack.c.l.b16 %v154
    %v248 = vunpack.c.h.b16 %v154
    %v249 = vunpack.c.l.b16 %v155
    %v250 = vunpack.c.l.b16 %v156
    %v251 = vunpack.c.h.b16 %v156
    %v252 = vunpack.c.l.b16 %v157
    %v253 = vunpack.c.l.b16 %v158
    %v254 = vunpack.c.h.b16 %v158
    %v255 = vunpack.c.l.b16 %v159
    %v256 = vunpack.c.l.b16 %v160
    %v257 = vunpack.c.h.b16 %v160
    %v258 = vunpack.c.l.b16 %v161
    %v259 = vpack.c.b16 %v214, %v211
    %v260 = vpack.c.b16 %v215, %v212
    %v261 = vpack.c.b16 %v216, %v213
    %v262 = vpack.c.b16 %v220, %v217
    %v263 = vpack.c.b16 %v221, %v218
    %v264 = vpack.c.b16 %v222, %v219
    %v265 = vpack.c.b16 %v226, %v223
    %v266 = vpack.c.b16 %v227, %v224
    %v267 = vpack.c.b16 %v228, %v225
    %v268 = vpack.c.b16 %v232, %v229
    %v269 = vpack.c.b16 %v233, %v230
    %v270 = vpack.c.b16 %v234, %v231
    %v271 = vpack.c.b16 %v238, %v235
    %v272 = vpack.c.b16 %v239, %v236
    %v273 = vpack.c.b16 %v240, %v237
    %v274 = vpack.c.b16 %v244, %v241
    %v275 = vpack.c.b16 %v245, %v242
    %v276 = vpack.c.b16 %v246, %v243
    %v277 = vpack.c.b16 %v250, %v247
    %v278 = vpack.c.b16 %v251, %v248
    %v279 = vpack.c.b16 %v252, %v249
    %v280 = vpack.c.b16 %v256, %v253
    %v281 = vpack.c.b16 %v257, %v254
    %v282 = vpack.c.b16 %v258, %v255
    %307 = vmatprep.subr.bf16.mxu0 %v260
    %308 = vmatpush1.bf16.msra.mxu0 %v259
    %309 = vmatprep.subr.bf16.mxu0 %v263
    %310 = vmatpush1.bf16.msra.mxu0 %v262
    %311 = vmatprep.subr.bf16.mxu0 %v266
    %312 = vmatpush1.bf16.msra.mxu0 %v265
    %313 = vmatprep.subr.bf16.mxu0 %v269
    %314 = vmatpush1.bf16.msra.mxu0 %v268
    %315 = vmatprep.subr.bf16.mxu0 %v272
    %316 = vmatpush1.bf16.msra.mxu0 %v271
    %317 = vmatprep.subr.bf16.mxu0 %v275
    %318 = vmatpush1.bf16.msra.mxu0 %v274
    %319 = vmatprep.subr.bf16.mxu0 %v278
    %320 = vmatpush1.bf16.msra.mxu0 %v277
    %321 = vmatprep.subr.bf16.mxu0 %v281
    %322 = vmatpush1.bf16.msra.mxu0 %v280
    %323 = vmatprep.subr.bf16.mxu0 0
    %324 = vmatpush1.bf16.msra.mxu0 0
    %325 = vmatprep.subr.bf16.mxu0 0
    %326 = vmatpush1.bf16.msra.mxu0 0
    %327 = vmatprep.subr.bf16.mxu0 0
    %328 = vmatpush1.bf16.msra.mxu0 0
    %329 = vmatprep.subr.bf16.mxu0 0
    %330 = vmatpush1.bf16.msra.mxu0 0
    %331 = vmatprep.subr.bf16.mxu0 0
    %332 = vmatpush1.bf16.msra.mxu0 0
    %333 = vmatprep.subr.bf16.mxu0 0
    %334 = vmatpush1.bf16.msra.mxu0 0
    %335 = vmatprep.subr.bf16.mxu0 0
    %336 = vmatpush1.bf16.msra.mxu0 0
    %337 = vmatprep.subr.bf16.mxu0 0
    %338 = vmatpush1.bf16.msra.mxu0 0
    %339 = vmatprep.mubr.bf16.mxu0 0
    %340 = vmatmul.mubr.bf16.gmra.mrb[0].mxu0 %v129
    %v341 = vpop.f32.mrb[0].mxu0
    %v342 = vadd.f32 %v167, %v341
    %v343 = vpop.f32.mrb[0].mxu0
    %v344 = vadd.f32 %v171, %v343
    %v345 = vpop.f32.mrb[0].mxu0
    %v346 = vadd.f32 %v167, %v345
    %v347 = vpop.f32.mrb[0].mxu0
    %v348 = vadd.f32 %v171, %v347
    %349 = vdwg.mxu0
    %350 = vmatprep.subr.bf16.mxu0 0
    %351 = vmatpush1.bf16.msra.mxu0 %v261
    %352 = vmatprep.subr.bf16.mxu0 0
    %353 = vmatpush1.bf16.msra.mxu0 %v264
    %354 = vmatprep.subr.bf16.mxu0 0
    %355 = vmatpush1.bf16.msra.mxu0 %v267
    %356 = vmatprep.subr.bf16.mxu0 0
    %357 = vmatpush1.bf16.msra.mxu0 %v270
    %358 = vmatprep.subr.bf16.mxu0 0
    %359 = vmatpush1.bf16.msra.mxu0 %v273
    %360 = vmatprep.subr.bf16.mxu0 0
    %361 = vmatpush1.bf16.msra.mxu0 %v276
    %362 = vmatprep.subr.bf16.mxu0 0
    %363 = vmatpush1.bf16.msra.mxu0 %v279
    %364 = vmatprep.subr.bf16.mxu0 0
    %365 = vmatpush1.bf16.msra.mxu0 %v282
    %366 = vmatprep.subr.bf16.mxu0 0
    %367 = vmatpush1.bf16.msra.mxu0 0
    %368 = vmatprep.subr.bf16.mxu0 0
    %369 = vmatpush1.bf16.msra.mxu0 0
    %370 = vmatprep.subr.bf16.mxu0 0
    %371 = vmatpush1.bf16.msra.mxu0 0
    %372 = vmatprep.subr.bf16.mxu0 0
    %373 = vmatpush1.bf16.msra.mxu0 0
    %374 = vmatprep.subr.bf16.mxu0 0
    %375 = vmatpush1.bf16.msra.mxu0 0
    %376 = vmatprep.subr.bf16.mxu0 0
    %377 = vmatpush1.bf16.msra.mxu0 0
    %378 = vmatprep.subr.bf16.mxu0 0
    %379 = vmatpush1.bf16.msra.mxu0 0
    %380 = vmatprep.subr.bf16.mxu0 0
    %381 = vmatpush1.bf16.msra.mxu0 0
    %382 = vmatprep.mubr.bf16.mxu0 0
    %383 = vmatmul.mubr.bf16.gmra.mrb[0].mxu0 %v129
    %v384 = vpop.f32.mrb[0].mxu0
    %v385 = vadd.f32 %v175, %v384
    %v386 = vpop.f32.mrb[0].mxu0
    %v387 = vpop.f32.mrb[0].mxu0
    %v388 = vadd.f32 %v175, %v387
    %v389 = vpop.f32.mrb[0].mxu0
    %390 = vdwg.mxu0
    %v391 = vpack.c.bf16 %v346, %v342
    %v392 = vpack.c.bf16 %v348, %v344
    %v393 = vpack.c.bf16 %v388, %v385
    %v397 = vunpack.c.l.b16 %v391
    %v398 = vunpack.c.l.b16 %v392
    %v399 = vunpack.c.l.b16 %v393
    %v400 = vunpack.c.h.b16 %v391
    %v401 = vunpack.c.h.b16 %v392
    %v402 = vunpack.c.h.b16 %v393
    %v403 = vpack.c.b16 %v398, %v397
    %v404 = vpack.c.b16 %v399, %v399
    %v405 = vpack.c.b16 %v401, %v400
    %v406 = vpack.c.b16 %v402, %v402
    %411 = vst [vmem:[#allocation11] sm:$0xff] %v403
    %412 = vst [vmem:[#allocation11 + $0x8] sm:$0xf] %v404
    %413 = vst [vmem:[#allocation11 + $0xc] sm:$0xff] %v405
    %414 = vst [vmem:[#allocation11 + $0x14] sm:$0xf] %v406
    // Predicated region
    $region42: #{clip_image_encoder_forward.11} parent=1 // pred_check
      _
    $region43: #{clip_image_encoder_forward.11} parent=1 // pred_check_branch
      %416 = sbr.rel (0) target = $region45
    $region44: #{clip_image_encoder_forward.11} parent=1 // pred_region
      %s418 = ssub.s32 384, 384
      %419 = vsyncadd [#allocation4], %s418
      %s420 = sshll.u32 [#allocation11], 4
      %s421 = int_to_ptr.vmem [resolvable:$true] %s420
      %426 = dma.vmem_to_hbm [thread:$0]  %s421, 384, %s5, [#allocation4], 192, 192, 12
    $region45: #{clip_image_encoder_forward.11} parent=1 // pred_fallthru
      _
    // Predicated region
    $region46: #{clip_image_encoder_forward.11} parent=1 // pred_check
      _
    $region47: #{clip_image_encoder_forward.11} parent=1 // pred_check_branch
      %428 = sbr.rel (0) target = $region49
    $region48: #{clip_image_encoder_forward.11} parent=1 // pred_region
      %429 = dma.done [#allocation4], 384
    $region49: #{clip_image_encoder_forward.11} parent=1 // pred_fallthru
      _
    %430 = vsyncpa [#allocation3], 1
    %431 = vsyncpa [#allocation6], 1
    %432 = vsyncpa [#allocation9], 1
    %433 = vsyncpa [#allocation4], 1

// kernel: clip_image_encoder_forward.12
$region0: #{clip_image_encoder_forward.12}
  #allocation0 [shape = 'u32[]', space=smem, size = 0x4, offset = 0x4, fixed_abs, tag = 'smem constant byte address 0x4 - core index']
  #allocation1 [shape = 'u32[144,128]{1,0:T(1,128)}', space=vmem, size = 0x12000, scoped, tag = 'internal scratch']
  #allocation2 [shape = 'bf16[8,128]{1,0:T(8,128)(2,1)}', space=vmem, size = 0x800, scoped, tag = 'scratch operand']
  %s0 = inlined_call_operand.hbm [shape: bf16[2,8,384], index: 0, kind: input, shape index: {}]
  %s1 = inlined_call_operand.hbm [shape: bf16[128,128], index: 1, kind: input, shape index: {}]
  %s2 = inlined_call_operand.hbm [shape: f32[1,128], index: 2, kind: input, shape index: {}]
  %s3 = inlined_call_operand.hbm [shape: bf16[2,8,128], index: 3, kind: input, shape index: {}]
  %s4 = inlined_call_operand.hbm [shape: bf16[2,8,128], index: 4, kind: output, shape index: {}]
  %s5 = sld [smem:[#allocation0]]
  $region65: #{clip_image_encoder_forward.12} parent=0
    _
  %s7 = ssub.s32 1, %s5
  %s8 = scalar_select 0, %s7, %s5
  $region1: #{clip_image_encoder_forward.12} parent=0
    #allocation3 [shape = 'u8[12288]{0}', space=vmem, size = 0x3000, scoped, tag = 'input window, operand 0']
    #allocation4 [shape = 's32[2]{0}', space=sflag, size = 0x8, scoped, tag = 'scoped memory for clip_image_encoder_forward.12']
    #allocation5 [shape = 's32[2]{0}', space=sflag, size = 0x8, scoped, tag = 'scoped memory for clip_image_encoder_forward.12']
    #allocation6 [shape = 'u8[32768]{0}', space=vmem, size = 0x8000, scoped, tag = 'input window, operand 1, single buffered']
    #allocation7 [shape = 's32[1]{0}', space=sflag, size = 0x4, scoped, tag = 'scoped memory for clip_image_encoder_forward.12']
    #allocation8 [shape = 'u8[512]{0}', space=vmem, size = 0x400, scoped, tag = 'input window, operand 2, single buffered']
    #allocation9 [shape = 'u8[4096]{0}', space=vmem, size = 0x1000, scoped, tag = 'input window, operand 3']
    #allocation10 [shape = 's32[2]{0}', space=sflag, size = 0x8, scoped, tag = 'scoped memory for clip_image_encoder_forward.12']
    #allocation11 [shape = 'u8[4096]{0}', space=vmem, size = 0x1000, scoped, tag = 'output window, operand 0']
    %9 = vsyncpa [#allocation4], 0
    %s10 = scalar_lea.sflag [#allocation4], 1
    %11 = vsyncpa %s10, 0
    %12 = vsyncpa [#allocation7], 0
    %13 = vsyncpa [#allocation10], 0
    %s14 = scalar_lea.sflag [#allocation10], 1
    %15 = vsyncpa %s14, 0
    %16 = vsyncpa [#allocation5], 0
    %s17 = scalar_lea.sflag [#allocation5], 1
    %18 = vsyncpa %s17, 0
    loop: start=0, step=1, limit=4
    $region2: #{clip_image_encoder_forward.12} parent=1 // loop_pre_header
      _
    $region3: #{clip_image_encoder_forward.12} parent=1 // loop_header
      %s20 = sphi 0, %s24
      %p21 = scmp.ge.s32.totalorder %s20, 4
      %s30 = sphi 0, %s32
      %s33 = sphi 0, %s30
      %s34 = sphi 0, %s33
      %s50 = sphi 0, %s34
      %s54 = sphi 0, %s54
      %s56 = sphi 0, %s54
      %s57 = sphi 0, %s56
      %s71 = sphi 0, %s57
      %s75 = sphi 0, %s75
      %s77 = sphi 0, %s75
      %s78 = sphi 0, %s77
      %s92 = sphi 0, %s78
      %s98 = sphi 0, %s100
      %s101 = sphi 0, %s98
      %s102 = sphi 0, %s101
      %s118 = sphi 0, %s102
      %s124 = sphi 0, %s126
      %s127 = sphi 0, %s124
      %s128 = sphi 0, %s127
      %s144 = sphi 0, %s128
    $region4: #{clip_image_encoder_forward.12} parent=1 // loop_header_branch
      %23 = sbr.rel (%p21) target = $region8
    $region5: #{clip_image_encoder_forward.12} parent=1 // loop_body
      %s25 = ssub.s32 %s20, 1
      %s26 = ssub.s32 %s20, 2
      %s27 = sadd.s32 %s20, 1
      %s28 = ssub.s32 %s20, %s27
      %p29 = scmp.eq.s32.totalorder %s28, 0
      %s31 = sadd.s32 %s30, 1
      %s32 = scalar_select %p29, %s30, %s31
      %p35 = pneg %p29
      %p36 = scmp.eq.s32.totalorder %s20, 1
      %p37 = por %p35, %p36
      %p38 = scmp.ne.s32.totalorder %s30, %s33
      %p39 = scmp.eq.s32.totalorder %s20, 0
      %p40 = por %p38, %p39
      %p41 = scmp.ne.s32.totalorder %s30, %s33
      %p42 = scmp.eq.s32.totalorder %s25, 1
      %p43 = por %p41, %p42
      %p44 = scmp.ne.s32.totalorder %s33, %s34
      %p45 = scmp.eq.s32.totalorder %s25, 0
      %p46 = por %p44, %p45
      %p47 = scmp.ne.s32.totalorder %s33, %s34
      %p48 = scmp.eq.s32.totalorder %s26, 1
      %p49 = por %p47, %p48
      %p51 = scmp.ne.s32.totalorder %s34, %s50
      %p52 = scmp.eq.s32.totalorder %s26, 0
      %p53 = por %p51, %p52
      %s55 = sadd.s32 %s54, 1
      %p58 = scmp.eq.s32.totalorder %s20, 1
      %p59 = scmp.ne.s32.totalorder %s54, %s56
      %p60 = scmp.eq.s32.totalorder %s20, 0
      %p61 = por %p59, %p60
      %p62 = scmp.ne.s32.totalorder %s54, %s56
      %p63 = scmp.eq.s32.totalorder %s25, 1
      %p64 = por %p62, %p63
      %p65 = scmp.ne.s32.totalorder %s56, %s57
      %p66 = scmp.eq.s32.totalorder %s25, 0
      %p67 = por %p65, %p66
      %p68 = scmp.ne.s32.totalorder %s56, %s57
      %p69 = scmp.eq.s32.totalorder %s26, 1
      %p70 = por %p68, %p69
      %p72 = scmp.ne.s32.totalorder %s57, %s71
      %p73 = scmp.eq.s32.totalorder %s26, 0
      %p74 = por %p72, %p73
      %s76 = sadd.s32 %s75, 1
      %p79 = scmp.eq.s32.totalorder %s20, 1
      %p80 = scmp.ne.s32.totalorder %s75, %s77
      %p81 = scmp.eq.s32.totalorder %s20, 0
      %p82 = por %p80, %p81
      %p83 = scmp.ne.s32.totalorder %s75, %s77
      %p84 = scmp.eq.s32.totalorder %s25, 1
      %p85 = por %p83, %p84
      %p86 = scmp.ne.s32.totalorder %s77, %s78
      %p87 = scmp.eq.s32.totalorder %s25, 0
      %p88 = por %p86, %p87
      %p89 = scmp.ne.s32.totalorder %s77, %s78
      %p90 = scmp.eq.s32.totalorder %s26, 1
      %p91 = por %p89, %p90
      %p93 = scmp.ne.s32.totalorder %s78, %s92
      %p94 = scmp.eq.s32.totalorder %s26, 0
      %p95 = por %p93, %p94
      %s96 = ssub.s32 %s20, %s27
      %p97 = scmp.eq.s32.totalorder %s96, 0
      %s99 = sadd.s32 %s98, 1
      %s100 = scalar_select %p97, %s98, %s99
      %p103 = pneg %p97
      %p104 = scmp.eq.s32.totalorder %s20, 1
      %p105 = por %p103, %p104
      %p106 = scmp.ne.s32.totalorder %s98, %s101
      %p107 = scmp.eq.s32.totalorder %s20, 0
      %p108 = por %p106, %p107
      %p109 = scmp.ne.s32.totalorder %s98, %s101
      %p110 = scmp.eq.s32.totalorder %s25, 1
      %p111 = por %p109, %p110
      %p112 = scmp.ne.s32.totalorder %s101, %s102
      %p113 = scmp.eq.s32.totalorder %s25, 0
      %p114 = por %p112, %p113
      %p115 = scmp.ne.s32.totalorder %s101, %s102
      %p116 = scmp.eq.s32.totalorder %s26, 1
      %p117 = por %p115, %p116
      %p119 = scmp.ne.s32.totalorder %s102, %s118
      %p120 = scmp.eq.s32.totalorder %s26, 0
      %p121 = por %p119, %p120
      %s122 = ssub.s32 %s20, %s27
      %p123 = scmp.eq.s32.totalorder %s122, 0
      %s125 = sadd.s32 %s124, 1
      %s126 = scalar_select %p123, %s124, %s125
      %p129 = pneg %p123
      %p130 = scmp.eq.s32.totalorder %s20, 1
      %p131 = por %p129, %p130
      %p132 = scmp.ne.s32.totalorder %s124, %s127
      %p133 = scmp.eq.s32.totalorder %s20, 0
      %p134 = por %p132, %p133
      %p135 = scmp.ne.s32.totalorder %s124, %s127
      %p136 = scmp.eq.s32.totalorder %s25, 1
      %p137 = por %p135, %p136
      %p138 = scmp.ne.s32.totalorder %s127, %s128
      %p139 = scmp.eq.s32.totalorder %s25, 0
      %p140 = por %p138, %p139
      %p141 = scmp.ne.s32.totalorder %s127, %s128
      %p142 = scmp.eq.s32.totalorder %s26, 1
      %p143 = por %p141, %p142
      %p145 = scmp.ne.s32.totalorder %s128, %s144
      %p146 = scmp.eq.s32.totalorder %s26, 0
      %p147 = por %p145, %p146
      %p148 = scmp.le.s32.totalorder 1, %s20
      %p149 = scmp.lt.s32.totalorder %s20, 3
      %p150 = pnand %p148, %p149
      %p151 = pneg %p150
      // Predicated region
      $region9: #{clip_image_encoder_forward.12} parent=5 // pred_check
        _
      $region10: #{clip_image_encoder_forward.12} parent=5 // pred_check_branch
        %153 = sbr.rel (%p150) target = $region12
      $region11: #{clip_image_encoder_forward.12} parent=5 // pred_region
        %s154 = ssub.s32 %s20, 1
        // Predicated region
        $region13: #{clip_image_encoder_forward.12} parent=11 // pred_check
          %p155 = pneg %p67
        $region14: #{clip_image_encoder_forward.12} parent=11 // pred_check_branch
          %157 = sbr.rel (%p155) target = $region16
        $region15: #{clip_image_encoder_forward.12} parent=11 // pred_region
          %s159 = ssub.s32 1024, 1024
          %160 = vsyncadd [#allocation7], %s159
          %s161 = sshll.u32 [#allocation6], 4
          %s162 = int_to_ptr.vmem [resolvable:$true] %s161
          %167 = dma.hbm_to_vmem [thread:$0]  %s1, 1024, %s162, [#allocation7], 64, 64, 4
        $region16: #{clip_image_encoder_forward.12} parent=11 // pred_fallthru
          _
        // Predicated region
        $region17: #{clip_image_encoder_forward.12} parent=11 // pred_check
          %p168 = pneg %p88
        $region18: #{clip_image_encoder_forward.12} parent=11 // pred_check_branch
          %170 = sbr.rel (%p168) target = $region20
        $region19: #{clip_image_encoder_forward.12} parent=11 // pred_region
          %s172 = ssub.s32 16, 16
          %173 = vsyncadd [#allocation7], %s172
          %s175 = sshll.u32 [#allocation8], 4
          %s176 = int_to_ptr.vmem [resolvable:$true] %s175
          %178 = dma.hbm_to_vmem [thread:$0]  %s2, 16, %s176, [#allocation7]
        $region20: #{clip_image_encoder_forward.12} parent=11 // pred_fallthru
          _
      $region12: #{clip_image_encoder_forward.12} parent=5 // pred_fallthru
        _
      %p179 = scmp.lt.s32.totalorder %s20, 2
      // Predicated region
      $region21: #{clip_image_encoder_forward.12} parent=5 // pred_check
        %p180 = pneg %p179
      $region22: #{clip_image_encoder_forward.12} parent=5 // pred_check_branch
        %182 = sbr.rel (%p180) target = $region24
      $region23: #{clip_image_encoder_forward.12} parent=5 // pred_region
        // Predicated region
        $region25: #{clip_image_encoder_forward.12} parent=23 // pred_check
          %p183 = pneg %p40
        $region26: #{clip_image_encoder_forward.12} parent=23 // pred_check_branch
          %185 = sbr.rel (%p183) target = $region28
        $region27: #{clip_image_encoder_forward.12} parent=23 // pred_region
          %s186 = sand.u32 %s30, 1
          %s187 = scalar_lea.sflag [#allocation4], %s186
          %s188 = sand.u32 %s30, 1
          %s189 = smul.addr %s188, 12
          %s190 = scalar_lea.vmem [#allocation3], %s189
          %s192 = ssub.s32 192, 192
          %193 = vsyncadd %s187, %s192
          %s194 = smul.addr %s20, 3
          %s195 = smul.addr %s194, 64
          %s196 = scalar_lea.hbm %s0, %s195
          %s198 = sshll.u32 %s190, 4
          %s199 = int_to_ptr.vmem [resolvable:$true] %s198
          %201 = dma.hbm_to_vmem [thread:$0]  %s196, 192, %s199, %s187
        $region28: #{clip_image_encoder_forward.12} parent=23 // pred_fallthru
          _
        // Predicated region
        $region29: #{clip_image_encoder_forward.12} parent=23 // pred_check
          %p202 = pneg %p108
        $region30: #{clip_image_encoder_forward.12} parent=23 // pred_check_branch
          %204 = sbr.rel (%p202) target = $region32
        $region31: #{clip_image_encoder_forward.12} parent=23 // pred_region
          %s205 = sand.u32 %s98, 1
          %s206 = scalar_lea.sflag [#allocation10], %s205
          %s207 = sand.u32 %s98, 1
          %s208 = smul.addr %s207, 4
          %s209 = scalar_lea.vmem [#allocation9], %s208
          %s211 = ssub.s32 64, 64
          %212 = vsyncadd %s206, %s211
          %s213 = smul.addr %s20, 64
          %s214 = scalar_lea.hbm %s3, %s213
          %s216 = sshll.u32 %s209, 4
          %s217 = int_to_ptr.vmem [resolvable:$true] %s216
          %219 = dma.hbm_to_vmem [thread:$0]  %s214, 64, %s217, %s206
        $region32: #{clip_image_encoder_forward.12} parent=23 // pred_fallthru
          _
      $region24: #{clip_image_encoder_forward.12} parent=5 // pred_fallthru
        _
      %p220 = scmp.le.s32.totalorder 1, %s20
      %p221 = scmp.lt.s32.totalorder %s20, 3
      %p222 = pnand %p220, %p221
      %p223 = pneg %p222
      // Predicated region
      $region33: #{clip_image_encoder_forward.12} parent=5 // pred_check
        _
      $region34: #{clip_image_encoder_forward.12} parent=5 // pred_check_branch
        %225 = sbr.rel (%p222) target = $region36
      $region35: #{clip_image_encoder_forward.12} parent=5 // pred_region
        %s226 = ssub.s32 %s20, 1
        %s227 = sand.u32 %s33, 1
        %s228 = scalar_lea.sflag [#allocation4], %s227
        %s229 = sand.u32 %s33, 1
        %s230 = smul.addr %s229, 12
        %s231 = scalar_lea.vmem [#allocation3], %s230
        // Predicated region
        $region37: #{clip_image_encoder_forward.12} parent=35 // pred_check
          %p232 = pneg %p46
        $region38: #{clip_image_encoder_forward.12} parent=35 // pred_check_branch
          %234 = sbr.rel (%p232) target = $region40
        $region39: #{clip_image_encoder_forward.12} parent=35 // pred_region
          %235 = dma.done %s228, 192
        $region40: #{clip_image_encoder_forward.12} parent=35 // pred_fallthru
          _
        // Predicated region
        $region41: #{clip_image_encoder_forward.12} parent=35 // pred_check
          %p236 = pneg %p67
        $region42: #{clip_image_encoder_forward.12} parent=35 // pred_check_branch
          %238 = sbr.rel (%p236) target = $region44
        $region43: #{clip_image_encoder_forward.12} parent=35 // pred_region
          %239 = dma.done [#allocation7], 1024
        $region44: #{clip_image_encoder_forward.12} parent=35 // pred_fallthru
          _
        // Predicated region
        $region45: #{clip_image_encoder_forward.12} parent=35 // pred_check
          %p240 = pneg %p88
        $region46: #{clip_image_encoder_forward.12} parent=35 // pred_check_branch
          %242 = sbr.rel (%p240) target = $region48
        $region47: #{clip_image_encoder_forward.12} parent=35 // pred_region
          %243 = dma.done [#allocation7], 16
        $region48: #{clip_image_encoder_forward.12} parent=35 // pred_fallthru
          _
        %s244 = sand.u32 %s101, 1
        %s245 = scalar_lea.sflag [#allocation10], %s244
        %s246 = sand.u32 %s101, 1
        %s247 = smul.addr %s246, 4
        %s248 = scalar_lea.vmem [#allocation9], %s247
        // Predicated region
        $region49: #{clip_image_encoder_forward.12} parent=35 // pred_check
          %p249 = pneg %p114
        $region50: #{clip_image_encoder_forward.12} parent=35 // pred_check_branch
          %251 = sbr.rel (%p249) target = $region52
        $region51: #{clip_image_encoder_forward.12} parent=35 // pred_region
          %252 = dma.done %s245, 64
        $region52: #{clip_image_encoder_forward.12} parent=35 // pred_fallthru
          _
        %s253 = sand.u32 %s33, 1
        %s254 = scalar_lea.sflag [#allocation4], %s253
        %s255 = sand.u32 %s33, 1
        %s256 = smul.addr %s255, 12
        %s257 = scalar_lea.vmem [#allocation3], %s256
        %p258 = pneg %p46
        %p259 = pneg %p43
        %p260 = pneg %p67
        %p261 = pneg %p64
        %p262 = pneg %p88
        %p263 = pneg %p85
        %s264 = sand.u32 %s101, 1
        %s265 = scalar_lea.sflag [#allocation10], %s264
        %s266 = sand.u32 %s101, 1
        %s267 = smul.addr %s266, 4
        %s268 = scalar_lea.vmem [#allocation9], %s267
        %p269 = pneg %p114
        %p270 = pneg %p111
        %p271 = pneg %p140
        %p272 = pneg %p137
        %s273 = sand.u32 %s127, 1
        %s274 = scalar_lea.sflag [#allocation5], %s273
        %s275 = sand.u32 %s127, 1
        %s276 = smul.addr %s275, 4
        %s277 = scalar_lea.vmem [#allocation11], %s276
        %v279 = vlaneseq
        %v280 = vand.u32 %v279, 127
        %vm281 = vcmp.lt.s32.totalorder %v280, 5
        %v282 = vsel %vm281, 0.0, -1e+30
        %v283 = vld [vmem:[%s231] sm:$0xf]
        %v284 = vld [vmem:[%s231 + $0x4] sm:$0xf]
        %v285 = vld [vmem:[%s231 + $0x8] sm:$0xf]
        %v286 = vunpack.c.l.bf16 %v283
        %v287 = vmul.f32 %v286, 0.125
        %v288 = vpack.c.bf16 %v287, %v287
        %vm289 = vcmask 523264
        %v291 = vsel %vm289, %v288, 0
        %v294 = vsel %vm289, %v284, 0
        %296 = vmatprep.subr.bf16.mxu0 0
        %297 = vmatpush1.bf16.xpose.msra.mxu0 %v294
        %298 = vmatprep.subr.bf16.mxu0 0
        %299 = vmatpush1.bf16.xpose.msra.mxu0 0
        %300 = vmatprep.subr.bf16.mxu0 0
        %301 = vmatpush1.bf16.xpose.msra.mxu0 0
        %302 = vmatprep.subr.bf16.mxu0 0
        %303 = vmatpush1.bf16.xpose.msra.mxu0 0
        %304 = vmatprep.subr.bf16.mxu0 0
        %305 = vmatpush1.bf16.xpose.msra.mxu0 0
        %306 = vmatprep.subr.bf16.mxu0 0
        %307 = vmatpush1.bf16.xpose.msra.mxu0 0
        %308 = vmatprep.subr.bf16.mxu0 0
        %309 = vmatpush1.bf16.xpose.msra.mxu0 0
        %310 = vmatprep.subr.bf16.mxu0 0
        %311 = vmatpush1.bf16.xpose.msra.mxu0 0
        %312 = vmatprep.subr.bf16.mxu0 0
        %313 = vmatpush1.bf16.xpose.msra.mxu0 0
        %314 = vmatprep.subr.bf16.mxu0 0
        %315 = vmatpush1.bf16.xpose.msra.mxu0 0
        %316 = vmatprep.subr.bf16.mxu0 0
        %317 = vmatpush1.bf16.xpose.msra.mxu0 0
        %318 = vmatprep.subr.bf16.mxu0 0
        %319 = vmatpush1.bf16.xpose.msra.mxu0 0
        %320 = vmatprep.subr.bf16.mxu0 0
        %321 = vmatpush1.bf16.xpose.msra.mxu0 0
        %322 = vmatprep.subr.bf16.mxu0 0
        %323 = vmatpush1.bf16.xpose.msra.mxu0 0
        %324 = vmatprep.subr.bf16.mxu0 0
        %325 = vmatpush1.bf16.xpose.msra.mxu0 0
        %326 = vmatprep.subr.bf16.mxu0 0
        %327 = vmatpush1.bf16.xpose.msra.mxu0 0
        %328 = vmatprep.mubr.bf16.mxu0 0
        %329 = vmatmul.mubr.bf16.gmra.mrb[0].mxu0 %v291
        %v330 = vpop.f32.mrb[0].mxu0
        %v331 = vadd.f32 %v282, %v330
        %v332 = vpop.f32.mrb[0].mxu0
        %v333 = vpop.f32.mrb[0].mxu0
        %v334 = vpop.f32.mrb[0].mxu0
        %335 = vdwg.mxu0
        %vm336 = vcmask 64512
        %v337 = vsel %vm336, %v331, -inf
        %338 = vmax.xlane.f32.xlu0 %v337
        %v339 = vpop.xlane.xlu0 %338
        %v340 = vsub.f32 %v331, %v339
        %v341 = vmul.f32 %v340, 1.442695
        %v342 = vpow.pop %v341
        %v343 = vsel %vm336, %v342, 0.0
        %344 = vadd.xlane.f32.xlu0 %v343
        %v345 = vpop.xlane.xlu0 %344
        %v346 = vrcp.pop %v345
        %v347 = vmul.f32 %v342, %v346
        %v348 = vpack.c.bf16 %v347, %v347
        %v350 = vsel %vm336, %v348, 0
        %vm352 = vcmask 1043456
        %v354 = vsel %vm352, %v285, 0
        %356 = vmatprep.subr.bf16.mxu0 0
        %357 = vmatpush1.bf16.msra.mxu0 %v354
        %358 = vmatprep.subr.bf16.mxu0 0
        %359 = vmatpush1.bf16.msra.mxu0 0
        %360 = vmatprep.subr.bf16.mxu0 0
        %361 = vmatpush1.bf16.msra.mxu0 0
        %362 = vmatprep.subr.bf16.mxu0 0
        %363 = vmatpush1.bf16.msra.mxu0 0
        %364 = vmatprep.subr.bf16.mxu0 0
        %365 = vmatpush1.bf16.msra.mxu0 0
        %366 = vmatprep.subr.bf16.mxu0 0
        %367 = vmatpush1.bf16.msra.mxu0 0
        %368 = vmatprep.subr.bf16.mxu0 0
        %369 = vmatpush1.bf16.msra.mxu0 0
        %370 = vmatprep.subr.bf16.mxu0 0
        %371 = vmatpush1.bf16.msra.mxu0 0
        %372 = vmatprep.subr.bf16.mxu0 0
        %373 = vmatpush1.bf16.msra.mxu0 0
        %374 = vmatprep.subr.bf16.mxu0 0
        %375 = vmatpush1.bf16.msra.mxu0 0
        %376 = vmatprep.subr.bf16.mxu0 0
        %377 = vmatpush1.bf16.msra.mxu0 0
        %378 = vmatprep.subr.bf16.mxu0 0
        %379 = vmatpush1.bf16.msra.mxu0 0
        %380 = vmatprep.subr.bf16.mxu0 0
        %381 = vmatpush1.bf16.msra.mxu0 0
        %382 = vmatprep.subr.bf16.mxu0 0
        %383 = vmatpush1.bf16.msra.mxu0 0
        %384 = vmatprep.subr.bf16.mxu0 0
        %385 = vmatpush1.bf16.msra.mxu0 0
        %386 = vmatprep.subr.bf16.mxu0 0
        %387 = vmatpush1.bf16.msra.mxu0 0
        %388 = vmatprep.mubr.bf16.mxu0 0
        %389 = vmatmul.mubr.bf16.gmra.mrb[0].mxu0 %v350
        %v390 = vpop.f32.mrb[0].mxu0
        %v391 = vadd.f32 0.0, %v390
        %v392 = vpop.f32.mrb[0].mxu0
        %v393 = vpop.f32.mrb[0].mxu0
        %v394 = vpop.f32.mrb[0].mxu0
        %395 = vdwg.mxu0
        %v396 = vpack.c.bf16 %v391, %v391
        %vm397 = vcmask 519168
        %398 = vst.msk [vmem:[#allocation2] sm:$0xf] %vm397, %v396
        %v399 = vld [vmem:[%s231] sm:$0xf]
        %v400 = vld [vmem:[%s231 + $0x4] sm:$0xf]
        %v401 = vld [vmem:[%s231 + $0x8] sm:$0xf]
        %v402 = vunpack.c.l.bf16 %v399
        %v403 = vmul.f32 %v402, 0.125
        %v404 = vpack.c.bf16 %v403, %v403
        %406 = vrot.lane.b32.xlu0 %v404, 64
        %v407 = vpop.permute.xlu0 %406
        %v409 = vunpack.c.l.b16 %v400
        %v410 = vpack.c.b16 %v409, %v409
        %411 = vrot.lane.b32.xlu0 %v410, 64
        %v412 = vpop.permute.xlu0 %411
        %v414 = vsel %vm289, %v407, 0
        %v417 = vsel %vm289, %v412, 0
        %419 = vmatprep.subr.bf16.mxu0 0
        %420 = vmatpush1.bf16.xpose.msra.mxu0 %v417
        %421 = vmatprep.subr.bf16.mxu0 0
        %422 = vmatpush1.bf16.xpose.msra.mxu0 0
        %423 = vmatprep.subr.bf16.mxu0 0
        %424 = vmatpush1.bf16.xpose.msra.mxu0 0
        %425 = vmatprep.subr.bf16.mxu0 0
        %426 = vmatpush1.bf16.xpose.msra.mxu0 0
        %427 = vmatprep.subr.bf16.mxu0 0
        %428 = vmatpush1.bf16.xpose.msra.mxu0 0
        %429 = vmatprep.subr.bf16.mxu0 0
        %430 = vmatpush1.bf16.xpose.msra.mxu0 0
        %431 = vmatprep.subr.bf16.mxu0 0
        %432 = vmatpush1.bf16.xpose.msra.mxu0 0
        %433 = vmatprep.subr.bf16.mxu0 0
        %434 = vmatpush1.bf16.xpose.msra.mxu0 0
        %435 = vmatprep.subr.bf16.mxu0 0
        %436 = vmatpush1.bf16.xpose.msra.mxu0 0
        %437 = vmatprep.subr.bf16.mxu0 0
        %438 = vmatpush1.bf16.xpose.msra.mxu0 0
        %439 = vmatprep.subr.bf16.mxu0 0
        %440 = vmatpush1.bf16.xpose.msra.mxu0 0
        %441 = vmatprep.subr.bf16.mxu0 0
        %442 = vmatpush1.bf16.xpose.msra.mxu0 0
        %443 = vmatprep.subr.bf16.mxu0 0
        %444 = vmatpush1.bf16.xpose.msra.mxu0 0
        %445 = vmatprep.subr.bf16.mxu0 0
        %446 = vmatpush1.bf16.xpose.msra.mxu0 0
        %447 = vmatprep.subr.bf16.mxu0 0
        %448 = vmatpush1.bf16.xpose.msra.mxu0 0
        %449 = vmatprep.subr.bf16.mxu0 0
        %450 = vmatpush1.bf16.xpose.msra.mxu0 0
        %451 = vmatprep.mubr.bf16.mxu0 0
        %452 = vmatmul.mubr.bf16.gmra.mrb[0].mxu0 %v414
        %v453 = vpop.f32.mrb[0].mxu0
        %v454 = vadd.f32 %v282, %v453
        %v455 = vpop.f32.mrb[0].mxu0
        %v456 = vpop.f32.mrb[0].mxu0
        %v457 = vpop.f32.mrb[0].mxu0
        %458 = vdwg.mxu0
        %v459 = vsel %vm336, %v454, -inf
        %460 = vmax.xlane.f32.xlu0 %v459
        %v461 = vpop.xlane.xlu0 %460
        %v462 = vsub.f32 %v454, %v461
        %v463 = vmul.f32 %v462, 1.442695
        %v464 = vpow.pop %v463
        %v465 = vsel %vm336, %v464, 0.0
        %466 = vadd.xlane.f32.xlu0 %v465
        %v467 = vpop.xlane.xlu0 %466
        %v468 = vrcp.pop %v467
        %v469 = vmul.f32 %v464, %v468
        %v470 = vpack.c.bf16 %v469, %v469
        %v472 = vunpack.c.l.b16 %v401
        %v473 = vpack.c.b16 %v472, %v472
        %474 = vrot.lane.b32.xlu0 %v473, 64
        %v475 = vpop.permute.xlu0 %474
        %v477 = vsel %vm336, %v470, 0
        %v480 = vsel %vm352, %v475, 0
        %482 = vmatprep.subr.bf16.mxu0 0
        %483 = vmatpush1.bf16.msra.mxu0 %v480
        %484 = vmatprep.subr.bf16.mxu0 0
        %485 = vmatpush1.bf16.msra.mxu0 0
        %486 = vmatprep.subr.bf16.mxu0 0
        %487 = vmatpush1.bf16.msra.mxu0 0
        %488 = vmatprep.subr.bf16.mxu0 0
        %489 = vmatpush1.bf16.msra.mxu0 0
        %490 = vmatprep.subr.bf16.mxu0 0
        %491 = vmatpush1.bf16.msra.mxu0 0
        %492 = vmatprep.subr.bf16.mxu0 0
        %493 = vmatpush1.bf16.msra.mxu0 0
        %494 = vmatprep.subr.bf16.mxu0 0
        %495 = vmatpush1.bf16.msra.mxu0 0
        %496 = vmatprep.subr.bf16.mxu0 0
        %497 = vmatpush1.bf16.msra.mxu0 0
        %498 = vmatprep.subr.bf16.mxu0 0
        %499 = vmatpush1.bf16.msra.mxu0 0
        %500 = vmatprep.subr.bf16.mxu0 0
        %501 = vmatpush1.bf16.msra.mxu0 0
        %502 = vmatprep.subr.bf16.mxu0 0
        %503 = vmatpush1.bf16.msra.mxu0 0
        %504 = vmatprep.subr.bf16.mxu0 0
        %505 = vmatpush1.bf16.msra.mxu0 0
        %506 = vmatprep.subr.bf16.mxu0 0
        %507 = vmatpush1.bf16.msra.mxu0 0
        %508 = vmatprep.subr.bf16.mxu0 0
        %509 = vmatpush1.bf16.msra.mxu0 0
        %510 = vmatprep.subr.bf16.mxu0 0
        %511 = vmatpush1.bf16.msra.mxu0 0
        %512 = vmatprep.subr.bf16.mxu0 0
        %513 = vmatpush1.bf16.msra.mxu0 0
        %514 = vmatprep.mubr.bf16.mxu0 0
        %515 = vmatmul.mubr.bf16.gmra.mrb[0].mxu0 %v477
        %v516 = vpop.f32.mrb[0].mxu0
        %v517 = vadd.f32 0.0, %v516
        %v518 = vpop.f32.mrb[0].mxu0
        %v519 = vpop.f32.mrb[0].mxu0
        %v520 = vpop.f32.mrb[0].mxu0
        %521 = vdwg.mxu0
        %v522 = vpack.c.bf16 %v517, %v517
        %v524 = vunpack.c.l.b16 %v522
        %v525 = vpack.c.b16 %v524, %v524
        %526 = vrot.lane.b32.xlu0 %v525, 64
        %v527 = vpop.permute.xlu0 %526
        %vm529 = vcmask 1043968
        %530 = vst.msk [vmem:[#allocation2] sm:$0xf] %vm529, %v527
        %v531 = vld [vmem:[#allocation2] sm:$0xf]
        %v532 = vld [vmem:[#allocation6] sm:$0xf]
        %v533 = vld [vmem:[#allocation6 + $0x4] sm:$0xf]
        %v534 = vld [vmem:[#allocation6 + $0x8] sm:$0xf]
        %v535 = vld [vmem:[#allocation6 + $0xc] sm:$0xf]
        %v536 = vld [vmem:[#allocation6 + $0x10] sm:$0xf]
        %v537 = vld [vmem:[#allocation6 + $0x14] sm:$0xf]
        %v538 = vld [vmem:[#allocation6 + $0x18] sm:$0xf]
        %v539 = vld [vmem:[#allocation6 + $0x1c] sm:$0xf]
        %v540 = vld [vmem:[#allocation6 + $0x20] sm:$0xf]
        %v541 = vld [vmem:[#allocation6 + $0x24] sm:$0xf]
        %v542 = vld [vmem:[#allocation6 + $0x28] sm:$0xf]
        %v543 = vld [vmem:[#allocation6 + $0x2c] sm:$0xf]
        %v544 = vld [vmem:[#allocation6 + $0x30] sm:$0xf]
        %v545 = vld [vmem:[#allocation6 + $0x34] sm:$0xf]
        %v546 = vld [vmem:[#allocation6 + $0x38] sm:$0xf]
        %v547 = vld [vmem:[#allocation6 + $0x3c] sm:$0xf]
        %v548 = vld [vmem:[#allocation8] sm:$0x1]
        %v550 = vlaneseq
        %v551 = vshrl.u32 %v550, 7
        %v552 = vsub.s32 0, %v551
        %v553 = vrot.slane %v548, %v552
        %v571 = vunpack.c.l.b16 %v532
        %v572 = vunpack.c.l.b16 %v533
        %v573 = vunpack.c.l.b16 %v534
        %v574 = vunpack.c.l.b16 %v535
        %v575 = vunpack.c.l.b16 %v536
        %v576 = vunpack.c.l.b16 %v537
        %v577 = vunpack.c.l.b16 %v538
        %v578 = vunpack.c.l.b16 %v539
        %v579 = vunpack.c.l.b16 %v540
        %v580 = vunpack.c.l.b16 %v541
        %v581 = vunpack.c.l.b16 %v542
        %v582 = vunpack.c.l.b16 %v543
        %v583 = vunpack.c.l.b16 %v544
        %v584 = vunpack.c.l.b16 %v545
        %v585 = vunpack.c.l.b16 %v546
        %v586 = vunpack.c.l.b16 %v547
        %v587 = vpack.c.b16 %v572, %v571
        %v588 = vpack.c.b16 %v574, %v573
        %v589 = vpack.c.b16 %v576, %v575
        %v590 = vpack.c.b16 %v578, %v577
        %v591 = vpack.c.b16 %v580, %v579
        %v592 = vpack.c.b16 %v582, %v581
        %v593 = vpack.c.b16 %v584, %v583
        %v594 = vpack.c.b16 %v586, %v585
        %603 = vmatprep.subr.bf16.mxu0 0
        %604 = vmatpush1.bf16.msra.mxu0 %v587
        %605 = vmatprep.subr.bf16.mxu0 0
        %606 = vmatpush1.bf16.msra.mxu0 %v588
        %607 = vmatprep.subr.bf16.mxu0 0
        %608 = vmatpush1.bf16.msra.mxu0 %v589
        %609 = vmatprep.subr.bf16.mxu0 0
        %610 = vmatpush1.bf16.msra.mxu0 %v590
        %611 = vmatprep.subr.bf16.mxu0 0
        %612 = vmatpush1.bf16.msra.mxu0 %v591
        %613 = vmatprep.subr.bf16.mxu0 0
        %614 = vmatpush1.bf16.msra.mxu0 %v592
        %615 = vmatprep.subr.bf16.mxu0 0
        %616 = vmatpush1.bf16.msra.mxu0 %v593
        %617 = vmatprep.subr.bf16.mxu0 0
        %618 = vmatpush1.bf16.msra.mxu0 %v594
        %619 = vmatprep.subr.bf16.mxu0 0
        %620 = vmatpush1.bf16.msra.mxu0 0
        %621 = vmatprep.subr.bf16.mxu0 0
        %622 = vmatpush1.bf16.msra.mxu0 0
        %623 = vmatprep.subr.bf16.mxu0 0
        %624 = vmatpush1.bf16.msra.mxu0 0
        %625 = vmatprep.subr.bf16.mxu0 0
        %626 = vmatpush1.bf16.msra.mxu0 0
        %627 = vmatprep.subr.bf16.mxu0 0
        %628 = vmatpush1.bf16.msra.mxu0 0
        %629 = vmatprep.subr.bf16.mxu0 0
        %630 = vmatpush1.bf16.msra.mxu0 0
        %631 = vmatprep.subr.bf16.mxu0 0
        %632 = vmatpush1.bf16.msra.mxu0 0
        %633 = vmatprep.subr.bf16.mxu0 0
        %634 = vmatpush1.bf16.msra.mxu0 0
        %635 = vmatprep.mubr.bf16.mxu0 0
        %636 = vmatmul.mubr.bf16.gmra.mrb[0].mxu0 %v531
        %v637 = vpop.f32.mrb[0].mxu0
        %v638 = vadd.f32 %v553, %v637
        %v639 = vpop.f32.mrb[0].mxu0
        %v640 = vpop.f32.mrb[0].mxu0
        %v641 = vpop.f32.mrb[0].mxu0
        %642 = vdwg.mxu0
        %v643 = vld [vmem:[%s248] sm:$0xf]
        %v644 = vunpack.c.l.bf16 %v643
        %v645 = vadd.f32 %v638, %v644
        %v646 = vpack.c.bf16 %v645, %v645
        %647 = vst [vmem:[%s277] sm:$0xf] %v646
        %s648 = sand.u32 %s127, 1
        %s649 = scalar_lea.sflag [#allocation5], %s648
        %s650 = sand.u32 %s127, 1
        %s651 = smul.addr %s650, 4
        %s652 = scalar_lea.vmem [#allocation11], %s651
        // Predicated region
        $region53: #{clip_image_encoder_forward.12} parent=35 // pred_check
          %p653 = pneg %p137
        $region54: #{clip_image_encoder_forward.12} parent=35 // pred_check_branch
          %655 = sbr.rel (%p653) target = $region56
        $region55: #{clip_image_encoder_forward.12} parent=35 // pred_region
          %s657 = ssub.s32 64, 64
          %658 = vsyncadd %s649, %s657
          %s659 = smul.addr %s25, 64
          %s660 = scalar_lea.hbm %s4, %s659
          %s662 = sshll.u32 %s652, 4
          %s663 = int_to_ptr.vmem [resolvable:$true] %s662
          %665 = dma.vmem_to_hbm [thread:$0]  %s663, 64, %s660, %s649
        $region56: #{clip_image_encoder_forward.12} parent=35 // pred_fallthru
          _
      $region36: #{clip_image_encoder_forward.12} parent=5 // pred_fallthru
        _
      %p666 = scmp.le.s32.totalorder 2, %s20
      // Predicated region
      $region57: #{clip_image_encoder_forward.12} parent=5 // pred_check
        %p667 = pneg %p666
      $region58: #{clip_image_encoder_forward.12} parent=5 // pred_check_branch
        %669 = sbr.rel (%p667) target = $region60
      $region59: #{clip_image_encoder_forward.12} parent=5 // pred_region
        %s670 = ssub.s32 %s20, 2
        // Predicated region
        $region61: #{clip_image_encoder_forward.12} parent=59 // pred_check
          %p671 = pneg %p143
        $region62: #{clip_image_encoder_forward.12} parent=59 // pred_check_branch
          %673 = sbr.rel (%p671) target = $region64
        $region63: #{clip_image_encoder_forward.12} parent=59 // pred_region
          %s674 = sand.u32 %s128, 1
          %s675 = scalar_lea.sflag [#allocation5], %s674
          %s676 = sand.u32 %s128, 1
          %s677 = smul.addr %s676, 4
          %s678 = scalar_lea.vmem [#allocation11], %s677
          %679 = dma.done %s675, 64
        $region64: #{clip_image_encoder_forward.12} parent=59 // pred_fallthru
          _
      $region60: #{clip_image_encoder_forward.12} parent=5 // pred_fallthru
        _
    $region6: #{clip_image_encoder_forward.12} parent=1 // loop_footer
      %s24 = sadd.s32 1, %s20
    $region7: #{clip_image_encoder_forward.12} parent=1 // loop_footer_branch
      %19 = sbr.rel target = $region3
    $region8: #{clip_image_encoder_forward.12} parent=1 // loop_exit
      _
    %680 = vsyncpa [#allocation4], 1
    %s681 = scalar_lea.sflag [#allocation4], 1
    %682 = vsyncpa %s681, 1
    %683 = vsyncpa [#allocation7], 1
    %684 = vsyncpa [#allocation10], 1
    %s685 = scalar_lea.sflag [#allocation10], 1
    %686 = vsyncpa %s685, 1
    %687 = vsyncpa [#allocation5], 1
    %s688 = scalar_lea.sflag [#allocation5], 1
    %689 = vsyncpa %s688, 1

// kernel: clip_image_encoder_forward.17
$region0: #{clip_image_encoder_forward.17}
  #allocation0 [shape = 'u32[]', space=smem, size = 0x4, offset = 0x4, fixed_abs, tag = 'smem constant byte address 0x4 - core index']
  #allocation1 [shape = 'u32[144,128]{1,0:T(1,128)}', space=vmem, size = 0x12000, scoped, tag = 'internal scratch']
  %s0 = inlined_call_operand.hbm [shape: bf16[2,128], index: 0, kind: input, shape index: {}]
  %s1 = inlined_call_operand.hbm [shape: f32[1,128], index: 1, kind: input, shape index: {}]
  %s2 = inlined_call_operand.hbm [shape: f32[1,128], index: 2, kind: input, shape index: {}]
  %s3 = inlined_call_operand.hbm [shape: bf16[128,64], index: 3, kind: input, shape index: {}]
  %s4 = inlined_call_operand.hbm [shape: f32[1,64], index: 4, kind: input, shape index: {}]
  %s5 = inlined_call_operand.hbm [shape: f32[2,64], index: 5, kind: output, shape index: {}]
  %s6 = sld [smem:[#allocation0]]
  $region50: #{clip_image_encoder_forward.17} parent=0
    _
  %s8 = ssub.s32 1, %s6
  %s9 = scalar_select 0, %s8, %s6
  $region1: #{clip_image_encoder_forward.17} parent=0
    #allocation2 [shape = 'u8[512]{0}', space=vmem, size = 0x400, scoped, tag = 'input window, operand 0, single buffered']
    #allocation3 [shape = 's32[1]{0}', space=sflag, size = 0x4, scoped, tag = 'scoped memory for clip_image_encoder_forward.17']
    #allocation4 [shape = 's32[1]{0}', space=sflag, size = 0x4, scoped, tag = 'scoped memory for clip_image_encoder_forward.17']
    #allocation5 [shape = 'u8[512]{0}', space=vmem, size = 0x400, scoped, tag = 'input window, operand 1, single buffered']
    #allocation6 [shape = 's32[1]{0}', space=sflag, size = 0x4, scoped, tag = 'scoped memory for clip_image_encoder_forward.17']
    #allocation7 [shape = 'u8[512]{0}', space=vmem, size = 0x400, scoped, tag = 'input window, operand 2, single buffered']
    #allocation8 [shape = 'u8[32768]{0}', space=vmem, size = 0x8000, scoped, tag = 'input window, operand 3, single buffered']
    #allocation9 [shape = 's32[1]{0}', space=sflag, size = 0x4, scoped, tag = 'scoped memory for clip_image_encoder_forward.17']
    #allocation10 [shape = 'u8[512]{0}', space=vmem, size = 0x400, scoped, tag = 'input window, operand 4, single buffered']
    #allocation11 [shape = 'u8[1024]{0}', space=vmem, size = 0x400, scoped, tag = 'output window, operand 0, single buffered']
    %10 = vsyncpa [#allocation3], 0
    %11 = vsyncpa [#allocation6], 0
    %12 = vsyncpa [#allocation9], 0
    %13 = vsyncpa [#allocation4], 0
    // Predicated region
    $region2: #{clip_image_encoder_forward.17} parent=1 // pred_check
      _
    $region3: #{clip_image_encoder_forward.17} parent=1 // pred_check_branch
      %15 = sbr.rel (0) target = $region5
    $region4: #{clip_image_encoder_forward.17} parent=1 // pred_region
      %s17 = ssub.s32 16, 16
      %18 = vsyncadd [#allocation3], %s17
      %s20 = sshll.u32 [#allocation2], 4
      %s21 = int_to_ptr.vmem [resolvable:$true] %s20
      %23 = dma.hbm_to_vmem [thread:$0]  %s0, 16, %s21, [#allocation3]
    $region5: #{clip_image_encoder_forward.17} parent=1 // pred_fallthru
      _
    // Predicated region
    $region6: #{clip_image_encoder_forward.17} parent=1 // pred_check
      _
    $region7: #{clip_image_encoder_forward.17} parent=1 // pred_check_branch
      %25 = sbr.rel (0) target = $region9
    $region8: #{clip_image_encoder_forward.17} parent=1 // pred_region
      %s27 = ssub.s32 16, 16
      %28 = vsyncadd [#allocation6], %s27
      %s30 = sshll.u32 [#allocation5], 4
      %s31 = int_to_ptr.vmem [resolvable:$true] %s30
      %33 = dma.hbm_to_vmem [thread:$0]  %s1, 16, %s31, [#allocation6]
    $region9: #{clip_image_encoder_forward.17} parent=1 // pred_fallthru
      _
    // Predicated region
    $region10: #{clip_image_encoder_forward.17} parent=1 // pred_check
      _
    $region11: #{clip_image_encoder_forward.17} parent=1 // pred_check_branch
      %35 = sbr.rel (0) target = $region13
    $region12: #{clip_image_encoder_forward.17} parent=1 // pred_region
      %s37 = ssub.s32 16, 16
      %38 = vsyncadd [#allocation6], %s37
      %s40 = sshll.u32 [#allocation7], 4
      %s41 = int_to_ptr.vmem [resolvable:$true] %s40
      %43 = dma.hbm_to_vmem [thread:$0]  %s2, 16, %s41, [#allocation6]
    $region13: #{clip_image_encoder_forward.17} parent=1 // pred_fallthru
      _
    // Predicated region
    $region14: #{clip_image_encoder_forward.17} parent=1 // pred_check
      _
    $region15: #{clip_image_encoder_forward.17} parent=1 // pred_check_branch
      %45 = sbr.rel (0) target = $region17
    $region16: #{clip_image_encoder_forward.17} parent=1 // pred_region
      %s47 = ssub.s32 1024, 1024
      %48 = vsyncadd [#allocation9], %s47
      %s49 = sshll.u32 [#allocation8], 4
      %s50 = int_to_ptr.vmem [resolvable:$true] %s49
      %55 = dma.hbm_to_vmem [thread:$0]  %s3, 1024, %s50, [#allocation9], 64, 64, 4
    $region17: #{clip_image_encoder_forward.17} parent=1 // pred_fallthru
      _
    // Predicated region
    $region18: #{clip_image_encoder_forward.17} parent=1 // pred_check
      _
    $region19: #{clip_image_encoder_forward.17} parent=1 // pred_check_branch
      %57 = sbr.rel (0) target = $region21
    $region20: #{clip_image_encoder_forward.17} parent=1 // pred_region
      %s59 = ssub.s32 16, 16
      %60 = vsyncadd [#allocation9], %s59
      %s62 = sshll.u32 [#allocation10], 4
      %s63 = int_to_ptr.vmem [resolvable:$true] %s62
      %65 = dma.hbm_to_vmem [thread:$0]  %s4, 16, %s63, [#allocation9]
    $region21: #{clip_image_encoder_forward.17} parent=1 // pred_fallthru
      _
    // Predicated region
    $region22: #{clip_image_encoder_forward.17} parent=1 // pred_check
      _
    $region23: #{clip_image_encoder_forward.17} parent=1 // pred_check_branch
      %67 = sbr.rel (0) target = $region25
    $region24: #{clip_image_encoder_forward.17} parent=1 // pred_region
      %68 = dma.done [#allocation3], 16
    $region25: #{clip_image_encoder_forward.17} parent=1 // pred_fallthru
      _
    // Predicated region
    $region26: #{clip_image_encoder_forward.17} parent=1 // pred_check
      _
    $region27: #{clip_image_encoder_forward.17} parent=1 // pred_check_branch
      %70 = sbr.rel (0) target = $region29
    $region28: #{clip_image_encoder_forward.17} parent=1 // pred_region
      %71 = dma.done [#allocation6], 16
    $region29: #{clip_image_encoder_forward.17} parent=1 // pred_fallthru
      _
    // Predicated region
    $region30: #{clip_image_encoder_forward.17} parent=1 // pred_check
      _
    $region31: #{clip_image_encoder_forward.17} parent=1 // pred_check_branch
      %73 = sbr.rel (0) target = $region33
    $region32: #{clip_image_encoder_forward.17} parent=1 // pred_region
      %74 = dma.done [#allocation6], 16
    $region33: #{clip_image_encoder_forward.17} parent=1 // pred_fallthru
      _
    // Predicated region
    $region34: #{clip_image_encoder_forward.17} parent=1 // pred_check
      _
    $region35: #{clip_image_encoder_forward.17} parent=1 // pred_check_branch
      %76 = sbr.rel (0) target = $region37
    $region36: #{clip_image_encoder_forward.17} parent=1 // pred_region
      %77 = dma.done [#allocation9], 1024
    $region37: #{clip_image_encoder_forward.17} parent=1 // pred_fallthru
      _
    // Predicated region
    $region38: #{clip_image_encoder_forward.17} parent=1 // pred_check
      _
    $region39: #{clip_image_encoder_forward.17} parent=1 // pred_check_branch
      %79 = sbr.rel (0) target = $region41
    $region40: #{clip_image_encoder_forward.17} parent=1 // pred_region
      %80 = dma.done [#allocation9], 16
    $region41: #{clip_image_encoder_forward.17} parent=1 // pred_fallthru
      _
    %v82 = vld [vmem:[#allocation2] sm:$0x1]
    %v83 = vunpack.c.l.bf16 %v82
    %vm84 = vcmask 1041408
    %v85 = vsel %vm84, %v83, 0.0
    %86 = vadd.xlane.f32.xlu0 %v85
    %v87 = vpop.xlane.xlu0 %86
    %v88 = vrcp.pop 128.0
    %v89 = vmul.f32 %v87, %v88
    %v90 = vsub.f32 %v83, %v89
    %v91 = vmul.f32 %v90, %v90
    %v92 = vsel %vm84, %v91, 0.0
    %93 = vadd.xlane.f32.xlu0 %v92
    %v94 = vpop.xlane.xlu0 %93
    %v95 = vmul.f32 %v94, %v88
    %v96 = vadd.f32 %v95, 1e-05
    %v97 = vrsqrt.pop %v96
    %v98 = vmul.f32 %v90, %v97
    %v99 = vld [vmem:[#allocation5] sm:$0x1]
    %v101 = vlaneseq
    %v102 = vshrl.u32 %v101, 7
    %v103 = vsub.s32 0, %v102
    %v104 = vrot.slane %v99, %v103
    %v106 = vmul.f32 %v98, %v104
    %v107 = vld [vmem:[#allocation7] sm:$0x1]
    %v109 = vlaneseq
    %v110 = vshrl.u32 %v109, 7
    %v111 = vsub.s32 0, %v110
    %v112 = vrot.slane %v107, %v111
    %v114 = vadd.f32 %v106, %v112
    %v115 = vpack.c.bf16 %v114, %v114
    %v116 = vld [vmem:[#allocation8] sm:$0xf]
    %v117 = vld [vmem:[#allocation8 + $0x4] sm:$0xf]
    %v118 = vld [vmem:[#allocation8 + $0x8] sm:$0xf]
    %v119 = vld [vmem:[#allocation8 + $0xc] sm:$0xf]
    %v120 = vld [vmem:[#allocation8 + $0x10] sm:$0xf]
    %v121 = vld [vmem:[#allocation8 + $0x14] sm:$0xf]
    %v122 = vld [vmem:[#allocation8 + $0x18] sm:$0xf]
    %v123 = vld [vmem:[#allocation8 + $0x1c] sm:$0xf]
    %v124 = vld [vmem:[#allocation8 + $0x20] sm:$0xf]
    %v125 = vld [vmem:[#allocation8 + $0x24] sm:$0xf]
    %v126 = vld [vmem:[#allocation8 + $0x28] sm:$0xf]
    %v127 = vld [vmem:[#allocation8 + $0x2c] sm:$0xf]
    %v128 = vld [vmem:[#allocation8 + $0x30] sm:$0xf]
    %v129 = vld [vmem:[#allocation8 + $0x34] sm:$0xf]
    %v130 = vld [vmem:[#allocation8 + $0x38] sm:$0xf]
    %v131 = vld [vmem:[#allocation8 + $0x3c] sm:$0xf]
    %v132 = vld [vmem:[#allocation10] sm:$0x1]
    %v134 = vlaneseq
    %v135 = vshrl.u32 %v134, 7
    %v136 = vsub.s32 0, %v135
    %v137 = vrot.slane %v132, %v136
    %v155 = vunpack.c.l.b16 %v116
    %v156 = vunpack.c.l.b16 %v117
    %v157 = vunpack.c.l.b16 %v118
    %v158 = vunpack.c.l.b16 %v119
    %v159 = vunpack.c.l.b16 %v120
    %v160 = vunpack.c.l.b16 %v121
    %v161 = vunpack.c.l.b16 %v122
    %v162 = vunpack.c.l.b16 %v123
    %v163 = vunpack.c.l.b16 %v124
    %v164 = vunpack.c.l.b16 %v125
    %v165 = vunpack.c.l.b16 %v126
    %v166 = vunpack.c.l.b16 %v127
    %v167 = vunpack.c.l.b16 %v128
    %v168 = vunpack.c.l.b16 %v129
    %v169 = vunpack.c.l.b16 %v130
    %v170 = vunpack.c.l.b16 %v131
    %v171 = vpack.c.b16 %v156, %v155
    %v172 = vpack.c.b16 %v158, %v157
    %v173 = vpack.c.b16 %v160, %v159
    %v174 = vpack.c.b16 %v162, %v161
    %v175 = vpack.c.b16 %v164, %v163
    %v176 = vpack.c.b16 %v166, %v165
    %v177 = vpack.c.b16 %v168, %v167
    %v178 = vpack.c.b16 %v170, %v169
    %187 = vmatprep.subr.bf16.mxu0 0
    %188 = vmatpush1.bf16.msra.mxu0 %v171
    %189 = vmatprep.subr.bf16.mxu0 0
    %190 = vmatpush1.bf16.msra.mxu0 %v172
    %191 = vmatprep.subr.bf16.mxu0 0
    %192 = vmatpush1.bf16.msra.mxu0 %v173
    %193 = vmatprep.subr.bf16.mxu0 0
    %194 = vmatpush1.bf16.msra.mxu0 %v174
    %195 = vmatprep.subr.bf16.mxu0 0
    %196 = vmatpush1.bf16.msra.mxu0 %v175
    %197 = vmatprep.subr.bf16.mxu0 0
    %198 = vmatpush1.bf16.msra.mxu0 %v176
    %199 = vmatprep.subr.bf16.mxu0 0
    %200 = vmatpush1.bf16.msra.mxu0 %v177
    %201 = vmatprep.subr.bf16.mxu0 0
    %202 = vmatpush1.bf16.msra.mxu0 %v178
    %203 = vmatprep.subr.bf16.mxu0 0
    %204 = vmatpush1.bf16.msra.mxu0 0
    %205 = vmatprep.subr.bf16.mxu0 0
    %206 = vmatpush1.bf16.msra.mxu0 0
    %207 = vmatprep.subr.bf16.mxu0 0
    %208 = vmatpush1.bf16.msra.mxu0 0
    %209 = vmatprep.subr.bf16.mxu0 0
    %210 = vmatpush1.bf16.msra.mxu0 0
    %211 = vmatprep.subr.bf16.mxu0 0
    %212 = vmatpush1.bf16.msra.mxu0 0
    %213 = vmatprep.subr.bf16.mxu0 0
    %214 = vmatpush1.bf16.msra.mxu0 0
    %215 = vmatprep.subr.bf16.mxu0 0
    %216 = vmatpush1.bf16.msra.mxu0 0
    %217 = vmatprep.subr.bf16.mxu0 0
    %218 = vmatpush1.bf16.msra.mxu0 0
    %219 = vmatprep.mubr.bf16.mxu0 0
    %220 = vmatmul.mubr.bf16.gmra.mrb[0].mxu0 %v115
    %v221 = vpop.f32.mrb[0].mxu0
    %v222 = vadd.f32 %v137, %v221
    %v223 = vpop.f32.mrb[0].mxu0
    %v224 = vpop.f32.mrb[0].mxu0
    %v225 = vpop.f32.mrb[0].mxu0
    %226 = vdwg.mxu0
    %vm227 = vcmask 517120
    %228 = vst.msk [vmem:[#allocation11] sm:$0x3] %vm227, %v222
    // Predicated region
    $region42: #{clip_image_encoder_forward.17} parent=1 // pred_check
      _
    $region43: #{clip_image_encoder_forward.17} parent=1 // pred_check_branch
      %230 = sbr.rel (0) target = $region45
    $region44: #{clip_image_encoder_forward.17} parent=1 // pred_region
      %s232 = ssub.s32 32, 32
      %233 = vsyncadd [#allocation4], %s232
      %s235 = sshll.u32 [#allocation11], 4
      %s236 = int_to_ptr.vmem [resolvable:$true] %s235
      %238 = dma.vmem_to_hbm [thread:$0]  %s236, 32, %s5, [#allocation4]
    $region45: #{clip_image_encoder_forward.17} parent=1 // pred_fallthru
      _
    // Predicated region
    $region46: #{clip_image_encoder_forward.17} parent=1 // pred_check
      _
    $region47: #{clip_image_encoder_forward.17} parent=1 // pred_check_branch
      %240 = sbr.rel (0) target = $region49
    $region48: #{clip_image_encoder_forward.17} parent=1 // pred_region
      %241 = dma.done [#allocation4], 32
    $region49: #{clip_image_encoder_forward.17} parent=1 // pred_fallthru
      _
    %242 = vsyncpa [#allocation3], 1
    %243 = vsyncpa [#allocation6], 1
    %244 = vsyncpa [#allocation9], 1
    %245 = vsyncpa [#allocation4], 1

// kernel: clip_image_encoder_forward.13
$region0: #{clip_image_encoder_forward.13}
  #allocation0 [shape = 'u32[]', space=smem, size = 0x4, offset = 0x4, fixed_abs, tag = 'smem constant byte address 0x4 - core index']
  #allocation1 [shape = 'u32[144,128]{1,0:T(1,128)}', space=vmem, size = 0x12000, scoped, tag = 'internal scratch']
  #allocation2 [shape = 'f32[16,128]{1,0:T(8,128)}', space=vmem, size = 0x2000, scoped, tag = 'scratch operand']
  #allocation3 [shape = 'bf16[16,128]{1,0:T(16,128)(2,1)}', space=vmem, size = 0x1000, scoped, tag = 'scratch operand']
  %s0 = inlined_call_operand.hbm [shape: bf16[16,128], index: 0, kind: input, shape index: {}]
  %s1 = inlined_call_operand.hbm [shape: f32[1,128], index: 1, kind: input, shape index: {}]
  %s2 = inlined_call_operand.hbm [shape: f32[1,128], index: 2, kind: input, shape index: {}]
  %s3 = inlined_call_operand.hbm [shape: bf16[128,512], index: 3, kind: input, shape index: {}]
  %s4 = inlined_call_operand.hbm [shape: f32[1,512], index: 4, kind: input, shape index: {}]
  %s5 = inlined_call_operand.hbm [shape: bf16[512,128], index: 5, kind: input, shape index: {}]
  %s6 = inlined_call_operand.hbm [shape: f32[1,128], index: 6, kind: input, shape index: {}]
  %s7 = inlined_call_operand.hbm [shape: bf16[16,128], index: 7, kind: output, shape index: {}]
  %s8 = sld [smem:[#allocation0]]
  $region74: #{clip_image_encoder_forward.13} parent=0
    _
  %s10 = ssub.s32 1, %s8
  %s11 = scalar_select 0, %s10, %s8
  $region1: #{clip_image_encoder_forward.13} parent=0
    #allocation4 [shape = 'u8[4096]{0}', space=vmem, size = 0x1000, scoped, tag = 'input window, operand 0, single buffered']
    #allocation5 [shape = 's32[1]{0}', space=sflag, size = 0x4, scoped, tag = 'scoped memory for clip_image_encoder_forward.13']
    #allocation6 [shape = 's32[1]{0}', space=sflag, size = 0x4, scoped, tag = 'scoped memory for clip_image_encoder_forward.13']
    #allocation7 [shape = 'u8[512]{0}', space=vmem, size = 0x400, scoped, tag = 'input window, operand 1, single buffered']
    #allocation8 [shape = 's32[1]{0}', space=sflag, size = 0x4, scoped, tag = 'scoped memory for clip_image_encoder_forward.13']
    #allocation9 [shape = 'u8[512]{0}', space=vmem, size = 0x400, scoped, tag = 'input window, operand 2, single buffered']
    #allocation10 [shape = 'u8[131072]{0}', space=vmem, size = 0x20000, scoped, tag = 'input window, operand 3, single buffered']
    #allocation11 [shape = 's32[1]{0}', space=sflag, size = 0x4, scoped, tag = 'scoped memory for clip_image_encoder_forward.13']
    #allocation12 [shape = 'u8[2048]{0}', space=vmem, size = 0x800, scoped, tag = 'input window, operand 4, single buffered']
    #allocation13 [shape = 'u8[131072]{0}', space=vmem, size = 0x20000, scoped, tag = 'input window, operand 5, single buffered']
    #allocation14 [shape = 's32[1]{0}', space=sflag, size = 0x4, scoped, tag = 'scoped memory for clip_image_encoder_forward.13']
    #allocation15 [shape = 'u8[512]{0}', space=vmem, size = 0x400, scoped, tag = 'input window, operand 6, single buffered']
    #allocation16 [shape = 'u8[4096]{0}', space=vmem, size = 0x1000, scoped, tag = 'output window, operand 0, single buffered']
    %12 = vsyncpa [#allocation5], 0
    %13 = vsyncpa [#allocation8], 0
    %14 = vsyncpa [#allocation11], 0
    %15 = vsyncpa [#allocation14], 0
    %16 = vsyncpa [#allocation6], 0
    // Predicated region
    $region2: #{clip_image_encoder_forward.13} parent=1 // pred_check
      _
    $region3: #{clip_image_encoder_forward.13} parent=1 // pred_check_branch
      %18 = sbr.rel (0) target = $region5
    $region4: #{clip_image_encoder_forward.13} parent=1 // pred_region
      %s20 = ssub.s32 128, 128
      %21 = vsyncadd [#allocation5], %s20
      %s22 = sshll.u32 [#allocation4], 4
      %s23 = int_to_ptr.vmem [resolvable:$true] %s22
      %28 = dma.hbm_to_vmem [thread:$0]  %s0, 128, %s23, [#allocation5], 64, 64, 4
    $region5: #{clip_image_encoder_forward.13} parent=1 // pred_fallthru
      _
    // Predicated region
    $region6: #{clip_image_encoder_forward.13} parent=1 // pred_check
      _
    $region7: #{clip_image_encoder_forward.13} parent=1 // pred_check_branch
      %30 = sbr.rel (0) target = $region9
    $region8: #{clip_image_encoder_forward.13} parent=1 // pred_region
      %s32 = ssub.s32 16, 16
      %33 = vsyncadd [#allocation8], %s32
      %s35 = sshll.u32 [#allocation7], 4
      %s36 = int_to_ptr.vmem [resolvable:$true] %s35
      %38 = dma.hbm_to_vmem [thread:$0]  %s1, 16, %s36, [#allocation8]
    $region9: #{clip_image_encoder_forward.13} parent=1 // pred_fallthru
      _
    // Predicated region
    $region10: #{clip_image_encoder_forward.13} parent=1 // pred_check
      _
    $region11: #{clip_image_encoder_forward.13} parent=1 // pred_check_branch
      %40 = sbr.rel (0) target = $region13
    $region12: #{clip_image_encoder_forward.13} parent=1 // pred_region
      %s42 = ssub.s32 16, 16
      %43 = vsyncadd [#allocation8], %s42
      %s45 = sshll.u32 [#allocation9], 4
      %s46 = int_to_ptr.vmem [resolvable:$true] %s45
      %48 = dma.hbm_to_vmem [thread:$0]  %s2, 16, %s46, [#allocation8]
    $region13: #{clip_image_encoder_forward.13} parent=1 // pred_fallthru
      _
    // Predicated region
    $region14: #{clip_image_encoder_forward.13} parent=1 // pred_check
      _
    $region15: #{clip_image_encoder_forward.13} parent=1 // pred_check_branch
      %50 = sbr.rel (0) target = $region17
    $region16: #{clip_image_encoder_forward.13} parent=1 // pred_region
      %s52 = ssub.s32 4096, 4096
      %53 = vsyncadd [#allocation11], %s52
      %s54 = sshll.u32 [#allocation10], 4
      %s55 = int_to_ptr.vmem [resolvable:$true] %s54
      %60 = dma.hbm_to_vmem [thread:$0]  %s3, 4096, %s55, [#allocation11], 256, 256, 16
    $region17: #{clip_image_encoder_forward.13} parent=1 // pred_fallthru
      _
    // Predicated region
    $region18: #{clip_image_encoder_forward.13} parent=1 // pred_check
      _
    $region19: #{clip_image_encoder_forward.13} parent=1 // pred_check_branch
      %62 = sbr.rel (0) target = $region21
    $region20: #{clip_image_encoder_forward.13} parent=1 // pred_region
      %s64 = ssub.s32 64, 64
      %65 = vsyncadd [#allocation11], %s64
      %s67 = sshll.u32 [#allocation12], 4
      %s68 = int_to_ptr.vmem [resolvable:$true] %s67
      %70 = dma.hbm_to_vmem [thread:$0]  %s4, 64, %s68, [#allocation11]
    $region21: #{clip_image_encoder_forward.13} parent=1 // pred_fallthru
      _
    // Predicated region
    $region22: #{clip_image_encoder_forward.13} parent=1 // pred_check
      _
    $region23: #{clip_image_encoder_forward.13} parent=1 // pred_check_branch
      %72 = sbr.rel (0) target = $region25
    $region24: #{clip_image_encoder_forward.13} parent=1 // pred_region
      %s74 = ssub.s32 4096, 4096
      %75 = vsyncadd [#allocation14], %s74
      %s76 = sshll.u32 [#allocation13], 4
      %s77 = int_to_ptr.vmem [resolvable:$true] %s76
      %82 = dma.hbm_to_vmem [thread:$0]  %s5, 4096, %s77, [#allocation14], 64, 64, 4
    $region25: #{clip_image_encoder_forward.13} parent=1 // pred_fallthru
      _
    // Predicated region
    $region26: #{clip_image_encoder_forward.13} parent=1 // pred_check
      _
    $region27: #{clip_image_encoder_forward.13} parent=1 // pred_check_branch
      %84 = sbr.rel (0) target = $region29
    $region28: #{clip_image_encoder_forward.13} parent=1 // pred_region
      %s86 = ssub.s32 16, 16
      %87 = vsyncadd [#allocation14], %s86
      %s89 = sshll.u32 [#allocation15], 4
      %s90 = int_to_ptr.vmem [resolvable:$true] %s89
      %92 = dma.hbm_to_vmem [thread:$0]  %s6, 16, %s90, [#allocation14]
    $region29: #{clip_image_encoder_forward.13} parent=1 // pred_fallthru
      _
    // Predicated region
    $region30: #{clip_image_encoder_forward.13} parent=1 // pred_check
      _
    $region31: #{clip_image_encoder_forward.13} parent=1 // pred_check_branch
      %94 = sbr.rel (0) target = $region33
    $region32: #{clip_image_encoder_forward.13} parent=1 // pred_region
      %95 = dma.done [#allocation5], 128
    $region33: #{clip_image_encoder_forward.13} parent=1 // pred_fallthru
      _
    // Predicated region
    $region34: #{clip_image_encoder_forward.13} parent=1 // pred_check
      _
    $region35: #{clip_image_encoder_forward.13} parent=1 // pred_check_branch
      %97 = sbr.rel (0) target = $region37
    $region36: #{clip_image_encoder_forward.13} parent=1 // pred_region
      %98 = dma.done [#allocation8], 16
    $region37: #{clip_image_encoder_forward.13} parent=1 // pred_fallthru
      _
    // Predicated region
    $region38: #{clip_image_encoder_forward.13} parent=1 // pred_check
      _
    $region39: #{clip_image_encoder_forward.13} parent=1 // pred_check_branch
      %100 = sbr.rel (0) target = $region41
    $region40: #{clip_image_encoder_forward.13} parent=1 // pred_region
      %101 = dma.done [#allocation8], 16
    $region41: #{clip_image_encoder_forward.13} parent=1 // pred_fallthru
      _
    // Predicated region
    $region42: #{clip_image_encoder_forward.13} parent=1 // pred_check
      _
    $region43: #{clip_image_encoder_forward.13} parent=1 // pred_check_branch
      %103 = sbr.rel (0) target = $region45
    $region44: #{clip_image_encoder_forward.13} parent=1 // pred_region
      %104 = dma.done [#allocation11], 4096
    $region45: #{clip_image_encoder_forward.13} parent=1 // pred_fallthru
      _
    // Predicated region
    $region46: #{clip_image_encoder_forward.13} parent=1 // pred_check
      _
    $region47: #{clip_image_encoder_forward.13} parent=1 // pred_check_branch
      %106 = sbr.rel (0) target = $region49
    $region48: #{clip_image_encoder_forward.13} parent=1 // pred_region
      %107 = dma.done [#allocation11], 64
    $region49: #{clip_image_encoder_forward.13} parent=1 // pred_fallthru
      _
    // Predicated region
    $region50: #{clip_image_encoder_forward.13} parent=1 // pred_check
      _
    $region51: #{clip_image_encoder_forward.13} parent=1 // pred_check_branch
      %109 = sbr.rel (0) target = $region53
    $region52: #{clip_image_encoder_forward.13} parent=1 // pred_region
      %110 = dma.done [#allocation14], 4096
    $region53: #{clip_image_encoder_forward.13} parent=1 // pred_fallthru
      _
    // Predicated region
    $region54: #{clip_image_encoder_forward.13} parent=1 // pred_check
      _
    $region55: #{clip_image_encoder_forward.13} parent=1 // pred_check_branch
      %112 = sbr.rel (0) target = $region57
    $region56: #{clip_image_encoder_forward.13} parent=1 // pred_region
      %113 = dma.done [#allocation14], 16
    $region57: #{clip_image_encoder_forward.13} parent=1 // pred_fallthru
      _
    %p115 = scmp.eq.s32.totalorder 0, 0
    // Predicated region
    $region58: #{clip_image_encoder_forward.13} parent=1 // pred_check
      %p116 = pneg %p115
    $region59: #{clip_image_encoder_forward.13} parent=1 // pred_check_branch
      %118 = sbr.rel (%p116) target = $region61
    $region60: #{clip_image_encoder_forward.13} parent=1 // pred_region
      %v119 = vld [vmem:[#allocation4] sm:$0xf]
      %v120 = vld [vmem:[#allocation4 + $0x4] sm:$0xf]
      %v121 = vunpack.c.l.bf16 %v119
      %v122 = vunpack.c.l.bf16 %v120
      %123 = vadd.xlane.f32.xlu0 %v121
      %v124 = vpop.xlane.xlu0 %123
      %125 = vadd.xlane.f32.xlu0 %v122
      %v126 = vpop.xlane.xlu0 %125
      %v127 = vrcp.pop 128.0
      %v128 = vmul.f32 %v124, %v127
      %v129 = vmul.f32 %v126, %v127
      %v130 = vsub.f32 %v121, %v128
      %v131 = vsub.f32 %v122, %v129
      %v132 = vmul.f32 %v130, %v130
      %v133 = vmul.f32 %v131, %v131
      %134 = vadd.xlane.f32.xlu0 %v132
      %v135 = vpop.xlane.xlu0 %134
      %136 = vadd.xlane.f32.xlu0 %v133
      %v137 = vpop.xlane.xlu0 %136
      %v138 = vmul.f32 %v135, %v127
      %v139 = vmul.f32 %v137, %v127
      %v140 = vadd.f32 %v138, 1e-05
      %v141 = vadd.f32 %v139, 1e-05
      %v142 = vrsqrt.pop %v140
      %v143 = vrsqrt.pop %v141
      %v144 = vmul.f32 %v130, %v142
      %v145 = vmul.f32 %v131, %v143
      %v146 = vld [vmem:[#allocation7] sm:$0x1]
      %v148 = vlaneseq
      %v149 = vshrl.u32 %v148, 7
      %v150 = vsub.s32 0, %v149
      %v151 = vrot.slane %v146, %v150
      %v153 = vmul.f32 %v144, %v151
      %v154 = vmul.f32 %v145, %v151
      %v155 = vld [vmem:[#allocation9] sm:$0x1]
      %v157 = vlaneseq
      %v158 = vshrl.u32 %v157, 7
      %v159 = vsub.s32 0, %v158
      %v160 = vrot.slane %v155, %v159
      %v162 = vadd.f32 %v153, %v160
      %v163 = vadd.f32 %v154, %v160
      %v164 = vpack.c.bf16 %v163, %v162
      %165 = vst [vmem:[#allocation3] sm:$0xff] %v164
      %166 = vst [vmem:[#allocation2] sm:$0xff] 0.0
      %167 = vst [vmem:[#allocation2 + $0x8] sm:$0xff] 0.0
    $region61: #{clip_image_encoder_forward.13} parent=1 // pred_fallthru
      _
    %v168 = vld [vmem:[#allocation3] sm:$0xff]
    %v169 = vld [vmem:[#allocation10] sm:$0xff]
    %v170 = vld [vmem:[#allocation10 + $0x8] sm:$0xff]
    %v171 = vld [vmem:[#allocation10 + $0x10] sm:$0xff]
    %v172 = vld [vmem:[#allocation10 + $0x18] sm:$0xff]
    %v173 = vld [vmem:[#allocation10 + $0x20] sm:$0xff]
    %v174 = vld [vmem:[#allocation10 + $0x28] sm:$0xff]
    %v175 = vld [vmem:[#allocation10 + $0x30] sm:$0xff]
    %v176 = vld [vmem:[#allocation10 + $0x38] sm:$0xff]
    %v177 = vld [vmem:[#allocation10 + $0x40] sm:$0xff]
    %v178 = vld [vmem:[#allocation10 + $0x48] sm:$0xff]
    %v179 = vld [vmem:[#allocation10 + $0x50] sm:$0xff]
    %v180 = vld [vmem:[#allocation10 + $0x58] sm:$0xff]
    %v181 = vld [vmem:[#allocation10 + $0x60] sm:$0xff]
    %v182 = vld [vmem:[#allocation10 + $0x68] sm:$0xff]
    %v183 = vld [vmem:[#allocation10 + $0x70] sm:$0xff]
    %v184 = vld [vmem:[#allocation10 + $0x78] sm:$0xff]
    %v185 = vld [vmem:[#allocation10 + $0x80] sm:$0xff]
    %v186 = vld [vmem:[#allocation10 + $0x88] sm:$0xff]
    %v187 = vld [vmem:[#allocation10 + $0x90] sm:$0xff]
    %v188 = vld [vmem:[#allocation10 + $0x98] sm:$0xff]
    %v189 = vld [vmem:[#allocation10 + $0xa0] sm:$0xff]
    %v190 = vld [vmem:[#allocation10 + $0xa8] sm:$0xff]
    %v191 = vld [vmem:[#allocation10 + $0xb0] sm:$0xff]
    %v192 = vld [vmem:[#allocation10 + $0xb8] sm:$0xff]
    %v193 = vld [vmem:[#allocation10 + $0xc0] sm:$0xff]
    %v194 = vld [vmem:[#allocation10 + $0xc8] sm:$0xff]
    %v195 = vld [vmem:[#allocation10 + $0xd0] sm:$0xff]
    %v196 = vld [vmem:[#allocation10 + $0xd8] sm:$0xff]
    %v197 = vld [vmem:[#allocation10 + $0xe0] sm:$0xff]
    %v198 = vld [vmem:[#allocation10 + $0xe8] sm:$0xff]
    %v199 = vld [vmem:[#allocation10 + $0xf0] sm:$0xff]
    %v200 = vld [vmem:[#allocation10 + $0xf8] sm:$0xff]
    %v201 = vld [vmem:[#allocation12] sm:$0xf]
    %v203 = vlaneseq
    %v204 = vshrl.u32 %v203, 7
    %v205 = vsub.s32 0, %v204
    %v206 = vrot.slane %v201, %v205
    %v207 = vlaneseq
    %v208 = vshrl.u32 %v207, 7
    %v209 = vsub.s32 1, %v208
    %v210 = vrot.slane %v201, %v209
    %v211 = vlaneseq
    %v212 = vshrl.u32 %v211, 7
    %v213 = vsub.s32 2, %v212
    %v214 = vrot.slane %v201, %v213
    %v215 = vlaneseq
    %v216 = vshrl.u32 %v215, 7
    %v217 = vsub.s32 3, %v216
    %v218 = vrot.slane %v201, %v217
    %v255 = vunpack.c.l.b16 %v169
    %v256 = vunpack.c.h.b16 %v169
    %v257 = vunpack.c.l.b16 %v170
    %v258 = vunpack.c.h.b16 %v170
    %v259 = vunpack.c.l.b16 %v171
    %v260 = vunpack.c.h.b16 %v171
    %v261 = vunpack.c.l.b16 %v172
    %v262 = vunpack.c.h.b16 %v172
    %v263 = vunpack.c.l.b16 %v173
    %v264 = vunpack.c.h.b16 %v173
    %v265 = vunpack.c.l.b16 %v174
    %v266 = vunpack.c.h.b16 %v174
    %v267 = vunpack.c.l.b16 %v175
    %v268 = vunpack.c.h.b16 %v175
    %v269 = vunpack.c.l.b16 %v176
    %v270 = vunpack.c.h.b16 %v176
    %v271 = vunpack.c.l.b16 %v177
    %v272 = vunpack.c.h.b16 %v177
    %v273 = vunpack.c.l.b16 %v178
    %v274 = vunpack.c.h.b16 %v178
    %v275 = vunpack.c.l.b16 %v179
    %v276 = vunpack.c.h.b16 %v179
    %v277 = vunpack.c.l.b16 %v180
    %v278 = vunpack.c.h.b16 %v180
    %v279 = vunpack.c.l.b16 %v181
    %v280 = vunpack.c.h.b16 %v181
    %v281 = vunpack.c.l.b16 %v182
    %v282 = vunpack.c.h.b16 %v182
    %v283 = vunpack.c.l.b16 %v183
    %v284 = vunpack.c.h.b16 %v183
    %v285 = vunpack.c.l.b16 %v184
    %v286 = vunpack.c.h.b16 %v184
    %v287 = vunpack.c.l.b16 %v185
    %v288 = vunpack.c.h.b16 %v185
    %v289 = vunpack.c.l.b16 %v186
    %v290 = vunpack.c.h.b16 %v186
    %v291 = vunpack.c.l.b16 %v187
    %v292 = vunpack.c.h.b16 %v187
    %v293 = vunpack.c.l.b16 %v188
    %v294 = vunpack.c.h.b16 %v188
    %v295 = vunpack.c.l.b16 %v189
    %v296 = vunpack.c.h.b16 %v189
    %v297 = vunpack.c.l.b16 %v190
    %v298 = vunpack.c.h.b16 %v190
    %v299 = vunpack.c.l.b16 %v191
    %v300 = vunpack.c.h.b16 %v191
    %v301 = vunpack.c.l.b16 %v192
    %v302 = vunpack.c.h.b16 %v192
    %v303 = vunpack.c.l.b16 %v193
    %v304 = vunpack.c.h.b16 %v193
    %v305 = vunpack.c.l.b16 %v194
    %v306 = vunpack.c.h.b16 %v194
    %v307 = vunpack.c.l.b16 %v195
    %v308 = vunpack.c.h.b16 %v195
    %v309 = vunpack.c.l.b16 %v196
    %v310 = vunpack.c.h.b16 %v196
    %v311 = vunpack.c.l.b16 %v197
    %v312 = vunpack.c.h.b16 %v197
    %v313 = vunpack.c.l.b16 %v198
    %v314 = vunpack.c.h.b16 %v198
    %v315 = vunpack.c.l.b16 %v199
    %v316 = vunpack.c.h.b16 %v199
    %v317 = vunpack.c.l.b16 %v200
    %v318 = vunpack.c.h.b16 %v200
    %v319 = vpack.c.b16 %v259, %v255
    %v320 = vpack.c.b16 %v260, %v256
    %v321 = vpack.c.b16 %v261, %v257
    %v322 = vpack.c.b16 %v262, %v258
    %v323 = vpack.c.b16 %v267, %v263
    %v324 = vpack.c.b16 %v268, %v264
    %v325 = vpack.c.b16 %v269, %v265
    %v326 = vpack.c.b16 %v270, %v266
    %v327 = vpack.c.b16 %v275, %v271
    %v328 = vpack.c.b16 %v276, %v272
    %v329 = vpack.c.b16 %v277, %v273
    %v330 = vpack.c.b16 %v278, %v274
    %v331 = vpack.c.b16 %v283, %v279
    %v332 = vpack.c.b16 %v284, %v280
    %v333 = vpack.c.b16 %v285, %v281
    %v334 = vpack.c.b16 %v286, %v282
    %v335 = vpack.c.b16 %v291, %v287
    %v336 = vpack.c.b16 %v292, %v288
    %v337 = vpack.c.b16 %v293, %v289
    %v338 = vpack.c.b16 %v294, %v290
    %v339 = vpack.c.b16 %v299, %v295
    %v340 = vpack.c.b16 %v300, %v296
    %v341 = vpack.c.b16 %v301, %v297
    %v342 = vpack.c.b16 %v302, %v298
    %v343 = vpack.c.b16 %v307, %v303
    %v344 = vpack.c.b16 %v308, %v304
    %v345 = vpack.c.b16 %v309, %v305
    %v346 = vpack.c.b16 %v310, %v306
    %v347 = vpack.c.b16 %v315, %v311
    %v348 = vpack.c.b16 %v316, %v312
    %v349 = vpack.c.b16 %v317, %v313
    %v350 = vpack.c.b16 %v318, %v314
    %383 = vmatprep.subr.bf16.mxu0 %v320
    %384 = vmatpush1.bf16.msra.mxu0 %v319
    %385 = vmatprep.subr.bf16.mxu0 %v324
    %386 = vmatpush1.bf16.msra.mxu0 %v323
    %387 = vmatprep.subr.bf16.mxu0 %v328
    %388 = vmatpush1.bf16.msra.mxu0 %v327
    %389 = vmatprep.subr.bf16.mxu0 %v332
    %390 = vmatpush1.bf16.msra.mxu0 %v331
    %391 = vmatprep.subr.bf16.mxu0 %v336
    %392 = vmatpush1.bf16.msra.mxu0 %v335
    %393 = vmatprep.subr.bf16.mxu0 %v340
    %394 = vmatpush1.bf16.msra.mxu0 %v339
    %395 = vmatprep.subr.bf16.mxu0 %v344
    %396 = vmatpush1.bf16.msra.mxu0 %v343
    %397 = vmatprep.subr.bf16.mxu0 %v348
    %398 = vmatpush1.bf16.msra.mxu0 %v347
    %399 = vmatprep.subr.bf16.mxu0 0
    %400 = vmatpush1.bf16.msra.mxu0 0
    %401 = vmatprep.subr.bf16.mxu0 0
    %402 = vmatpush1.bf16.msra.mxu0 0
    %403 = vmatprep.subr.bf16.mxu0 0
    %404 = vmatpush1.bf16.msra.mxu0 0
    %405 = vmatprep.subr.bf16.mxu0 0
    %406 = vmatpush1.bf16.msra.mxu0 0
    %407 = vmatprep.subr.bf16.mxu0 0
    %408 = vmatpush1.bf16.msra.mxu0 0
    %409 = vmatprep.subr.bf16.mxu0 0
    %410 = vmatpush1.bf16.msra.mxu0 0
    %411 = vmatprep.subr.bf16.mxu0 0
    %412 = vmatpush1.bf16.msra.mxu0 0
    %413 = vmatprep.subr.bf16.mxu0 0
    %414 = vmatpush1.bf16.msra.mxu0 0
    %415 = vmatprep.mubr.bf16.mxu0 0
    %416 = vmatmul.mubr.bf16.gmra.mrb[0].mxu0 %v168
    %v417 = vpop.f32.mrb[0].mxu0
    %v418 = vadd.f32 %v206, %v417
    %v419 = vpop.f32.mrb[0].mxu0
    %v420 = vadd.f32 %v210, %v419
    %v421 = vpop.f32.mrb[0].mxu0
    %v422 = vadd.f32 %v206, %v421
    %v423 = vpop.f32.mrb[0].mxu0
    %v424 = vadd.f32 %v210, %v423
    %425 = vdwg.mxu0
    %426 = vmatprep.subr.bf16.mxu0 %v322
    %427 = vmatpush1.bf16.msra.mxu0 %v321
    %428 = vmatprep.subr.bf16.mxu0 %v326
    %429 = vmatpush1.bf16.msra.mxu0 %v325
    %430 = vmatprep.subr.bf16.mxu0 %v330
    %431 = vmatpush1.bf16.msra.mxu0 %v329
    %432 = vmatprep.subr.bf16.mxu0 %v334
    %433 = vmatpush1.bf16.msra.mxu0 %v333
    %434 = vmatprep.subr.bf16.mxu0 %v338
    %435 = vmatpush1.bf16.msra.mxu0 %v337
    %436 = vmatprep.subr.bf16.mxu0 %v342
    %437 = vmatpush1.bf16.msra.mxu0 %v341
    %438 = vmatprep.subr.bf16.mxu0 %v346
    %439 = vmatpush1.bf16.msra.mxu0 %v345
    %440 = vmatprep.subr.bf16.mxu0 %v350
    %441 = vmatpush1.bf16.msra.mxu0 %v349
    %442 = vmatprep.subr.bf16.mxu0 0
    %443 = vmatpush1.bf16.msra.mxu0 0
    %444 = vmatprep.subr.bf16.mxu0 0
    %445 = vmatpush1.bf16.msra.mxu0 0
    %446 = vmatprep.subr.bf16.mxu0 0
    %447 = vmatpush1.bf16.msra.mxu0 0
    %448 = vmatprep.subr.bf16.mxu0 0
    %449 = vmatpush1.bf16.msra.mxu0 0
    %450 = vmatprep.subr.bf16.mxu0 0
    %451 = vmatpush1.bf16.msra.mxu0 0
    %452 = vmatprep.subr.bf16.mxu0 0
    %453 = vmatpush1.bf16.msra.mxu0 0
    %454 = vmatprep.subr.bf16.mxu0 0
    %455 = vmatpush1.bf16.msra.mxu0 0
    %456 = vmatprep.subr.bf16.mxu0 0
    %457 = vmatpush1.bf16.msra.mxu0 0
    %458 = vmatprep.mubr.bf16.mxu0 0
    %459 = vmatmul.mubr.bf16.gmra.mrb[0].mxu0 %v168
    %v460 = vpop.f32.mrb[0].mxu0
    %v461 = vadd.f32 %v214, %v460
    %v462 = vpop.f32.mrb[0].mxu0
    %v463 = vadd.f32 %v218, %v462
    %v464 = vpop.f32.mrb[0].mxu0
    %v465 = vadd.f32 %v214, %v464
    %v466 = vpop.f32.mrb[0].mxu0
    %v467 = vadd.f32 %v218, %v466
    %468 = vdwg.mxu0
    %v469 = vmul.f32 %v418, 1.702
    %v470 = vmul.f32 %v420, 1.702
    %v471 = vmul.f32 %v461, 1.702
    %v472 = vmul.f32 %v463, 1.702
    %v473 = vmul.f32 %v422, 1.702
    %v474 = vmul.f32 %v424, 1.702
    %v475 = vmul.f32 %v465, 1.702
    %v476 = vmul.f32 %v467, 1.702
    %v477 = vxor.u32 %v469, 2147483648
    %v478 = vxor.u32 %v470, 2147483648
    %v479 = vxor.u32 %v471, 2147483648
    %v480 = vxor.u32 %v472, 2147483648
    %v481 = vxor.u32 %v473, 2147483648
    %v482 = vxor.u32 %v474, 2147483648
    %v483 = vxor.u32 %v475, 2147483648
    %v484 = vxor.u32 %v476, 2147483648
    %v485 = vmul.f32 %v477, 1.442695
    %v486 = vpow.pop %v485
    %v487 = vmul.f32 %v478, 1.442695
    %v488 = vpow.pop %v487
    %v489 = vmul.f32 %v479, 1.442695
    %v490 = vpow.pop %v489
    %v491 = vmul.f32 %v480, 1.442695
    %v492 = vpow.pop %v491
    %v493 = vmul.f32 %v481, 1.442695
    %v494 = vpow.pop %v493
    %v495 = vmul.f32 %v482, 1.442695
    %v496 = vpow.pop %v495
    %v497 = vmul.f32 %v483, 1.442695
    %v498 = vpow.pop %v497
    %v499 = vmul.f32 %v484, 1.442695
    %v500 = vpow.pop %v499
    %v501 = vadd.f32 %v486, 1.0
    %v502 = vadd.f32 %v488, 1.0
    %v503 = vadd.f32 %v490, 1.0
    %v504 = vadd.f32 %v492, 1.0
    %v505 = vadd.f32 %v494, 1.0
    %v506 = vadd.f32 %v496, 1.0
    %v507 = vadd.f32 %v498, 1.0
    %v508 = vadd.f32 %v500, 1.0
    %v509 = vrcp.pop %v501
    %v510 = vmul.f32 1.0, %v509
    %v511 = vrcp.pop %v502
    %v512 = vmul.f32 1.0, %v511
    %v513 = vrcp.pop %v503
    %v514 = vmul.f32 1.0, %v513
    %v515 = vrcp.pop %v504
    %v516 = vmul.f32 1.0, %v515
    %v517 = vrcp.pop %v505
    %v518 = vmul.f32 1.0, %v517
    %v519 = vrcp.pop %v506
    %v520 = vmul.f32 1.0, %v519
    %v521 = vrcp.pop %v507
    %v522 = vmul.f32 1.0, %v521
    %v523 = vrcp.pop %v508
    %v524 = vmul.f32 1.0, %v523
    %v525 = vmul.f32 %v418, %v510
    %v526 = vmul.f32 %v420, %v512
    %v527 = vmul.f32 %v461, %v514
    %v528 = vmul.f32 %v463, %v516
    %v529 = vmul.f32 %v422, %v518
    %v530 = vmul.f32 %v424, %v520
    %v531 = vmul.f32 %v465, %v522
    %v532 = vmul.f32 %v467, %v524
    %v533 = vld [vmem:[#allocation2] sm:$0xff]
    %v534 = vld [vmem:[#allocation2 + $0x8] sm:$0xff]
    %v535 = vpack.c.bf16 %v529, %v525
    %v536 = vpack.c.bf16 %v530, %v526
    %v537 = vpack.c.bf16 %v531, %v527
    %v538 = vpack.c.bf16 %v532, %v528
    %v539 = vld [vmem:[#allocation13] sm:$0xf]
    %v540 = vld [vmem:[#allocation13 + $0x4] sm:$0xf]
    %v541 = vld [vmem:[#allocation13 + $0x8] sm:$0xf]
    %v542 = vld [vmem:[#allocation13 + $0xc] sm:$0xf]
    %v543 = vld [vmem:[#allocation13 + $0x10] sm:$0xf]
    %v544 = vld [vmem:[#allocation13 + $0x14] sm:$0xf]
    %v545 = vld [vmem:[#allocation13 + $0x18] sm:$0xf]
    %v546 = vld [vmem:[#allocation13 + $0x1c] sm:$0xf]
    %v547 = vld [vmem:[#allocation13 + $0x20] sm:$0xf]
    %v548 = vld [vmem:[#allocation13 + $0x24] sm:$0xf]
    %v549 = vld [vmem:[#allocation13 + $0x28] sm:$0xf]
    %v550 = vld [vmem:[#allocation13 + $0x2c] sm:$0xf]
    %v551 = vld [vmem:[#allocation13 + $0x30] sm:$0xf]
    %v552 = vld [vmem:[#allocation13 + $0x34] sm:$0xf]
    %v553 = vld [vmem:[#allocation13 + $0x38] sm:$0xf]
    %v554 = vld [vmem:[#allocation13 + $0x3c] sm:$0xf]
    %v555 = vld [vmem:[#allocation13 + $0x40] sm:$0xf]
    %v556 = vld [vmem:[#allocation13 + $0x44] sm:$0xf]
    %v557 = vld [vmem:[#allocation13 + $0x48] sm:$0xf]
    %v558 = vld [vmem:[#allocation13 + $0x4c] sm:$0xf]
    %v559 = vld [vmem:[#allocation13 + $0x50] sm:$0xf]
    %v560 = vld [vmem:[#allocation13 + $0x54] sm:$0xf]
    %v561 = vld [vmem:[#allocation13 + $0x58] sm:$0xf]
    %v562 = vld [vmem:[#allocation13 + $0x5c] sm:$0xf]
    %v563 = vld [vmem:[#allocation13 + $0x60] sm:$0xf]
    %v564 = vld [vmem:[#allocation13 + $0x64] sm:$0xf]
    %v565 = vld [vmem:[#allocation13 + $0x68] sm:$0xf]
    %v566 = vld [vmem:[#allocation13 + $0x6c] sm:$0xf]
    %v567 = vld [vmem:[#allocation13 + $0x70] sm:$0xf]
    %v568 = vld [vmem:[#allocation13 + $0x74] sm:$0xf]
    %v569 = vld [vmem:[#allocation13 + $0x78] sm:$0xf]
    %v570 = vld [vmem:[#allocation13 + $0x7c] sm:$0xf]
    %v571 = vld [vmem:[#allocation13 + $0x80] sm:$0xf]
    %v572 = vld [vmem:[#allocation13 + $0x84] sm:$0xf]
    %v573 = vld [vmem:[#allocation13 + $0x88] sm:$0xf]
    %v574 = vld [vmem:[#allocation13 + $0x8c] sm:$0xf]
    %v575 = vld [vmem:[#allocation13 + $0x90] sm:$0xf]
    %v576 = vld [vmem:[#allocation13 + $0x94] sm:$0xf]
    %v577 = vld [vmem:[#allocation13 + $0x98] sm:$0xf]
    %v578 = vld [vmem:[#allocation13 + $0x9c] sm:$0xf]
    %v579 = vld [vmem:[#allocation13 + $0xa0] sm:$0xf]
    %v580 = vld [vmem:[#allocation13 + $0xa4] sm:$0xf]
    %v581 = vld [vmem:[#allocation13 + $0xa8] sm:$0xf]
    %v582 = vld [vmem:[#allocation13 + $0xac] sm:$0xf]
    %v583 = vld [vmem:[#allocation13 + $0xb0] sm:$0xf]
    %v584 = vld [vmem:[#allocation13 + $0xb4] sm:$0xf]
    %v585 = vld [vmem:[#allocation13 + $0xb8] sm:$0xf]
    %v586 = vld [vmem:[#allocation13 + $0xbc] sm:$0xf]
    %v587 = vld [vmem:[#allocation13 + $0xc0] sm:$0xf]
    %v588 = vld [vmem:[#allocation13 + $0xc4] sm:$0xf]
    %v589 = vld [vmem:[#allocation13 + $0xc8] sm:$0xf]
    %v590 = vld [vmem:[#allocation13 + $0xcc] sm:$0xf]
    %v591 = vld [vmem:[#allocation13 + $0xd0] sm:$0xf]
    %v592 = vld [vmem:[#allocation13 + $0xd4] sm:$0xf]
    %v593 = vld [vmem:[#allocation13 + $0xd8] sm:$0xf]
    %v594 = vld [vmem:[#allocation13 + $0xdc] sm:$0xf]
    %v595 = vld [vmem:[#allocation13 + $0xe0] sm:$0xf]
    %v596 = vld [vmem:[#allocation13 + $0xe4] sm:$0xf]
    %v597 = vld [vmem:[#allocation13 + $0xe8] sm:$0xf]
    %v598 = vld [vmem:[#allocation13 + $0xec] sm:$0xf]
    %v599 = vld [vmem:[#allocation13 + $0xf0] sm:$0xf]
    %v600 = vld [vmem:[#allocation13 + $0xf4] sm:$0xf]
    %v601 = vld [vmem:[#allocation13 + $0xf8] sm:$0xf]
    %v602 = vld [vmem:[#allocation13 + $0xfc] sm:$0xf]
    %v667 = vunpack.c.l.b16 %v539
    %v668 = vunpack.c.l.b16 %v540
    %v669 = vunpack.c.l.b16 %v541
    %v670 = vunpack.c.l.b16 %v542
    %v671 = vunpack.c.l.b16 %v543
    %v672 = vunpack.c.l.b16 %v544
    %v673 = vunpack.c.l.b16 %v545
    %v674 = vunpack.c.l.b16 %v546
    %v675 = vunpack.c.l.b16 %v547
    %v676 = vunpack.c.l.b16 %v548
    %v677 = vunpack.c.l.b16 %v549
    %v678 = vunpack.c.l.b16 %v550
    %v679 = vunpack.c.l.b16 %v551
    %v680 = vunpack.c.l.b16 %v552
    %v681 = vunpack.c.l.b16 %v553
    %v682 = vunpack.c.l.b16 %v554
    %v683 = vunpack.c.l.b16 %v555
    %v684 = vunpack.c.l.b16 %v556
    %v685 = vunpack.c.l.b16 %v557
    %v686 = vunpack.c.l.b16 %v558
    %v687 = vunpack.c.l.b16 %v559
    %v688 = vunpack.c.l.b16 %v560
    %v689 = vunpack.c.l.b16 %v561
    %v690 = vunpack.c.l.b16 %v562
    %v691 = vunpack.c.l.b16 %v563
    %v692 = vunpack.c.l.b16 %v564
    %v693 = vunpack.c.l.b16 %v565
    %v694 = vunpack.c.l.b16 %v566
    %v695 = vunpack.c.l.b16 %v567
    %v696 = vunpack.c.l.b16 %v568
    %v697 = vunpack.c.l.b16 %v569
    %v698 = vunpack.c.l.b16 %v570
    %v699 = vunpack.c.l.b16 %v571
    %v700 = vunpack.c.l.b16 %v572
    %v701 = vunpack.c.l.b16 %v573
    %v702 = vunpack.c.l.b16 %v574
    %v703 = vunpack.c.l.b16 %v575
    %v704 = vunpack.c.l.b16 %v576
    %v705 = vunpack.c.l.b16 %v577
    %v706 = vunpack.c.l.b16 %v578
    %v707 = vunpack.c.l.b16 %v579
    %v708 = vunpack.c.l.b16 %v580
    %v709 = vunpack.c.l.b16 %v581
    %v710 = vunpack.c.l.b16 %v582
    %v711 = vunpack.c.l.b16 %v583
    %v712 = vunpack.c.l.b16 %v584
    %v713 = vunpack.c.l.b16 %v585
    %v714 = vunpack.c.l.b16 %v586
    %v715 = vunpack.c.l.b16 %v587
    %v716 = vunpack.c.l.b16 %v588
    %v717 = vunpack.c.l.b16 %v589
    %v718 = vunpack.c.l.b16 %v590
    %v719 = vunpack.c.l.b16 %v591
    %v720 = vunpack.c.l.b16 %v592
    %v721 = vunpack.c.l.b16 %v593
    %v722 = vunpack.c.l.b16 %v594
    %v723 = vunpack.c.l.b16 %v595
    %v724 = vunpack.c.l.b16 %v596
    %v725 = vunpack.c.l.b16 %v597
    %v726 = vunpack.c.l.b16 %v598
    %v727 = vunpack.c.l.b16 %v599
    %v728 = vunpack.c.l.b16 %v600
    %v729 = vunpack.c.l.b16 %v601
    %v730 = vunpack.c.l.b16 %v602
    %v731 = vpack.c.b16 %v668, %v667
    %v732 = vpack.c.b16 %v670, %v669
    %v733 = vpack.c.b16 %v672, %v671
    %v734 = vpack.c.b16 %v674, %v673
    %v735 = vpack.c.b16 %v676, %v675
    %v736 = vpack.c.b16 %v678, %v677
    %v737 = vpack.c.b16 %v680, %v679
    %v738 = vpack.c.b16 %v682, %v681
    %v739 = vpack.c.b16 %v684, %v683
    %v740 = vpack.c.b16 %v686, %v685
    %v741 = vpack.c.b16 %v688, %v687
    %v742 = vpack.c.b16 %v690, %v689
    %v743 = vpack.c.b16 %v692, %v691
    %v744 = vpack.c.b16 %v694, %v693
    %v745 = vpack.c.b16 %v696, %v695
    %v746 = vpack.c.b16 %v698, %v697
    %v747 = vpack.c.b16 %v700, %v699
    %v748 = vpack.c.b16 %v702, %v701
    %v749 = vpack.c.b16 %v704, %v703
    %v750 = vpack.c.b16 %v706, %v705
    %v751 = vpack.c.b16 %v708, %v707
    %v752 = vpack.c.b16 %v710, %v709
    %v753 = vpack.c.b16 %v712, %v711
    %v754 = vpack.c.b16 %v714, %v713
    %v755 = vpack.c.b16 %v716, %v715
    %v756 = vpack.c.b16 %v718, %v717
    %v757 = vpack.c.b16 %v720, %v719
    %v758 = vpack.c.b16 %v722, %v721
    %v759 = vpack.c.b16 %v724, %v723
    %v760 = vpack.c.b16 %v726, %v725
    %v761 = vpack.c.b16 %v728, %v727
    %v762 = vpack.c.b16 %v730, %v729
    %795 = vmatprep.subr.bf16.mxu0 0
    %796 = vmatpush1.bf16.msra.mxu0 %v731
    %797 = vmatprep.subr.bf16.mxu0 0
    %798 = vmatpush1.bf16.msra.mxu0 %v732
    %799 = vmatprep.subr.bf16.mxu0 0
    %800 = vmatpush1.bf16.msra.mxu0 %v733
    %801 = vmatprep.subr.bf16.mxu0 0
    %802 = vmatpush1.bf16.msra.mxu0 %v734
    %803 = vmatprep.subr.bf16.mxu0 0
    %804 = vmatpush1.bf16.msra.mxu0 %v735
    %805 = vmatprep.subr.bf16.mxu0 0
    %806 = vmatpush1.bf16.msra.mxu0 %v736
    %807 = vmatprep.subr.bf16.mxu0 0
    %808 = vmatpush1.bf16.msra.mxu0 %v737
    %809 = vmatprep.subr.bf16.mxu0 0
    %810 = vmatpush1.bf16.msra.mxu0 %v738
    %811 = vmatprep.subr.bf16.mxu0 0
    %812 = vmatpush1.bf16.msra.mxu0 %v739
    %813 = vmatprep.subr.bf16.mxu0 0
    %814 = vmatpush1.bf16.msra.mxu0 %v740
    %815 = vmatprep.subr.bf16.mxu0 0
    %816 = vmatpush1.bf16.msra.mxu0 %v741
    %817 = vmatprep.subr.bf16.mxu0 0
    %818 = vmatpush1.bf16.msra.mxu0 %v742
    %819 = vmatprep.subr.bf16.mxu0 0
    %820 = vmatpush1.bf16.msra.mxu0 %v743
    %821 = vmatprep.subr.bf16.mxu0 0
    %822 = vmatpush1.bf16.msra.mxu0 %v744
    %823 = vmatprep.subr.bf16.mxu0 0
    %824 = vmatpush1.bf16.msra.mxu0 %v745
    %825 = vmatprep.subr.bf16.mxu0 0
    %826 = vmatpush1.bf16.msra.mxu0 %v746
    %827 = vmatprep.mubr.bf16.mxu0 %v536
    %828 = vmatmul.mubr.bf16.gmra.mrb[0].mxu0 %v535
    %v829 = vpop.f32.mrb[0].mxu0
    %v830 = vadd.f32 0.0, %v829
    %v831 = vpop.f32.mrb[0].mxu0
    %v832 = vpop.f32.mrb[0].mxu0
    %v833 = vadd.f32 0.0, %v832
    %v834 = vpop.f32.mrb[0].mxu0
    %835 = vdwg.mxu0
    %836 = vmatprep.subr.bf16.mxu0 0
    %837 = vmatpush1.bf16.msra.mxu0 %v747
    %838 = vmatprep.subr.bf16.mxu0 0
    %839 = vmatpush1.bf16.msra.mxu0 %v748
    %840 = vmatprep.subr.bf16.mxu0 0
    %841 = vmatpush1.bf16.msra.mxu0 %v749
    %842 = vmatprep.subr.bf16.mxu0 0
    %843 = vmatpush1.bf16.msra.mxu0 %v750
    %844 = vmatprep.subr.bf16.mxu0 0
    %845 = vmatpush1.bf16.msra.mxu0 %v751
    %846 = vmatprep.subr.bf16.mxu0 0
    %847 = vmatpush1.bf16.msra.mxu0 %v752
    %848 = vmatprep.subr.bf16.mxu0 0
    %849 = vmatpush1.bf16.msra.mxu0 %v753
    %850 = vmatprep.subr.bf16.mxu0 0
    %851 = vmatpush1.bf16.msra.mxu0 %v754
    %852 = vmatprep.subr.bf16.mxu0 0
    %853 = vmatpush1.bf16.msra.mxu0 %v755
    %854 = vmatprep.subr.bf16.mxu0 0
    %855 = vmatpush1.bf16.msra.mxu0 %v756
    %856 = vmatprep.subr.bf16.mxu0 0
    %857 = vmatpush1.bf16.msra.mxu0 %v757
    %858 = vmatprep.subr.bf16.mxu0 0
    %859 = vmatpush1.bf16.msra.mxu0 %v758
    %860 = vmatprep.subr.bf16.mxu0 0
    %861 = vmatpush1.bf16.msra.mxu0 %v759
    %862 = vmatprep.subr.bf16.mxu0 0
    %863 = vmatpush1.bf16.msra.mxu0 %v760
    %864 = vmatprep.subr.bf16.mxu0 0
    %865 = vmatpush1.bf16.msra.mxu0 %v761
    %866 = vmatprep.subr.bf16.mxu0 0
    %867 = vmatpush1.bf16.msra.mxu0 %v762
    %868 = vmatprep.mubr.bf16.mxu0 %v538
    %869 = vmatmul.mubr.bf16.gmra.mrb[0].mxu0 %v537
    %v870 = vpop.f32.mrb[0].mxu0
    %v871 = vadd.f32 %v830, %v870
    %v872 = vpop.f32.mrb[0].mxu0
    %v873 = vpop.f32.mrb[0].mxu0
    %v874 = vadd.f32 %v833, %v873
    %v875 = vpop.f32.mrb[0].mxu0
    %876 = vdwg.mxu0
    %v877 = vadd.f32 %v533, %v871
    %v878 = vadd.f32 %v534, %v874
    %879 = vst [vmem:[#allocation2] sm:$0xff] %v877
    %880 = vst [vmem:[#allocation2 + $0x8] sm:$0xff] %v878
    // Predicated region
    $region62: #{clip_image_encoder_forward.13} parent=1 // pred_check
      %p881 = pneg %p115
    $region63: #{clip_image_encoder_forward.13} parent=1 // pred_check_branch
      %883 = sbr.rel (%p881) target = $region65
    $region64: #{clip_image_encoder_forward.13} parent=1 // pred_region
      %v884 = vld [vmem:[#allocation2] sm:$0xff]
      %v885 = vld [vmem:[#allocation2 + $0x8] sm:$0xff]
      %v886 = vld [vmem:[#allocation15] sm:$0x1]
      %v888 = vlaneseq
      %v889 = vshrl.u32 %v888, 7
      %v890 = vsub.s32 0, %v889
      %v891 = vrot.slane %v886, %v890
      %v893 = vadd.f32 %v884, %v891
      %v894 = vadd.f32 %v885, %v891
      %v895 = vld [vmem:[#allocation4] sm:$0xf]
      %v896 = vld [vmem:[#allocation4 + $0x4] sm:$0xf]
      %v897 = vunpack.c.l.bf16 %v895
      %v898 = vunpack.c.l.bf16 %v896
      %v899 = vadd.f32 %v893, %v897
      %v900 = vadd.f32 %v894, %v898
      %v901 = vpack.c.bf16 %v900, %v899
      %v903 = vunpack.c.l.b16 %v901
      %v904 = vunpack.c.h.b16 %v901
      %v905 = vpack.c.b16 %v903, %v903
      %v906 = vpack.c.b16 %v904, %v904
      %909 = vst [vmem:[#allocation16] sm:$0xf] %v905
      %910 = vst [vmem:[#allocation16 + $0x4] sm:$0xf] %v906
    $region65: #{clip_image_encoder_forward.13} parent=1 // pred_fallthru
      _
    // Predicated region
    $region66: #{clip_image_encoder_forward.13} parent=1 // pred_check
      _
    $region67: #{clip_image_encoder_forward.13} parent=1 // pred_check_branch
      %912 = sbr.rel (0) target = $region69
    $region68: #{clip_image_encoder_forward.13} parent=1 // pred_region
      %s914 = ssub.s32 128, 128
      %915 = vsyncadd [#allocation6], %s914
      %s916 = sshll.u32 [#allocation16], 4
      %s917 = int_to_ptr.vmem [resolvable:$true] %s916
      %922 = dma.vmem_to_hbm [thread:$0]  %s917, 128, %s7, [#allocation6], 64, 64, 4
    $region69: #{clip_image_encoder_forward.13} parent=1 // pred_fallthru
      _
    // Predicated region
    $region70: #{clip_image_encoder_forward.13} parent=1 // pred_check
      _
    $region71: #{clip_image_encoder_forward.13} parent=1 // pred_check_branch
      %924 = sbr.rel (0) target = $region73
    $region72: #{clip_image_encoder_forward.13} parent=1 // pred_region
      %925 = dma.done [#allocation6], 128
    $region73: #{clip_image_encoder_forward.13} parent=1 // pred_fallthru
      _
    %926 = vsyncpa [#allocation5], 1
    %927 = vsyncpa [#allocation8], 1
    %928 = vsyncpa [#allocation11], 1
    %929 = vsyncpa [#allocation14], 1
    %930 = vsyncpa [#allocation6], 1

</llo_original>
